<compile_context>
chip_gen: v5e
topology: v5e:2x2
jax: 0.10.0
libtpu: 0.0.40
codegen_flags: <defaults>
</compile_context>

<pallas_src>
import functools

import jax
import jax.numpy as jnp
from jax import lax
from jax.experimental import pallas as pl
from jax.experimental.pallas import tpu as pltpu

BN_EPS = 1e-5


def _round_up(x, m):
    return (x + m - 1) // m * m


def _largest_divisor_leq(n, cap):
    for d in range(min(n, cap), 0, -1):
        if n % d == 0:
            return d
    return 1


@functools.lru_cache(maxsize=None)
def _vmem_limit():
    # ~64 MiB on 128-MiB-VMEM chips (v5e/v6e), ~32 MiB on v7x (64 MiB physical).
    try:
        cap = getattr(pltpu.get_tpu_info(), "vmem_capacity_bytes", None)
        if cap:
            return int(min(max(cap // 2, 32 * 2**20), 64 * 2**20))
    except Exception:
        pass
    return 32 * 2**20


# ---------------------------------------------------------------------------
# Fused tiled MXU matmul:  out = epi( pro(A[:, :K]) @ W )
#   pro(a)  = relu(a * scale_in + bias_in)      (optional, per-K-tile)
#   epi(acc)= relu(acc * scale_out + bias_out)  (optional, per-N-tile)
# A may be wider than W's K (channel-padded feature buffer); zero-padded weight
# rows / zero prologue scale+bias neutralize the extra columns.
# ---------------------------------------------------------------------------

def _fused_mm_kernel(a_ref, w_ref, si_ref, bi_ref, so_ref, bo_ref, o_ref,
                     acc_ref, *, has_pro, relu_in, has_epi, relu_out):
    k = pl.program_id(2)

    @pl.when(k == 0)
    def _():
        acc_ref[...] = jnp.zeros_like(acc_ref)

    a = a_ref[...]
    if has_pro:
        a = a.astype(jnp.float32) * si_ref[...] + bi_ref[...]
        if relu_in:
            a = jnp.maximum(a, 0.0)
        a = a.astype(jnp.bfloat16)
    acc_ref[...] += jnp.dot(a, w_ref[...], preferred_element_type=jnp.float32)

    @pl.when(k == pl.num_programs(2) - 1)
    def _():
        out = acc_ref[...]
        if has_epi:
            out = out * so_ref[...] + bo_ref[...]
            if relu_out:
                out = jnp.maximum(out, 0.0)
        o_ref[...] = out.astype(o_ref.dtype)


def fused_matmul(a, w, *, scale_in=None, bias_in=None, relu_in=False,
                 scale_out=None, bias_out=None, relu_out=False,
                 out_dtype=jnp.bfloat16):
    """Returns (M, round_up(N,128)); the padded output columns are exactly 0."""
    M, Ka = a.shape
    Kw, N = w.shape
    Np = _round_up(N, 128)

    if Ka == Kw:
        if Kw % 128 == 0:
            tk = next(c for c in (512, 256, 128) if Kw % c == 0)
        else:
            tk = Kw                      # single full-width K block (stem 7*7*3)
        Kp = Kw
    else:                                # channel-prefix read of a wider buffer
        assert Ka > Kw and Ka % 128 == 0
        tk = 128
        Kp = _round_up(Kw, 128)

    # N tile: full padded width when it fits (no re-streaming of A).
    if Np <= 512:
        tn = Np
    else:
        tn = next(c for c in (512, 256, 128) if Np % c == 0)

    # M tile: big, preferably dividing M so the (possibly huge) A buffer is
    # never physically padded/copied.
    if M <= 512:
        tm = _round_up(M, 8)
    else:
        tm = next((c for c in (512, 448, 384, 320, 256, 192, 128)
                   if M % c == 0), 256)
    Mp = _round_up(M, tm)

    a_p = a.astype(jnp.bfloat16)
    if Mp != M:
        a_p = jnp.pad(a_p, ((0, Mp - M), (0, 0)))
    w_p = jnp.pad(w.astype(jnp.bfloat16), ((0, Kp - Kw), (0, Np - N)))

    has_pro = scale_in is not None
    has_epi = scale_out is not None
    if has_pro:
        si = jnp.pad(scale_in.astype(jnp.float32), (0, Kp - Kw)).reshape(1, Kp)
        bi = jnp.pad(bias_in.astype(jnp.float32), (0, Kp - Kw)).reshape(1, Kp)
    else:
        si = jnp.zeros((1, Kp), jnp.float32)
        bi = jnp.zeros((1, Kp), jnp.float32)
    if has_epi:
        so = jnp.pad(scale_out.astype(jnp.float32), (0, Np - N)).reshape(1, Np)
        bo = jnp.pad(bias_out.astype(jnp.float32), (0, Np - N)).reshape(1, Np)
    else:
        so = jnp.ones((1, Np), jnp.float32)
        bo = jnp.zeros((1, Np), jnp.float32)

    grid = (Mp // tm, Np // tn, Kp // tk)
    kern = functools.partial(_fused_mm_kernel, has_pro=has_pro, relu_in=relu_in,
                             has_epi=has_epi, relu_out=relu_out)
    out = pl.pallas_call(
        kern,
        grid=grid,
        in_specs=[
            pl.BlockSpec((tm, tk), lambda i, j, k: (i, k)),
            pl.BlockSpec((tk, tn), lambda i, j, k: (k, j)),
            pl.BlockSpec((1, tk), lambda i, j, k: (0, k)),
            pl.BlockSpec((1, tk), lambda i, j, k: (0, k)),
            pl.BlockSpec((1, tn), lambda i, j, k: (0, j)),
            pl.BlockSpec((1, tn), lambda i, j, k: (0, j)),
        ],
        out_specs=pl.BlockSpec((tm, tn), lambda i, j, k: (i, j)),
        out_shape=jax.ShapeDtypeStruct((Mp, Np), out_dtype),
        scratch_shapes=[pltpu.VMEM((tm, tn), jnp.float32)],
        compiler_params=pltpu.CompilerParams(
            dimension_semantics=("parallel", "parallel", "arbitrary"),
            vmem_limit_bytes=_vmem_limit()),
    )(a_p, w_p, si, bi, so, bo)

    return out[:M] if Mp != M else out


# ---------------------------------------------------------------------------
# 3x3 / stride-1 / pad-1 conv without HBM im2col, row-tiled.
# The padded image is flattened to [flat_rows, C]; each grid step processes TR
# flat rows plus a halo block (fetched via a second BlockSpec on the same
# array).  The 3 column taps are stacked along channels once into an aligned
# VMEM scratch, so each row tap is one K = 3*C matmul (3 matmuls total).
# ---------------------------------------------------------------------------

def _conv3x3_kernel(xa_ref, xb_ref, w_ref, o_ref, xcomb_ref, ycat_ref, *, wp):
    tr = o_ref.shape[1]
    hb = xb_ref.shape[1]
    cin = xa_ref.shape[2]
    lrows = ycat_ref.shape[0]

    # Combine row-chunk + halo in an aligned scratch buffer.
    xcomb_ref[0:tr, :] = xa_ref[0]
    xcomb_ref[tr:tr + hb, :] = xb_ref[0]
    # Column taps dj in {0,1,2}: stack the shifted views along channels.
    for dj in range(3):
        ycat_ref[:, dj * cin:(dj + 1) * cin] = xcomb_ref[dj:dj + lrows, :]

    acc = jnp.zeros((tr, o_ref.shape[2]), jnp.float32)
    for di in range(3):
        acc += jnp.dot(ycat_ref[di * wp: di * wp + tr, :], w_ref[di],
                       preferred_element_type=jnp.float32)
    o_ref[0] = acc.astype(o_ref.dtype)


def conv3x3_same(x_nhwc, w9):
    # x: [N, H, W, Cin] bf16 ;  w9: [9, Cin, Cout]  (taps ordered di*3+dj)
    N, H, W, C = x_nhwc.shape
    Cout = w9.shape[2]
    # Padded image width rounded to a sublane-friendly multiple so the
    # per-row-group slices of the tap scratch stay aligned.
    Wp = max(16, _round_up(W + 2, 16))
    Rout = H * Wp                        # flattened output rows (junk cols cut later)
    HB = _round_up(2 * Wp + 2, 16)       # halo rows needed past a row tile
    q = max(1, min(512 // HB, pl.cdiv(Rout, HB)))
    TR = HB * q                          # output rows per grid step
    ntiles = pl.cdiv(Rout, TR)
    Rtot = ntiles * TR + HB
    L = TR + 2 * Wp

    xp = jnp.pad(x_nhwc, ((0, 0), (1, 0), (1, Wp - W - 1), (0, 0)))
    xflat = xp.reshape(N, (H + 1) * Wp, C)
    xflat = jnp.pad(xflat, ((0, 0), (0, Rtot - (H + 1) * Wp), (0, 0)))
    wg = w9.astype(jnp.bfloat16).reshape(3, 3 * C, Cout)

    kern = functools.partial(_conv3x3_kernel, wp=Wp)
    out = pl.pallas_call(
        kern,
        grid=(N, ntiles),
        in_specs=[
            pl.BlockSpec((1, TR, C), lambda n, i: (n, i, 0)),
            pl.BlockSpec((1, HB, C), lambda n, i: (n, (i + 1) * q, 0)),
            pl.BlockSpec((3, 3 * C, Cout), lambda n, i: (0, 0, 0)),
        ],
        out_specs=pl.BlockSpec((1, TR, Cout), lambda n, i: (n, i, 0)),
        out_shape=jax.ShapeDtypeStruct((N, ntiles * TR, Cout), jnp.bfloat16),
        scratch_shapes=[pltpu.VMEM((TR + HB, C), jnp.bfloat16),
                        pltpu.VMEM((L, 3 * C), jnp.bfloat16)],
        compiler_params=pltpu.CompilerParams(
            dimension_semantics=("parallel", "parallel"),
            vmem_limit_bytes=_vmem_limit()),
    )(xflat, xflat, wg)
    return out[:, :Rout, :].reshape(N, H, Wp, Cout)[:, :, :W, :]


# ---------------------------------------------------------------------------
# Stem MaxPool 3x3 / stride 2 / pad 1 — direct kernel on the NHWC tensor
# (no HBM window stack).  Relies on the input being post-ReLU (>= 0) so that
# zero padding / zero masking never changes a max.
# ---------------------------------------------------------------------------

def _maxpool_kernel(xa_ref, xb_ref, o_ref):
    trm = o_ref.shape[1]
    wout = o_ref.shape[2]
    a = xa_ref[0]                                     # (2*trm, Wh, 2, C)
    h = xb_ref[0, 0]                                  # (Wh, 2, C) halo row
    wh, c = a.shape[1], a.shape[3]

    a5 = a.reshape(trm, 2, wh, 2, c)
    r0, r1 = a5[:, 0], a5[:, 1]
    if trm > 1:
        nxt = jnp.concatenate([r0[1:], h[None]], axis=0)
    else:
        nxt = h[None]
    rmax = jnp.maximum(jnp.maximum(r0, r1), nxt)      # (trm, Wh, 2, C)

    pairmax = jnp.max(rmax[:, :wout], axis=2)         # cols 2j, 2j+1
    nxt_pair = rmax[:, 1:]                            # (trm, wout, 2, C)
    e_idx = lax.broadcasted_iota(jnp.int32, nxt_pair.shape, 2)
    # values >= 0, so masking the odd column with 0 keeps the even one (2j+2)
    evens_next = jnp.max(jnp.where(e_idx == 0, nxt_pair,
                                   jnp.zeros_like(nxt_pair)), axis=2)
    o_ref[0] = jnp.maximum(pairmax, evens_next).astype(o_ref.dtype)


def maxpool3x3_s2(x):
    N, H, W, C = x.shape                 # H, W even; x >= 0 (post-ReLU)
    Ho, Wo = H // 2, W // 2
    Wh = (W + 2) // 2
    xp = jnp.pad(x, ((0, 0), (1, 0), (1, 1), (0, 0)))     # top/left/right zeros
    xr = xp.reshape(N, H + 1, Wh, 2, C)
    trm = _largest_divisor_leq(Ho, 8)
    out = pl.pallas_call(
        _maxpool_kernel,
        grid=(N, Ho // trm),
        in_specs=[
            pl.BlockSpec((1, 2 * trm, Wh, 2, C), lambda n, i: (n, i, 0, 0, 0)),
            pl.BlockSpec((1, 1, Wh, 2, C),
                         lambda n, i: (n, 2 * trm * (i + 1), 0, 0, 0)),
        ],
        out_specs=pl.BlockSpec((1, trm, Wo, C), lambda n, i: (n, i, 0, 0)),
        out_shape=jax.ShapeDtypeStruct((N, Ho, Wo, C), x.dtype),
        compiler_params=pltpu.CompilerParams(
            dimension_semantics=("parallel", "parallel"),
            vmem_limit_bytes=_vmem_limit()),
    )(xr, xr)
    return out


# ---------------------------------------------------------------------------
# Transition: BN + ReLU fused into the 2x2/2 average pool (direct kernel, no
# HBM window stack).  The 1x1 transition conv runs afterwards on the pooled
# rows (1x1 conv and average pooling commute).
# ---------------------------------------------------------------------------

def _avgpool_bn_kernel(x_ref, s_ref, b_ref, o_ref):
    x = x_ref[...].astype(jnp.float32)               # (tro, 2, Wo, 2, C)
    x = jnp.maximum(x * s_ref[...] + b_ref[...], 0.0)
    r = jnp.sum(x, axis=1)                           # (tro, Wo, 2, C)
    r = jnp.sum(r, axis=2) * 0.25                    # (tro, Wo, C)
    o_ref[...] = r.astype(o_ref.dtype)


def avgpool2x2_bn_relu(x, scale, bias):
    N, H, W, C = x.shape                             # H, W even
    Ho, Wo = H // 2, W // 2
    s = jnp.pad(scale.astype(jnp.float32), (0, C - scale.shape[0])).reshape(1, C)
    b = jnp.pad(bias.astype(jnp.float32), (0, C - bias.shape[0])).reshape(1, C)
    xr = x.reshape(N * Ho, 2, Wo, 2, C)              # free reshape
    tro = _largest_divisor_leq(Ho, 8)
    out = pl.pallas_call(
        _avgpool_bn_kernel,
        grid=(N * Ho // tro,),
        in_specs=[
            pl.BlockSpec((tro, 2, Wo, 2, C), lambda i: (i, 0, 0, 0, 0)),
            pl.BlockSpec((1, C), lambda i: (0, 0)),
            pl.BlockSpec((1, C), lambda i: (0, 0)),
        ],
        out_specs=pl.BlockSpec((tro, Wo, C), lambda i: (i, 0, 0)),
        out_shape=jax.ShapeDtypeStruct((N * Ho, Wo, C), x.dtype),
        compiler_params=pltpu.CompilerParams(
            dimension_semantics=("parallel",),
            vmem_limit_bytes=_vmem_limit()),
    )(xr, s, b)
    return out.reshape(N, Ho, Wo, C)


# ---------------------------------------------------------------------------
# Fused global-average-pool + classifier Linear.
# ---------------------------------------------------------------------------

def _gap_linear_kernel(x_ref, w_ref, b_ref, o_ref):
    pooled = jnp.mean(x_ref[...].astype(jnp.float32), axis=1)      # [N, C]
    o_ref[...] = jnp.dot(pooled.astype(jnp.bfloat16), w_ref[...],
                         preferred_element_type=jnp.float32) + b_ref[...]


def gap_linear(x_nhwc, w, b):
    N, H, W, C = x_nhwc.shape
    cin, ncls = w.shape
    nclsp = _round_up(ncls, 128)
    x2 = x_nhwc.reshape(N, H * W, C)
    wp = jnp.pad(w.astype(jnp.bfloat16), ((0, C - cin), (0, nclsp - ncls)))
    bp = jnp.pad(b.astype(jnp.float32), (0, nclsp - ncls)).reshape(1, nclsp)
    out = pl.pallas_call(
        _gap_linear_kernel,
        grid=(1,),
        in_specs=[pl.BlockSpec((N, H * W, C), lambda i: (0, 0, 0)),
                  pl.BlockSpec((C, nclsp), lambda i: (0, 0)),
                  pl.BlockSpec((1, nclsp), lambda i: (0, 0))],
        out_specs=pl.BlockSpec((N, nclsp), lambda i: (0, 0)),
        out_shape=jax.ShapeDtypeStruct((N, nclsp), jnp.float32),
        compiler_params=pltpu.CompilerParams(vmem_limit_bytes=_vmem_limit()),
    )(x2, wp, bp)
    return out[:, :ncls]


# ---------------------------------------------------------------------------
# XLA glue: im2col for the stride-2 7x7 stem conv only (Cin = 3).
# TODO(synk): fuse the stem patch extraction into a Pallas kernel as well.
# ---------------------------------------------------------------------------

def _im2col(x, kh, kw, stride, pad):
    if pad > 0:
        x = jnp.pad(x, ((0, 0), (pad, pad), (pad, pad), (0, 0)))
    N, H, W, C = x.shape
    oh = (H - kh) // stride + 1
    ow = (W - kw) // stride + 1
    views = [x[:, i:i + stride * (oh - 1) + 1:stride,
               j:j + stride * (ow - 1) + 1:stride, :]
             for i in range(kh) for j in range(kw)]
    patches = jnp.stack(views, axis=3)                  # [N, oh, ow, kh*kw, C]
    return patches.reshape(N * oh * ow, kh * kw * C), (N, oh, ow)


# ---------------------------------------------------------------------------
# Parameter initialization (mirrors the PyTorch module's init)
# ---------------------------------------------------------------------------

def bn_params(c):
    gamma = jnp.ones((c,), jnp.float32)          # constant_(weight, 1)
    beta = jnp.zeros((c,), jnp.float32)          # constant_(bias, 0)
    running_mean = jnp.zeros((c,), jnp.float32)
    running_var = jnp.ones((c,), jnp.float32)
    scale = gamma / jnp.sqrt(running_var + BN_EPS)
    bias = beta - running_mean * scale
    return scale, bias


def conv_weight(key, cin, cout, kh, kw):
    fan_in = cin * kh * kw                       # kaiming_normal_, fan_in, gain sqrt(2)
    std = (2.0 / fan_in) ** 0.5
    return jax.random.normal(key, (kh, kw, cin, cout), jnp.float32) * std


def init_densenet_params(key, growth_rate, num_layers, num_init_features,
                         bn_size, num_classes):
    keys = iter(jax.random.split(key, 4096))
    params = {}
    params['conv0'] = conv_weight(next(keys), 3, num_init_features, 7, 7
                                  ).reshape(7 * 7 * 3, num_init_features)
    params['bn0'] = bn_params(num_init_features)

    num_features = num_init_features
    blocks = []
    for bi, nl in enumerate(num_layers):
        layers = []
        for li in range(nl):
            cin = num_features + li * growth_rate
            cmid = bn_size * growth_rate
            layers.append({
                'bn1': bn_params(cin),
                'conv1': conv_weight(next(keys), cin, cmid, 1, 1).reshape(cin, cmid),
                'bn2': bn_params(cmid),
                'conv2': conv_weight(next(keys), cmid, growth_rate, 3, 3
                                     ).reshape(9, cmid, growth_rate),
            })
        block = {'layers': layers}
        num_features += nl * growth_rate
        if bi != len(num_layers) - 1:
            block['transition'] = {
                'bn': bn_params(num_features),
                'conv': conv_weight(next(keys), num_features, num_features // 2,
                                    1, 1).reshape(num_features, num_features // 2),
            }
            num_features //= 2
        blocks.append(block)
    params['blocks'] = blocks

    bound = 1.0 / (num_features ** 0.5)
    params['fc_w'] = jax.random.uniform(next(keys), (num_features, num_classes),
                                        jnp.float32, -bound, bound)
    params['fc_b'] = jnp.zeros((num_classes,), jnp.float32)
    return params


# ---------------------------------------------------------------------------
# Forward pass (matches DenseNet.forward, eval mode, drop_rate = 0)
# ---------------------------------------------------------------------------

def densenet_forward(params, x_nchw):
    # TODO(synk): training-mode BatchNorm statistics and dropout (drop_rate>0)
    # are not implemented; eval-mode semantics are used.
    x = jnp.transpose(x_nchw, (0, 2, 3, 1)).astype(jnp.bfloat16)   # -> NHWC

    # Stem: Conv 7x7/2 pad3 + BN + ReLU (BN+ReLU fused as matmul epilogue).
    patches, (N, H, W) = _im2col(x, 7, 7, 2, 3)
    s0, b0 = params['bn0']
    feat = fused_matmul(patches, params['conv0'],
                        scale_out=s0, bias_out=b0, relu_out=True)
    c_valid = params['conv0'].shape[1]
    Cp = feat.shape[1]                       # lane-padded channel width (zeros beyond c_valid)
    x = feat.reshape(N, H, W, Cp)

    # MaxPool 3x3/2 pad1, direct kernel (input is post-ReLU, >= 0).
    x = maxpool3x3_s2(x)
    N, H, W, Cp = x.shape

    for block in params['blocks']:
        layers = block['layers']
        growth = layers[0]['conv2'].shape[2]
        c_total = c_valid + len(layers) * growth
        c_buf = _round_up(c_total, 128)

        # One channel-padded feature buffer per dense block (no per-layer concat).
        buf = x.reshape(N * H * W, Cp)
        if c_buf > Cp:
            buf = jnp.pad(buf, ((0, 0), (0, c_buf - Cp)))
        coff = c_valid
        for layer in layers:
            s1, b1 = layer['bn1']
            s2, b2 = layer['bn2']
            cmid = layer['conv1'].shape[1]
            # BN1+ReLU1 -> 1x1 conv -> BN2+ReLU2 in one fused MXU matmul that
            # reads the live channel prefix of the block buffer.
            z = fused_matmul(buf, layer['conv1'],
                             scale_in=s1, bias_in=b1, relu_in=True,
                             scale_out=s2, bias_out=b2, relu_out=True)
            if z.shape[1] != cmid:
                z = z[:, :cmid]
            z = z.reshape(N, H, W, cmid)
            y = conv3x3_same(z, layer['conv2'])              # [N, H, W, growth]
            # TODO(synk): a direct in-kernel write into the channel slice needs
            # 128-lane-aligned output blocks; use an XLA slice update instead.
            buf = lax.dynamic_update_slice(
                buf, y.reshape(N * H * W, growth), (0, coff))
            coff += growth
        c_valid = c_total
        Cp = c_buf
        x = buf.reshape(N, H, W, Cp)

        if 'transition' in block:
            st, bt = block['transition']['bn']
            # BN+ReLU fused into the 2x2 avg-pool; 1x1 conv runs on the pooled
            # rows (pooling and the 1x1 conv commute).
            xp = avgpool2x2_bn_relu(x, st, bt)
            N, H, W, _ = xp.shape
            tconv = block['transition']['conv']
            out = fused_matmul(xp.reshape(N * H * W, Cp), tconv)
            c_valid = tconv.shape[1]
            Cp = out.shape[1]
            x = out.reshape(N, H, W, Cp)

    # AdaptiveAvgPool2d((1,1)) + Flatten + Linear, fused into one kernel.
    return gap_linear(x, params['fc_w'], params['fc_b'])


# ---------------------------------------------------------------------------

if __name__ == "__main__":
    key = jax.random.PRNGKey(0)
    pkey, xkey = jax.random.split(key)

    # Small DenseNet config (keeps realistic 128-lane channel tiles but tiny
    # spatial extents / depth).
    growth_rate = 32
    num_layers = [2, 2]
    num_init_features = 64
    bn_size = 4
    num_classes = 10

    params = init_densenet_params(pkey, growth_rate, num_layers,
                                  num_init_features, bn_size, num_classes)
    x = jax.random.normal(xkey, (2, 3, 32, 32), jnp.float32)   # NCHW input

    fwd = jax.jit(densenet_forward)
    out = jax.block_until_ready(fwd(params, x))
    assert out.shape == (2, num_classes)
    assert bool(jnp.all(jnp.isfinite(out)))
    print("KERNEL_OK")
</pallas_src>

<mosaic_0001>
module attributes {stable_mosaic.version = 11 : i64} {
  func.func @_fused_mm_kernel(%arg0: i32, %arg1: i32, %arg2: i32, %arg3: memref<512x147xbf16, #tpu.memory_space<vmem>>, %arg4: memref<147x128xbf16, #tpu.memory_space<vmem>>, %arg5: memref<1x147xf32, #tpu.memory_space<vmem>>, %arg6: memref<1x147xf32, #tpu.memory_space<vmem>>, %arg7: memref<1x128xf32, #tpu.memory_space<vmem>>, %arg8: memref<1x128xf32, #tpu.memory_space<vmem>>, %arg9: memref<512x128xbf16, #tpu.memory_space<vmem>>, %arg10: memref<512x128xf32, #tpu.memory_space<vmem>>) attributes {dimension_semantics = [#tpu.dimension_semantics<parallel>, #tpu.dimension_semantics<parallel>, #tpu.dimension_semantics<arbitrary>], iteration_bounds = array<i64: 1, 1, 1>, scalar_prefetch = 0 : i64, scratch_operands = 1 : i64, tpu.core_type = #tpu.core_type<tc>, window_params = [{transform_indices = @transform_0, window_bounds = array<i64: 512, 147>}, {transform_indices = @transform_1, window_bounds = array<i64: 147, 128>}, {transform_indices = @transform_2, window_bounds = array<i64: 1, 147>}, {transform_indices = @transform_3, window_bounds = array<i64: 1, 147>}, {transform_indices = @transform_4, window_bounds = array<i64: 1, 128>}, {transform_indices = @transform_5, window_bounds = array<i64: 1, 128>}, {transform_indices = @transform_6, window_bounds = array<i64: 512, 128>}]} {
    %c0_i32 = arith.constant 0 : i32
    %0 = arith.cmpi eq, %arg2, %c0_i32 : i32
    %1 = arith.extui %0 : i1 to i32
    %c0_i32_0 = arith.constant 0 : i32
    %2 = arith.cmpi ne, %1, %c0_i32_0 : i32
    scf.if %2 {
      %cst_10 = arith.constant 0.000000e+00 : f32
      %12 = vector.broadcast %cst_10 : f32 to vector<512x128xf32>
      %c0_11 = arith.constant 0 : index
      %c0_12 = arith.constant 0 : index
      %13 = vector.load %arg10[%c0_11, %c0_12] : memref<512x128xf32, #tpu.memory_space<vmem>>, vector<512x128xf32>
      tpu.vector_store %arg10[%c0_11, %c0_12], %12 {strides = array<i32>} : memref<512x128xf32, #tpu.memory_space<vmem>>, vector<512x128xf32>,
    } else {
    }
    %c0 = arith.constant 0 : index
    %c0_1 = arith.constant 0 : index
    %3 = vector.load %arg3[%c0, %c0_1] : memref<512x147xbf16, #tpu.memory_space<vmem>>, vector<512x147xbf16>
    %c0_2 = arith.constant 0 : index
    %c0_3 = arith.constant 0 : index
    %4 = vector.load %arg10[%c0_2, %c0_3] : memref<512x128xf32, #tpu.memory_space<vmem>>, vector<512x128xf32>
    %c0_4 = arith.constant 0 : index
    %c0_5 = arith.constant 0 : index
    %5 = vector.load %arg4[%c0_4, %c0_5] : memref<147x128xbf16, #tpu.memory_space<vmem>>, vector<147x128xbf16>
    %cst = arith.constant dense<0.000000e+00> : vector<512x128xf32>
    %6 = tpu.matmul %3, %5, %cst {dimension_numbers = #tpu.dot_dimension_numbers<[1], [0], [0], [1], [0, 0, 1, 1], [], []>} : vector<512x147xbf16>, vector<147x128xbf16>, vector<512x128xf32> -> vector<512x128xf32>
    %7 = arith.addf %4, %6 : vector<512x128xf32>
    %c0_6 = arith.constant 0 : index
    %c0_7 = arith.constant 0 : index
    %8 = vector.load %arg10[%c0_6, %c0_7] : memref<512x128xf32, #tpu.memory_space<vmem>>, vector<512x128xf32>
    tpu.vector_store %arg10[%c0_6, %c0_7], %7 {strides = array<i32>} : memref<512x128xf32, #tpu.memory_space<vmem>>, vector<512x128xf32>,
    %c0_i32_8 = arith.constant 0 : i32
    %9 = arith.cmpi eq, %arg2, %c0_i32_8 : i32
    %10 = arith.extui %9 : i1 to i32
    %c0_i32_9 = arith.constant 0 : i32
    %11 = arith.cmpi ne, %10, %c0_i32_9 : i32
    scf.if %11 {
      %c0_10 = arith.constant 0 : index
      %c0_11 = arith.constant 0 : index
      %12 = vector.load %arg10[%c0_10, %c0_11] : memref<512x128xf32, #tpu.memory_space<vmem>>, vector<512x128xf32>
      %c0_12 = arith.constant 0 : index
      %c0_13 = arith.constant 0 : index
      %13 = vector.load %arg7[%c0_12, %c0_13] : memref<1x128xf32, #tpu.memory_space<vmem>>, vector<1x128xf32>
      %14 = vector.broadcast %13 : vector<1x128xf32> to vector<512x128xf32>
      %15 = arith.mulf %12, %14 : vector<512x128xf32>
      %c0_14 = arith.constant 0 : index
      %c0_15 = arith.constant 0 : index
      %16 = vector.load %arg8[%c0_14, %c0_15] : memref<1x128xf32, #tpu.memory_space<vmem>>, vector<1x128xf32>
      %17 = vector.broadcast %16 : vector<1x128xf32> to vector<512x128xf32>
      %18 = arith.addf %15, %17 : vector<512x128xf32>
      %cst_16 = arith.constant 0.000000e+00 : f32
      %19 = vector.broadcast %cst_16 : f32 to vector<512x128xf32>
      %20 = arith.maximumf %18, %19 : vector<512x128xf32>
      %21 = arith.truncf %20 : vector<512x128xf32> to vector<512x128xbf16>
      %c0_17 = arith.constant 0 : index
      %c0_18 = arith.constant 0 : index
      %22 = vector.load %arg9[%c0_17, %c0_18] : memref<512x128xbf16, #tpu.memory_space<vmem>>, vector<512x128xbf16>
      tpu.vector_store %arg9[%c0_17, %c0_18], %21 {strides = array<i32>} : memref<512x128xbf16, #tpu.memory_space<vmem>>, vector<512x128xbf16>,
    } else {
    }
    return
  }
  func.func @transform_0(%arg0: i32, %arg1: i32, %arg2: i32) -> (i32, i32) {
    %c0_i32 = arith.constant 0 : i32
    return %arg0, %arg2 : i32, i32
  }
  func.func @transform_1(%arg0: i32, %arg1: i32, %arg2: i32) -> (i32, i32) {
    %c0_i32 = arith.constant 0 : i32
    return %arg2, %arg1 : i32, i32
  }
  func.func @transform_2(%arg0: i32, %arg1: i32, %arg2: i32) -> (i32, i32) {
    %c0_i32 = arith.constant 0 : i32
    %c0_i32_0 = arith.constant 0 : i32
    return %c0_i32, %arg2 : i32, i32
  }
  func.func @transform_3(%arg0: i32, %arg1: i32, %arg2: i32) -> (i32, i32) {
    %c0_i32 = arith.constant 0 : i32
    %c0_i32_0 = arith.constant 0 : i32
    return %c0_i32, %arg2 : i32, i32
  }
  func.func @transform_4(%arg0: i32, %arg1: i32, %arg2: i32) -> (i32, i32) {
    %c0_i32 = arith.constant 0 : i32
    %c0_i32_0 = arith.constant 0 : i32
    return %c0_i32, %arg1 : i32, i32
  }
  func.func @transform_5(%arg0: i32, %arg1: i32, %arg2: i32) -> (i32, i32) {
    %c0_i32 = arith.constant 0 : i32
    %c0_i32_0 = arith.constant 0 : i32
    return %c0_i32, %arg1 : i32, i32
  }
  func.func @transform_6(%arg0: i32, %arg1: i32, %arg2: i32) -> (i32, i32) {
    %c0_i32 = arith.constant 0 : i32
    return %arg0, %arg1 : i32, i32
  }
}

module attributes {stable_mosaic.version = 11 : i64} {
  func.func @_maxpool_kernel(%arg0: i32, %arg1: i32, %arg2: memref<1x16x9x2x128xbf16, #tpu.memory_space<vmem>>, %arg3: memref<1x1x9x2x128xbf16, #tpu.memory_space<vmem>>, %arg4: memref<1x8x8x128xbf16, #tpu.memory_space<vmem>>) attributes {dimension_semantics = [#tpu.dimension_semantics<parallel>, #tpu.dimension_semantics<parallel>], iteration_bounds = array<i64: 2, 1>, scalar_prefetch = 0 : i64, scratch_operands = 0 : i64, tpu.core_type = #tpu.core_type<tc>, window_params = [{transform_indices = @transform_0, window_bounds = array<i64: 1, 16, 9, 2, 128>}, {transform_indices = @transform_1, window_bounds = array<i64: 1, 1, 9, 2, 128>}, {transform_indices = @transform_2, window_bounds = array<i64: 1, 8, 8, 128>}]} {
    %c0 = arith.constant 0 : index
    %c0_0 = arith.constant 0 : index
    %c0_1 = arith.constant 0 : index
    %c0_2 = arith.constant 0 : index
    %c0_3 = arith.constant 0 : index
    %0 = vector.load %arg2[%c0, %c0_0, %c0_1, %c0_2, %c0_3] : memref<1x16x9x2x128xbf16, #tpu.memory_space<vmem>>, vector<1x16x9x2x128xbf16>
    %1 = vector.shape_cast %0 : vector<1x16x9x2x128xbf16> to vector<16x9x2x128xbf16>
    %c0_4 = arith.constant 0 : index
    %c0_5 = arith.constant 0 : index
    %c0_6 = arith.constant 0 : index
    %c0_7 = arith.constant 0 : index
    %c0_8 = arith.constant 0 : index
    %2 = vector.load %arg3[%c0_4, %c0_5, %c0_6, %c0_7, %c0_8] : memref<1x1x9x2x128xbf16, #tpu.memory_space<vmem>>, vector<1x1x9x2x128xbf16>
    %3 = vector.shape_cast %2 : vector<1x1x9x2x128xbf16> to vector<9x2x128xbf16>
    %4 = vector.shape_cast %1 : vector<16x9x2x128xbf16> to vector<8x2x9x2x128xbf16>
    %5 = vector.extract_strided_slice %4 {offsets = [0, 0, 0, 0, 0], sizes = [8, 1, 9, 2, 128], strides = [1, 1, 1, 1, 1]} : vector<8x2x9x2x128xbf16> to vector<8x1x9x2x128xbf16>
    %6 = vector.shape_cast %5 : vector<8x1x9x2x128xbf16> to vector<8x9x2x128xbf16>
    %7 = vector.extract_strided_slice %4 {offsets = [0, 1, 0, 0, 0], sizes = [8, 1, 9, 2, 128], strides = [1, 1, 1, 1, 1]} : vector<8x2x9x2x128xbf16> to vector<8x1x9x2x128xbf16>
    %8 = vector.shape_cast %7 : vector<8x1x9x2x128xbf16> to vector<8x9x2x128xbf16>
    %9 = vector.extract_strided_slice %6 {offsets = [1, 0, 0, 0], sizes = [7, 9, 2, 128], strides = [1, 1, 1, 1]} : vector<8x9x2x128xbf16> to vector<7x9x2x128xbf16>
    %10 = vector.shape_cast %3 : vector<9x2x128xbf16> to vector<1x9x2x128xbf16>
    %11 = tpu.concatenate %9, %10 in 0 : vector<7x9x2x128xbf16>, vector<1x9x2x128xbf16> -> vector<8x9x2x128xbf16>
    %12 = arith.maximumf %6, %8 : vector<8x9x2x128xbf16>
    %13 = arith.maximumf %12, %11 : vector<8x9x2x128xbf16>
    %14 = vector.extract_strided_slice %13 {offsets = [0, 0, 0, 0], sizes = [8, 8, 2, 128], strides = [1, 1, 1, 1]} : vector<8x9x2x128xbf16> to vector<8x8x2x128xbf16>
    %cst = arith.constant dense<0xFF80> : vector<8x8x128xbf16>
    %15 = vector.multi_reduction <maximumf>, %14, %cst [2] : vector<8x8x2x128xbf16> to vector<8x8x128xbf16>
    %16 = vector.extract_strided_slice %13 {offsets = [0, 1, 0, 0], sizes = [8, 8, 2, 128], strides = [1, 1, 1, 1]} : vector<8x9x2x128xbf16> to vector<8x8x2x128xbf16>
    %17 = tpu.iota {dimensions = array<i32: 2>} : vector<8x8x2x128xi32>
    %c0_i32 = arith.constant 0 : i32
    %18 = vector.broadcast %c0_i32 : i32 to vector<8x8x2x128xi32>
    %19 = arith.cmpi eq, %17, %18 : vector<8x8x2x128xi32>
    %cst_9 = arith.constant 0.000000e+00 : bf16
    %20 = vector.broadcast %cst_9 : bf16 to vector<8x8x2x128xbf16>
    %21 = arith.select %19, %16, %20 : vector<8x8x2x128xi1>, vector<8x8x2x128xbf16>
    %cst_10 = arith.constant dense<0xFF80> : vector<8x8x128xbf16>
    %22 = vector.multi_reduction <maximumf>, %21, %cst_10 [2] : vector<8x8x2x128xbf16> to vector<8x8x128xbf16>
    %23 = arith.maximumf %15, %22 : vector<8x8x128xbf16>
    %c0_11 = arith.constant 0 : index
    %c0_12 = arith.constant 0 : index
    %c0_13 = arith.constant 0 : index
    %c0_14 = arith.constant 0 : index
    %24 = vector.load %arg4[%c0_11, %c0_12, %c0_13, %c0_14] : memref<1x8x8x128xbf16, #tpu.memory_space<vmem>>, vector<1x8x8x128xbf16>
    %25 = vector.shape_cast %24 : vector<1x8x8x128xbf16> to vector<8x8x128xbf16>
    %26 = vector.shape_cast %23 : vector<8x8x128xbf16> to vector<1x8x8x128xbf16>
    tpu.vector_store %arg4[%c0_11, %c0_12, %c0_13, %c0_14], %26 {strides = array<i32>} : memref<1x8x8x128xbf16, #tpu.memory_space<vmem>>, vector<1x8x8x128xbf16>,
    return
  }
  func.func @transform_0(%arg0: i32, %arg1: i32) -> (i32, i32, i32, i32, i32) {
    %c0_i32 = arith.constant 0 : i32
    %c0_i32_0 = arith.constant 0 : i32
    %c0_i32_1 = arith.constant 0 : i32
    %c0_i32_2 = arith.constant 0 : i32
    return %arg0, %arg1, %c0_i32, %c0_i32_0, %c0_i32_1 : i32, i32, i32, i32, i32
  }
  func.func @transform_1(%arg0: i32, %arg1: i32) -> (i32, i32, i32, i32, i32) {
    %c1_i32 = arith.constant 1 : i32
    %0 = arith.addi %arg1, %c1_i32 : i32
    %c16_i32 = arith.constant 16 : i32
    %1 = arith.muli %c16_i32, %0 : i32
    %c0_i32 = arith.constant 0 : i32
    %c0_i32_0 = arith.constant 0 : i32
    %c0_i32_1 = arith.constant 0 : i32
    %c0_i32_2 = arith.constant 0 : i32
    return %arg0, %1, %c0_i32, %c0_i32_0, %c0_i32_1 : i32, i32, i32, i32, i32
  }
  func.func @transform_2(%arg0: i32, %arg1: i32) -> (i32, i32, i32, i32) {
    %c0_i32 = arith.constant 0 : i32
    %c0_i32_0 = arith.constant 0 : i32
    %c0_i32_1 = arith.constant 0 : i32
    return %arg0, %arg1, %c0_i32, %c0_i32_0 : i32, i32, i32, i32
  }
}

module attributes {stable_mosaic.version = 11 : i64} {
  func.func @_fused_mm_kernel(%arg0: i32, %arg1: i32, %arg2: i32, %arg3: memref<128x128xbf16, #tpu.memory_space<vmem>>, %arg4: memref<128x128xbf16, #tpu.memory_space<vmem>>, %arg5: memref<1x128xf32, #tpu.memory_space<vmem>>, %arg6: memref<1x128xf32, #tpu.memory_space<vmem>>, %arg7: memref<1x128xf32, #tpu.memory_space<vmem>>, %arg8: memref<1x128xf32, #tpu.memory_space<vmem>>, %arg9: memref<128x128xbf16, #tpu.memory_space<vmem>>, %arg10: memref<128x128xf32, #tpu.memory_space<vmem>>) attributes {dimension_semantics = [#tpu.dimension_semantics<parallel>, #tpu.dimension_semantics<parallel>, #tpu.dimension_semantics<arbitrary>], iteration_bounds = array<i64: 1, 1, 1>, scalar_prefetch = 0 : i64, scratch_operands = 1 : i64, tpu.core_type = #tpu.core_type<tc>, window_params = [{transform_indices = @transform_0, window_bounds = array<i64: 128, 128>}, {transform_indices = @transform_1, window_bounds = array<i64: 128, 128>}, {transform_indices = @transform_2, window_bounds = array<i64: 1, 128>}, {transform_indices = @transform_3, window_bounds = array<i64: 1, 128>}, {transform_indices = @transform_4, window_bounds = array<i64: 1, 128>}, {transform_indices = @transform_5, window_bounds = array<i64: 1, 128>}, {transform_indices = @transform_6, window_bounds = array<i64: 128, 128>}]} {
    %c0_i32 = arith.constant 0 : i32
    %0 = arith.cmpi eq, %arg2, %c0_i32 : i32
    %1 = arith.extui %0 : i1 to i32
    %c0_i32_0 = arith.constant 0 : i32
    %2 = arith.cmpi ne, %1, %c0_i32_0 : i32
    scf.if %2 {
      %cst_15 = arith.constant 0.000000e+00 : f32
      %22 = vector.broadcast %cst_15 : f32 to vector<128x128xf32>
      %c0_16 = arith.constant 0 : index
      %c0_17 = arith.constant 0 : index
      %23 = vector.load %arg10[%c0_16, %c0_17] : memref<128x128xf32, #tpu.memory_space<vmem>>, vector<128x128xf32>
      tpu.vector_store %arg10[%c0_16, %c0_17], %22 {strides = array<i32>} : memref<128x128xf32, #tpu.memory_space<vmem>>, vector<128x128xf32>,
    } else {
    }
    %c0 = arith.constant 0 : index
    %c0_1 = arith.constant 0 : index
    %3 = vector.load %arg3[%c0, %c0_1] : memref<128x128xbf16, #tpu.memory_space<vmem>>, vector<128x128xbf16>
    %4 = arith.extf %3 : vector<128x128xbf16> to vector<128x128xf32>
    %c0_2 = arith.constant 0 : index
    %c0_3 = arith.constant 0 : index
    %5 = vector.load %arg5[%c0_2, %c0_3] : memref<1x128xf32, #tpu.memory_space<vmem>>, vector<1x128xf32>
    %6 = vector.broadcast %5 : vector<1x128xf32> to vector<128x128xf32>
    %7 = arith.mulf %4, %6 : vector<128x128xf32>
    %c0_4 = arith.constant 0 : index
    %c0_5 = arith.constant 0 : index
    %8 = vector.load %arg6[%c0_4, %c0_5] : memref<1x128xf32, #tpu.memory_space<vmem>>, vector<1x128xf32>
    %9 = vector.broadcast %8 : vector<1x128xf32> to vector<128x128xf32>
    %10 = arith.addf %7, %9 : vector<128x128xf32>
    %cst = arith.constant 0.000000e+00 : f32
    %11 = vector.broadcast %cst : f32 to vector<128x128xf32>
    %12 = arith.maximumf %10, %11 : vector<128x128xf32>
    %13 = arith.truncf %12 : vector<128x128xf32> to vector<128x128xbf16>
    %c0_6 = arith.constant 0 : index
    %c0_7 = arith.constant 0 : index
    %14 = vector.load %arg10[%c0_6, %c0_7] : memref<128x128xf32, #tpu.memory_space<vmem>>, vector<128x128xf32>
    %c0_8 = arith.constant 0 : index
    %c0_9 = arith.constant 0 : index
    %15 = vector.load %arg4[%c0_8, %c0_9] : memref<128x128xbf16, #tpu.memory_space<vmem>>, vector<128x128xbf16>
    %cst_10 = arith.constant dense<0.000000e+00> : vector<128x128xf32>
    %16 = tpu.matmul %13, %15, %cst_10 {dimension_numbers = #tpu.dot_dimension_numbers<[1], [0], [0], [1], [0, 0, 1, 1], [], []>} : vector<128x128xbf16>, vector<128x128xbf16>, vector<128x128xf32> -> vector<128x128xf32>
    %17 = arith.addf %14, %16 : vector<128x128xf32>
    %c0_11 = arith.constant 0 : index
    %c0_12 = arith.constant 0 : index
    %18 = vector.load %arg10[%c0_11, %c0_12] : memref<128x128xf32, #tpu.memory_space<vmem>>, vector<128x128xf32>
    tpu.vector_store %arg10[%c0_11, %c0_12], %17 {strides = array<i32>} : memref<128x128xf32, #tpu.memory_space<vmem>>, vector<128x128xf32>,
    %c0_i32_13 = arith.constant 0 : i32
    %19 = arith.cmpi eq, %arg2, %c0_i32_13 : i32
    %20 = arith.extui %19 : i1 to i32
    %c0_i32_14 = arith.constant 0 : i32
    %21 = arith.cmpi ne, %20, %c0_i32_14 : i32
    scf.if %21 {
      %c0_15 = arith.constant 0 : index
      %c0_16 = arith.constant 0 : index
      %22 = vector.load %arg10[%c0_15, %c0_16] : memref<128x128xf32, #tpu.memory_space<vmem>>, vector<128x128xf32>
      %c0_17 = arith.constant 0 : index
      %c0_18 = arith.constant 0 : index
      %23 = vector.load %arg7[%c0_17, %c0_18] : memref<1x128xf32, #tpu.memory_space<vmem>>, vector<1x128xf32>
      %24 = vector.broadcast %23 : vector<1x128xf32> to vector<128x128xf32>
      %25 = arith.mulf %22, %24 : vector<128x128xf32>
      %c0_19 = arith.constant 0 : index
      %c0_20 = arith.constant 0 : index
      %26 = vector.load %arg8[%c0_19, %c0_20] : memref<1x128xf32, #tpu.memory_space<vmem>>, vector<1x128xf32>
      %27 = vector.broadcast %26 : vector<1x128xf32> to vector<128x128xf32>
      %28 = arith.addf %25, %27 : vector<128x128xf32>
      %cst_21 = arith.constant 0.000000e+00 : f32
      %29 = vector.broadcast %cst_21 : f32 to vector<128x128xf32>
      %30 = arith.maximumf %28, %29 : vector<128x128xf32>
      %31 = arith.truncf %30 : vector<128x128xf32> to vector<128x128xbf16>
      %c0_22 = arith.constant 0 : index
      %c0_23 = arith.constant 0 : index
      %32 = vector.load %arg9[%c0_22, %c0_23] : memref<128x128xbf16, #tpu.memory_space<vmem>>, vector<128x128xbf16>
      tpu.vector_store %arg9[%c0_22, %c0_23], %31 {strides = array<i32>} : memref<128x128xbf16, #tpu.memory_space<vmem>>, vector<128x128xbf16>,
    } else {
    }
    return
  }
  func.func @transform_0(%arg0: i32, %arg1: i32, %arg2: i32) -> (i32, i32) {
    %c0_i32 = arith.constant 0 : i32
    return %arg0, %arg2 : i32, i32
  }
  func.func @transform_1(%arg0: i32, %arg1: i32, %arg2: i32) -> (i32, i32) {
    %c0_i32 = arith.constant 0 : i32
    return %arg2, %arg1 : i32, i32
  }
  func.func @transform_2(%arg0: i32, %arg1: i32, %arg2: i32) -> (i32, i32) {
    %c0_i32 = arith.constant 0 : i32
    %c0_i32_0 = arith.constant 0 : i32
    return %c0_i32, %arg2 : i32, i32
  }
  func.func @transform_3(%arg0: i32, %arg1: i32, %arg2: i32) -> (i32, i32) {
    %c0_i32 = arith.constant 0 : i32
    %c0_i32_0 = arith.constant 0 : i32
    return %c0_i32, %arg2 : i32, i32
  }
  func.func @transform_4(%arg0: i32, %arg1: i32, %arg2: i32) -> (i32, i32) {
    %c0_i32 = arith.constant 0 : i32
    %c0_i32_0 = arith.constant 0 : i32
    return %c0_i32, %arg1 : i32, i32
  }
  func.func @transform_5(%arg0: i32, %arg1: i32, %arg2: i32) -> (i32, i32) {
    %c0_i32 = arith.constant 0 : i32
    %c0_i32_0 = arith.constant 0 : i32
    return %c0_i32, %arg1 : i32, i32
  }
  func.func @transform_6(%arg0: i32, %arg1: i32, %arg2: i32) -> (i32, i32) {
    %c0_i32 = arith.constant 0 : i32
    return %arg0, %arg1 : i32, i32
  }
}

module attributes {stable_mosaic.version = 11 : i64} {
  func.func @_conv3x3_kernel(%arg0: i32, %arg1: i32, %arg2: memref<1x144x128xbf16, #tpu.memory_space<vmem>>, %arg3: memref<1x48x128xbf16, #tpu.memory_space<vmem>>, %arg4: memref<3x384x32xbf16, #tpu.memory_space<vmem>>, %arg5: memref<1x144x32xbf16, #tpu.memory_space<vmem>>, %arg6: memref<192x128xbf16, #tpu.memory_space<vmem>>, %arg7: memref<176x384xbf16, #tpu.memory_space<vmem>>) attributes {dimension_semantics = [#tpu.dimension_semantics<parallel>, #tpu.dimension_semantics<parallel>], iteration_bounds = array<i64: 2, 1>, scalar_prefetch = 0 : i64, scratch_operands = 2 : i64, tpu.core_type = #tpu.core_type<tc>, window_params = [{transform_indices = @transform_0, window_bounds = array<i64: 1, 144, 128>}, {transform_indices = @transform_1, window_bounds = array<i64: 1, 48, 128>}, {pipeline_mode = #tpu.pipeline_mode<synchronous>, transform_indices = @transform_2, window_bounds = array<i64: 3, 384, 32>}, {transform_indices = @transform_3, window_bounds = array<i64: 1, 144, 32>}]} {
    %c0 = arith.constant 0 : index
    %c0_0 = arith.constant 0 : index
    %c0_1 = arith.constant 0 : index
    %0 = vector.load %arg2[%c0, %c0_0, %c0_1] : memref<1x144x128xbf16, #tpu.memory_space<vmem>>, vector<1x144x128xbf16>
    %1 = vector.shape_cast %0 : vector<1x144x128xbf16> to vector<144x128xbf16>
    %c0_2 = arith.constant 0 : index
    %c0_3 = arith.constant 0 : index
    %2 = vector.load %arg6[%c0_2, %c0_3] : memref<192x128xbf16, #tpu.memory_space<vmem>>, vector<144x128xbf16>
    tpu.vector_store %arg6[%c0_2, %c0_3], %1 {strides = array<i32>} : memref<192x128xbf16, #tpu.memory_space<vmem>>, vector<144x128xbf16>,
    %c0_4 = arith.constant 0 : index
    %c0_5 = arith.constant 0 : index
    %c0_6 = arith.constant 0 : index
    %3 = vector.load %arg3[%c0_4, %c0_5, %c0_6] : memref<1x48x128xbf16, #tpu.memory_space<vmem>>, vector<1x48x128xbf16>
    %4 = vector.shape_cast %3 : vector<1x48x128xbf16> to vector<48x128xbf16>
    %c144 = arith.constant 144 : index
    %c0_7 = arith.constant 0 : index
    %5 = vector.load %arg6[%c144, %c0_7] : memref<192x128xbf16, #tpu.memory_space<vmem>>, vector<48x128xbf16>
    tpu.vector_store %arg6[%c144, %c0_7], %4 {strides = array<i32>} : memref<192x128xbf16, #tpu.memory_space<vmem>>, vector<48x128xbf16>,
    %c0_8 = arith.constant 0 : index
    %c0_9 = arith.constant 0 : index
    %6 = vector.load %arg6[%c0_8, %c0_9] : memref<192x128xbf16, #tpu.memory_space<vmem>>, vector<176x128xbf16>
    %c0_10 = arith.constant 0 : index
    %c0_11 = arith.constant 0 : index
    %7 = vector.load %arg7[%c0_10, %c0_11] : memref<176x384xbf16, #tpu.memory_space<vmem>>, vector<176x128xbf16>
    tpu.vector_store %arg7[%c0_10, %c0_11], %6 {strides = array<i32>} : memref<176x384xbf16, #tpu.memory_space<vmem>>, vector<176x128xbf16>,
    %c1 = arith.constant 1 : index
    %c0_12 = arith.constant 0 : index
    %8 = vector.load %arg6[%c1, %c0_12] : memref<192x128xbf16, #tpu.memory_space<vmem>>, vector<176x128xbf16>
    %c0_13 = arith.constant 0 : index
    %c128 = arith.constant 128 : index
    %9 = vector.load %arg7[%c0_13, %c128] : memref<176x384xbf16, #tpu.memory_space<vmem>>, vector<176x128xbf16>
    tpu.vector_store %arg7[%c0_13, %c128], %8 {strides = array<i32>} : memref<176x384xbf16, #tpu.memory_space<vmem>>, vector<176x128xbf16>,
    %c2 = arith.constant 2 : index
    %c0_14 = arith.constant 0 : index
    %10 = vector.load %arg6[%c2, %c0_14] : memref<192x128xbf16, #tpu.memory_space<vmem>>, vector<176x128xbf16>
    %c0_15 = arith.constant 0 : index
    %c256 = arith.constant 256 : index
    %11 = vector.load %arg7[%c0_15, %c256] : memref<176x384xbf16, #tpu.memory_space<vmem>>, vector<176x128xbf16>
    tpu.vector_store %arg7[%c0_15, %c256], %10 {strides = array<i32>} : memref<176x384xbf16, #tpu.memory_space<vmem>>, vector<176x128xbf16>,
    %cst = arith.constant 0.000000e+00 : f32
    %12 = vector.broadcast %cst : f32 to vector<144x32xf32>
    %c0_16 = arith.constant 0 : index
    %c0_17 = arith.constant 0 : index
    %13 = vector.load %arg7[%c0_16, %c0_17] : memref<176x384xbf16, #tpu.memory_space<vmem>>, vector<144x384xbf16>
    %c0_18 = arith.constant 0 : index
    %c0_19 = arith.constant 0 : index
    %c0_20 = arith.constant 0 : index
    %14 = vector.load %arg4[%c0_18, %c0_19, %c0_20] : memref<3x384x32xbf16, #tpu.memory_space<vmem>>, vector<1x384x32xbf16>
    %15 = vector.shape_cast %14 : vector<1x384x32xbf16> to vector<384x32xbf16>
    %cst_21 = arith.constant dense<0.000000e+00> : vector<144x32xf32>
    %16 = tpu.matmul %13, %15, %cst_21 {dimension_numbers = #tpu.dot_dimension_numbers<[1], [0], [0], [1], [0, 0, 1, 1], [], []>} : vector<144x384xbf16>, vector<384x32xbf16>, vector<144x32xf32> -> vector<144x32xf32>
    %17 = arith.addf %12, %16 : vector<144x32xf32>
    %c16 = arith.constant 16 : index
    %c0_22 = arith.constant 0 : index
    %18 = vector.load %arg7[%c16, %c0_22] : memref<176x384xbf16, #tpu.memory_space<vmem>>, vector<144x384xbf16>
    %c1_23 = arith.constant 1 : index
    %c0_24 = arith.constant 0 : index
    %c0_25 = arith.constant 0 : index
    %19 = vector.load %arg4[%c1_23, %c0_24, %c0_25] : memref<3x384x32xbf16, #tpu.memory_space<vmem>>, vector<1x384x32xbf16>
    %20 = vector.shape_cast %19 : vector<1x384x32xbf16> to vector<384x32xbf16>
    %cst_26 = arith.constant dense<0.000000e+00> : vector<144x32xf32>
    %21 = tpu.matmul %18, %20, %cst_26 {dimension_numbers = #tpu.dot_dimension_numbers<[1], [0], [0], [1], [0, 0, 1, 1], [], []>} : vector<144x384xbf16>, vector<384x32xbf16>, vector<144x32xf32> -> vector<144x32xf32>
    %22 = arith.addf %17, %21 : vector<144x32xf32>
    %c32 = arith.constant 32 : index
    %c0_27 = arith.constant 0 : index
    %23 = vector.load %arg7[%c32, %c0_27] : memref<176x384xbf16, #tpu.memory_space<vmem>>, vector<144x384xbf16>
    %c2_28 = arith.constant 2 : index
    %c0_29 = arith.constant 0 : index
    %c0_30 = arith.constant 0 : index
    %24 = vector.load %arg4[%c2_28, %c0_29, %c0_30] : memref<3x384x32xbf16, #tpu.memory_space<vmem>>, vector<1x384x32xbf16>
    %25 = vector.shape_cast %24 : vector<1x384x32xbf16> to vector<384x32xbf16>
    %cst_31 = arith.constant dense<0.000000e+00> : vector<144x32xf32>
    %26 = tpu.matmul %23, %25, %cst_31 {dimension_numbers = #tpu.dot_dimension_numbers<[1], [0], [0], [1], [0, 0, 1, 1], [], []>} : vector<144x384xbf16>, vector<384x32xbf16>, vector<144x32xf32> -> vector<144x32xf32>
    %27 = arith.addf %22, %26 : vector<144x32xf32>
    %28 = arith.truncf %27 : vector<144x32xf32> to vector<144x32xbf16>
    %c0_32 = arith.constant 0 : index
    %c0_33 = arith.constant 0 : index
    %c0_34 = arith.constant 0 : index
    %29 = vector.load %arg5[%c0_32, %c0_33, %c0_34] : memref<1x144x32xbf16, #tpu.memory_space<vmem>>, vector<1x144x32xbf16>
    %30 = vector.shape_cast %29 : vector<1x144x32xbf16> to vector<144x32xbf16>
    %31 = vector.shape_cast %28 : vector<144x32xbf16> to vector<1x144x32xbf16>
    tpu.vector_store %arg5[%c0_32, %c0_33, %c0_34], %31 {strides = array<i32>} : memref<1x144x32xbf16, #tpu.memory_space<vmem>>, vector<1x144x32xbf16>,
    return
  }
  func.func @transform_0(%arg0: i32, %arg1: i32) -> (i32, i32, i32) {
    %c0_i32 = arith.constant 0 : i32
    %c0_i32_0 = arith.constant 0 : i32
    return %arg0, %arg1, %c0_i32 : i32, i32, i32
  }
  func.func @transform_1(%arg0: i32, %arg1: i32) -> (i32, i32, i32) {
    %c1_i32 = arith.constant 1 : i32
    %0 = arith.addi %arg1, %c1_i32 : i32
    %c3_i32 = arith.constant 3 : i32
    %1 = arith.muli %0, %c3_i32 : i32
    %c0_i32 = arith.constant 0 : i32
    %c0_i32_0 = arith.constant 0 : i32
    return %arg0, %1, %c0_i32 : i32, i32, i32
  }
  func.func @transform_2(%arg0: i32, %arg1: i32) -> (i32, i32, i32) {
    %c0_i32 = arith.constant 0 : i32
    %c0_i32_0 = arith.constant 0 : i32
    %c0_i32_1 = arith.constant 0 : i32
    %c0_i32_2 = arith.constant 0 : i32
    return %c0_i32, %c0_i32_0, %c0_i32_1 : i32, i32, i32
  }
  func.func @transform_3(%arg0: i32, %arg1: i32) -> (i32, i32, i32) {
    %c0_i32 = arith.constant 0 : i32
    %c0_i32_0 = arith.constant 0 : i32
    return %arg0, %arg1, %c0_i32 : i32, i32, i32
  }
}

module attributes {stable_mosaic.version = 11 : i64} {
  func.func @_avgpool_bn_kernel(%arg0: i32, %arg1: memref<4x2x4x2x128xbf16, #tpu.memory_space<vmem>>, %arg2: memref<1x128xf32, #tpu.memory_space<vmem>>, %arg3: memref<1x128xf32, #tpu.memory_space<vmem>>, %arg4: memref<4x4x128xbf16, #tpu.memory_space<vmem>>) attributes {dimension_semantics = [#tpu.dimension_semantics<parallel>], iteration_bounds = array<i64: 2>, scalar_prefetch = 0 : i64, scratch_operands = 0 : i64, tpu.core_type = #tpu.core_type<tc>, window_params = [{transform_indices = @transform_0, window_bounds = array<i64: 4, 2, 4, 2, 128>}, {pipeline_mode = #tpu.pipeline_mode<synchronous>, transform_indices = @transform_1, window_bounds = array<i64: 1, 128>}, {pipeline_mode = #tpu.pipeline_mode<synchronous>, transform_indices = @transform_2, window_bounds = array<i64: 1, 128>}, {transform_indices = @transform_3, window_bounds = array<i64: 4, 4, 128>}]} {
    %c0 = arith.constant 0 : index
    %c0_0 = arith.constant 0 : index
    %c0_1 = arith.constant 0 : index
    %c0_2 = arith.constant 0 : index
    %c0_3 = arith.constant 0 : index
    %0 = vector.load %arg1[%c0, %c0_0, %c0_1, %c0_2, %c0_3] : memref<4x2x4x2x128xbf16, #tpu.memory_space<vmem>>, vector<4x2x4x2x128xbf16>
    %1 = arith.extf %0 : vector<4x2x4x2x128xbf16> to vector<4x2x4x2x128xf32>
    %c0_4 = arith.constant 0 : index
    %c0_5 = arith.constant 0 : index
    %2 = vector.load %arg2[%c0_4, %c0_5] : memref<1x128xf32, #tpu.memory_space<vmem>>, vector<1x128xf32>
    %3 = vector.shape_cast %2 : vector<1x128xf32> to vector<1x1x1x1x128xf32>
    %4 = vector.broadcast %3 : vector<1x1x1x1x128xf32> to vector<4x2x4x2x128xf32>
    %5 = arith.mulf %1, %4 : vector<4x2x4x2x128xf32>
    %c0_6 = arith.constant 0 : index
    %c0_7 = arith.constant 0 : index
    %6 = vector.load %arg3[%c0_6, %c0_7] : memref<1x128xf32, #tpu.memory_space<vmem>>, vector<1x128xf32>
    %7 = vector.shape_cast %6 : vector<1x128xf32> to vector<1x1x1x1x128xf32>
    %8 = vector.broadcast %7 : vector<1x1x1x1x128xf32> to vector<4x2x4x2x128xf32>
    %9 = arith.addf %5, %8 : vector<4x2x4x2x128xf32>
    %cst = arith.constant 0.000000e+00 : f32
    %10 = vector.broadcast %cst : f32 to vector<4x2x4x2x128xf32>
    %11 = arith.maximumf %9, %10 : vector<4x2x4x2x128xf32>
    %cst_8 = arith.constant dense<0.000000e+00> : vector<4x4x2x128xf32>
    %12 = vector.multi_reduction <add>, %11, %cst_8 [1] : vector<4x2x4x2x128xf32> to vector<4x4x2x128xf32>
    %cst_9 = arith.constant dense<0.000000e+00> : vector<4x4x128xf32>
    %13 = vector.multi_reduction <add>, %12, %cst_9 [2] : vector<4x4x2x128xf32> to vector<4x4x128xf32>
    %cst_10 = arith.constant 2.500000e-01 : f32
    %14 = vector.broadcast %cst_10 : f32 to vector<4x4x128xf32>
    %15 = arith.mulf %13, %14 : vector<4x4x128xf32>
    %16 = arith.truncf %15 : vector<4x4x128xf32> to vector<4x4x128xbf16>
    %c0_11 = arith.constant 0 : index
    %c0_12 = arith.constant 0 : index
    %c0_13 = arith.constant 0 : index
    %17 = vector.load %arg4[%c0_11, %c0_12, %c0_13] : memref<4x4x128xbf16, #tpu.memory_space<vmem>>, vector<4x4x128xbf16>
    tpu.vector_store %arg4[%c0_11, %c0_12, %c0_13], %16 {strides = array<i32>} : memref<4x4x128xbf16, #tpu.memory_space<vmem>>, vector<4x4x128xbf16>,
    return
  }
  func.func @transform_0(%arg0: i32) -> (i32, i32, i32, i32, i32) {
    %c0_i32 = arith.constant 0 : i32
    %c0_i32_0 = arith.constant 0 : i32
    %c0_i32_1 = arith.constant 0 : i32
    %c0_i32_2 = arith.constant 0 : i32
    %c0_i32_3 = arith.constant 0 : i32
    return %arg0, %c0_i32, %c0_i32_0, %c0_i32_1, %c0_i32_2 : i32, i32, i32, i32, i32
  }
  func.func @transform_1(%arg0: i32) -> (i32, i32) {
    %c0_i32 = arith.constant 0 : i32
    %c0_i32_0 = arith.constant 0 : i32
    %c0_i32_1 = arith.constant 0 : i32
    return %c0_i32, %c0_i32_0 : i32, i32
  }
  func.func @transform_2(%arg0: i32) -> (i32, i32) {
    %c0_i32 = arith.constant 0 : i32
    %c0_i32_0 = arith.constant 0 : i32
    %c0_i32_1 = arith.constant 0 : i32
    return %c0_i32, %c0_i32_0 : i32, i32
  }
  func.func @transform_3(%arg0: i32) -> (i32, i32, i32) {
    %c0_i32 = arith.constant 0 : i32
    %c0_i32_0 = arith.constant 0 : i32
    %c0_i32_1 = arith.constant 0 : i32
    return %arg0, %c0_i32, %c0_i32_0 : i32, i32, i32
  }
}

module attributes {stable_mosaic.version = 11 : i64} {
  func.func @_fused_mm_kernel(%arg0: i32, %arg1: i32, %arg2: i32, %arg3: memref<32x128xbf16, #tpu.memory_space<vmem>>, %arg4: memref<128x128xbf16, #tpu.memory_space<vmem>>, %arg5: memref<1x128xf32, #tpu.memory_space<vmem>>, %arg6: memref<1x128xf32, #tpu.memory_space<vmem>>, %arg7: memref<1x128xf32, #tpu.memory_space<vmem>>, %arg8: memref<1x128xf32, #tpu.memory_space<vmem>>, %arg9: memref<32x128xbf16, #tpu.memory_space<vmem>>, %arg10: memref<32x128xf32, #tpu.memory_space<vmem>>) attributes {dimension_semantics = [#tpu.dimension_semantics<parallel>, #tpu.dimension_semantics<parallel>, #tpu.dimension_semantics<arbitrary>], iteration_bounds = array<i64: 1, 1, 1>, scalar_prefetch = 0 : i64, scratch_operands = 1 : i64, tpu.core_type = #tpu.core_type<tc>, window_params = [{transform_indices = @transform_0, window_bounds = array<i64: 32, 128>}, {transform_indices = @transform_1, window_bounds = array<i64: 128, 128>}, {transform_indices = @transform_2, window_bounds = array<i64: 1, 128>}, {transform_indices = @transform_3, window_bounds = array<i64: 1, 128>}, {transform_indices = @transform_4, window_bounds = array<i64: 1, 128>}, {transform_indices = @transform_5, window_bounds = array<i64: 1, 128>}, {transform_indices = @transform_6, window_bounds = array<i64: 32, 128>}]} {
    %c0_i32 = arith.constant 0 : i32
    %0 = arith.cmpi eq, %arg2, %c0_i32 : i32
    %1 = arith.extui %0 : i1 to i32
    %c0_i32_0 = arith.constant 0 : i32
    %2 = arith.cmpi ne, %1, %c0_i32_0 : i32
    scf.if %2 {
      %cst_10 = arith.constant 0.000000e+00 : f32
      %12 = vector.broadcast %cst_10 : f32 to vector<32x128xf32>
      %c0_11 = arith.constant 0 : index
      %c0_12 = arith.constant 0 : index
      %13 = vector.load %arg10[%c0_11, %c0_12] : memref<32x128xf32, #tpu.memory_space<vmem>>, vector<32x128xf32>
      tpu.vector_store %arg10[%c0_11, %c0_12], %12 {strides = array<i32>} : memref<32x128xf32, #tpu.memory_space<vmem>>, vector<32x128xf32>,
    } else {
    }
    %c0 = arith.constant 0 : index
    %c0_1 = arith.constant 0 : index
    %3 = vector.load %arg3[%c0, %c0_1] : memref<32x128xbf16, #tpu.memory_space<vmem>>, vector<32x128xbf16>
    %c0_2 = arith.constant 0 : index
    %c0_3 = arith.constant 0 : index
    %4 = vector.load %arg10[%c0_2, %c0_3] : memref<32x128xf32, #tpu.memory_space<vmem>>, vector<32x128xf32>
    %c0_4 = arith.constant 0 : index
    %c0_5 = arith.constant 0 : index
    %5 = vector.load %arg4[%c0_4, %c0_5] : memref<128x128xbf16, #tpu.memory_space<vmem>>, vector<128x128xbf16>
    %cst = arith.constant dense<0.000000e+00> : vector<32x128xf32>
    %6 = tpu.matmul %3, %5, %cst {dimension_numbers = #tpu.dot_dimension_numbers<[1], [0], [0], [1], [0, 0, 1, 1], [], []>} : vector<32x128xbf16>, vector<128x128xbf16>, vector<32x128xf32> -> vector<32x128xf32>
    %7 = arith.addf %4, %6 : vector<32x128xf32>
    %c0_6 = arith.constant 0 : index
    %c0_7 = arith.constant 0 : index
    %8 = vector.load %arg10[%c0_6, %c0_7] : memref<32x128xf32, #tpu.memory_space<vmem>>, vector<32x128xf32>
    tpu.vector_store %arg10[%c0_6, %c0_7], %7 {strides = array<i32>} : memref<32x128xf32, #tpu.memory_space<vmem>>, vector<32x128xf32>,
    %c0_i32_8 = arith.constant 0 : i32
    %9 = arith.cmpi eq, %arg2, %c0_i32_8 : i32
    %10 = arith.extui %9 : i1 to i32
    %c0_i32_9 = arith.constant 0 : i32
    %11 = arith.cmpi ne, %10, %c0_i32_9 : i32
    scf.if %11 {
      %c0_10 = arith.constant 0 : index
      %c0_11 = arith.constant 0 : index
      %12 = vector.load %arg10[%c0_10, %c0_11] : memref<32x128xf32, #tpu.memory_space<vmem>>, vector<32x128xf32>
      %13 = arith.truncf %12 : vector<32x128xf32> to vector<32x128xbf16>
      %c0_12 = arith.constant 0 : index
      %c0_13 = arith.constant 0 : index
      %14 = vector.load %arg9[%c0_12, %c0_13] : memref<32x128xbf16, #tpu.memory_space<vmem>>, vector<32x128xbf16>
      tpu.vector_store %arg9[%c0_12, %c0_13], %13 {strides = array<i32>} : memref<32x128xbf16, #tpu.memory_space<vmem>>, vector<32x128xbf16>,
    } else {
    }
    return
  }
  func.func @transform_0(%arg0: i32, %arg1: i32, %arg2: i32) -> (i32, i32) {
    %c0_i32 = arith.constant 0 : i32
    return %arg0, %arg2 : i32, i32
  }
  func.func @transform_1(%arg0: i32, %arg1: i32, %arg2: i32) -> (i32, i32) {
    %c0_i32 = arith.constant 0 : i32
    return %arg2, %arg1 : i32, i32
  }
  func.func @transform_2(%arg0: i32, %arg1: i32, %arg2: i32) -> (i32, i32) {
    %c0_i32 = arith.constant 0 : i32
    %c0_i32_0 = arith.constant 0 : i32
    return %c0_i32, %arg2 : i32, i32
  }
  func.func @transform_3(%arg0: i32, %arg1: i32, %arg2: i32) -> (i32, i32) {
    %c0_i32 = arith.constant 0 : i32
    %c0_i32_0 = arith.constant 0 : i32
    return %c0_i32, %arg2 : i32, i32
  }
  func.func @transform_4(%arg0: i32, %arg1: i32, %arg2: i32) -> (i32, i32) {
    %c0_i32 = arith.constant 0 : i32
    %c0_i32_0 = arith.constant 0 : i32
    return %c0_i32, %arg1 : i32, i32
  }
  func.func @transform_5(%arg0: i32, %arg1: i32, %arg2: i32) -> (i32, i32) {
    %c0_i32 = arith.constant 0 : i32
    %c0_i32_0 = arith.constant 0 : i32
    return %c0_i32, %arg1 : i32, i32
  }
  func.func @transform_6(%arg0: i32, %arg1: i32, %arg2: i32) -> (i32, i32) {
    %c0_i32 = arith.constant 0 : i32
    return %arg0, %arg1 : i32, i32
  }
}

module attributes {stable_mosaic.version = 11 : i64} {
  func.func @_fused_mm_kernel(%arg0: i32, %arg1: i32, %arg2: i32, %arg3: memref<32x128xbf16, #tpu.memory_space<vmem>>, %arg4: memref<128x128xbf16, #tpu.memory_space<vmem>>, %arg5: memref<1x128xf32, #tpu.memory_space<vmem>>, %arg6: memref<1x128xf32, #tpu.memory_space<vmem>>, %arg7: memref<1x128xf32, #tpu.memory_space<vmem>>, %arg8: memref<1x128xf32, #tpu.memory_space<vmem>>, %arg9: memref<32x128xbf16, #tpu.memory_space<vmem>>, %arg10: memref<32x128xf32, #tpu.memory_space<vmem>>) attributes {dimension_semantics = [#tpu.dimension_semantics<parallel>, #tpu.dimension_semantics<parallel>, #tpu.dimension_semantics<arbitrary>], iteration_bounds = array<i64: 1, 1, 1>, scalar_prefetch = 0 : i64, scratch_operands = 1 : i64, tpu.core_type = #tpu.core_type<tc>, window_params = [{transform_indices = @transform_0, window_bounds = array<i64: 32, 128>}, {transform_indices = @transform_1, window_bounds = array<i64: 128, 128>}, {transform_indices = @transform_2, window_bounds = array<i64: 1, 128>}, {transform_indices = @transform_3, window_bounds = array<i64: 1, 128>}, {transform_indices = @transform_4, window_bounds = array<i64: 1, 128>}, {transform_indices = @transform_5, window_bounds = array<i64: 1, 128>}, {transform_indices = @transform_6, window_bounds = array<i64: 32, 128>}]} {
    %c0_i32 = arith.constant 0 : i32
    %0 = arith.cmpi eq, %arg2, %c0_i32 : i32
    %1 = arith.extui %0 : i1 to i32
    %c0_i32_0 = arith.constant 0 : i32
    %2 = arith.cmpi ne, %1, %c0_i32_0 : i32
    scf.if %2 {
      %cst_15 = arith.constant 0.000000e+00 : f32
      %22 = vector.broadcast %cst_15 : f32 to vector<32x128xf32>
      %c0_16 = arith.constant 0 : index
      %c0_17 = arith.constant 0 : index
      %23 = vector.load %arg10[%c0_16, %c0_17] : memref<32x128xf32, #tpu.memory_space<vmem>>, vector<32x128xf32>
      tpu.vector_store %arg10[%c0_16, %c0_17], %22 {strides = array<i32>} : memref<32x128xf32, #tpu.memory_space<vmem>>, vector<32x128xf32>,
    } else {
    }
    %c0 = arith.constant 0 : index
    %c0_1 = arith.constant 0 : index
    %3 = vector.load %arg3[%c0, %c0_1] : memref<32x128xbf16, #tpu.memory_space<vmem>>, vector<32x128xbf16>
    %4 = arith.extf %3 : vector<32x128xbf16> to vector<32x128xf32>
    %c0_2 = arith.constant 0 : index
    %c0_3 = arith.constant 0 : index
    %5 = vector.load %arg5[%c0_2, %c0_3] : memref<1x128xf32, #tpu.memory_space<vmem>>, vector<1x128xf32>
    %6 = vector.broadcast %5 : vector<1x128xf32> to vector<32x128xf32>
    %7 = arith.mulf %4, %6 : vector<32x128xf32>
    %c0_4 = arith.constant 0 : index
    %c0_5 = arith.constant 0 : index
    %8 = vector.load %arg6[%c0_4, %c0_5] : memref<1x128xf32, #tpu.memory_space<vmem>>, vector<1x128xf32>
    %9 = vector.broadcast %8 : vector<1x128xf32> to vector<32x128xf32>
    %10 = arith.addf %7, %9 : vector<32x128xf32>
    %cst = arith.constant 0.000000e+00 : f32
    %11 = vector.broadcast %cst : f32 to vector<32x128xf32>
    %12 = arith.maximumf %10, %11 : vector<32x128xf32>
    %13 = arith.truncf %12 : vector<32x128xf32> to vector<32x128xbf16>
    %c0_6 = arith.constant 0 : index
    %c0_7 = arith.constant 0 : index
    %14 = vector.load %arg10[%c0_6, %c0_7] : memref<32x128xf32, #tpu.memory_space<vmem>>, vector<32x128xf32>
    %c0_8 = arith.constant 0 : index
    %c0_9 = arith.constant 0 : index
    %15 = vector.load %arg4[%c0_8, %c0_9] : memref<128x128xbf16, #tpu.memory_space<vmem>>, vector<128x128xbf16>
    %cst_10 = arith.constant dense<0.000000e+00> : vector<32x128xf32>
    %16 = tpu.matmul %13, %15, %cst_10 {dimension_numbers = #tpu.dot_dimension_numbers<[1], [0], [0], [1], [0, 0, 1, 1], [], []>} : vector<32x128xbf16>, vector<128x128xbf16>, vector<32x128xf32> -> vector<32x128xf32>
    %17 = arith.addf %14, %16 : vector<32x128xf32>
    %c0_11 = arith.constant 0 : index
    %c0_12 = arith.constant 0 : index
    %18 = vector.load %arg10[%c0_11, %c0_12] : memref<32x128xf32, #tpu.memory_space<vmem>>, vector<32x128xf32>
    tpu.vector_store %arg10[%c0_11, %c0_12], %17 {strides = array<i32>} : memref<32x128xf32, #tpu.memory_space<vmem>>, vector<32x128xf32>,
    %c0_i32_13 = arith.constant 0 : i32
    %19 = arith.cmpi eq, %arg2, %c0_i32_13 : i32
    %20 = arith.extui %19 : i1 to i32
    %c0_i32_14 = arith.constant 0 : i32
    %21 = arith.cmpi ne, %20, %c0_i32_14 : i32
    scf.if %21 {
      %c0_15 = arith.constant 0 : index
      %c0_16 = arith.constant 0 : index
      %22 = vector.load %arg10[%c0_15, %c0_16] : memref<32x128xf32, #tpu.memory_space<vmem>>, vector<32x128xf32>
      %c0_17 = arith.constant 0 : index
      %c0_18 = arith.constant 0 : index
      %23 = vector.load %arg7[%c0_17, %c0_18] : memref<1x128xf32, #tpu.memory_space<vmem>>, vector<1x128xf32>
      %24 = vector.broadcast %23 : vector<1x128xf32> to vector<32x128xf32>
      %25 = arith.mulf %22, %24 : vector<32x128xf32>
      %c0_19 = arith.constant 0 : index
      %c0_20 = arith.constant 0 : index
      %26 = vector.load %arg8[%c0_19, %c0_20] : memref<1x128xf32, #tpu.memory_space<vmem>>, vector<1x128xf32>
      %27 = vector.broadcast %26 : vector<1x128xf32> to vector<32x128xf32>
      %28 = arith.addf %25, %27 : vector<32x128xf32>
      %cst_21 = arith.constant 0.000000e+00 : f32
      %29 = vector.broadcast %cst_21 : f32 to vector<32x128xf32>
      %30 = arith.maximumf %28, %29 : vector<32x128xf32>
      %31 = arith.truncf %30 : vector<32x128xf32> to vector<32x128xbf16>
      %c0_22 = arith.constant 0 : index
      %c0_23 = arith.constant 0 : index
      %32 = vector.load %arg9[%c0_22, %c0_23] : memref<32x128xbf16, #tpu.memory_space<vmem>>, vector<32x128xbf16>
      tpu.vector_store %arg9[%c0_22, %c0_23], %31 {strides = array<i32>} : memref<32x128xbf16, #tpu.memory_space<vmem>>, vector<32x128xbf16>,
    } else {
    }
    return
  }
  func.func @transform_0(%arg0: i32, %arg1: i32, %arg2: i32) -> (i32, i32) {
    %c0_i32 = arith.constant 0 : i32
    return %arg0, %arg2 : i32, i32
  }
  func.func @transform_1(%arg0: i32, %arg1: i32, %arg2: i32) -> (i32, i32) {
    %c0_i32 = arith.constant 0 : i32
    return %arg2, %arg1 : i32, i32
  }
  func.func @transform_2(%arg0: i32, %arg1: i32, %arg2: i32) -> (i32, i32) {
    %c0_i32 = arith.constant 0 : i32
    %c0_i32_0 = arith.constant 0 : i32
    return %c0_i32, %arg2 : i32, i32
  }
  func.func @transform_3(%arg0: i32, %arg1: i32, %arg2: i32) -> (i32, i32) {
    %c0_i32 = arith.constant 0 : i32
    %c0_i32_0 = arith.constant 0 : i32
    return %c0_i32, %arg2 : i32, i32
  }
  func.func @transform_4(%arg0: i32, %arg1: i32, %arg2: i32) -> (i32, i32) {
    %c0_i32 = arith.constant 0 : i32
    %c0_i32_0 = arith.constant 0 : i32
    return %c0_i32, %arg1 : i32, i32
  }
  func.func @transform_5(%arg0: i32, %arg1: i32, %arg2: i32) -> (i32, i32) {
    %c0_i32 = arith.constant 0 : i32
    %c0_i32_0 = arith.constant 0 : i32
    return %c0_i32, %arg1 : i32, i32
  }
  func.func @transform_6(%arg0: i32, %arg1: i32, %arg2: i32) -> (i32, i32) {
    %c0_i32 = arith.constant 0 : i32
    return %arg0, %arg1 : i32, i32
  }
}

module attributes {stable_mosaic.version = 11 : i64} {
  func.func @_conv3x3_kernel(%arg0: i32, %arg1: i32, %arg2: memref<1x96x128xbf16, #tpu.memory_space<vmem>>, %arg3: memref<1x48x128xbf16, #tpu.memory_space<vmem>>, %arg4: memref<3x384x32xbf16, #tpu.memory_space<vmem>>, %arg5: memref<1x96x32xbf16, #tpu.memory_space<vmem>>, %arg6: memref<144x128xbf16, #tpu.memory_space<vmem>>, %arg7: memref<128x384xbf16, #tpu.memory_space<vmem>>) attributes {dimension_semantics = [#tpu.dimension_semantics<parallel>, #tpu.dimension_semantics<parallel>], iteration_bounds = array<i64: 2, 1>, scalar_prefetch = 0 : i64, scratch_operands = 2 : i64, tpu.core_type = #tpu.core_type<tc>, window_params = [{transform_indices = @transform_0, window_bounds = array<i64: 1, 96, 128>}, {transform_indices = @transform_1, window_bounds = array<i64: 1, 48, 128>}, {pipeline_mode = #tpu.pipeline_mode<synchronous>, transform_indices = @transform_2, window_bounds = array<i64: 3, 384, 32>}, {transform_indices = @transform_3, window_bounds = array<i64: 1, 96, 32>}]} {
    %c0 = arith.constant 0 : index
    %c0_0 = arith.constant 0 : index
    %c0_1 = arith.constant 0 : index
    %0 = vector.load %arg2[%c0, %c0_0, %c0_1] : memref<1x96x128xbf16, #tpu.memory_space<vmem>>, vector<1x96x128xbf16>
    %1 = vector.shape_cast %0 : vector<1x96x128xbf16> to vector<96x128xbf16>
    %c0_2 = arith.constant 0 : index
    %c0_3 = arith.constant 0 : index
    %2 = vector.load %arg6[%c0_2, %c0_3] : memref<144x128xbf16, #tpu.memory_space<vmem>>, vector<96x128xbf16>
    tpu.vector_store %arg6[%c0_2, %c0_3], %1 {strides = array<i32>} : memref<144x128xbf16, #tpu.memory_space<vmem>>, vector<96x128xbf16>,
    %c0_4 = arith.constant 0 : index
    %c0_5 = arith.constant 0 : index
    %c0_6 = arith.constant 0 : index
    %3 = vector.load %arg3[%c0_4, %c0_5, %c0_6] : memref<1x48x128xbf16, #tpu.memory_space<vmem>>, vector<1x48x128xbf16>
    %4 = vector.shape_cast %3 : vector<1x48x128xbf16> to vector<48x128xbf16>
    %c96 = arith.constant 96 : index
    %c0_7 = arith.constant 0 : index
    %5 = vector.load %arg6[%c96, %c0_7] : memref<144x128xbf16, #tpu.memory_space<vmem>>, vector<48x128xbf16>
    tpu.vector_store %arg6[%c96, %c0_7], %4 {strides = array<i32>} : memref<144x128xbf16, #tpu.memory_space<vmem>>, vector<48x128xbf16>,
    %c0_8 = arith.constant 0 : index
    %c0_9 = arith.constant 0 : index
    %6 = vector.load %arg6[%c0_8, %c0_9] : memref<144x128xbf16, #tpu.memory_space<vmem>>, vector<128x128xbf16>
    %c0_10 = arith.constant 0 : index
    %c0_11 = arith.constant 0 : index
    %7 = vector.load %arg7[%c0_10, %c0_11] : memref<128x384xbf16, #tpu.memory_space<vmem>>, vector<128x128xbf16>
    tpu.vector_store %arg7[%c0_10, %c0_11], %6 {strides = array<i32>} : memref<128x384xbf16, #tpu.memory_space<vmem>>, vector<128x128xbf16>,
    %c1 = arith.constant 1 : index
    %c0_12 = arith.constant 0 : index
    %8 = vector.load %arg6[%c1, %c0_12] : memref<144x128xbf16, #tpu.memory_space<vmem>>, vector<128x128xbf16>
    %c0_13 = arith.constant 0 : index
    %c128 = arith.constant 128 : index
    %9 = vector.load %arg7[%c0_13, %c128] : memref<128x384xbf16, #tpu.memory_space<vmem>>, vector<128x128xbf16>
    tpu.vector_store %arg7[%c0_13, %c128], %8 {strides = array<i32>} : memref<128x384xbf16, #tpu.memory_space<vmem>>, vector<128x128xbf16>,
    %c2 = arith.constant 2 : index
    %c0_14 = arith.constant 0 : index
    %10 = vector.load %arg6[%c2, %c0_14] : memref<144x128xbf16, #tpu.memory_space<vmem>>, vector<128x128xbf16>
    %c0_15 = arith.constant 0 : index
    %c256 = arith.constant 256 : index
    %11 = vector.load %arg7[%c0_15, %c256] : memref<128x384xbf16, #tpu.memory_space<vmem>>, vector<128x128xbf16>
    tpu.vector_store %arg7[%c0_15, %c256], %10 {strides = array<i32>} : memref<128x384xbf16, #tpu.memory_space<vmem>>, vector<128x128xbf16>,
    %cst = arith.constant 0.000000e+00 : f32
    %12 = vector.broadcast %cst : f32 to vector<96x32xf32>
    %c0_16 = arith.constant 0 : index
    %c0_17 = arith.constant 0 : index
    %13 = vector.load %arg7[%c0_16, %c0_17] : memref<128x384xbf16, #tpu.memory_space<vmem>>, vector<96x384xbf16>
    %c0_18 = arith.constant 0 : index
    %c0_19 = arith.constant 0 : index
    %c0_20 = arith.constant 0 : index
    %14 = vector.load %arg4[%c0_18, %c0_19, %c0_20] : memref<3x384x32xbf16, #tpu.memory_space<vmem>>, vector<1x384x32xbf16>
    %15 = vector.shape_cast %14 : vector<1x384x32xbf16> to vector<384x32xbf16>
    %cst_21 = arith.constant dense<0.000000e+00> : vector<96x32xf32>
    %16 = tpu.matmul %13, %15, %cst_21 {dimension_numbers = #tpu.dot_dimension_numbers<[1], [0], [0], [1], [0, 0, 1, 1], [], []>} : vector<96x384xbf16>, vector<384x32xbf16>, vector<96x32xf32> -> vector<96x32xf32>
    %17 = arith.addf %12, %16 : vector<96x32xf32>
    %c16 = arith.constant 16 : index
    %c0_22 = arith.constant 0 : index
    %18 = vector.load %arg7[%c16, %c0_22] : memref<128x384xbf16, #tpu.memory_space<vmem>>, vector<96x384xbf16>
    %c1_23 = arith.constant 1 : index
    %c0_24 = arith.constant 0 : index
    %c0_25 = arith.constant 0 : index
    %19 = vector.load %arg4[%c1_23, %c0_24, %c0_25] : memref<3x384x32xbf16, #tpu.memory_space<vmem>>, vector<1x384x32xbf16>
    %20 = vector.shape_cast %19 : vector<1x384x32xbf16> to vector<384x32xbf16>
    %cst_26 = arith.constant dense<0.000000e+00> : vector<96x32xf32>
    %21 = tpu.matmul %18, %20, %cst_26 {dimension_numbers = #tpu.dot_dimension_numbers<[1], [0], [0], [1], [0, 0, 1, 1], [], []>} : vector<96x384xbf16>, vector<384x32xbf16>, vector<96x32xf32> -> vector<96x32xf32>
    %22 = arith.addf %17, %21 : vector<96x32xf32>
    %c32 = arith.constant 32 : index
    %c0_27 = arith.constant 0 : index
    %23 = vector.load %arg7[%c32, %c0_27] : memref<128x384xbf16, #tpu.memory_space<vmem>>, vector<96x384xbf16>
    %c2_28 = arith.constant 2 : index
    %c0_29 = arith.constant 0 : index
    %c0_30 = arith.constant 0 : index
    %24 = vector.load %arg4[%c2_28, %c0_29, %c0_30] : memref<3x384x32xbf16, #tpu.memory_space<vmem>>, vector<1x384x32xbf16>
    %25 = vector.shape_cast %24 : vector<1x384x32xbf16> to vector<384x32xbf16>
    %cst_31 = arith.constant dense<0.000000e+00> : vector<96x32xf32>
    %26 = tpu.matmul %23, %25, %cst_31 {dimension_numbers = #tpu.dot_dimension_numbers<[1], [0], [0], [1], [0, 0, 1, 1], [], []>} : vector<96x384xbf16>, vector<384x32xbf16>, vector<96x32xf32> -> vector<96x32xf32>
    %27 = arith.addf %22, %26 : vector<96x32xf32>
    %28 = arith.truncf %27 : vector<96x32xf32> to vector<96x32xbf16>
    %c0_32 = arith.constant 0 : index
    %c0_33 = arith.constant 0 : index
    %c0_34 = arith.constant 0 : index
    %29 = vector.load %arg5[%c0_32, %c0_33, %c0_34] : memref<1x96x32xbf16, #tpu.memory_space<vmem>>, vector<1x96x32xbf16>
    %30 = vector.shape_cast %29 : vector<1x96x32xbf16> to vector<96x32xbf16>
    %31 = vector.shape_cast %28 : vector<96x32xbf16> to vector<1x96x32xbf16>
    tpu.vector_store %arg5[%c0_32, %c0_33, %c0_34], %31 {strides = array<i32>} : memref<1x96x32xbf16, #tpu.memory_space<vmem>>, vector<1x96x32xbf16>,
    return
  }
  func.func @transform_0(%arg0: i32, %arg1: i32) -> (i32, i32, i32) {
    %c0_i32 = arith.constant 0 : i32
    %c0_i32_0 = arith.constant 0 : i32
    return %arg0, %arg1, %c0_i32 : i32, i32, i32
  }
  func.func @transform_1(%arg0: i32, %arg1: i32) -> (i32, i32, i32) {
    %c1_i32 = arith.constant 1 : i32
    %0 = arith.addi %arg1, %c1_i32 : i32
    %c2_i32 = arith.constant 2 : i32
    %1 = arith.muli %0, %c2_i32 : i32
    %c0_i32 = arith.constant 0 : i32
    %c0_i32_0 = arith.constant 0 : i32
    return %arg0, %1, %c0_i32 : i32, i32, i32
  }
  func.func @transform_2(%arg0: i32, %arg1: i32) -> (i32, i32, i32) {
    %c0_i32 = arith.constant 0 : i32
    %c0_i32_0 = arith.constant 0 : i32
    %c0_i32_1 = arith.constant 0 : i32
    %c0_i32_2 = arith.constant 0 : i32
    return %c0_i32, %c0_i32_0, %c0_i32_1 : i32, i32, i32
  }
  func.func @transform_3(%arg0: i32, %arg1: i32) -> (i32, i32, i32) {
    %c0_i32 = arith.constant 0 : i32
    %c0_i32_0 = arith.constant 0 : i32
    return %arg0, %arg1, %c0_i32 : i32, i32, i32
  }
}

module attributes {stable_mosaic.version = 11 : i64} {
  func.func @_gap_linear_kernel(%arg0: i32, %arg1: memref<2x16x128xbf16, #tpu.memory_space<vmem>>, %arg2: memref<128x128xbf16, #tpu.memory_space<vmem>>, %arg3: memref<1x128xf32, #tpu.memory_space<vmem>>, %arg4: memref<2x128xf32, #tpu.memory_space<vmem>>) attributes {dimension_semantics = [#tpu.dimension_semantics<arbitrary>], iteration_bounds = array<i64: 1>, scalar_prefetch = 0 : i64, scratch_operands = 0 : i64, tpu.core_type = #tpu.core_type<tc>, window_params = [{pipeline_mode = #tpu.pipeline_mode<synchronous>, transform_indices = @transform_0, window_bounds = array<i64: 2, 16, 128>}, {pipeline_mode = #tpu.pipeline_mode<synchronous>, transform_indices = @transform_1, window_bounds = array<i64: 128, 128>}, {pipeline_mode = #tpu.pipeline_mode<synchronous>, transform_indices = @transform_2, window_bounds = array<i64: 1, 128>}, {pipeline_mode = #tpu.pipeline_mode<synchronous>, transform_indices = @transform_3, window_bounds = array<i64: 2, 128>}]} {
    %c0 = arith.constant 0 : index
    %c0_0 = arith.constant 0 : index
    %c0_1 = arith.constant 0 : index
    %0 = vector.load %arg1[%c0, %c0_0, %c0_1] : memref<2x16x128xbf16, #tpu.memory_space<vmem>>, vector<2x16x128xbf16>
    %1 = arith.extf %0 : vector<2x16x128xbf16> to vector<2x16x128xf32>
    %cst = arith.constant dense<0.000000e+00> : vector<2x128xf32>
    %2 = vector.multi_reduction <add>, %1, %cst [1] : vector<2x16x128xf32> to vector<2x128xf32>
    %cst_2 = arith.constant 1.600000e+01 : f32
    %3 = vector.broadcast %cst_2 : f32 to vector<2x128xf32>
    %4 = arith.divf %2, %3 : vector<2x128xf32>
    %5 = arith.truncf %4 : vector<2x128xf32> to vector<2x128xbf16>
    %c0_3 = arith.constant 0 : index
    %c0_4 = arith.constant 0 : index
    %6 = vector.load %arg2[%c0_3, %c0_4] : memref<128x128xbf16, #tpu.memory_space<vmem>>, vector<128x128xbf16>
    %cst_5 = arith.constant dense<0.000000e+00> : vector<2x128xf32>
    %7 = tpu.matmul %5, %6, %cst_5 {dimension_numbers = #tpu.dot_dimension_numbers<[1], [0], [0], [1], [0, 0, 1, 1], [], []>} : vector<2x128xbf16>, vector<128x128xbf16>, vector<2x128xf32> -> vector<2x128xf32>
    %c0_6 = arith.constant 0 : index
    %c0_7 = arith.constant 0 : index
    %8 = vector.load %arg3[%c0_6, %c0_7] : memref<1x128xf32, #tpu.memory_space<vmem>>, vector<1x128xf32>
    %9 = vector.broadcast %8 : vector<1x128xf32> to vector<2x128xf32>
    %10 = arith.addf %7, %9 : vector<2x128xf32>
    %c0_8 = arith.constant 0 : index
    %c0_9 = arith.constant 0 : index
    %11 = vector.load %arg4[%c0_8, %c0_9] : memref<2x128xf32, #tpu.memory_space<vmem>>, vector<2x128xf32>
    tpu.vector_store %arg4[%c0_8, %c0_9], %10 {strides = array<i32>} : memref<2x128xf32, #tpu.memory_space<vmem>>, vector<2x128xf32>,
    return
  }
  func.func @transform_0(%arg0: i32) -> (i32, i32, i32) {
    %c0_i32 = arith.constant 0 : i32
    %c0_i32_0 = arith.constant 0 : i32
    %c0_i32_1 = arith.constant 0 : i32
    %c0_i32_2 = arith.constant 0 : i32
    return %c0_i32, %c0_i32_0, %c0_i32_1 : i32, i32, i32
  }
  func.func @transform_1(%arg0: i32) -> (i32, i32) {
    %c0_i32 = arith.constant 0 : i32
    %c0_i32_0 = arith.constant 0 : i32
    %c0_i32_1 = arith.constant 0 : i32
    return %c0_i32, %c0_i32_0 : i32, i32
  }
  func.func @transform_2(%arg0: i32) -> (i32, i32) {
    %c0_i32 = arith.constant 0 : i32
    %c0_i32_0 = arith.constant 0 : i32
    %c0_i32_1 = arith.constant 0 : i32
    return %c0_i32, %c0_i32_0 : i32, i32
  }
  func.func @transform_3(%arg0: i32) -> (i32, i32) {
    %c0_i32 = arith.constant 0 : i32
    %c0_i32_0 = arith.constant 0 : i32
    %c0_i32_1 = arith.constant 0 : i32
    return %c0_i32, %c0_i32_0 : i32, i32
  }
}

</mosaic_0001>

<llo_original>
// kernel: densenet_forward.13
$region0: #{densenet_forward.13}
  #allocation0 [shape = 'u32[]', space=smem, size = 0x4, offset = 0x4, fixed_abs, tag = 'smem constant byte address 0x4 - core index']
  #allocation1 [shape = 'u32[72,128]{1,0:T(1,128)}', space=vmem, size = 0x9000, scoped, tag = 'internal scratch']
  #allocation2 [shape = 'f32[512,128]{1,0:T(8,128)}', space=vmem, size = 0x40000, scoped, tag = 'scratch operand']
  %s0 = inlined_call_operand.vmem [shape: bf16[512,147], index: 0, kind: input, shape index: {}]
  %s1 = inlined_call_operand.vmem [shape: bf16[147,128], index: 1, kind: input, shape index: {}]
  %s2 = inlined_call_operand.vmem [shape: f32[1,147], index: 2, kind: input, shape index: {}, may-alias: {2,3}]
  %s3 = inlined_call_operand.vmem [shape: f32[1,147], index: 3, kind: input, shape index: {}, may-alias: {2,3}]
  %s4 = inlined_call_operand.vmem [shape: f32[1,128], index: 4, kind: input, shape index: {}]
  %s5 = inlined_call_operand.vmem [shape: f32[1,128], index: 5, kind: input, shape index: {}]
  %s6 = inlined_call_operand.vmem [shape: bf16[512,128], index: 6, kind: output, shape index: {}]
  %s7 = sld [smem:[#allocation0]]
  $region42: #{densenet_forward.13} parent=0
    _
  %s9 = ssub.s32 1, %s7
  %s10 = scalar_select 0, %s9, %s7
  // Predicated region
  $region2: #{densenet_forward.13} parent=0 // pred_check
    _
  $region3: #{densenet_forward.13} parent=0 // pred_check_branch
    %12 = sbr.rel (0) target = $region5
  $region4: #{densenet_forward.13} parent=0 // pred_region
    _
  $region5: #{densenet_forward.13} parent=0 // pred_fallthru
    _
  // Predicated region
  $region6: #{densenet_forward.13} parent=0 // pred_check
    _
  $region7: #{densenet_forward.13} parent=0 // pred_check_branch
    %14 = sbr.rel (0) target = $region9
  $region8: #{densenet_forward.13} parent=0 // pred_region
    _
  $region9: #{densenet_forward.13} parent=0 // pred_fallthru
    _
  // Predicated region
  $region10: #{densenet_forward.13} parent=0 // pred_check
    _
  $region11: #{densenet_forward.13} parent=0 // pred_check_branch
    %16 = sbr.rel (0) target = $region13
  $region12: #{densenet_forward.13} parent=0 // pred_region
    _
  $region13: #{densenet_forward.13} parent=0 // pred_fallthru
    _
  // Predicated region
  $region14: #{densenet_forward.13} parent=0 // pred_check
    _
  $region15: #{densenet_forward.13} parent=0 // pred_check_branch
    %18 = sbr.rel (0) target = $region17
  $region16: #{densenet_forward.13} parent=0 // pred_region
    _
  $region17: #{densenet_forward.13} parent=0 // pred_fallthru
    _
  // Predicated region
  $region18: #{densenet_forward.13} parent=0 // pred_check
    _
  $region19: #{densenet_forward.13} parent=0 // pred_check_branch
    %20 = sbr.rel (0) target = $region21
  $region20: #{densenet_forward.13} parent=0 // pred_region
    _
  $region21: #{densenet_forward.13} parent=0 // pred_fallthru
    _
  // Predicated region
  $region22: #{densenet_forward.13} parent=0 // pred_check
    _
  $region23: #{densenet_forward.13} parent=0 // pred_check_branch
    %22 = sbr.rel (0) target = $region25
  $region24: #{densenet_forward.13} parent=0 // pred_region
    _
  $region25: #{densenet_forward.13} parent=0 // pred_fallthru
    _
  %p24 = scmp.eq.s32.totalorder 0, 0
  // Predicated region
  $region26: #{densenet_forward.13} parent=0 // pred_check
    %p25 = pneg %p24
  $region27: #{densenet_forward.13} parent=0 // pred_check_branch
    %27 = sbr.rel (%p25) target = $region29
  $region28: #{densenet_forward.13} parent=0 // pred_region
    %28 = vst [vmem:[#allocation2] sm:$0xff] 0.0
    %29 = vst [vmem:[#allocation2 + $0x8] sm:$0xff] 0.0
    %30 = vst [vmem:[#allocation2 + $0x10] sm:$0xff] 0.0
    %31 = vst [vmem:[#allocation2 + $0x18] sm:$0xff] 0.0
    %32 = vst [vmem:[#allocation2 + $0x20] sm:$0xff] 0.0
    %33 = vst [vmem:[#allocation2 + $0x28] sm:$0xff] 0.0
    %34 = vst [vmem:[#allocation2 + $0x30] sm:$0xff] 0.0
    %35 = vst [vmem:[#allocation2 + $0x38] sm:$0xff] 0.0
    %36 = vst [vmem:[#allocation2 + $0x40] sm:$0xff] 0.0
    %37 = vst [vmem:[#allocation2 + $0x48] sm:$0xff] 0.0
    %38 = vst [vmem:[#allocation2 + $0x50] sm:$0xff] 0.0
    %39 = vst [vmem:[#allocation2 + $0x58] sm:$0xff] 0.0
    %40 = vst [vmem:[#allocation2 + $0x60] sm:$0xff] 0.0
    %41 = vst [vmem:[#allocation2 + $0x68] sm:$0xff] 0.0
    %42 = vst [vmem:[#allocation2 + $0x70] sm:$0xff] 0.0
    %43 = vst [vmem:[#allocation2 + $0x78] sm:$0xff] 0.0
    %44 = vst [vmem:[#allocation2 + $0x80] sm:$0xff] 0.0
    %45 = vst [vmem:[#allocation2 + $0x88] sm:$0xff] 0.0
    %46 = vst [vmem:[#allocation2 + $0x90] sm:$0xff] 0.0
    %47 = vst [vmem:[#allocation2 + $0x98] sm:$0xff] 0.0
    %48 = vst [vmem:[#allocation2 + $0xa0] sm:$0xff] 0.0
    %49 = vst [vmem:[#allocation2 + $0xa8] sm:$0xff] 0.0
    %50 = vst [vmem:[#allocation2 + $0xb0] sm:$0xff] 0.0
    %51 = vst [vmem:[#allocation2 + $0xb8] sm:$0xff] 0.0
    %52 = vst [vmem:[#allocation2 + $0xc0] sm:$0xff] 0.0
    %53 = vst [vmem:[#allocation2 + $0xc8] sm:$0xff] 0.0
    %54 = vst [vmem:[#allocation2 + $0xd0] sm:$0xff] 0.0
    %55 = vst [vmem:[#allocation2 + $0xd8] sm:$0xff] 0.0
    %56 = vst [vmem:[#allocation2 + $0xe0] sm:$0xff] 0.0
    %57 = vst [vmem:[#allocation2 + $0xe8] sm:$0xff] 0.0
    %58 = vst [vmem:[#allocation2 + $0xf0] sm:$0xff] 0.0
    %59 = vst [vmem:[#allocation2 + $0xf8] sm:$0xff] 0.0
    %60 = vst [vmem:[#allocation2 + $0x100] sm:$0xff] 0.0
    %61 = vst [vmem:[#allocation2 + $0x108] sm:$0xff] 0.0
    %62 = vst [vmem:[#allocation2 + $0x110] sm:$0xff] 0.0
    %63 = vst [vmem:[#allocation2 + $0x118] sm:$0xff] 0.0
    %64 = vst [vmem:[#allocation2 + $0x120] sm:$0xff] 0.0
    %65 = vst [vmem:[#allocation2 + $0x128] sm:$0xff] 0.0
    %66 = vst [vmem:[#allocation2 + $0x130] sm:$0xff] 0.0
    %67 = vst [vmem:[#allocation2 + $0x138] sm:$0xff] 0.0
    %68 = vst [vmem:[#allocation2 + $0x140] sm:$0xff] 0.0
    %69 = vst [vmem:[#allocation2 + $0x148] sm:$0xff] 0.0
    %70 = vst [vmem:[#allocation2 + $0x150] sm:$0xff] 0.0
    %71 = vst [vmem:[#allocation2 + $0x158] sm:$0xff] 0.0
    %72 = vst [vmem:[#allocation2 + $0x160] sm:$0xff] 0.0
    %73 = vst [vmem:[#allocation2 + $0x168] sm:$0xff] 0.0
    %74 = vst [vmem:[#allocation2 + $0x170] sm:$0xff] 0.0
    %75 = vst [vmem:[#allocation2 + $0x178] sm:$0xff] 0.0
    %76 = vst [vmem:[#allocation2 + $0x180] sm:$0xff] 0.0
    %77 = vst [vmem:[#allocation2 + $0x188] sm:$0xff] 0.0
    %78 = vst [vmem:[#allocation2 + $0x190] sm:$0xff] 0.0
    %79 = vst [vmem:[#allocation2 + $0x198] sm:$0xff] 0.0
    %80 = vst [vmem:[#allocation2 + $0x1a0] sm:$0xff] 0.0
    %81 = vst [vmem:[#allocation2 + $0x1a8] sm:$0xff] 0.0
    %82 = vst [vmem:[#allocation2 + $0x1b0] sm:$0xff] 0.0
    %83 = vst [vmem:[#allocation2 + $0x1b8] sm:$0xff] 0.0
    %84 = vst [vmem:[#allocation2 + $0x1c0] sm:$0xff] 0.0
    %85 = vst [vmem:[#allocation2 + $0x1c8] sm:$0xff] 0.0
    %86 = vst [vmem:[#allocation2 + $0x1d0] sm:$0xff] 0.0
    %87 = vst [vmem:[#allocation2 + $0x1d8] sm:$0xff] 0.0
    %88 = vst [vmem:[#allocation2 + $0x1e0] sm:$0xff] 0.0
    %89 = vst [vmem:[#allocation2 + $0x1e8] sm:$0xff] 0.0
    %90 = vst [vmem:[#allocation2 + $0x1f0] sm:$0xff] 0.0
    %91 = vst [vmem:[#allocation2 + $0x1f8] sm:$0xff] 0.0
  $region29: #{densenet_forward.13} parent=0 // pred_fallthru
    _
  %v92 = vld [vmem:[%s0] sm:$0xff]
  %v93 = vld [vmem:[%s0 + $0x8] sm:$0xff]
  %v94 = vld [vmem:[%s0 + $0x10] sm:$0xff]
  %v95 = vld [vmem:[%s0 + $0x18] sm:$0xff]
  %v96 = vld [vmem:[%s0 + $0x20] sm:$0xff]
  %v97 = vld [vmem:[%s0 + $0x28] sm:$0xff]
  %v98 = vld [vmem:[%s0 + $0x30] sm:$0xff]
  %v99 = vld [vmem:[%s0 + $0x38] sm:$0xff]
  %v100 = vld [vmem:[%s0 + $0x40] sm:$0xff]
  %v101 = vld [vmem:[%s0 + $0x48] sm:$0xff]
  %v102 = vld [vmem:[%s0 + $0x50] sm:$0xff]
  %v103 = vld [vmem:[%s0 + $0x58] sm:$0xff]
  %v104 = vld [vmem:[%s0 + $0x60] sm:$0xff]
  %v105 = vld [vmem:[%s0 + $0x68] sm:$0xff]
  %v106 = vld [vmem:[%s0 + $0x70] sm:$0xff]
  %v107 = vld [vmem:[%s0 + $0x78] sm:$0xff]
  %v108 = vld [vmem:[%s0 + $0x80] sm:$0xff]
  %v109 = vld [vmem:[%s0 + $0x88] sm:$0xff]
  %v110 = vld [vmem:[%s0 + $0x90] sm:$0xff]
  %v111 = vld [vmem:[%s0 + $0x98] sm:$0xff]
  %v112 = vld [vmem:[%s0 + $0xa0] sm:$0xff]
  %v113 = vld [vmem:[%s0 + $0xa8] sm:$0xff]
  %v114 = vld [vmem:[%s0 + $0xb0] sm:$0xff]
  %v115 = vld [vmem:[%s0 + $0xb8] sm:$0xff]
  %v116 = vld [vmem:[%s0 + $0xc0] sm:$0xff]
  %v117 = vld [vmem:[%s0 + $0xc8] sm:$0xff]
  %v118 = vld [vmem:[%s0 + $0xd0] sm:$0xff]
  %v119 = vld [vmem:[%s0 + $0xd8] sm:$0xff]
  %v120 = vld [vmem:[%s0 + $0xe0] sm:$0xff]
  %v121 = vld [vmem:[%s0 + $0xe8] sm:$0xff]
  %v122 = vld [vmem:[%s0 + $0xf0] sm:$0xff]
  %v123 = vld [vmem:[%s0 + $0xf8] sm:$0xff]
  %v124 = vld [vmem:[%s0 + $0x100] sm:$0xff]
  %v125 = vld [vmem:[%s0 + $0x108] sm:$0xff]
  %v126 = vld [vmem:[%s0 + $0x110] sm:$0xff]
  %v127 = vld [vmem:[%s0 + $0x118] sm:$0xff]
  %v128 = vld [vmem:[%s0 + $0x120] sm:$0xff]
  %v129 = vld [vmem:[%s0 + $0x128] sm:$0xff]
  %v130 = vld [vmem:[%s0 + $0x130] sm:$0xff]
  %v131 = vld [vmem:[%s0 + $0x138] sm:$0xff]
  %v132 = vld [vmem:[%s0 + $0x140] sm:$0xff]
  %v133 = vld [vmem:[%s0 + $0x148] sm:$0xff]
  %v134 = vld [vmem:[%s0 + $0x150] sm:$0xff]
  %v135 = vld [vmem:[%s0 + $0x158] sm:$0xff]
  %v136 = vld [vmem:[%s0 + $0x160] sm:$0xff]
  %v137 = vld [vmem:[%s0 + $0x168] sm:$0xff]
  %v138 = vld [vmem:[%s0 + $0x170] sm:$0xff]
  %v139 = vld [vmem:[%s0 + $0x178] sm:$0xff]
  %v140 = vld [vmem:[%s0 + $0x180] sm:$0xff]
  %v141 = vld [vmem:[%s0 + $0x188] sm:$0xff]
  %v142 = vld [vmem:[%s0 + $0x190] sm:$0xff]
  %v143 = vld [vmem:[%s0 + $0x198] sm:$0xff]
  %v144 = vld [vmem:[%s0 + $0x1a0] sm:$0xff]
  %v145 = vld [vmem:[%s0 + $0x1a8] sm:$0xff]
  %v146 = vld [vmem:[%s0 + $0x1b0] sm:$0xff]
  %v147 = vld [vmem:[%s0 + $0x1b8] sm:$0xff]
  %v148 = vld [vmem:[%s0 + $0x1c0] sm:$0xff]
  %v149 = vld [vmem:[%s0 + $0x1c8] sm:$0xff]
  %v150 = vld [vmem:[%s0 + $0x1d0] sm:$0xff]
  %v151 = vld [vmem:[%s0 + $0x1d8] sm:$0xff]
  %v152 = vld [vmem:[%s0 + $0x1e0] sm:$0xff]
  %v153 = vld [vmem:[%s0 + $0x1e8] sm:$0xff]
  %v154 = vld [vmem:[%s0 + $0x1f0] sm:$0xff]
  %v155 = vld [vmem:[%s0 + $0x1f8] sm:$0xff]
  %v156 = vld [vmem:[#allocation2] sm:$0xff]
  %v157 = vld [vmem:[#allocation2 + $0x8] sm:$0xff]
  %v158 = vld [vmem:[#allocation2 + $0x10] sm:$0xff]
  %v159 = vld [vmem:[#allocation2 + $0x18] sm:$0xff]
  %v160 = vld [vmem:[#allocation2 + $0x20] sm:$0xff]
  %v161 = vld [vmem:[#allocation2 + $0x28] sm:$0xff]
  %v162 = vld [vmem:[#allocation2 + $0x30] sm:$0xff]
  %v163 = vld [vmem:[#allocation2 + $0x38] sm:$0xff]
  %v164 = vld [vmem:[#allocation2 + $0x40] sm:$0xff]
  %v165 = vld [vmem:[#allocation2 + $0x48] sm:$0xff]
  %v166 = vld [vmem:[#allocation2 + $0x50] sm:$0xff]
  %v167 = vld [vmem:[#allocation2 + $0x58] sm:$0xff]
  %v168 = vld [vmem:[#allocation2 + $0x60] sm:$0xff]
  %v169 = vld [vmem:[#allocation2 + $0x68] sm:$0xff]
  %v170 = vld [vmem:[#allocation2 + $0x70] sm:$0xff]
  %v171 = vld [vmem:[#allocation2 + $0x78] sm:$0xff]
  %v172 = vld [vmem:[#allocation2 + $0x80] sm:$0xff]
  %v173 = vld [vmem:[#allocation2 + $0x88] sm:$0xff]
  %v174 = vld [vmem:[#allocation2 + $0x90] sm:$0xff]
  %v175 = vld [vmem:[#allocation2 + $0x98] sm:$0xff]
  %v176 = vld [vmem:[#allocation2 + $0xa0] sm:$0xff]
  %v177 = vld [vmem:[#allocation2 + $0xa8] sm:$0xff]
  %v178 = vld [vmem:[#allocation2 + $0xb0] sm:$0xff]
  %v179 = vld [vmem:[#allocation2 + $0xb8] sm:$0xff]
  %v180 = vld [vmem:[#allocation2 + $0xc0] sm:$0xff]
  %v181 = vld [vmem:[#allocation2 + $0xc8] sm:$0xff]
  %v182 = vld [vmem:[#allocation2 + $0xd0] sm:$0xff]
  %v183 = vld [vmem:[#allocation2 + $0xd8] sm:$0xff]
  %v184 = vld [vmem:[#allocation2 + $0xe0] sm:$0xff]
  %v185 = vld [vmem:[#allocation2 + $0xe8] sm:$0xff]
  %v186 = vld [vmem:[#allocation2 + $0xf0] sm:$0xff]
  %v187 = vld [vmem:[#allocation2 + $0xf8] sm:$0xff]
  %v188 = vld [vmem:[#allocation2 + $0x100] sm:$0xff]
  %v189 = vld [vmem:[#allocation2 + $0x108] sm:$0xff]
  %v190 = vld [vmem:[#allocation2 + $0x110] sm:$0xff]
  %v191 = vld [vmem:[#allocation2 + $0x118] sm:$0xff]
  %v192 = vld [vmem:[#allocation2 + $0x120] sm:$0xff]
  %v193 = vld [vmem:[#allocation2 + $0x128] sm:$0xff]
  %v194 = vld [vmem:[#allocation2 + $0x130] sm:$0xff]
  %v195 = vld [vmem:[#allocation2 + $0x138] sm:$0xff]
  %v196 = vld [vmem:[#allocation2 + $0x140] sm:$0xff]
  %v197 = vld [vmem:[#allocation2 + $0x148] sm:$0xff]
  %v198 = vld [vmem:[#allocation2 + $0x150] sm:$0xff]
  %v199 = vld [vmem:[#allocation2 + $0x158] sm:$0xff]
  %v200 = vld [vmem:[#allocation2 + $0x160] sm:$0xff]
  %v201 = vld [vmem:[#allocation2 + $0x168] sm:$0xff]
  %v202 = vld [vmem:[#allocation2 + $0x170] sm:$0xff]
  %v203 = vld [vmem:[#allocation2 + $0x178] sm:$0xff]
  %v204 = vld [vmem:[#allocation2 + $0x180] sm:$0xff]
  %v205 = vld [vmem:[#allocation2 + $0x188] sm:$0xff]
  %v206 = vld [vmem:[#allocation2 + $0x190] sm:$0xff]
  %v207 = vld [vmem:[#allocation2 + $0x198] sm:$0xff]
  %v208 = vld [vmem:[#allocation2 + $0x1a0] sm:$0xff]
  %v209 = vld [vmem:[#allocation2 + $0x1a8] sm:$0xff]
  %v210 = vld [vmem:[#allocation2 + $0x1b0] sm:$0xff]
  %v211 = vld [vmem:[#allocation2 + $0x1b8] sm:$0xff]
  %v212 = vld [vmem:[#allocation2 + $0x1c0] sm:$0xff]
  %v213 = vld [vmem:[#allocation2 + $0x1c8] sm:$0xff]
  %v214 = vld [vmem:[#allocation2 + $0x1d0] sm:$0xff]
  %v215 = vld [vmem:[#allocation2 + $0x1d8] sm:$0xff]
  %v216 = vld [vmem:[#allocation2 + $0x1e0] sm:$0xff]
  %v217 = vld [vmem:[#allocation2 + $0x1e8] sm:$0xff]
  %v218 = vld [vmem:[#allocation2 + $0x1f0] sm:$0xff]
  %v219 = vld [vmem:[#allocation2 + $0x1f8] sm:$0xff]
  %v220 = vld [vmem:[%s1] sm:$0xf]
  %v221 = vld [vmem:[%s1 + $0x4] sm:$0xf]
  %v222 = vld [vmem:[%s1 + $0x8] sm:$0xf]
  %v223 = vld [vmem:[%s1 + $0xc] sm:$0xf]
  %v224 = vld [vmem:[%s1 + $0x10] sm:$0xf]
  %v225 = vld [vmem:[%s1 + $0x14] sm:$0xf]
  %v226 = vld [vmem:[%s1 + $0x18] sm:$0xf]
  %v227 = vld [vmem:[%s1 + $0x1c] sm:$0xf]
  %v228 = vld [vmem:[%s1 + $0x20] sm:$0xf]
  %v229 = vld [vmem:[%s1 + $0x24] sm:$0xf]
  %v230 = vld [vmem:[%s1 + $0x28] sm:$0xf]
  %v231 = vld [vmem:[%s1 + $0x2c] sm:$0xf]
  %v232 = vld [vmem:[%s1 + $0x30] sm:$0xf]
  %v233 = vld [vmem:[%s1 + $0x34] sm:$0xf]
  %v234 = vld [vmem:[%s1 + $0x38] sm:$0xf]
  %v235 = vld [vmem:[%s1 + $0x3c] sm:$0xf]
  %v236 = vld [vmem:[%s1 + $0x40] sm:$0xf]
  %v237 = vld [vmem:[%s1 + $0x44] sm:$0xf]
  %v238 = vld [vmem:[%s1 + $0x48] sm:$0x3]
  %v303 = vunpack.c.l.b16 %v92
  %v304 = vunpack.c.h.b16 %v92
  %v305 = vunpack.c.l.b16 %v93
  %v306 = vunpack.c.h.b16 %v93
  %v307 = vunpack.c.l.b16 %v94
  %v308 = vunpack.c.h.b16 %v94
  %v309 = vunpack.c.l.b16 %v95
  %v310 = vunpack.c.h.b16 %v95
  %v311 = vunpack.c.l.b16 %v96
  %v312 = vunpack.c.h.b16 %v96
  %v313 = vunpack.c.l.b16 %v97
  %v314 = vunpack.c.h.b16 %v97
  %v315 = vunpack.c.l.b16 %v98
  %v316 = vunpack.c.h.b16 %v98
  %v317 = vunpack.c.l.b16 %v99
  %v318 = vunpack.c.h.b16 %v99
  %v319 = vunpack.c.l.b16 %v100
  %v320 = vunpack.c.h.b16 %v100
  %v321 = vunpack.c.l.b16 %v101
  %v322 = vunpack.c.h.b16 %v101
  %v323 = vunpack.c.l.b16 %v102
  %v324 = vunpack.c.h.b16 %v102
  %v325 = vunpack.c.l.b16 %v103
  %v326 = vunpack.c.h.b16 %v103
  %v327 = vunpack.c.l.b16 %v104
  %v328 = vunpack.c.h.b16 %v104
  %v329 = vunpack.c.l.b16 %v105
  %v330 = vunpack.c.h.b16 %v105
  %v331 = vunpack.c.l.b16 %v106
  %v332 = vunpack.c.h.b16 %v106
  %v333 = vunpack.c.l.b16 %v107
  %v334 = vunpack.c.h.b16 %v107
  %v335 = vunpack.c.l.b16 %v108
  %v336 = vunpack.c.h.b16 %v108
  %v337 = vunpack.c.l.b16 %v109
  %v338 = vunpack.c.h.b16 %v109
  %v339 = vunpack.c.l.b16 %v110
  %v340 = vunpack.c.h.b16 %v110
  %v341 = vunpack.c.l.b16 %v111
  %v342 = vunpack.c.h.b16 %v111
  %v343 = vunpack.c.l.b16 %v112
  %v344 = vunpack.c.h.b16 %v112
  %v345 = vunpack.c.l.b16 %v113
  %v346 = vunpack.c.h.b16 %v113
  %v347 = vunpack.c.l.b16 %v114
  %v348 = vunpack.c.h.b16 %v114
  %v349 = vunpack.c.l.b16 %v115
  %v350 = vunpack.c.h.b16 %v115
  %v351 = vunpack.c.l.b16 %v116
  %v352 = vunpack.c.h.b16 %v116
  %v353 = vunpack.c.l.b16 %v117
  %v354 = vunpack.c.h.b16 %v117
  %v355 = vunpack.c.l.b16 %v118
  %v356 = vunpack.c.h.b16 %v118
  %v357 = vunpack.c.l.b16 %v119
  %v358 = vunpack.c.h.b16 %v119
  %v359 = vunpack.c.l.b16 %v120
  %v360 = vunpack.c.h.b16 %v120
  %v361 = vunpack.c.l.b16 %v121
  %v362 = vunpack.c.h.b16 %v121
  %v363 = vunpack.c.l.b16 %v122
  %v364 = vunpack.c.h.b16 %v122
  %v365 = vunpack.c.l.b16 %v123
  %v366 = vunpack.c.h.b16 %v123
  %v367 = vunpack.c.l.b16 %v124
  %v368 = vunpack.c.h.b16 %v124
  %v369 = vunpack.c.l.b16 %v125
  %v370 = vunpack.c.h.b16 %v125
  %v371 = vunpack.c.l.b16 %v126
  %v372 = vunpack.c.h.b16 %v126
  %v373 = vunpack.c.l.b16 %v127
  %v374 = vunpack.c.h.b16 %v127
  %v375 = vunpack.c.l.b16 %v128
  %v376 = vunpack.c.h.b16 %v128
  %v377 = vunpack.c.l.b16 %v129
  %v378 = vunpack.c.h.b16 %v129
  %v379 = vunpack.c.l.b16 %v130
  %v380 = vunpack.c.h.b16 %v130
  %v381 = vunpack.c.l.b16 %v131
  %v382 = vunpack.c.h.b16 %v131
  %v383 = vunpack.c.l.b16 %v132
  %v384 = vunpack.c.h.b16 %v132
  %v385 = vunpack.c.l.b16 %v133
  %v386 = vunpack.c.h.b16 %v133
  %v387 = vunpack.c.l.b16 %v134
  %v388 = vunpack.c.h.b16 %v134
  %v389 = vunpack.c.l.b16 %v135
  %v390 = vunpack.c.h.b16 %v135
  %v391 = vunpack.c.l.b16 %v136
  %v392 = vunpack.c.h.b16 %v136
  %v393 = vunpack.c.l.b16 %v137
  %v394 = vunpack.c.h.b16 %v137
  %v395 = vunpack.c.l.b16 %v138
  %v396 = vunpack.c.h.b16 %v138
  %v397 = vunpack.c.l.b16 %v139
  %v398 = vunpack.c.h.b16 %v139
  %v399 = vunpack.c.l.b16 %v140
  %v400 = vunpack.c.h.b16 %v140
  %v401 = vunpack.c.l.b16 %v141
  %v402 = vunpack.c.h.b16 %v141
  %v403 = vunpack.c.l.b16 %v142
  %v404 = vunpack.c.h.b16 %v142
  %v405 = vunpack.c.l.b16 %v143
  %v406 = vunpack.c.h.b16 %v143
  %v407 = vunpack.c.l.b16 %v144
  %v408 = vunpack.c.h.b16 %v144
  %v409 = vunpack.c.l.b16 %v145
  %v410 = vunpack.c.h.b16 %v145
  %v411 = vunpack.c.l.b16 %v146
  %v412 = vunpack.c.h.b16 %v146
  %v413 = vunpack.c.l.b16 %v147
  %v414 = vunpack.c.h.b16 %v147
  %v415 = vunpack.c.l.b16 %v148
  %v416 = vunpack.c.h.b16 %v148
  %v417 = vunpack.c.l.b16 %v149
  %v418 = vunpack.c.h.b16 %v149
  %v419 = vunpack.c.l.b16 %v150
  %v420 = vunpack.c.h.b16 %v150
  %v421 = vunpack.c.l.b16 %v151
  %v422 = vunpack.c.h.b16 %v151
  %v423 = vunpack.c.l.b16 %v152
  %v424 = vunpack.c.h.b16 %v152
  %v425 = vunpack.c.l.b16 %v153
  %v426 = vunpack.c.h.b16 %v153
  %v427 = vunpack.c.l.b16 %v154
  %v428 = vunpack.c.h.b16 %v154
  %v429 = vunpack.c.l.b16 %v155
  %v430 = vunpack.c.h.b16 %v155
  %v431 = vpack.c.b16 %v305, %v303
  %v432 = vpack.c.b16 %v306, %v304
  %v433 = vpack.c.b16 %v309, %v307
  %v434 = vpack.c.b16 %v310, %v308
  %v435 = vpack.c.b16 %v313, %v311
  %v436 = vpack.c.b16 %v314, %v312
  %v437 = vpack.c.b16 %v317, %v315
  %v438 = vpack.c.b16 %v318, %v316
  %v439 = vpack.c.b16 %v321, %v319
  %v440 = vpack.c.b16 %v322, %v320
  %v441 = vpack.c.b16 %v325, %v323
  %v442 = vpack.c.b16 %v326, %v324
  %v443 = vpack.c.b16 %v329, %v327
  %v444 = vpack.c.b16 %v330, %v328
  %v445 = vpack.c.b16 %v333, %v331
  %v446 = vpack.c.b16 %v334, %v332
  %v447 = vpack.c.b16 %v337, %v335
  %v448 = vpack.c.b16 %v338, %v336
  %v449 = vpack.c.b16 %v341, %v339
  %v450 = vpack.c.b16 %v342, %v340
  %v451 = vpack.c.b16 %v345, %v343
  %v452 = vpack.c.b16 %v346, %v344
  %v453 = vpack.c.b16 %v349, %v347
  %v454 = vpack.c.b16 %v350, %v348
  %v455 = vpack.c.b16 %v353, %v351
  %v456 = vpack.c.b16 %v354, %v352
  %v457 = vpack.c.b16 %v357, %v355
  %v458 = vpack.c.b16 %v358, %v356
  %v459 = vpack.c.b16 %v361, %v359
  %v460 = vpack.c.b16 %v362, %v360
  %v461 = vpack.c.b16 %v365, %v363
  %v462 = vpack.c.b16 %v366, %v364
  %v463 = vpack.c.b16 %v369, %v367
  %v464 = vpack.c.b16 %v370, %v368
  %v465 = vpack.c.b16 %v373, %v371
  %v466 = vpack.c.b16 %v374, %v372
  %v467 = vpack.c.b16 %v377, %v375
  %v468 = vpack.c.b16 %v378, %v376
  %v469 = vpack.c.b16 %v381, %v379
  %v470 = vpack.c.b16 %v382, %v380
  %v471 = vpack.c.b16 %v385, %v383
  %v472 = vpack.c.b16 %v386, %v384
  %v473 = vpack.c.b16 %v389, %v387
  %v474 = vpack.c.b16 %v390, %v388
  %v475 = vpack.c.b16 %v393, %v391
  %v476 = vpack.c.b16 %v394, %v392
  %v477 = vpack.c.b16 %v397, %v395
  %v478 = vpack.c.b16 %v398, %v396
  %v479 = vpack.c.b16 %v401, %v399
  %v480 = vpack.c.b16 %v402, %v400
  %v481 = vpack.c.b16 %v405, %v403
  %v482 = vpack.c.b16 %v406, %v404
  %v483 = vpack.c.b16 %v409, %v407
  %v484 = vpack.c.b16 %v410, %v408
  %v485 = vpack.c.b16 %v413, %v411
  %v486 = vpack.c.b16 %v414, %v412
  %v487 = vpack.c.b16 %v417, %v415
  %v488 = vpack.c.b16 %v418, %v416
  %v489 = vpack.c.b16 %v421, %v419
  %v490 = vpack.c.b16 %v422, %v420
  %v491 = vpack.c.b16 %v425, %v423
  %v492 = vpack.c.b16 %v426, %v424
  %v493 = vpack.c.b16 %v429, %v427
  %v494 = vpack.c.b16 %v430, %v428
  %v546 = vunpack.c.l.b16 %v220
  %v547 = vunpack.c.l.b16 %v221
  %v548 = vunpack.c.l.b16 %v222
  %v549 = vunpack.c.l.b16 %v223
  %v550 = vunpack.c.l.b16 %v224
  %v551 = vunpack.c.l.b16 %v225
  %v552 = vunpack.c.l.b16 %v226
  %v553 = vunpack.c.l.b16 %v227
  %v554 = vunpack.c.l.b16 %v228
  %v555 = vunpack.c.l.b16 %v229
  %v556 = vunpack.c.l.b16 %v230
  %v557 = vunpack.c.l.b16 %v231
  %v558 = vunpack.c.l.b16 %v232
  %v559 = vunpack.c.l.b16 %v233
  %v560 = vunpack.c.l.b16 %v234
  %v561 = vunpack.c.l.b16 %v235
  %v562 = vunpack.c.l.b16 %v236
  %v563 = vunpack.c.l.b16 %v237
  %v564 = vunpack.c.l.b16 %v238
  %v565 = vpack.c.b16 %v547, %v546
  %v566 = vpack.c.b16 %v549, %v548
  %v567 = vpack.c.b16 %v551, %v550
  %v568 = vpack.c.b16 %v553, %v552
  %v569 = vpack.c.b16 %v555, %v554
  %v570 = vpack.c.b16 %v557, %v556
  %v571 = vpack.c.b16 %v559, %v558
  %v572 = vpack.c.b16 %v561, %v560
  %v573 = vpack.c.b16 %v563, %v562
  %v574 = vpack.c.b16 %v564, %v564
  %vm584 = vcmask 154624
  %v586 = vsel %vm584, %v432, 0
  %v589 = vsel %vm584, %v434, 0
  %v592 = vsel %vm584, %v436, 0
  %v595 = vsel %vm584, %v438, 0
  %v598 = vsel %vm584, %v440, 0
  %v601 = vsel %vm584, %v442, 0
  %v604 = vsel %vm584, %v444, 0
  %v607 = vsel %vm584, %v446, 0
  %v610 = vsel %vm584, %v448, 0
  %v613 = vsel %vm584, %v450, 0
  %v616 = vsel %vm584, %v452, 0
  %v619 = vsel %vm584, %v454, 0
  %v622 = vsel %vm584, %v456, 0
  %v625 = vsel %vm584, %v458, 0
  %v628 = vsel %vm584, %v460, 0
  %v631 = vsel %vm584, %v462, 0
  %v634 = vsel %vm584, %v464, 0
  %v637 = vsel %vm584, %v466, 0
  %v640 = vsel %vm584, %v468, 0
  %v643 = vsel %vm584, %v470, 0
  %v646 = vsel %vm584, %v472, 0
  %v649 = vsel %vm584, %v474, 0
  %v652 = vsel %vm584, %v476, 0
  %v655 = vsel %vm584, %v478, 0
  %v658 = vsel %vm584, %v480, 0
  %v661 = vsel %vm584, %v482, 0
  %v664 = vsel %vm584, %v484, 0
  %v667 = vsel %vm584, %v486, 0
  %v670 = vsel %vm584, %v488, 0
  %v673 = vsel %vm584, %v490, 0
  %v676 = vsel %vm584, %v492, 0
  %v679 = vsel %vm584, %v494, 0
  %vm681 = vcmask 1040384
  %vm682 = vcmask 1041408
  %v683 = vsel %vm681, 4294967295, 65535
  %v684 = vsel %vm682, %v683, 0
  %v686 = vand.u32 %v574, %v684
  %688 = vmatpush.bf16.msra.mxu0 %v572
  %689 = vmatpush.bf16.msra.mxu0 %v571
  %690 = vmatpush.bf16.msra.mxu0 %v570
  %691 = vmatpush.bf16.msra.mxu0 %v569
  %692 = vmatpush.bf16.msra.mxu0 %v568
  %693 = vmatpush.bf16.msra.mxu0 %v567
  %694 = vmatpush.bf16.msra.mxu0 %v566
  %695 = vmatpush.bf16.msra.mxu0 %v565
  %696 = vmatmul.bf16.gmra.mxu0 %v431
  %v697 = vpop.f32.mrf.mxu0
  %v698 = vadd.f32 0.0, %v697
  %v699 = vpop.f32.mrf.mxu0
  %v700 = vadd.f32 0.0, %v699
  %701 = vmatmul.bf16.gmra.mxu0 %v433
  %v702 = vpop.f32.mrf.mxu0
  %v703 = vadd.f32 0.0, %v702
  %v704 = vpop.f32.mrf.mxu0
  %v705 = vadd.f32 0.0, %v704
  %706 = vmatmul.bf16.gmra.mxu0 %v435
  %v707 = vpop.f32.mrf.mxu0
  %v708 = vadd.f32 0.0, %v707
  %v709 = vpop.f32.mrf.mxu0
  %v710 = vadd.f32 0.0, %v709
  %711 = vmatmul.bf16.gmra.mxu0 %v437
  %v712 = vpop.f32.mrf.mxu0
  %v713 = vadd.f32 0.0, %v712
  %v714 = vpop.f32.mrf.mxu0
  %v715 = vadd.f32 0.0, %v714
  %716 = vmatmul.bf16.gmra.mxu0 %v439
  %v717 = vpop.f32.mrf.mxu0
  %v718 = vadd.f32 0.0, %v717
  %v719 = vpop.f32.mrf.mxu0
  %v720 = vadd.f32 0.0, %v719
  %721 = vmatmul.bf16.gmra.mxu0 %v441
  %v722 = vpop.f32.mrf.mxu0
  %v723 = vadd.f32 0.0, %v722
  %v724 = vpop.f32.mrf.mxu0
  %v725 = vadd.f32 0.0, %v724
  %726 = vmatmul.bf16.gmra.mxu0 %v443
  %v727 = vpop.f32.mrf.mxu0
  %v728 = vadd.f32 0.0, %v727
  %v729 = vpop.f32.mrf.mxu0
  %v730 = vadd.f32 0.0, %v729
  %731 = vmatmul.bf16.gmra.mxu0 %v445
  %v732 = vpop.f32.mrf.mxu0
  %v733 = vadd.f32 0.0, %v732
  %v734 = vpop.f32.mrf.mxu0
  %v735 = vadd.f32 0.0, %v734
  %736 = vmatmul.bf16.gmra.mxu0 %v447
  %v737 = vpop.f32.mrf.mxu0
  %v738 = vadd.f32 0.0, %v737
  %v739 = vpop.f32.mrf.mxu0
  %v740 = vadd.f32 0.0, %v739
  %741 = vmatmul.bf16.gmra.mxu0 %v449
  %v742 = vpop.f32.mrf.mxu0
  %v743 = vadd.f32 0.0, %v742
  %v744 = vpop.f32.mrf.mxu0
  %v745 = vadd.f32 0.0, %v744
  %746 = vmatmul.bf16.gmra.mxu0 %v451
  %v747 = vpop.f32.mrf.mxu0
  %v748 = vadd.f32 0.0, %v747
  %v749 = vpop.f32.mrf.mxu0
  %v750 = vadd.f32 0.0, %v749
  %751 = vmatmul.bf16.gmra.mxu0 %v453
  %v752 = vpop.f32.mrf.mxu0
  %v753 = vadd.f32 0.0, %v752
  %v754 = vpop.f32.mrf.mxu0
  %v755 = vadd.f32 0.0, %v754
  %756 = vmatmul.bf16.gmra.mxu0 %v455
  %v757 = vpop.f32.mrf.mxu0
  %v758 = vadd.f32 0.0, %v757
  %v759 = vpop.f32.mrf.mxu0
  %v760 = vadd.f32 0.0, %v759
  %761 = vmatmul.bf16.gmra.mxu0 %v457
  %v762 = vpop.f32.mrf.mxu0
  %v763 = vadd.f32 0.0, %v762
  %v764 = vpop.f32.mrf.mxu0
  %v765 = vadd.f32 0.0, %v764
  %766 = vmatmul.bf16.gmra.mxu0 %v459
  %v767 = vpop.f32.mrf.mxu0
  %v768 = vadd.f32 0.0, %v767
  %v769 = vpop.f32.mrf.mxu0
  %v770 = vadd.f32 0.0, %v769
  %771 = vmatmul.bf16.gmra.mxu0 %v461
  %v772 = vpop.f32.mrf.mxu0
  %v773 = vadd.f32 0.0, %v772
  %v774 = vpop.f32.mrf.mxu0
  %v775 = vadd.f32 0.0, %v774
  %776 = vmatmul.bf16.gmra.mxu0 %v463
  %v777 = vpop.f32.mrf.mxu0
  %v778 = vadd.f32 0.0, %v777
  %v779 = vpop.f32.mrf.mxu0
  %v780 = vadd.f32 0.0, %v779
  %781 = vmatmul.bf16.gmra.mxu0 %v465
  %v782 = vpop.f32.mrf.mxu0
  %v783 = vadd.f32 0.0, %v782
  %v784 = vpop.f32.mrf.mxu0
  %v785 = vadd.f32 0.0, %v784
  %786 = vmatmul.bf16.gmra.mxu0 %v467
  %v787 = vpop.f32.mrf.mxu0
  %v788 = vadd.f32 0.0, %v787
  %v789 = vpop.f32.mrf.mxu0
  %v790 = vadd.f32 0.0, %v789
  %791 = vmatmul.bf16.gmra.mxu0 %v469
  %v792 = vpop.f32.mrf.mxu0
  %v793 = vadd.f32 0.0, %v792
  %v794 = vpop.f32.mrf.mxu0
  %v795 = vadd.f32 0.0, %v794
  %796 = vmatmul.bf16.gmra.mxu0 %v471
  %v797 = vpop.f32.mrf.mxu0
  %v798 = vadd.f32 0.0, %v797
  %v799 = vpop.f32.mrf.mxu0
  %v800 = vadd.f32 0.0, %v799
  %801 = vmatmul.bf16.gmra.mxu0 %v473
  %v802 = vpop.f32.mrf.mxu0
  %v803 = vadd.f32 0.0, %v802
  %v804 = vpop.f32.mrf.mxu0
  %v805 = vadd.f32 0.0, %v804
  %806 = vmatmul.bf16.gmra.mxu0 %v475
  %v807 = vpop.f32.mrf.mxu0
  %v808 = vadd.f32 0.0, %v807
  %v809 = vpop.f32.mrf.mxu0
  %v810 = vadd.f32 0.0, %v809
  %811 = vmatmul.bf16.gmra.mxu0 %v477
  %v812 = vpop.f32.mrf.mxu0
  %v813 = vadd.f32 0.0, %v812
  %v814 = vpop.f32.mrf.mxu0
  %v815 = vadd.f32 0.0, %v814
  %816 = vmatmul.bf16.gmra.mxu0 %v479
  %v817 = vpop.f32.mrf.mxu0
  %v818 = vadd.f32 0.0, %v817
  %v819 = vpop.f32.mrf.mxu0
  %v820 = vadd.f32 0.0, %v819
  %821 = vmatmul.bf16.gmra.mxu0 %v481
  %v822 = vpop.f32.mrf.mxu0
  %v823 = vadd.f32 0.0, %v822
  %v824 = vpop.f32.mrf.mxu0
  %v825 = vadd.f32 0.0, %v824
  %826 = vmatmul.bf16.gmra.mxu0 %v483
  %v827 = vpop.f32.mrf.mxu0
  %v828 = vadd.f32 0.0, %v827
  %v829 = vpop.f32.mrf.mxu0
  %v830 = vadd.f32 0.0, %v829
  %831 = vmatmul.bf16.gmra.mxu0 %v485
  %v832 = vpop.f32.mrf.mxu0
  %v833 = vadd.f32 0.0, %v832
  %v834 = vpop.f32.mrf.mxu0
  %v835 = vadd.f32 0.0, %v834
  %836 = vmatmul.bf16.gmra.mxu0 %v487
  %v837 = vpop.f32.mrf.mxu0
  %v838 = vadd.f32 0.0, %v837
  %v839 = vpop.f32.mrf.mxu0
  %v840 = vadd.f32 0.0, %v839
  %841 = vmatmul.bf16.gmra.mxu0 %v489
  %v842 = vpop.f32.mrf.mxu0
  %v843 = vadd.f32 0.0, %v842
  %v844 = vpop.f32.mrf.mxu0
  %v845 = vadd.f32 0.0, %v844
  %846 = vmatmul.bf16.gmra.mxu0 %v491
  %v847 = vpop.f32.mrf.mxu0
  %v848 = vadd.f32 0.0, %v847
  %v849 = vpop.f32.mrf.mxu0
  %v850 = vadd.f32 0.0, %v849
  %851 = vmatmul.bf16.gmra.mxu0 %v493
  %v852 = vpop.f32.mrf.mxu0
  %v853 = vadd.f32 0.0, %v852
  %v854 = vpop.f32.mrf.mxu0
  %v855 = vadd.f32 0.0, %v854
  %856 = vdwg.mxu0
  %857 = vmatpush.bf16.msra.mxu0 0
  %858 = vmatpush.bf16.msra.mxu0 0
  %859 = vmatpush.bf16.msra.mxu0 0
  %860 = vmatpush.bf16.msra.mxu0 0
  %861 = vmatpush.bf16.msra.mxu0 0
  %862 = vmatpush.bf16.msra.mxu0 0
  %863 = vmatpush.bf16.msra.mxu0 %v686
  %864 = vmatpush.bf16.msra.mxu0 %v573
  %865 = vmatmul.bf16.gmra.mxu0 %v586
  %v866 = vpop.f32.mrf.mxu0
  %v867 = vadd.f32 %v698, %v866
  %v868 = vpop.f32.mrf.mxu0
  %v869 = vadd.f32 %v700, %v868
  %870 = vmatmul.bf16.gmra.mxu0 %v589
  %v871 = vpop.f32.mrf.mxu0
  %v872 = vadd.f32 %v703, %v871
  %v873 = vpop.f32.mrf.mxu0
  %v874 = vadd.f32 %v705, %v873
  %875 = vmatmul.bf16.gmra.mxu0 %v592
  %v876 = vpop.f32.mrf.mxu0
  %v877 = vadd.f32 %v708, %v876
  %v878 = vpop.f32.mrf.mxu0
  %v879 = vadd.f32 %v710, %v878
  %880 = vmatmul.bf16.gmra.mxu0 %v595
  %v881 = vpop.f32.mrf.mxu0
  %v882 = vadd.f32 %v713, %v881
  %v883 = vpop.f32.mrf.mxu0
  %v884 = vadd.f32 %v715, %v883
  %885 = vmatmul.bf16.gmra.mxu0 %v598
  %v886 = vpop.f32.mrf.mxu0
  %v887 = vadd.f32 %v718, %v886
  %v888 = vpop.f32.mrf.mxu0
  %v889 = vadd.f32 %v720, %v888
  %890 = vmatmul.bf16.gmra.mxu0 %v601
  %v891 = vpop.f32.mrf.mxu0
  %v892 = vadd.f32 %v723, %v891
  %v893 = vpop.f32.mrf.mxu0
  %v894 = vadd.f32 %v725, %v893
  %895 = vmatmul.bf16.gmra.mxu0 %v604
  %v896 = vpop.f32.mrf.mxu0
  %v897 = vadd.f32 %v728, %v896
  %v898 = vpop.f32.mrf.mxu0
  %v899 = vadd.f32 %v730, %v898
  %900 = vmatmul.bf16.gmra.mxu0 %v607
  %v901 = vpop.f32.mrf.mxu0
  %v902 = vadd.f32 %v733, %v901
  %v903 = vpop.f32.mrf.mxu0
  %v904 = vadd.f32 %v735, %v903
  %905 = vmatmul.bf16.gmra.mxu0 %v610
  %v906 = vpop.f32.mrf.mxu0
  %v907 = vadd.f32 %v738, %v906
  %v908 = vpop.f32.mrf.mxu0
  %v909 = vadd.f32 %v740, %v908
  %910 = vmatmul.bf16.gmra.mxu0 %v613
  %v911 = vpop.f32.mrf.mxu0
  %v912 = vadd.f32 %v743, %v911
  %v913 = vpop.f32.mrf.mxu0
  %v914 = vadd.f32 %v745, %v913
  %915 = vmatmul.bf16.gmra.mxu0 %v616
  %v916 = vpop.f32.mrf.mxu0
  %v917 = vadd.f32 %v748, %v916
  %v918 = vpop.f32.mrf.mxu0
  %v919 = vadd.f32 %v750, %v918
  %920 = vmatmul.bf16.gmra.mxu0 %v619
  %v921 = vpop.f32.mrf.mxu0
  %v922 = vadd.f32 %v753, %v921
  %v923 = vpop.f32.mrf.mxu0
  %v924 = vadd.f32 %v755, %v923
  %925 = vmatmul.bf16.gmra.mxu0 %v622
  %v926 = vpop.f32.mrf.mxu0
  %v927 = vadd.f32 %v758, %v926
  %v928 = vpop.f32.mrf.mxu0
  %v929 = vadd.f32 %v760, %v928
  %930 = vmatmul.bf16.gmra.mxu0 %v625
  %v931 = vpop.f32.mrf.mxu0
  %v932 = vadd.f32 %v763, %v931
  %v933 = vpop.f32.mrf.mxu0
  %v934 = vadd.f32 %v765, %v933
  %935 = vmatmul.bf16.gmra.mxu0 %v628
  %v936 = vpop.f32.mrf.mxu0
  %v937 = vadd.f32 %v768, %v936
  %v938 = vpop.f32.mrf.mxu0
  %v939 = vadd.f32 %v770, %v938
  %940 = vmatmul.bf16.gmra.mxu0 %v631
  %v941 = vpop.f32.mrf.mxu0
  %v942 = vadd.f32 %v773, %v941
  %v943 = vpop.f32.mrf.mxu0
  %v944 = vadd.f32 %v775, %v943
  %945 = vmatmul.bf16.gmra.mxu0 %v634
  %v946 = vpop.f32.mrf.mxu0
  %v947 = vadd.f32 %v778, %v946
  %v948 = vpop.f32.mrf.mxu0
  %v949 = vadd.f32 %v780, %v948
  %950 = vmatmul.bf16.gmra.mxu0 %v637
  %v951 = vpop.f32.mrf.mxu0
  %v952 = vadd.f32 %v783, %v951
  %v953 = vpop.f32.mrf.mxu0
  %v954 = vadd.f32 %v785, %v953
  %955 = vmatmul.bf16.gmra.mxu0 %v640
  %v956 = vpop.f32.mrf.mxu0
  %v957 = vadd.f32 %v788, %v956
  %v958 = vpop.f32.mrf.mxu0
  %v959 = vadd.f32 %v790, %v958
  %960 = vmatmul.bf16.gmra.mxu0 %v643
  %v961 = vpop.f32.mrf.mxu0
  %v962 = vadd.f32 %v793, %v961
  %v963 = vpop.f32.mrf.mxu0
  %v964 = vadd.f32 %v795, %v963
  %965 = vmatmul.bf16.gmra.mxu0 %v646
  %v966 = vpop.f32.mrf.mxu0
  %v967 = vadd.f32 %v798, %v966
  %v968 = vpop.f32.mrf.mxu0
  %v969 = vadd.f32 %v800, %v968
  %970 = vmatmul.bf16.gmra.mxu0 %v649
  %v971 = vpop.f32.mrf.mxu0
  %v972 = vadd.f32 %v803, %v971
  %v973 = vpop.f32.mrf.mxu0
  %v974 = vadd.f32 %v805, %v973
  %975 = vmatmul.bf16.gmra.mxu0 %v652
  %v976 = vpop.f32.mrf.mxu0
  %v977 = vadd.f32 %v808, %v976
  %v978 = vpop.f32.mrf.mxu0
  %v979 = vadd.f32 %v810, %v978
  %980 = vmatmul.bf16.gmra.mxu0 %v655
  %v981 = vpop.f32.mrf.mxu0
  %v982 = vadd.f32 %v813, %v981
  %v983 = vpop.f32.mrf.mxu0
  %v984 = vadd.f32 %v815, %v983
  %985 = vmatmul.bf16.gmra.mxu0 %v658
  %v986 = vpop.f32.mrf.mxu0
  %v987 = vadd.f32 %v818, %v986
  %v988 = vpop.f32.mrf.mxu0
  %v989 = vadd.f32 %v820, %v988
  %990 = vmatmul.bf16.gmra.mxu0 %v661
  %v991 = vpop.f32.mrf.mxu0
  %v992 = vadd.f32 %v823, %v991
  %v993 = vpop.f32.mrf.mxu0
  %v994 = vadd.f32 %v825, %v993
  %995 = vmatmul.bf16.gmra.mxu0 %v664
  %v996 = vpop.f32.mrf.mxu0
  %v997 = vadd.f32 %v828, %v996
  %v998 = vpop.f32.mrf.mxu0
  %v999 = vadd.f32 %v830, %v998
  %1000 = vmatmul.bf16.gmra.mxu0 %v667
  %v1001 = vpop.f32.mrf.mxu0
  %v1002 = vadd.f32 %v833, %v1001
  %v1003 = vpop.f32.mrf.mxu0
  %v1004 = vadd.f32 %v835, %v1003
  %1005 = vmatmul.bf16.gmra.mxu0 %v670
  %v1006 = vpop.f32.mrf.mxu0
  %v1007 = vadd.f32 %v838, %v1006
  %v1008 = vpop.f32.mrf.mxu0
  %v1009 = vadd.f32 %v840, %v1008
  %1010 = vmatmul.bf16.gmra.mxu0 %v673
  %v1011 = vpop.f32.mrf.mxu0
  %v1012 = vadd.f32 %v843, %v1011
  %v1013 = vpop.f32.mrf.mxu0
  %v1014 = vadd.f32 %v845, %v1013
  %1015 = vmatmul.bf16.gmra.mxu0 %v676
  %v1016 = vpop.f32.mrf.mxu0
  %v1017 = vadd.f32 %v848, %v1016
  %v1018 = vpop.f32.mrf.mxu0
  %v1019 = vadd.f32 %v850, %v1018
  %1020 = vmatmul.bf16.gmra.mxu0 %v679
  %v1021 = vpop.f32.mrf.mxu0
  %v1022 = vadd.f32 %v853, %v1021
  %v1023 = vpop.f32.mrf.mxu0
  %v1024 = vadd.f32 %v855, %v1023
  %1025 = vdwg.mxu0
  %v1026 = vadd.f32 %v156, %v867
  %v1027 = vadd.f32 %v157, %v869
  %v1028 = vadd.f32 %v158, %v872
  %v1029 = vadd.f32 %v159, %v874
  %v1030 = vadd.f32 %v160, %v877
  %v1031 = vadd.f32 %v161, %v879
  %v1032 = vadd.f32 %v162, %v882
  %v1033 = vadd.f32 %v163, %v884
  %v1034 = vadd.f32 %v164, %v887
  %v1035 = vadd.f32 %v165, %v889
  %v1036 = vadd.f32 %v166, %v892
  %v1037 = vadd.f32 %v167, %v894
  %v1038 = vadd.f32 %v168, %v897
  %v1039 = vadd.f32 %v169, %v899
  %v1040 = vadd.f32 %v170, %v902
  %v1041 = vadd.f32 %v171, %v904
  %v1042 = vadd.f32 %v172, %v907
  %v1043 = vadd.f32 %v173, %v909
  %v1044 = vadd.f32 %v174, %v912
  %v1045 = vadd.f32 %v175, %v914
  %v1046 = vadd.f32 %v176, %v917
  %v1047 = vadd.f32 %v177, %v919
  %v1048 = vadd.f32 %v178, %v922
  %v1049 = vadd.f32 %v179, %v924
  %v1050 = vadd.f32 %v180, %v927
  %v1051 = vadd.f32 %v181, %v929
  %v1052 = vadd.f32 %v182, %v932
  %v1053 = vadd.f32 %v183, %v934
  %v1054 = vadd.f32 %v184, %v937
  %v1055 = vadd.f32 %v185, %v939
  %v1056 = vadd.f32 %v186, %v942
  %v1057 = vadd.f32 %v187, %v944
  %v1058 = vadd.f32 %v188, %v947
  %v1059 = vadd.f32 %v189, %v949
  %v1060 = vadd.f32 %v190, %v952
  %v1061 = vadd.f32 %v191, %v954
  %v1062 = vadd.f32 %v192, %v957
  %v1063 = vadd.f32 %v193, %v959
  %v1064 = vadd.f32 %v194, %v962
  %v1065 = vadd.f32 %v195, %v964
  %v1066 = vadd.f32 %v196, %v967
  %v1067 = vadd.f32 %v197, %v969
  %v1068 = vadd.f32 %v198, %v972
  %v1069 = vadd.f32 %v199, %v974
  %v1070 = vadd.f32 %v200, %v977
  %v1071 = vadd.f32 %v201, %v979
  %v1072 = vadd.f32 %v202, %v982
  %v1073 = vadd.f32 %v203, %v984
  %v1074 = vadd.f32 %v204, %v987
  %v1075 = vadd.f32 %v205, %v989
  %v1076 = vadd.f32 %v206, %v992
  %v1077 = vadd.f32 %v207, %v994
  %v1078 = vadd.f32 %v208, %v997
  %v1079 = vadd.f32 %v209, %v999
  %v1080 = vadd.f32 %v210, %v1002
  %v1081 = vadd.f32 %v211, %v1004
  %v1082 = vadd.f32 %v212, %v1007
  %v1083 = vadd.f32 %v213, %v1009
  %v1084 = vadd.f32 %v214, %v1012
  %v1085 = vadd.f32 %v215, %v1014
  %v1086 = vadd.f32 %v216, %v1017
  %v1087 = vadd.f32 %v217, %v1019
  %v1088 = vadd.f32 %v218, %v1022
  %v1089 = vadd.f32 %v219, %v1024
  %1090 = vst [vmem:[#allocation2] sm:$0xff] %v1026
  %1091 = vst [vmem:[#allocation2 + $0x8] sm:$0xff] %v1027
  %1092 = vst [vmem:[#allocation2 + $0x10] sm:$0xff] %v1028
  %1093 = vst [vmem:[#allocation2 + $0x18] sm:$0xff] %v1029
  %1094 = vst [vmem:[#allocation2 + $0x20] sm:$0xff] %v1030
  %1095 = vst [vmem:[#allocation2 + $0x28] sm:$0xff] %v1031
  %1096 = vst [vmem:[#allocation2 + $0x30] sm:$0xff] %v1032
  %1097 = vst [vmem:[#allocation2 + $0x38] sm:$0xff] %v1033
  %1098 = vst [vmem:[#allocation2 + $0x40] sm:$0xff] %v1034
  %1099 = vst [vmem:[#allocation2 + $0x48] sm:$0xff] %v1035
  %1100 = vst [vmem:[#allocation2 + $0x50] sm:$0xff] %v1036
  %1101 = vst [vmem:[#allocation2 + $0x58] sm:$0xff] %v1037
  %1102 = vst [vmem:[#allocation2 + $0x60] sm:$0xff] %v1038
  %1103 = vst [vmem:[#allocation2 + $0x68] sm:$0xff] %v1039
  %1104 = vst [vmem:[#allocation2 + $0x70] sm:$0xff] %v1040
  %1105 = vst [vmem:[#allocation2 + $0x78] sm:$0xff] %v1041
  %1106 = vst [vmem:[#allocation2 + $0x80] sm:$0xff] %v1042
  %1107 = vst [vmem:[#allocation2 + $0x88] sm:$0xff] %v1043
  %1108 = vst [vmem:[#allocation2 + $0x90] sm:$0xff] %v1044
  %1109 = vst [vmem:[#allocation2 + $0x98] sm:$0xff] %v1045
  %1110 = vst [vmem:[#allocation2 + $0xa0] sm:$0xff] %v1046
  %1111 = vst [vmem:[#allocation2 + $0xa8] sm:$0xff] %v1047
  %1112 = vst [vmem:[#allocation2 + $0xb0] sm:$0xff] %v1048
  %1113 = vst [vmem:[#allocation2 + $0xb8] sm:$0xff] %v1049
  %1114 = vst [vmem:[#allocation2 + $0xc0] sm:$0xff] %v1050
  %1115 = vst [vmem:[#allocation2 + $0xc8] sm:$0xff] %v1051
  %1116 = vst [vmem:[#allocation2 + $0xd0] sm:$0xff] %v1052
  %1117 = vst [vmem:[#allocation2 + $0xd8] sm:$0xff] %v1053
  %1118 = vst [vmem:[#allocation2 + $0xe0] sm:$0xff] %v1054
  %1119 = vst [vmem:[#allocation2 + $0xe8] sm:$0xff] %v1055
  %1120 = vst [vmem:[#allocation2 + $0xf0] sm:$0xff] %v1056
  %1121 = vst [vmem:[#allocation2 + $0xf8] sm:$0xff] %v1057
  %1122 = vst [vmem:[#allocation2 + $0x100] sm:$0xff] %v1058
  %1123 = vst [vmem:[#allocation2 + $0x108] sm:$0xff] %v1059
  %1124 = vst [vmem:[#allocation2 + $0x110] sm:$0xff] %v1060
  %1125 = vst [vmem:[#allocation2 + $0x118] sm:$0xff] %v1061
  %1126 = vst [vmem:[#allocation2 + $0x120] sm:$0xff] %v1062
  %1127 = vst [vmem:[#allocation2 + $0x128] sm:$0xff] %v1063
  %1128 = vst [vmem:[#allocation2 + $0x130] sm:$0xff] %v1064
  %1129 = vst [vmem:[#allocation2 + $0x138] sm:$0xff] %v1065
  %1130 = vst [vmem:[#allocation2 + $0x140] sm:$0xff] %v1066
  %1131 = vst [vmem:[#allocation2 + $0x148] sm:$0xff] %v1067
  %1132 = vst [vmem:[#allocation2 + $0x150] sm:$0xff] %v1068
  %1133 = vst [vmem:[#allocation2 + $0x158] sm:$0xff] %v1069
  %1134 = vst [vmem:[#allocation2 + $0x160] sm:$0xff] %v1070
  %1135 = vst [vmem:[#allocation2 + $0x168] sm:$0xff] %v1071
  %1136 = vst [vmem:[#allocation2 + $0x170] sm:$0xff] %v1072
  %1137 = vst [vmem:[#allocation2 + $0x178] sm:$0xff] %v1073
  %1138 = vst [vmem:[#allocation2 + $0x180] sm:$0xff] %v1074
  %1139 = vst [vmem:[#allocation2 + $0x188] sm:$0xff] %v1075
  %1140 = vst [vmem:[#allocation2 + $0x190] sm:$0xff] %v1076
  %1141 = vst [vmem:[#allocation2 + $0x198] sm:$0xff] %v1077
  %1142 = vst [vmem:[#allocation2 + $0x1a0] sm:$0xff] %v1078
  %1143 = vst [vmem:[#allocation2 + $0x1a8] sm:$0xff] %v1079
  %1144 = vst [vmem:[#allocation2 + $0x1b0] sm:$0xff] %v1080
  %1145 = vst [vmem:[#allocation2 + $0x1b8] sm:$0xff] %v1081
  %1146 = vst [vmem:[#allocation2 + $0x1c0] sm:$0xff] %v1082
  %1147 = vst [vmem:[#allocation2 + $0x1c8] sm:$0xff] %v1083
  %1148 = vst [vmem:[#allocation2 + $0x1d0] sm:$0xff] %v1084
  %1149 = vst [vmem:[#allocation2 + $0x1d8] sm:$0xff] %v1085
  %1150 = vst [vmem:[#allocation2 + $0x1e0] sm:$0xff] %v1086
  %1151 = vst [vmem:[#allocation2 + $0x1e8] sm:$0xff] %v1087
  %1152 = vst [vmem:[#allocation2 + $0x1f0] sm:$0xff] %v1088
  %1153 = vst [vmem:[#allocation2 + $0x1f8] sm:$0xff] %v1089
  // Predicated region
  $region30: #{densenet_forward.13} parent=0 // pred_check
    %p1154 = pneg %p24
  $region31: #{densenet_forward.13} parent=0 // pred_check_branch
    %1156 = sbr.rel (%p1154) target = $region33
  $region32: #{densenet_forward.13} parent=0 // pred_region
    %v1157 = vld [vmem:[#allocation2] sm:$0xff]
    %v1158 = vld [vmem:[#allocation2 + $0x8] sm:$0xff]
    %v1159 = vld [vmem:[#allocation2 + $0x10] sm:$0xff]
    %v1160 = vld [vmem:[#allocation2 + $0x18] sm:$0xff]
    %v1161 = vld [vmem:[#allocation2 + $0x20] sm:$0xff]
    %v1162 = vld [vmem:[#allocation2 + $0x28] sm:$0xff]
    %v1163 = vld [vmem:[#allocation2 + $0x30] sm:$0xff]
    %v1164 = vld [vmem:[#allocation2 + $0x38] sm:$0xff]
    %v1165 = vld [vmem:[#allocation2 + $0x40] sm:$0xff]
    %v1166 = vld [vmem:[#allocation2 + $0x48] sm:$0xff]
    %v1167 = vld [vmem:[#allocation2 + $0x50] sm:$0xff]
    %v1168 = vld [vmem:[#allocation2 + $0x58] sm:$0xff]
    %v1169 = vld [vmem:[#allocation2 + $0x60] sm:$0xff]
    %v1170 = vld [vmem:[#allocation2 + $0x68] sm:$0xff]
    %v1171 = vld [vmem:[#allocation2 + $0x70] sm:$0xff]
    %v1172 = vld [vmem:[#allocation2 + $0x78] sm:$0xff]
    %v1173 = vld [vmem:[#allocation2 + $0x80] sm:$0xff]
    %v1174 = vld [vmem:[#allocation2 + $0x88] sm:$0xff]
    %v1175 = vld [vmem:[#allocation2 + $0x90] sm:$0xff]
    %v1176 = vld [vmem:[#allocation2 + $0x98] sm:$0xff]
    %v1177 = vld [vmem:[#allocation2 + $0xa0] sm:$0xff]
    %v1178 = vld [vmem:[#allocation2 + $0xa8] sm:$0xff]
    %v1179 = vld [vmem:[#allocation2 + $0xb0] sm:$0xff]
    %v1180 = vld [vmem:[#allocation2 + $0xb8] sm:$0xff]
    %v1181 = vld [vmem:[#allocation2 + $0xc0] sm:$0xff]
    %v1182 = vld [vmem:[#allocation2 + $0xc8] sm:$0xff]
    %v1183 = vld [vmem:[#allocation2 + $0xd0] sm:$0xff]
    %v1184 = vld [vmem:[#allocation2 + $0xd8] sm:$0xff]
    %v1185 = vld [vmem:[#allocation2 + $0xe0] sm:$0xff]
    %v1186 = vld [vmem:[#allocation2 + $0xe8] sm:$0xff]
    %v1187 = vld [vmem:[#allocation2 + $0xf0] sm:$0xff]
    %v1188 = vld [vmem:[#allocation2 + $0xf8] sm:$0xff]
    %v1189 = vld [vmem:[#allocation2 + $0x100] sm:$0xff]
    %v1190 = vld [vmem:[#allocation2 + $0x108] sm:$0xff]
    %v1191 = vld [vmem:[#allocation2 + $0x110] sm:$0xff]
    %v1192 = vld [vmem:[#allocation2 + $0x118] sm:$0xff]
    %v1193 = vld [vmem:[#allocation2 + $0x120] sm:$0xff]
    %v1194 = vld [vmem:[#allocation2 + $0x128] sm:$0xff]
    %v1195 = vld [vmem:[#allocation2 + $0x130] sm:$0xff]
    %v1196 = vld [vmem:[#allocation2 + $0x138] sm:$0xff]
    %v1197 = vld [vmem:[#allocation2 + $0x140] sm:$0xff]
    %v1198 = vld [vmem:[#allocation2 + $0x148] sm:$0xff]
    %v1199 = vld [vmem:[#allocation2 + $0x150] sm:$0xff]
    %v1200 = vld [vmem:[#allocation2 + $0x158] sm:$0xff]
    %v1201 = vld [vmem:[#allocation2 + $0x160] sm:$0xff]
    %v1202 = vld [vmem:[#allocation2 + $0x168] sm:$0xff]
    %v1203 = vld [vmem:[#allocation2 + $0x170] sm:$0xff]
    %v1204 = vld [vmem:[#allocation2 + $0x178] sm:$0xff]
    %v1205 = vld [vmem:[#allocation2 + $0x180] sm:$0xff]
    %v1206 = vld [vmem:[#allocation2 + $0x188] sm:$0xff]
    %v1207 = vld [vmem:[#allocation2 + $0x190] sm:$0xff]
    %v1208 = vld [vmem:[#allocation2 + $0x198] sm:$0xff]
    %v1209 = vld [vmem:[#allocation2 + $0x1a0] sm:$0xff]
    %v1210 = vld [vmem:[#allocation2 + $0x1a8] sm:$0xff]
    %v1211 = vld [vmem:[#allocation2 + $0x1b0] sm:$0xff]
    %v1212 = vld [vmem:[#allocation2 + $0x1b8] sm:$0xff]
    %v1213 = vld [vmem:[#allocation2 + $0x1c0] sm:$0xff]
    %v1214 = vld [vmem:[#allocation2 + $0x1c8] sm:$0xff]
    %v1215 = vld [vmem:[#allocation2 + $0x1d0] sm:$0xff]
    %v1216 = vld [vmem:[#allocation2 + $0x1d8] sm:$0xff]
    %v1217 = vld [vmem:[#allocation2 + $0x1e0] sm:$0xff]
    %v1218 = vld [vmem:[#allocation2 + $0x1e8] sm:$0xff]
    %v1219 = vld [vmem:[#allocation2 + $0x1f0] sm:$0xff]
    %v1220 = vld [vmem:[#allocation2 + $0x1f8] sm:$0xff]
    %v1221 = vld [vmem:[%s4] sm:$0x1]
    %v1223 = vperm.slane %v1221, 0
    %v1225 = vmul.f32 %v1157, %v1223
    %v1226 = vmul.f32 %v1158, %v1223
    %v1227 = vmul.f32 %v1159, %v1223
    %v1228 = vmul.f32 %v1160, %v1223
    %v1229 = vmul.f32 %v1161, %v1223
    %v1230 = vmul.f32 %v1162, %v1223
    %v1231 = vmul.f32 %v1163, %v1223
    %v1232 = vmul.f32 %v1164, %v1223
    %v1233 = vmul.f32 %v1165, %v1223
    %v1234 = vmul.f32 %v1166, %v1223
    %v1235 = vmul.f32 %v1167, %v1223
    %v1236 = vmul.f32 %v1168, %v1223
    %v1237 = vmul.f32 %v1169, %v1223
    %v1238 = vmul.f32 %v1170, %v1223
    %v1239 = vmul.f32 %v1171, %v1223
    %v1240 = vmul.f32 %v1172, %v1223
    %v1241 = vmul.f32 %v1173, %v1223
    %v1242 = vmul.f32 %v1174, %v1223
    %v1243 = vmul.f32 %v1175, %v1223
    %v1244 = vmul.f32 %v1176, %v1223
    %v1245 = vmul.f32 %v1177, %v1223
    %v1246 = vmul.f32 %v1178, %v1223
    %v1247 = vmul.f32 %v1179, %v1223
    %v1248 = vmul.f32 %v1180, %v1223
    %v1249 = vmul.f32 %v1181, %v1223
    %v1250 = vmul.f32 %v1182, %v1223
    %v1251 = vmul.f32 %v1183, %v1223
    %v1252 = vmul.f32 %v1184, %v1223
    %v1253 = vmul.f32 %v1185, %v1223
    %v1254 = vmul.f32 %v1186, %v1223
    %v1255 = vmul.f32 %v1187, %v1223
    %v1256 = vmul.f32 %v1188, %v1223
    %v1257 = vmul.f32 %v1189, %v1223
    %v1258 = vmul.f32 %v1190, %v1223
    %v1259 = vmul.f32 %v1191, %v1223
    %v1260 = vmul.f32 %v1192, %v1223
    %v1261 = vmul.f32 %v1193, %v1223
    %v1262 = vmul.f32 %v1194, %v1223
    %v1263 = vmul.f32 %v1195, %v1223
    %v1264 = vmul.f32 %v1196, %v1223
    %v1265 = vmul.f32 %v1197, %v1223
    %v1266 = vmul.f32 %v1198, %v1223
    %v1267 = vmul.f32 %v1199, %v1223
    %v1268 = vmul.f32 %v1200, %v1223
    %v1269 = vmul.f32 %v1201, %v1223
    %v1270 = vmul.f32 %v1202, %v1223
    %v1271 = vmul.f32 %v1203, %v1223
    %v1272 = vmul.f32 %v1204, %v1223
    %v1273 = vmul.f32 %v1205, %v1223
    %v1274 = vmul.f32 %v1206, %v1223
    %v1275 = vmul.f32 %v1207, %v1223
    %v1276 = vmul.f32 %v1208, %v1223
    %v1277 = vmul.f32 %v1209, %v1223
    %v1278 = vmul.f32 %v1210, %v1223
    %v1279 = vmul.f32 %v1211, %v1223
    %v1280 = vmul.f32 %v1212, %v1223
    %v1281 = vmul.f32 %v1213, %v1223
    %v1282 = vmul.f32 %v1214, %v1223
    %v1283 = vmul.f32 %v1215, %v1223
    %v1284 = vmul.f32 %v1216, %v1223
    %v1285 = vmul.f32 %v1217, %v1223
    %v1286 = vmul.f32 %v1218, %v1223
    %v1287 = vmul.f32 %v1219, %v1223
    %v1288 = vmul.f32 %v1220, %v1223
    %v1289 = vld [vmem:[%s5] sm:$0x1]
    %v1291 = vperm.slane %v1289, 0
    %v1293 = vadd.f32 %v1225, %v1291
    %v1294 = vadd.f32 %v1226, %v1291
    %v1295 = vadd.f32 %v1227, %v1291
    %v1296 = vadd.f32 %v1228, %v1291
    %v1297 = vadd.f32 %v1229, %v1291
    %v1298 = vadd.f32 %v1230, %v1291
    %v1299 = vadd.f32 %v1231, %v1291
    %v1300 = vadd.f32 %v1232, %v1291
    %v1301 = vadd.f32 %v1233, %v1291
    %v1302 = vadd.f32 %v1234, %v1291
    %v1303 = vadd.f32 %v1235, %v1291
    %v1304 = vadd.f32 %v1236, %v1291
    %v1305 = vadd.f32 %v1237, %v1291
    %v1306 = vadd.f32 %v1238, %v1291
    %v1307 = vadd.f32 %v1239, %v1291
    %v1308 = vadd.f32 %v1240, %v1291
    %v1309 = vadd.f32 %v1241, %v1291
    %v1310 = vadd.f32 %v1242, %v1291
    %v1311 = vadd.f32 %v1243, %v1291
    %v1312 = vadd.f32 %v1244, %v1291
    %v1313 = vadd.f32 %v1245, %v1291
    %v1314 = vadd.f32 %v1246, %v1291
    %v1315 = vadd.f32 %v1247, %v1291
    %v1316 = vadd.f32 %v1248, %v1291
    %v1317 = vadd.f32 %v1249, %v1291
    %v1318 = vadd.f32 %v1250, %v1291
    %v1319 = vadd.f32 %v1251, %v1291
    %v1320 = vadd.f32 %v1252, %v1291
    %v1321 = vadd.f32 %v1253, %v1291
    %v1322 = vadd.f32 %v1254, %v1291
    %v1323 = vadd.f32 %v1255, %v1291
    %v1324 = vadd.f32 %v1256, %v1291
    %v1325 = vadd.f32 %v1257, %v1291
    %v1326 = vadd.f32 %v1258, %v1291
    %v1327 = vadd.f32 %v1259, %v1291
    %v1328 = vadd.f32 %v1260, %v1291
    %v1329 = vadd.f32 %v1261, %v1291
    %v1330 = vadd.f32 %v1262, %v1291
    %v1331 = vadd.f32 %v1263, %v1291
    %v1332 = vadd.f32 %v1264, %v1291
    %v1333 = vadd.f32 %v1265, %v1291
    %v1334 = vadd.f32 %v1266, %v1291
    %v1335 = vadd.f32 %v1267, %v1291
    %v1336 = vadd.f32 %v1268, %v1291
    %v1337 = vadd.f32 %v1269, %v1291
    %v1338 = vadd.f32 %v1270, %v1291
    %v1339 = vadd.f32 %v1271, %v1291
    %v1340 = vadd.f32 %v1272, %v1291
    %v1341 = vadd.f32 %v1273, %v1291
    %v1342 = vadd.f32 %v1274, %v1291
    %v1343 = vadd.f32 %v1275, %v1291
    %v1344 = vadd.f32 %v1276, %v1291
    %v1345 = vadd.f32 %v1277, %v1291
    %v1346 = vadd.f32 %v1278, %v1291
    %v1347 = vadd.f32 %v1279, %v1291
    %v1348 = vadd.f32 %v1280, %v1291
    %v1349 = vadd.f32 %v1281, %v1291
    %v1350 = vadd.f32 %v1282, %v1291
    %v1351 = vadd.f32 %v1283, %v1291
    %v1352 = vadd.f32 %v1284, %v1291
    %v1353 = vadd.f32 %v1285, %v1291
    %v1354 = vadd.f32 %v1286, %v1291
    %v1355 = vadd.f32 %v1287, %v1291
    %v1356 = vadd.f32 %v1288, %v1291
    %v1357 = vmax.f32 %v1293, 0.0
    %v1358 = vmax.f32 %v1294, 0.0
    %v1359 = vmax.f32 %v1295, 0.0
    %v1360 = vmax.f32 %v1296, 0.0
    %v1361 = vmax.f32 %v1297, 0.0
    %v1362 = vmax.f32 %v1298, 0.0
    %v1363 = vmax.f32 %v1299, 0.0
    %v1364 = vmax.f32 %v1300, 0.0
    %v1365 = vmax.f32 %v1301, 0.0
    %v1366 = vmax.f32 %v1302, 0.0
    %v1367 = vmax.f32 %v1303, 0.0
    %v1368 = vmax.f32 %v1304, 0.0
    %v1369 = vmax.f32 %v1305, 0.0
    %v1370 = vmax.f32 %v1306, 0.0
    %v1371 = vmax.f32 %v1307, 0.0
    %v1372 = vmax.f32 %v1308, 0.0
    %v1373 = vmax.f32 %v1309, 0.0
    %v1374 = vmax.f32 %v1310, 0.0
    %v1375 = vmax.f32 %v1311, 0.0
    %v1376 = vmax.f32 %v1312, 0.0
    %v1377 = vmax.f32 %v1313, 0.0
    %v1378 = vmax.f32 %v1314, 0.0
    %v1379 = vmax.f32 %v1315, 0.0
    %v1380 = vmax.f32 %v1316, 0.0
    %v1381 = vmax.f32 %v1317, 0.0
    %v1382 = vmax.f32 %v1318, 0.0
    %v1383 = vmax.f32 %v1319, 0.0
    %v1384 = vmax.f32 %v1320, 0.0
    %v1385 = vmax.f32 %v1321, 0.0
    %v1386 = vmax.f32 %v1322, 0.0
    %v1387 = vmax.f32 %v1323, 0.0
    %v1388 = vmax.f32 %v1324, 0.0
    %v1389 = vmax.f32 %v1325, 0.0
    %v1390 = vmax.f32 %v1326, 0.0
    %v1391 = vmax.f32 %v1327, 0.0
    %v1392 = vmax.f32 %v1328, 0.0
    %v1393 = vmax.f32 %v1329, 0.0
    %v1394 = vmax.f32 %v1330, 0.0
    %v1395 = vmax.f32 %v1331, 0.0
    %v1396 = vmax.f32 %v1332, 0.0
    %v1397 = vmax.f32 %v1333, 0.0
    %v1398 = vmax.f32 %v1334, 0.0
    %v1399 = vmax.f32 %v1335, 0.0
    %v1400 = vmax.f32 %v1336, 0.0
    %v1401 = vmax.f32 %v1337, 0.0
    %v1402 = vmax.f32 %v1338, 0.0
    %v1403 = vmax.f32 %v1339, 0.0
    %v1404 = vmax.f32 %v1340, 0.0
    %v1405 = vmax.f32 %v1341, 0.0
    %v1406 = vmax.f32 %v1342, 0.0
    %v1407 = vmax.f32 %v1343, 0.0
    %v1408 = vmax.f32 %v1344, 0.0
    %v1409 = vmax.f32 %v1345, 0.0
    %v1410 = vmax.f32 %v1346, 0.0
    %v1411 = vmax.f32 %v1347, 0.0
    %v1412 = vmax.f32 %v1348, 0.0
    %v1413 = vmax.f32 %v1349, 0.0
    %v1414 = vmax.f32 %v1350, 0.0
    %v1415 = vmax.f32 %v1351, 0.0
    %v1416 = vmax.f32 %v1352, 0.0
    %v1417 = vmax.f32 %v1353, 0.0
    %v1418 = vmax.f32 %v1354, 0.0
    %v1419 = vmax.f32 %v1355, 0.0
    %v1420 = vmax.f32 %v1356, 0.0
    %v1421 = vpack.c.bf16 %v1357, %v1357
    %v1422 = vpack.c.bf16 %v1358, %v1358
    %v1423 = vpack.c.bf16 %v1359, %v1359
    %v1424 = vpack.c.bf16 %v1360, %v1360
    %v1425 = vpack.c.bf16 %v1361, %v1361
    %v1426 = vpack.c.bf16 %v1362, %v1362
    %v1427 = vpack.c.bf16 %v1363, %v1363
    %v1428 = vpack.c.bf16 %v1364, %v1364
    %v1429 = vpack.c.bf16 %v1365, %v1365
    %v1430 = vpack.c.bf16 %v1366, %v1366
    %v1431 = vpack.c.bf16 %v1367, %v1367
    %v1432 = vpack.c.bf16 %v1368, %v1368
    %v1433 = vpack.c.bf16 %v1369, %v1369
    %v1434 = vpack.c.bf16 %v1370, %v1370
    %v1435 = vpack.c.bf16 %v1371, %v1371
    %v1436 = vpack.c.bf16 %v1372, %v1372
    %v1437 = vpack.c.bf16 %v1373, %v1373
    %v1438 = vpack.c.bf16 %v1374, %v1374
    %v1439 = vpack.c.bf16 %v1375, %v1375
    %v1440 = vpack.c.bf16 %v1376, %v1376
    %v1441 = vpack.c.bf16 %v1377, %v1377
    %v1442 = vpack.c.bf16 %v1378, %v1378
    %v1443 = vpack.c.bf16 %v1379, %v1379
    %v1444 = vpack.c.bf16 %v1380, %v1380
    %v1445 = vpack.c.bf16 %v1381, %v1381
    %v1446 = vpack.c.bf16 %v1382, %v1382
    %v1447 = vpack.c.bf16 %v1383, %v1383
    %v1448 = vpack.c.bf16 %v1384, %v1384
    %v1449 = vpack.c.bf16 %v1385, %v1385
    %v1450 = vpack.c.bf16 %v1386, %v1386
    %v1451 = vpack.c.bf16 %v1387, %v1387
    %v1452 = vpack.c.bf16 %v1388, %v1388
    %v1453 = vpack.c.bf16 %v1389, %v1389
    %v1454 = vpack.c.bf16 %v1390, %v1390
    %v1455 = vpack.c.bf16 %v1391, %v1391
    %v1456 = vpack.c.bf16 %v1392, %v1392
    %v1457 = vpack.c.bf16 %v1393, %v1393
    %v1458 = vpack.c.bf16 %v1394, %v1394
    %v1459 = vpack.c.bf16 %v1395, %v1395
    %v1460 = vpack.c.bf16 %v1396, %v1396
    %v1461 = vpack.c.bf16 %v1397, %v1397
    %v1462 = vpack.c.bf16 %v1398, %v1398
    %v1463 = vpack.c.bf16 %v1399, %v1399
    %v1464 = vpack.c.bf16 %v1400, %v1400
    %v1465 = vpack.c.bf16 %v1401, %v1401
    %v1466 = vpack.c.bf16 %v1402, %v1402
    %v1467 = vpack.c.bf16 %v1403, %v1403
    %v1468 = vpack.c.bf16 %v1404, %v1404
    %v1469 = vpack.c.bf16 %v1405, %v1405
    %v1470 = vpack.c.bf16 %v1406, %v1406
    %v1471 = vpack.c.bf16 %v1407, %v1407
    %v1472 = vpack.c.bf16 %v1408, %v1408
    %v1473 = vpack.c.bf16 %v1409, %v1409
    %v1474 = vpack.c.bf16 %v1410, %v1410
    %v1475 = vpack.c.bf16 %v1411, %v1411
    %v1476 = vpack.c.bf16 %v1412, %v1412
    %v1477 = vpack.c.bf16 %v1413, %v1413
    %v1478 = vpack.c.bf16 %v1414, %v1414
    %v1479 = vpack.c.bf16 %v1415, %v1415
    %v1480 = vpack.c.bf16 %v1416, %v1416
    %v1481 = vpack.c.bf16 %v1417, %v1417
    %v1482 = vpack.c.bf16 %v1418, %v1418
    %v1483 = vpack.c.bf16 %v1419, %v1419
    %v1484 = vpack.c.bf16 %v1420, %v1420
    %1485 = vst [vmem:[%s6] sm:$0xf] %v1421
    %1486 = vst [vmem:[%s6 + $0x4] sm:$0xf] %v1422
    %1487 = vst [vmem:[%s6 + $0x8] sm:$0xf] %v1423
    %1488 = vst [vmem:[%s6 + $0xc] sm:$0xf] %v1424
    %1489 = vst [vmem:[%s6 + $0x10] sm:$0xf] %v1425
    %1490 = vst [vmem:[%s6 + $0x14] sm:$0xf] %v1426
    %1491 = vst [vmem:[%s6 + $0x18] sm:$0xf] %v1427
    %1492 = vst [vmem:[%s6 + $0x1c] sm:$0xf] %v1428
    %1493 = vst [vmem:[%s6 + $0x20] sm:$0xf] %v1429
    %1494 = vst [vmem:[%s6 + $0x24] sm:$0xf] %v1430
    %1495 = vst [vmem:[%s6 + $0x28] sm:$0xf] %v1431
    %1496 = vst [vmem:[%s6 + $0x2c] sm:$0xf] %v1432
    %1497 = vst [vmem:[%s6 + $0x30] sm:$0xf] %v1433
    %1498 = vst [vmem:[%s6 + $0x34] sm:$0xf] %v1434
    %1499 = vst [vmem:[%s6 + $0x38] sm:$0xf] %v1435
    %1500 = vst [vmem:[%s6 + $0x3c] sm:$0xf] %v1436
    %1501 = vst [vmem:[%s6 + $0x40] sm:$0xf] %v1437
    %1502 = vst [vmem:[%s6 + $0x44] sm:$0xf] %v1438
    %1503 = vst [vmem:[%s6 + $0x48] sm:$0xf] %v1439
    %1504 = vst [vmem:[%s6 + $0x4c] sm:$0xf] %v1440
    %1505 = vst [vmem:[%s6 + $0x50] sm:$0xf] %v1441
    %1506 = vst [vmem:[%s6 + $0x54] sm:$0xf] %v1442
    %1507 = vst [vmem:[%s6 + $0x58] sm:$0xf] %v1443
    %1508 = vst [vmem:[%s6 + $0x5c] sm:$0xf] %v1444
    %1509 = vst [vmem:[%s6 + $0x60] sm:$0xf] %v1445
    %1510 = vst [vmem:[%s6 + $0x64] sm:$0xf] %v1446
    %1511 = vst [vmem:[%s6 + $0x68] sm:$0xf] %v1447
    %1512 = vst [vmem:[%s6 + $0x6c] sm:$0xf] %v1448
    %1513 = vst [vmem:[%s6 + $0x70] sm:$0xf] %v1449
    %1514 = vst [vmem:[%s6 + $0x74] sm:$0xf] %v1450
    %1515 = vst [vmem:[%s6 + $0x78] sm:$0xf] %v1451
    %1516 = vst [vmem:[%s6 + $0x7c] sm:$0xf] %v1452
    %1517 = vst [vmem:[%s6 + $0x80] sm:$0xf] %v1453
    %1518 = vst [vmem:[%s6 + $0x84] sm:$0xf] %v1454
    %1519 = vst [vmem:[%s6 + $0x88] sm:$0xf] %v1455
    %1520 = vst [vmem:[%s6 + $0x8c] sm:$0xf] %v1456
    %1521 = vst [vmem:[%s6 + $0x90] sm:$0xf] %v1457
    %1522 = vst [vmem:[%s6 + $0x94] sm:$0xf] %v1458
    %1523 = vst [vmem:[%s6 + $0x98] sm:$0xf] %v1459
    %1524 = vst [vmem:[%s6 + $0x9c] sm:$0xf] %v1460
    %1525 = vst [vmem:[%s6 + $0xa0] sm:$0xf] %v1461
    %1526 = vst [vmem:[%s6 + $0xa4] sm:$0xf] %v1462
    %1527 = vst [vmem:[%s6 + $0xa8] sm:$0xf] %v1463
    %1528 = vst [vmem:[%s6 + $0xac] sm:$0xf] %v1464
    %1529 = vst [vmem:[%s6 + $0xb0] sm:$0xf] %v1465
    %1530 = vst [vmem:[%s6 + $0xb4] sm:$0xf] %v1466
    %1531 = vst [vmem:[%s6 + $0xb8] sm:$0xf] %v1467
    %1532 = vst [vmem:[%s6 + $0xbc] sm:$0xf] %v1468
    %1533 = vst [vmem:[%s6 + $0xc0] sm:$0xf] %v1469
    %1534 = vst [vmem:[%s6 + $0xc4] sm:$0xf] %v1470
    %1535 = vst [vmem:[%s6 + $0xc8] sm:$0xf] %v1471
    %1536 = vst [vmem:[%s6 + $0xcc] sm:$0xf] %v1472
    %1537 = vst [vmem:[%s6 + $0xd0] sm:$0xf] %v1473
    %1538 = vst [vmem:[%s6 + $0xd4] sm:$0xf] %v1474
    %1539 = vst [vmem:[%s6 + $0xd8] sm:$0xf] %v1475
    %1540 = vst [vmem:[%s6 + $0xdc] sm:$0xf] %v1476
    %1541 = vst [vmem:[%s6 + $0xe0] sm:$0xf] %v1477
    %1542 = vst [vmem:[%s6 + $0xe4] sm:$0xf] %v1478
    %1543 = vst [vmem:[%s6 + $0xe8] sm:$0xf] %v1479
    %1544 = vst [vmem:[%s6 + $0xec] sm:$0xf] %v1480
    %1545 = vst [vmem:[%s6 + $0xf0] sm:$0xf] %v1481
    %1546 = vst [vmem:[%s6 + $0xf4] sm:$0xf] %v1482
    %1547 = vst [vmem:[%s6 + $0xf8] sm:$0xf] %v1483
    %1548 = vst [vmem:[%s6 + $0xfc] sm:$0xf] %v1484
  $region33: #{densenet_forward.13} parent=0 // pred_fallthru
    _
  // Predicated region
  $region34: #{densenet_forward.13} parent=0 // pred_check
    _
  $region35: #{densenet_forward.13} parent=0 // pred_check_branch
    %1550 = sbr.rel (0) target = $region37
  $region36: #{densenet_forward.13} parent=0 // pred_region
    _
  $region37: #{densenet_forward.13} parent=0 // pred_fallthru
    _
  // Predicated region
  $region38: #{densenet_forward.13} parent=0 // pred_check
    _
  $region39: #{densenet_forward.13} parent=0 // pred_check_branch
    %1552 = sbr.rel (0) target = $region41
  $region40: #{densenet_forward.13} parent=0 // pred_region
    _
  $region41: #{densenet_forward.13} parent=0 // pred_fallthru
    _

// kernel: densenet_forward.15
$region0: #{densenet_forward.15}
  #allocation0 [shape = 'u32[]', space=smem, size = 0x4, offset = 0x4, fixed_abs, tag = 'smem constant byte address 0x4 - core index']
  #allocation1 [shape = 'u32[72,128]{1,0:T(1,128)}', space=vmem, size = 0x9000, scoped, tag = 'internal scratch']
  #allocation2 [shape = 'f32[128,128]{1,0:T(8,128)}', space=vmem, size = 0x10000, scoped, tag = 'scratch operand']
  %s0 = inlined_call_operand.vmem [shape: bf16[128,128], index: 0, kind: input, shape index: {}]
  %s1 = inlined_call_operand.vmem [shape: bf16[128,128], index: 1, kind: input, shape index: {}]
  %s2 = inlined_call_operand.vmem [shape: f32[1,128], index: 2, kind: input, shape index: {}]
  %s3 = inlined_call_operand.vmem [shape: f32[1,128], index: 3, kind: input, shape index: {}]
  %s4 = inlined_call_operand.vmem [shape: f32[1,128], index: 4, kind: input, shape index: {}]
  %s5 = inlined_call_operand.vmem [shape: f32[1,128], index: 5, kind: input, shape index: {}]
  %s6 = inlined_call_operand.vmem [shape: bf16[128,128], index: 6, kind: output, shape index: {}]
  %s7 = sld [smem:[#allocation0]]
  $region42: #{densenet_forward.15} parent=0
    _
  %s9 = ssub.s32 1, %s7
  %s10 = scalar_select 0, %s9, %s7
  // Predicated region
  $region2: #{densenet_forward.15} parent=0 // pred_check
    _
  $region3: #{densenet_forward.15} parent=0 // pred_check_branch
    %12 = sbr.rel (0) target = $region5
  $region4: #{densenet_forward.15} parent=0 // pred_region
    _
  $region5: #{densenet_forward.15} parent=0 // pred_fallthru
    _
  // Predicated region
  $region6: #{densenet_forward.15} parent=0 // pred_check
    _
  $region7: #{densenet_forward.15} parent=0 // pred_check_branch
    %14 = sbr.rel (0) target = $region9
  $region8: #{densenet_forward.15} parent=0 // pred_region
    _
  $region9: #{densenet_forward.15} parent=0 // pred_fallthru
    _
  // Predicated region
  $region10: #{densenet_forward.15} parent=0 // pred_check
    _
  $region11: #{densenet_forward.15} parent=0 // pred_check_branch
    %16 = sbr.rel (0) target = $region13
  $region12: #{densenet_forward.15} parent=0 // pred_region
    _
  $region13: #{densenet_forward.15} parent=0 // pred_fallthru
    _
  // Predicated region
  $region14: #{densenet_forward.15} parent=0 // pred_check
    _
  $region15: #{densenet_forward.15} parent=0 // pred_check_branch
    %18 = sbr.rel (0) target = $region17
  $region16: #{densenet_forward.15} parent=0 // pred_region
    _
  $region17: #{densenet_forward.15} parent=0 // pred_fallthru
    _
  // Predicated region
  $region18: #{densenet_forward.15} parent=0 // pred_check
    _
  $region19: #{densenet_forward.15} parent=0 // pred_check_branch
    %20 = sbr.rel (0) target = $region21
  $region20: #{densenet_forward.15} parent=0 // pred_region
    _
  $region21: #{densenet_forward.15} parent=0 // pred_fallthru
    _
  // Predicated region
  $region22: #{densenet_forward.15} parent=0 // pred_check
    _
  $region23: #{densenet_forward.15} parent=0 // pred_check_branch
    %22 = sbr.rel (0) target = $region25
  $region24: #{densenet_forward.15} parent=0 // pred_region
    _
  $region25: #{densenet_forward.15} parent=0 // pred_fallthru
    _
  %p23 = scmp.eq.s32.totalorder 0, 0
  // Predicated region
  $region26: #{densenet_forward.15} parent=0 // pred_check
    %p24 = pneg %p23
  $region27: #{densenet_forward.15} parent=0 // pred_check_branch
    %26 = sbr.rel (%p24) target = $region29
  $region28: #{densenet_forward.15} parent=0 // pred_region
    %27 = vst [vmem:[#allocation2] sm:$0xff] 0.0
    %28 = vst [vmem:[#allocation2 + $0x8] sm:$0xff] 0.0
    %29 = vst [vmem:[#allocation2 + $0x10] sm:$0xff] 0.0
    %30 = vst [vmem:[#allocation2 + $0x18] sm:$0xff] 0.0
    %31 = vst [vmem:[#allocation2 + $0x20] sm:$0xff] 0.0
    %32 = vst [vmem:[#allocation2 + $0x28] sm:$0xff] 0.0
    %33 = vst [vmem:[#allocation2 + $0x30] sm:$0xff] 0.0
    %34 = vst [vmem:[#allocation2 + $0x38] sm:$0xff] 0.0
    %35 = vst [vmem:[#allocation2 + $0x40] sm:$0xff] 0.0
    %36 = vst [vmem:[#allocation2 + $0x48] sm:$0xff] 0.0
    %37 = vst [vmem:[#allocation2 + $0x50] sm:$0xff] 0.0
    %38 = vst [vmem:[#allocation2 + $0x58] sm:$0xff] 0.0
    %39 = vst [vmem:[#allocation2 + $0x60] sm:$0xff] 0.0
    %40 = vst [vmem:[#allocation2 + $0x68] sm:$0xff] 0.0
    %41 = vst [vmem:[#allocation2 + $0x70] sm:$0xff] 0.0
    %42 = vst [vmem:[#allocation2 + $0x78] sm:$0xff] 0.0
  $region29: #{densenet_forward.15} parent=0 // pred_fallthru
    _
  %v43 = vld [vmem:[%s0] sm:$0xf]
  %v44 = vld [vmem:[%s0 + $0x4] sm:$0xf]
  %v45 = vld [vmem:[%s0 + $0x8] sm:$0xf]
  %v46 = vld [vmem:[%s0 + $0xc] sm:$0xf]
  %v47 = vld [vmem:[%s0 + $0x10] sm:$0xf]
  %v48 = vld [vmem:[%s0 + $0x14] sm:$0xf]
  %v49 = vld [vmem:[%s0 + $0x18] sm:$0xf]
  %v50 = vld [vmem:[%s0 + $0x1c] sm:$0xf]
  %v51 = vld [vmem:[%s0 + $0x20] sm:$0xf]
  %v52 = vld [vmem:[%s0 + $0x24] sm:$0xf]
  %v53 = vld [vmem:[%s0 + $0x28] sm:$0xf]
  %v54 = vld [vmem:[%s0 + $0x2c] sm:$0xf]
  %v55 = vld [vmem:[%s0 + $0x30] sm:$0xf]
  %v56 = vld [vmem:[%s0 + $0x34] sm:$0xf]
  %v57 = vld [vmem:[%s0 + $0x38] sm:$0xf]
  %v58 = vld [vmem:[%s0 + $0x3c] sm:$0xf]
  %v59 = vunpack.c.l.bf16 %v43
  %v60 = vunpack.c.l.bf16 %v44
  %v61 = vunpack.c.l.bf16 %v45
  %v62 = vunpack.c.l.bf16 %v46
  %v63 = vunpack.c.l.bf16 %v47
  %v64 = vunpack.c.l.bf16 %v48
  %v65 = vunpack.c.l.bf16 %v49
  %v66 = vunpack.c.l.bf16 %v50
  %v67 = vunpack.c.l.bf16 %v51
  %v68 = vunpack.c.l.bf16 %v52
  %v69 = vunpack.c.l.bf16 %v53
  %v70 = vunpack.c.l.bf16 %v54
  %v71 = vunpack.c.l.bf16 %v55
  %v72 = vunpack.c.l.bf16 %v56
  %v73 = vunpack.c.l.bf16 %v57
  %v74 = vunpack.c.l.bf16 %v58
  %v75 = vld [vmem:[%s2] sm:$0x1]
  %v77 = vperm.slane %v75, 0
  %v79 = vmul.f32 %v59, %v77
  %v80 = vmul.f32 %v60, %v77
  %v81 = vmul.f32 %v61, %v77
  %v82 = vmul.f32 %v62, %v77
  %v83 = vmul.f32 %v63, %v77
  %v84 = vmul.f32 %v64, %v77
  %v85 = vmul.f32 %v65, %v77
  %v86 = vmul.f32 %v66, %v77
  %v87 = vmul.f32 %v67, %v77
  %v88 = vmul.f32 %v68, %v77
  %v89 = vmul.f32 %v69, %v77
  %v90 = vmul.f32 %v70, %v77
  %v91 = vmul.f32 %v71, %v77
  %v92 = vmul.f32 %v72, %v77
  %v93 = vmul.f32 %v73, %v77
  %v94 = vmul.f32 %v74, %v77
  %v95 = vld [vmem:[%s3] sm:$0x1]
  %v97 = vperm.slane %v95, 0
  %v99 = vadd.f32 %v79, %v97
  %v100 = vadd.f32 %v80, %v97
  %v101 = vadd.f32 %v81, %v97
  %v102 = vadd.f32 %v82, %v97
  %v103 = vadd.f32 %v83, %v97
  %v104 = vadd.f32 %v84, %v97
  %v105 = vadd.f32 %v85, %v97
  %v106 = vadd.f32 %v86, %v97
  %v107 = vadd.f32 %v87, %v97
  %v108 = vadd.f32 %v88, %v97
  %v109 = vadd.f32 %v89, %v97
  %v110 = vadd.f32 %v90, %v97
  %v111 = vadd.f32 %v91, %v97
  %v112 = vadd.f32 %v92, %v97
  %v113 = vadd.f32 %v93, %v97
  %v114 = vadd.f32 %v94, %v97
  %v115 = vmax.f32 %v99, 0.0
  %v116 = vmax.f32 %v100, 0.0
  %v117 = vmax.f32 %v101, 0.0
  %v118 = vmax.f32 %v102, 0.0
  %v119 = vmax.f32 %v103, 0.0
  %v120 = vmax.f32 %v104, 0.0
  %v121 = vmax.f32 %v105, 0.0
  %v122 = vmax.f32 %v106, 0.0
  %v123 = vmax.f32 %v107, 0.0
  %v124 = vmax.f32 %v108, 0.0
  %v125 = vmax.f32 %v109, 0.0
  %v126 = vmax.f32 %v110, 0.0
  %v127 = vmax.f32 %v111, 0.0
  %v128 = vmax.f32 %v112, 0.0
  %v129 = vmax.f32 %v113, 0.0
  %v130 = vmax.f32 %v114, 0.0
  %v131 = vpack.c.bf16 %v116, %v115
  %v132 = vpack.c.bf16 %v118, %v117
  %v133 = vpack.c.bf16 %v120, %v119
  %v134 = vpack.c.bf16 %v122, %v121
  %v135 = vpack.c.bf16 %v124, %v123
  %v136 = vpack.c.bf16 %v126, %v125
  %v137 = vpack.c.bf16 %v128, %v127
  %v138 = vpack.c.bf16 %v130, %v129
  %v139 = vld [vmem:[#allocation2] sm:$0xff]
  %v140 = vld [vmem:[#allocation2 + $0x8] sm:$0xff]
  %v141 = vld [vmem:[#allocation2 + $0x10] sm:$0xff]
  %v142 = vld [vmem:[#allocation2 + $0x18] sm:$0xff]
  %v143 = vld [vmem:[#allocation2 + $0x20] sm:$0xff]
  %v144 = vld [vmem:[#allocation2 + $0x28] sm:$0xff]
  %v145 = vld [vmem:[#allocation2 + $0x30] sm:$0xff]
  %v146 = vld [vmem:[#allocation2 + $0x38] sm:$0xff]
  %v147 = vld [vmem:[#allocation2 + $0x40] sm:$0xff]
  %v148 = vld [vmem:[#allocation2 + $0x48] sm:$0xff]
  %v149 = vld [vmem:[#allocation2 + $0x50] sm:$0xff]
  %v150 = vld [vmem:[#allocation2 + $0x58] sm:$0xff]
  %v151 = vld [vmem:[#allocation2 + $0x60] sm:$0xff]
  %v152 = vld [vmem:[#allocation2 + $0x68] sm:$0xff]
  %v153 = vld [vmem:[#allocation2 + $0x70] sm:$0xff]
  %v154 = vld [vmem:[#allocation2 + $0x78] sm:$0xff]
  %v155 = vld [vmem:[%s1] sm:$0xf]
  %v156 = vld [vmem:[%s1 + $0x4] sm:$0xf]
  %v157 = vld [vmem:[%s1 + $0x8] sm:$0xf]
  %v158 = vld [vmem:[%s1 + $0xc] sm:$0xf]
  %v159 = vld [vmem:[%s1 + $0x10] sm:$0xf]
  %v160 = vld [vmem:[%s1 + $0x14] sm:$0xf]
  %v161 = vld [vmem:[%s1 + $0x18] sm:$0xf]
  %v162 = vld [vmem:[%s1 + $0x1c] sm:$0xf]
  %v163 = vld [vmem:[%s1 + $0x20] sm:$0xf]
  %v164 = vld [vmem:[%s1 + $0x24] sm:$0xf]
  %v165 = vld [vmem:[%s1 + $0x28] sm:$0xf]
  %v166 = vld [vmem:[%s1 + $0x2c] sm:$0xf]
  %v167 = vld [vmem:[%s1 + $0x30] sm:$0xf]
  %v168 = vld [vmem:[%s1 + $0x34] sm:$0xf]
  %v169 = vld [vmem:[%s1 + $0x38] sm:$0xf]
  %v170 = vld [vmem:[%s1 + $0x3c] sm:$0xf]
  %v187 = vunpack.c.l.b16 %v155
  %v188 = vunpack.c.l.b16 %v156
  %v189 = vunpack.c.l.b16 %v157
  %v190 = vunpack.c.l.b16 %v158
  %v191 = vunpack.c.l.b16 %v159
  %v192 = vunpack.c.l.b16 %v160
  %v193 = vunpack.c.l.b16 %v161
  %v194 = vunpack.c.l.b16 %v162
  %v195 = vunpack.c.l.b16 %v163
  %v196 = vunpack.c.l.b16 %v164
  %v197 = vunpack.c.l.b16 %v165
  %v198 = vunpack.c.l.b16 %v166
  %v199 = vunpack.c.l.b16 %v167
  %v200 = vunpack.c.l.b16 %v168
  %v201 = vunpack.c.l.b16 %v169
  %v202 = vunpack.c.l.b16 %v170
  %v203 = vpack.c.b16 %v188, %v187
  %v204 = vpack.c.b16 %v190, %v189
  %v205 = vpack.c.b16 %v192, %v191
  %v206 = vpack.c.b16 %v194, %v193
  %v207 = vpack.c.b16 %v196, %v195
  %v208 = vpack.c.b16 %v198, %v197
  %v209 = vpack.c.b16 %v200, %v199
  %v210 = vpack.c.b16 %v202, %v201
  %219 = vmatpush.bf16.msra.mxu0 %v210
  %220 = vmatpush.bf16.msra.mxu0 %v209
  %221 = vmatpush.bf16.msra.mxu0 %v208
  %222 = vmatpush.bf16.msra.mxu0 %v207
  %223 = vmatpush.bf16.msra.mxu0 %v206
  %224 = vmatpush.bf16.msra.mxu0 %v205
  %225 = vmatpush.bf16.msra.mxu0 %v204
  %226 = vmatpush.bf16.msra.mxu0 %v203
  %227 = vmatmul.bf16.gmra.mxu0 %v131
  %v228 = vpop.f32.mrf.mxu0
  %v229 = vadd.f32 0.0, %v228
  %v230 = vpop.f32.mrf.mxu0
  %v231 = vadd.f32 0.0, %v230
  %232 = vmatmul.bf16.gmra.mxu0 %v132
  %v233 = vpop.f32.mrf.mxu0
  %v234 = vadd.f32 0.0, %v233
  %v235 = vpop.f32.mrf.mxu0
  %v236 = vadd.f32 0.0, %v235
  %237 = vmatmul.bf16.gmra.mxu0 %v133
  %v238 = vpop.f32.mrf.mxu0
  %v239 = vadd.f32 0.0, %v238
  %v240 = vpop.f32.mrf.mxu0
  %v241 = vadd.f32 0.0, %v240
  %242 = vmatmul.bf16.gmra.mxu0 %v134
  %v243 = vpop.f32.mrf.mxu0
  %v244 = vadd.f32 0.0, %v243
  %v245 = vpop.f32.mrf.mxu0
  %v246 = vadd.f32 0.0, %v245
  %247 = vmatmul.bf16.gmra.mxu0 %v135
  %v248 = vpop.f32.mrf.mxu0
  %v249 = vadd.f32 0.0, %v248
  %v250 = vpop.f32.mrf.mxu0
  %v251 = vadd.f32 0.0, %v250
  %252 = vmatmul.bf16.gmra.mxu0 %v136
  %v253 = vpop.f32.mrf.mxu0
  %v254 = vadd.f32 0.0, %v253
  %v255 = vpop.f32.mrf.mxu0
  %v256 = vadd.f32 0.0, %v255
  %257 = vmatmul.bf16.gmra.mxu0 %v137
  %v258 = vpop.f32.mrf.mxu0
  %v259 = vadd.f32 0.0, %v258
  %v260 = vpop.f32.mrf.mxu0
  %v261 = vadd.f32 0.0, %v260
  %262 = vmatmul.bf16.gmra.mxu0 %v138
  %v263 = vpop.f32.mrf.mxu0
  %v264 = vadd.f32 0.0, %v263
  %v265 = vpop.f32.mrf.mxu0
  %v266 = vadd.f32 0.0, %v265
  %267 = vdwg.mxu0
  %v268 = vadd.f32 %v139, %v229
  %v269 = vadd.f32 %v140, %v231
  %v270 = vadd.f32 %v141, %v234
  %v271 = vadd.f32 %v142, %v236
  %v272 = vadd.f32 %v143, %v239
  %v273 = vadd.f32 %v144, %v241
  %v274 = vadd.f32 %v145, %v244
  %v275 = vadd.f32 %v146, %v246
  %v276 = vadd.f32 %v147, %v249
  %v277 = vadd.f32 %v148, %v251
  %v278 = vadd.f32 %v149, %v254
  %v279 = vadd.f32 %v150, %v256
  %v280 = vadd.f32 %v151, %v259
  %v281 = vadd.f32 %v152, %v261
  %v282 = vadd.f32 %v153, %v264
  %v283 = vadd.f32 %v154, %v266
  %284 = vst [vmem:[#allocation2] sm:$0xff] %v268
  %285 = vst [vmem:[#allocation2 + $0x8] sm:$0xff] %v269
  %286 = vst [vmem:[#allocation2 + $0x10] sm:$0xff] %v270
  %287 = vst [vmem:[#allocation2 + $0x18] sm:$0xff] %v271
  %288 = vst [vmem:[#allocation2 + $0x20] sm:$0xff] %v272
  %289 = vst [vmem:[#allocation2 + $0x28] sm:$0xff] %v273
  %290 = vst [vmem:[#allocation2 + $0x30] sm:$0xff] %v274
  %291 = vst [vmem:[#allocation2 + $0x38] sm:$0xff] %v275
  %292 = vst [vmem:[#allocation2 + $0x40] sm:$0xff] %v276
  %293 = vst [vmem:[#allocation2 + $0x48] sm:$0xff] %v277
  %294 = vst [vmem:[#allocation2 + $0x50] sm:$0xff] %v278
  %295 = vst [vmem:[#allocation2 + $0x58] sm:$0xff] %v279
  %296 = vst [vmem:[#allocation2 + $0x60] sm:$0xff] %v280
  %297 = vst [vmem:[#allocation2 + $0x68] sm:$0xff] %v281
  %298 = vst [vmem:[#allocation2 + $0x70] sm:$0xff] %v282
  %299 = vst [vmem:[#allocation2 + $0x78] sm:$0xff] %v283
  // Predicated region
  $region30: #{densenet_forward.15} parent=0 // pred_check
    %p300 = pneg %p23
  $region31: #{densenet_forward.15} parent=0 // pred_check_branch
    %302 = sbr.rel (%p300) target = $region33
  $region32: #{densenet_forward.15} parent=0 // pred_region
    %v303 = vld [vmem:[#allocation2] sm:$0xff]
    %v304 = vld [vmem:[#allocation2 + $0x8] sm:$0xff]
    %v305 = vld [vmem:[#allocation2 + $0x10] sm:$0xff]
    %v306 = vld [vmem:[#allocation2 + $0x18] sm:$0xff]
    %v307 = vld [vmem:[#allocation2 + $0x20] sm:$0xff]
    %v308 = vld [vmem:[#allocation2 + $0x28] sm:$0xff]
    %v309 = vld [vmem:[#allocation2 + $0x30] sm:$0xff]
    %v310 = vld [vmem:[#allocation2 + $0x38] sm:$0xff]
    %v311 = vld [vmem:[#allocation2 + $0x40] sm:$0xff]
    %v312 = vld [vmem:[#allocation2 + $0x48] sm:$0xff]
    %v313 = vld [vmem:[#allocation2 + $0x50] sm:$0xff]
    %v314 = vld [vmem:[#allocation2 + $0x58] sm:$0xff]
    %v315 = vld [vmem:[#allocation2 + $0x60] sm:$0xff]
    %v316 = vld [vmem:[#allocation2 + $0x68] sm:$0xff]
    %v317 = vld [vmem:[#allocation2 + $0x70] sm:$0xff]
    %v318 = vld [vmem:[#allocation2 + $0x78] sm:$0xff]
    %v319 = vld [vmem:[%s4] sm:$0x1]
    %v321 = vperm.slane %v319, 0
    %v323 = vmul.f32 %v303, %v321
    %v324 = vmul.f32 %v304, %v321
    %v325 = vmul.f32 %v305, %v321
    %v326 = vmul.f32 %v306, %v321
    %v327 = vmul.f32 %v307, %v321
    %v328 = vmul.f32 %v308, %v321
    %v329 = vmul.f32 %v309, %v321
    %v330 = vmul.f32 %v310, %v321
    %v331 = vmul.f32 %v311, %v321
    %v332 = vmul.f32 %v312, %v321
    %v333 = vmul.f32 %v313, %v321
    %v334 = vmul.f32 %v314, %v321
    %v335 = vmul.f32 %v315, %v321
    %v336 = vmul.f32 %v316, %v321
    %v337 = vmul.f32 %v317, %v321
    %v338 = vmul.f32 %v318, %v321
    %v339 = vld [vmem:[%s5] sm:$0x1]
    %v341 = vperm.slane %v339, 0
    %v343 = vadd.f32 %v323, %v341
    %v344 = vadd.f32 %v324, %v341
    %v345 = vadd.f32 %v325, %v341
    %v346 = vadd.f32 %v326, %v341
    %v347 = vadd.f32 %v327, %v341
    %v348 = vadd.f32 %v328, %v341
    %v349 = vadd.f32 %v329, %v341
    %v350 = vadd.f32 %v330, %v341
    %v351 = vadd.f32 %v331, %v341
    %v352 = vadd.f32 %v332, %v341
    %v353 = vadd.f32 %v333, %v341
    %v354 = vadd.f32 %v334, %v341
    %v355 = vadd.f32 %v335, %v341
    %v356 = vadd.f32 %v336, %v341
    %v357 = vadd.f32 %v337, %v341
    %v358 = vadd.f32 %v338, %v341
    %v359 = vmax.f32 %v343, 0.0
    %v360 = vmax.f32 %v344, 0.0
    %v361 = vmax.f32 %v345, 0.0
    %v362 = vmax.f32 %v346, 0.0
    %v363 = vmax.f32 %v347, 0.0
    %v364 = vmax.f32 %v348, 0.0
    %v365 = vmax.f32 %v349, 0.0
    %v366 = vmax.f32 %v350, 0.0
    %v367 = vmax.f32 %v351, 0.0
    %v368 = vmax.f32 %v352, 0.0
    %v369 = vmax.f32 %v353, 0.0
    %v370 = vmax.f32 %v354, 0.0
    %v371 = vmax.f32 %v355, 0.0
    %v372 = vmax.f32 %v356, 0.0
    %v373 = vmax.f32 %v357, 0.0
    %v374 = vmax.f32 %v358, 0.0
    %v375 = vpack.c.bf16 %v359, %v359
    %v376 = vpack.c.bf16 %v360, %v360
    %v377 = vpack.c.bf16 %v361, %v361
    %v378 = vpack.c.bf16 %v362, %v362
    %v379 = vpack.c.bf16 %v363, %v363
    %v380 = vpack.c.bf16 %v364, %v364
    %v381 = vpack.c.bf16 %v365, %v365
    %v382 = vpack.c.bf16 %v366, %v366
    %v383 = vpack.c.bf16 %v367, %v367
    %v384 = vpack.c.bf16 %v368, %v368
    %v385 = vpack.c.bf16 %v369, %v369
    %v386 = vpack.c.bf16 %v370, %v370
    %v387 = vpack.c.bf16 %v371, %v371
    %v388 = vpack.c.bf16 %v372, %v372
    %v389 = vpack.c.bf16 %v373, %v373
    %v390 = vpack.c.bf16 %v374, %v374
    %391 = vst [vmem:[%s6] sm:$0xf] %v375
    %392 = vst [vmem:[%s6 + $0x4] sm:$0xf] %v376
    %393 = vst [vmem:[%s6 + $0x8] sm:$0xf] %v377
    %394 = vst [vmem:[%s6 + $0xc] sm:$0xf] %v378
    %395 = vst [vmem:[%s6 + $0x10] sm:$0xf] %v379
    %396 = vst [vmem:[%s6 + $0x14] sm:$0xf] %v380
    %397 = vst [vmem:[%s6 + $0x18] sm:$0xf] %v381
    %398 = vst [vmem:[%s6 + $0x1c] sm:$0xf] %v382
    %399 = vst [vmem:[%s6 + $0x20] sm:$0xf] %v383
    %400 = vst [vmem:[%s6 + $0x24] sm:$0xf] %v384
    %401 = vst [vmem:[%s6 + $0x28] sm:$0xf] %v385
    %402 = vst [vmem:[%s6 + $0x2c] sm:$0xf] %v386
    %403 = vst [vmem:[%s6 + $0x30] sm:$0xf] %v387
    %404 = vst [vmem:[%s6 + $0x34] sm:$0xf] %v388
    %405 = vst [vmem:[%s6 + $0x38] sm:$0xf] %v389
    %406 = vst [vmem:[%s6 + $0x3c] sm:$0xf] %v390
  $region33: #{densenet_forward.15} parent=0 // pred_fallthru
    _
  // Predicated region
  $region34: #{densenet_forward.15} parent=0 // pred_check
    _
  $region35: #{densenet_forward.15} parent=0 // pred_check_branch
    %408 = sbr.rel (0) target = $region37
  $region36: #{densenet_forward.15} parent=0 // pred_region
    _
  $region37: #{densenet_forward.15} parent=0 // pred_fallthru
    _
  // Predicated region
  $region38: #{densenet_forward.15} parent=0 // pred_check
    _
  $region39: #{densenet_forward.15} parent=0 // pred_check_branch
    %410 = sbr.rel (0) target = $region41
  $region40: #{densenet_forward.15} parent=0 // pred_region
    _
  $region41: #{densenet_forward.15} parent=0 // pred_fallthru
    _

// kernel: densenet_forward.14
$region0: #{densenet_forward.14}
  #allocation0 [shape = 'u32[]', space=smem, size = 0x4, offset = 0x4, fixed_abs, tag = 'smem constant byte address 0x4 - core index']
  #allocation1 [shape = 'u32[72,128]{1,0:T(1,128)}', space=vmem, size = 0x9000, scoped, tag = 'internal scratch']
  %s0 = inlined_call_operand.vmem [shape: bf16[2,17,9,2,128], index: 0, kind: input, shape index: {}, may-alias: {0,1}]
  %s1 = inlined_call_operand.vmem [shape: bf16[2,17,9,2,128], index: 1, kind: input, shape index: {}, may-alias: {0,1}]
  %s2 = inlined_call_operand.vmem [shape: bf16[2,8,8,128], index: 2, kind: output, shape index: {}]
  %s3 = sld [smem:[#allocation0]]
  $region41: #{densenet_forward.14} parent=0
    _
  %s5 = ssub.s32 1, %s3
  %s6 = scalar_select 0, %s5, %s3
  loop: start=0, step=1, limit=4
  $region2: #{densenet_forward.14} parent=0 // loop_pre_header
    _
  $region3: #{densenet_forward.14} parent=0 // loop_header
    %s8 = sphi 0, %s12
    %p9 = scmp.ge.s32.totalorder %s8, 4
    %s15 = sphi 0, %s27
    %s16 = sphi 0, %s23
    %s17 = sphi 0, %s15
    %s18 = sphi 0, %s16
    %s19 = sphi 0, %s17
    %s20 = sphi 0, %s18
    %s32 = sphi 0, %s34
    %s35 = sphi 0, %s32
    %s36 = sphi 0, %s35
    %s52 = sphi 0, %s36
    %s64 = sphi 0, %s66
    %s67 = sphi 0, %s64
    %s68 = sphi 0, %s67
    %s84 = sphi 0, %s68
    %s92 = sphi 0, %s94
    %s95 = sphi 0, %s92
    %s96 = sphi 0, %s95
    %s112 = sphi 0, %s96
  $region4: #{densenet_forward.14} parent=0 // loop_header_branch
    %11 = sbr.rel (%p9) target = $region8
  $region5: #{densenet_forward.14} parent=0 // loop_body
    %s13 = ssub.s32 %s8, 1
    %s14 = ssub.s32 %s8, 2
    %s21 = sadd.s32 1, %s16
    %p22 = scmp.ge.s32.totalorder %s21, 1
    %s23 = scalar_select %p22, 0, %s21
    %s24 = sadd.s32 1, %s15
    %s25 = scalar_select %p22, %s24, %s15
    %p26 = scmp.ge.s32.totalorder %s25, 2
    %s27 = scalar_select %p26, 0, %s25
    %s28 = ssub.s32 %s15, %s27
    %s29 = ssub.s32 %s16, %s23
    %s30 = sor.u32 %s28, %s29
    %p31 = scmp.eq.s32.totalorder %s30, 0
    %s33 = sadd.s32 %s32, 1
    %s34 = scalar_select %p31, %s32, %s33
    %p37 = pneg %p31
    %p38 = scmp.eq.s32.totalorder %s8, 1
    %p39 = por %p37, %p38
    %p40 = scmp.ne.s32.totalorder %s32, %s35
    %p41 = scmp.eq.s32.totalorder %s8, 0
    %p42 = por %p40, %p41
    %p43 = scmp.ne.s32.totalorder %s32, %s35
    %p44 = scmp.eq.s32.totalorder %s13, 1
    %p45 = por %p43, %p44
    %p46 = scmp.ne.s32.totalorder %s35, %s36
    %p47 = scmp.eq.s32.totalorder %s13, 0
    %p48 = por %p46, %p47
    %p49 = scmp.ne.s32.totalorder %s35, %s36
    %p50 = scmp.eq.s32.totalorder %s14, 1
    %p51 = por %p49, %p50
    %p53 = scmp.ne.s32.totalorder %s36, %s52
    %p54 = scmp.eq.s32.totalorder %s14, 0
    %p55 = por %p53, %p54
    %s56 = sadd.s32 %s16, 1
    %s57 = smul.u32 %s56, 16
    %s58 = sadd.s32 %s23, 1
    %s59 = smul.u32 %s58, 16
    %s60 = ssub.s32 %s15, %s27
    %s61 = ssub.s32 %s57, %s59
    %s62 = sor.u32 %s60, %s61
    %p63 = scmp.eq.s32.totalorder %s62, 0
    %s65 = sadd.s32 %s64, 1
    %s66 = scalar_select %p63, %s64, %s65
    %p69 = pneg %p63
    %p70 = scmp.eq.s32.totalorder %s8, 1
    %p71 = por %p69, %p70
    %p72 = scmp.ne.s32.totalorder %s64, %s67
    %p73 = scmp.eq.s32.totalorder %s8, 0
    %p74 = por %p72, %p73
    %p75 = scmp.ne.s32.totalorder %s64, %s67
    %p76 = scmp.eq.s32.totalorder %s13, 1
    %p77 = por %p75, %p76
    %p78 = scmp.ne.s32.totalorder %s67, %s68
    %p79 = scmp.eq.s32.totalorder %s13, 0
    %p80 = por %p78, %p79
    %p81 = scmp.ne.s32.totalorder %s67, %s68
    %p82 = scmp.eq.s32.totalorder %s14, 1
    %p83 = por %p81, %p82
    %p85 = scmp.ne.s32.totalorder %s68, %s84
    %p86 = scmp.eq.s32.totalorder %s14, 0
    %p87 = por %p85, %p86
    %s88 = ssub.s32 %s15, %s27
    %s89 = ssub.s32 %s16, %s23
    %s90 = sor.u32 %s88, %s89
    %p91 = scmp.eq.s32.totalorder %s90, 0
    %s93 = sadd.s32 %s92, 1
    %s94 = scalar_select %p91, %s92, %s93
    %p97 = pneg %p91
    %p98 = scmp.eq.s32.totalorder %s8, 1
    %p99 = por %p97, %p98
    %p100 = scmp.ne.s32.totalorder %s92, %s95
    %p101 = scmp.eq.s32.totalorder %s8, 0
    %p102 = por %p100, %p101
    %p103 = scmp.ne.s32.totalorder %s92, %s95
    %p104 = scmp.eq.s32.totalorder %s13, 1
    %p105 = por %p103, %p104
    %p106 = scmp.ne.s32.totalorder %s95, %s96
    %p107 = scmp.eq.s32.totalorder %s13, 0
    %p108 = por %p106, %p107
    %p109 = scmp.ne.s32.totalorder %s95, %s96
    %p110 = scmp.eq.s32.totalorder %s14, 1
    %p111 = por %p109, %p110
    %p113 = scmp.ne.s32.totalorder %s96, %s112
    %p114 = scmp.eq.s32.totalorder %s14, 0
    %p115 = por %p113, %p114
    %p116 = scmp.le.s32.totalorder 1, %s8
    %p117 = scmp.lt.s32.totalorder %s8, 3
    %p118 = pnand %p116, %p117
    %p119 = pneg %p118
    // Predicated region
    $region9: #{densenet_forward.14} parent=5 // pred_check
      _
    $region10: #{densenet_forward.14} parent=5 // pred_check_branch
      %121 = sbr.rel (%p118) target = $region12
    $region11: #{densenet_forward.14} parent=5 // pred_region
      %s122 = ssub.s32 %s8, 1
    $region12: #{densenet_forward.14} parent=5 // pred_fallthru
      _
    %p123 = scmp.lt.s32.totalorder %s8, 2
    // Predicated region
    $region13: #{densenet_forward.14} parent=5 // pred_check
      %p124 = pneg %p123
    $region14: #{densenet_forward.14} parent=5 // pred_check_branch
      %126 = sbr.rel (%p124) target = $region16
    $region15: #{densenet_forward.14} parent=5 // pred_region
      // Predicated region
      $region17: #{densenet_forward.14} parent=15 // pred_check
        %p127 = pneg %p42
      $region18: #{densenet_forward.14} parent=15 // pred_check_branch
        %129 = sbr.rel (%p127) target = $region20
      $region19: #{densenet_forward.14} parent=15 // pred_region
        %s130 = smul.u32 16, %s16
        %s131 = ssub.s32 17, %s130
        %p132 = scmp.lt.s32.totalorder %s131, 16
        %s133 = scalar_select %p132, %s131, 16
        %s134 = smul.u32 %s133, 9
        %p135 = scmp.lt.s32.totalorder %s15, 1
        %s136 = scalar_select %p135, %s15, 1
        %p137 = scmp.lt.s32.totalorder %s130, 16
        %s138 = scalar_select %p137, %s130, 16
        %s139 = smul.addr %s138, 9
        %s140 = smul.addr %s136, 153
        %s141 = sadd.s32 %s139, %s140
        %s142 = scalar_lea.vmem %s0, %s141
        %s143 = smul.u32 16, %s16
        %s144 = ssub.s32 17, %s143
        %p145 = scmp.lt.s32.totalorder %s144, 16
        %s146 = scalar_select %p145, %s144, 16
        %s147 = smul.u32 %s146, 9
      $region20: #{densenet_forward.14} parent=15 // pred_fallthru
        _
      // Predicated region
      $region21: #{densenet_forward.14} parent=15 // pred_check
        %p148 = pneg %p74
      $region22: #{densenet_forward.14} parent=15 // pred_check_branch
        %150 = sbr.rel (%p148) target = $region24
      $region23: #{densenet_forward.14} parent=15 // pred_region
        %s151 = sadd.s32 %s16, 1
        %s152 = smul.u32 %s151, 16
        %p153 = scmp.lt.s32.totalorder %s15, 1
        %s154 = scalar_select %p153, %s15, 1
        %p155 = scmp.lt.s32.totalorder %s152, 16
        %s156 = scalar_select %p155, %s152, 16
        %s157 = smul.addr %s156, 9
        %s158 = smul.addr %s154, 153
        %s159 = sadd.s32 %s157, %s158
        %s160 = scalar_lea.vmem %s1, %s159
        %s161 = sadd.s32 %s16, 1
        %s162 = smul.u32 %s161, 16
      $region24: #{densenet_forward.14} parent=15 // pred_fallthru
        _
    $region16: #{densenet_forward.14} parent=5 // pred_fallthru
      _
    %p163 = scmp.le.s32.totalorder 1, %s8
    %p164 = scmp.lt.s32.totalorder %s8, 3
    %p165 = pnand %p163, %p164
    %p166 = pneg %p165
    // Predicated region
    $region25: #{densenet_forward.14} parent=5 // pred_check
      _
    $region26: #{densenet_forward.14} parent=5 // pred_check_branch
      %168 = sbr.rel (%p165) target = $region28
    $region27: #{densenet_forward.14} parent=5 // pred_region
      %s169 = ssub.s32 %s8, 1
      %s170 = smul.u32 16, %s18
      %s171 = ssub.s32 17, %s170
      %p172 = scmp.lt.s32.totalorder %s171, 16
      %s173 = scalar_select %p172, %s171, 16
      %s174 = smul.u32 %s173, 9
      %p175 = scmp.lt.s32.totalorder %s17, 1
      %s176 = scalar_select %p175, %s17, 1
      %p177 = scmp.lt.s32.totalorder %s170, 16
      %s178 = scalar_select %p177, %s170, 16
      %s179 = smul.addr %s178, 9
      %s180 = smul.addr %s176, 153
      %s181 = sadd.s32 %s179, %s180
      %s182 = scalar_lea.vmem %s0, %s181
      %p183 = pneg %p48
      %p184 = pneg %p45
      %s185 = sadd.s32 %s18, 1
      %s186 = smul.u32 %s185, 16
      %p187 = scmp.lt.s32.totalorder %s17, 1
      %s188 = scalar_select %p187, %s17, 1
      %p189 = scmp.lt.s32.totalorder %s186, 16
      %s190 = scalar_select %p189, %s186, 16
      %s191 = smul.addr %s190, 9
      %s192 = smul.addr %s188, 153
      %s193 = sadd.s32 %s191, %s192
      %s194 = scalar_lea.vmem %s1, %s193
      %p195 = pneg %p80
      %p196 = pneg %p77
      %p197 = pneg %p108
      %p198 = pneg %p105
      %s199 = smul.u32 8, %s18
      %p200 = scmp.lt.s32.totalorder %s17, 1
      %s201 = scalar_select %p200, %s17, 1
      %p202 = scmp.lt.s32.totalorder %s199, 7
      %s203 = scalar_select %p202, %s199, 7
      %s204 = smul.addr %s201, 8
      %s205 = sadd.s32 %s203, %s204
      %s206 = smul.addr %s205, 4
      %s207 = scalar_lea.vmem %s2, %s206
      %s208 = smul.u32 16, %s18
      %s209 = ssub.s32 17, %s208
      %p210 = scmp.lt.s32.totalorder %s209, 16
      %s211 = scalar_select %p210, %s209, 16
      %s212 = smul.u32 %s211, 9
      %p213 = scmp.lt.s32.totalorder %s17, 1
      %s214 = scalar_select %p213, %s17, 1
      %p215 = scmp.lt.s32.totalorder %s208, 16
      %s216 = scalar_select %p215, %s208, 16
      %s217 = smul.addr %s216, 9
      %s218 = smul.addr %s214, 153
      %s219 = sadd.s32 %s217, %s218
      %s220 = scalar_lea.vmem %s0, %s219
      %s221 = smul.u32 16, %s18
      %s222 = ssub.s32 17, %s221
      %p223 = scmp.lt.s32.totalorder %s222, 16
      %s224 = scalar_select %p223, %s222, 16
      %s225 = smul.u32 %s224, 9
      %s226 = sadd.s32 %s18, 1
      %s227 = smul.u32 %s226, 16
      %p228 = scmp.lt.s32.totalorder %s17, 1
      %s229 = scalar_select %p228, %s17, 1
      %p230 = scmp.lt.s32.totalorder %s227, 16
      %s231 = scalar_select %p230, %s227, 16
      %s232 = smul.addr %s231, 9
      %s233 = smul.addr %s229, 153
      %s234 = sadd.s32 %s232, %s233
      %s235 = scalar_lea.vmem %s1, %s234
      %s236 = sadd.s32 %s18, 1
      %s237 = smul.u32 %s236, 16
      %s238 = smul.u32 8, %s18
      %p239 = scmp.lt.s32.totalorder %s17, 1
      %s240 = scalar_select %p239, %s17, 1
      %p241 = scmp.lt.s32.totalorder %s238, 7
      %s242 = scalar_select %p241, %s238, 7
      %s243 = smul.addr %s240, 8
      %s244 = sadd.s32 %s242, %s243
      %s245 = smul.addr %s244, 4
      %s246 = scalar_lea.vmem %s2, %s245
      %s247 = smul.u32 8, %s18
      %v249 = vld [vmem:[%s220] sm:$0x1]
      %v250 = vld [vmem:[%s220 + $0x1] sm:$0x1]
      %v251 = vld [vmem:[%s220 + $0x2] sm:$0x1]
      %v252 = vld [vmem:[%s220 + $0x3] sm:$0x1]
      %v253 = vld [vmem:[%s220 + $0x4] sm:$0x1]
      %v254 = vld [vmem:[%s220 + $0x5] sm:$0x1]
      %v255 = vld [vmem:[%s220 + $0x6] sm:$0x1]
      %v256 = vld [vmem:[%s220 + $0x7] sm:$0x1]
      %v257 = vld [vmem:[%s220 + $0x8] sm:$0x1]
      %v258 = vld [vmem:[%s220 + $0x9] sm:$0x1]
      %v259 = vld [vmem:[%s220 + $0xa] sm:$0x1]
      %v260 = vld [vmem:[%s220 + $0xb] sm:$0x1]
      %v261 = vld [vmem:[%s220 + $0xc] sm:$0x1]
      %v262 = vld [vmem:[%s220 + $0xd] sm:$0x1]
      %v263 = vld [vmem:[%s220 + $0xe] sm:$0x1]
      %v264 = vld [vmem:[%s220 + $0xf] sm:$0x1]
      %v265 = vld [vmem:[%s220 + $0x10] sm:$0x1]
      %v266 = vld [vmem:[%s220 + $0x11] sm:$0x1]
      %v267 = vld [vmem:[%s220 + $0x12] sm:$0x1]
      %v268 = vld [vmem:[%s220 + $0x13] sm:$0x1]
      %v269 = vld [vmem:[%s220 + $0x14] sm:$0x1]
      %v270 = vld [vmem:[%s220 + $0x15] sm:$0x1]
      %v271 = vld [vmem:[%s220 + $0x16] sm:$0x1]
      %v272 = vld [vmem:[%s220 + $0x17] sm:$0x1]
      %v273 = vld [vmem:[%s220 + $0x18] sm:$0x1]
      %v274 = vld [vmem:[%s220 + $0x19] sm:$0x1]
      %v275 = vld [vmem:[%s220 + $0x1a] sm:$0x1]
      %v276 = vld [vmem:[%s220 + $0x1b] sm:$0x1]
      %v277 = vld [vmem:[%s220 + $0x1c] sm:$0x1]
      %v278 = vld [vmem:[%s220 + $0x1d] sm:$0x1]
      %v279 = vld [vmem:[%s220 + $0x1e] sm:$0x1]
      %v280 = vld [vmem:[%s220 + $0x1f] sm:$0x1]
      %v281 = vld [vmem:[%s220 + $0x20] sm:$0x1]
      %v282 = vld [vmem:[%s220 + $0x21] sm:$0x1]
      %v283 = vld [vmem:[%s220 + $0x22] sm:$0x1]
      %v284 = vld [vmem:[%s220 + $0x23] sm:$0x1]
      %v285 = vld [vmem:[%s220 + $0x24] sm:$0x1]
      %v286 = vld [vmem:[%s220 + $0x25] sm:$0x1]
      %v287 = vld [vmem:[%s220 + $0x26] sm:$0x1]
      %v288 = vld [vmem:[%s220 + $0x27] sm:$0x1]
      %v289 = vld [vmem:[%s220 + $0x28] sm:$0x1]
      %v290 = vld [vmem:[%s220 + $0x29] sm:$0x1]
      %v291 = vld [vmem:[%s220 + $0x2a] sm:$0x1]
      %v292 = vld [vmem:[%s220 + $0x2b] sm:$0x1]
      %v293 = vld [vmem:[%s220 + $0x2c] sm:$0x1]
      %v294 = vld [vmem:[%s220 + $0x2d] sm:$0x1]
      %v295 = vld [vmem:[%s220 + $0x2e] sm:$0x1]
      %v296 = vld [vmem:[%s220 + $0x2f] sm:$0x1]
      %v297 = vld [vmem:[%s220 + $0x30] sm:$0x1]
      %v298 = vld [vmem:[%s220 + $0x31] sm:$0x1]
      %v299 = vld [vmem:[%s220 + $0x32] sm:$0x1]
      %v300 = vld [vmem:[%s220 + $0x33] sm:$0x1]
      %v301 = vld [vmem:[%s220 + $0x34] sm:$0x1]
      %v302 = vld [vmem:[%s220 + $0x35] sm:$0x1]
      %v303 = vld [vmem:[%s220 + $0x36] sm:$0x1]
      %v304 = vld [vmem:[%s220 + $0x37] sm:$0x1]
      %v305 = vld [vmem:[%s220 + $0x38] sm:$0x1]
      %v306 = vld [vmem:[%s220 + $0x39] sm:$0x1]
      %v307 = vld [vmem:[%s220 + $0x3a] sm:$0x1]
      %v308 = vld [vmem:[%s220 + $0x3b] sm:$0x1]
      %v309 = vld [vmem:[%s220 + $0x3c] sm:$0x1]
      %v310 = vld [vmem:[%s220 + $0x3d] sm:$0x1]
      %v311 = vld [vmem:[%s220 + $0x3e] sm:$0x1]
      %v312 = vld [vmem:[%s220 + $0x3f] sm:$0x1]
      %v313 = vld [vmem:[%s220 + $0x40] sm:$0x1]
      %v314 = vld [vmem:[%s220 + $0x41] sm:$0x1]
      %v315 = vld [vmem:[%s220 + $0x42] sm:$0x1]
      %v316 = vld [vmem:[%s220 + $0x43] sm:$0x1]
      %v317 = vld [vmem:[%s220 + $0x44] sm:$0x1]
      %v318 = vld [vmem:[%s220 + $0x45] sm:$0x1]
      %v319 = vld [vmem:[%s220 + $0x46] sm:$0x1]
      %v320 = vld [vmem:[%s220 + $0x47] sm:$0x1]
      %v321 = vld [vmem:[%s220 + $0x48] sm:$0x1]
      %v322 = vld [vmem:[%s220 + $0x49] sm:$0x1]
      %v323 = vld [vmem:[%s220 + $0x4a] sm:$0x1]
      %v324 = vld [vmem:[%s220 + $0x4b] sm:$0x1]
      %v325 = vld [vmem:[%s220 + $0x4c] sm:$0x1]
      %v326 = vld [vmem:[%s220 + $0x4d] sm:$0x1]
      %v327 = vld [vmem:[%s220 + $0x4e] sm:$0x1]
      %v328 = vld [vmem:[%s220 + $0x4f] sm:$0x1]
      %v329 = vld [vmem:[%s220 + $0x50] sm:$0x1]
      %v330 = vld [vmem:[%s220 + $0x51] sm:$0x1]
      %v331 = vld [vmem:[%s220 + $0x52] sm:$0x1]
      %v332 = vld [vmem:[%s220 + $0x53] sm:$0x1]
      %v333 = vld [vmem:[%s220 + $0x54] sm:$0x1]
      %v334 = vld [vmem:[%s220 + $0x55] sm:$0x1]
      %v335 = vld [vmem:[%s220 + $0x56] sm:$0x1]
      %v336 = vld [vmem:[%s220 + $0x57] sm:$0x1]
      %v337 = vld [vmem:[%s220 + $0x58] sm:$0x1]
      %v338 = vld [vmem:[%s220 + $0x59] sm:$0x1]
      %v339 = vld [vmem:[%s220 + $0x5a] sm:$0x1]
      %v340 = vld [vmem:[%s220 + $0x5b] sm:$0x1]
      %v341 = vld [vmem:[%s220 + $0x5c] sm:$0x1]
      %v342 = vld [vmem:[%s220 + $0x5d] sm:$0x1]
      %v343 = vld [vmem:[%s220 + $0x5e] sm:$0x1]
      %v344 = vld [vmem:[%s220 + $0x5f] sm:$0x1]
      %v345 = vld [vmem:[%s220 + $0x60] sm:$0x1]
      %v346 = vld [vmem:[%s220 + $0x61] sm:$0x1]
      %v347 = vld [vmem:[%s220 + $0x62] sm:$0x1]
      %v348 = vld [vmem:[%s220 + $0x63] sm:$0x1]
      %v349 = vld [vmem:[%s220 + $0x64] sm:$0x1]
      %v350 = vld [vmem:[%s220 + $0x65] sm:$0x1]
      %v351 = vld [vmem:[%s220 + $0x66] sm:$0x1]
      %v352 = vld [vmem:[%s220 + $0x67] sm:$0x1]
      %v353 = vld [vmem:[%s220 + $0x68] sm:$0x1]
      %v354 = vld [vmem:[%s220 + $0x69] sm:$0x1]
      %v355 = vld [vmem:[%s220 + $0x6a] sm:$0x1]
      %v356 = vld [vmem:[%s220 + $0x6b] sm:$0x1]
      %v357 = vld [vmem:[%s220 + $0x6c] sm:$0x1]
      %v358 = vld [vmem:[%s220 + $0x6d] sm:$0x1]
      %v359 = vld [vmem:[%s220 + $0x6e] sm:$0x1]
      %v360 = vld [vmem:[%s220 + $0x6f] sm:$0x1]
      %v361 = vld [vmem:[%s220 + $0x70] sm:$0x1]
      %v362 = vld [vmem:[%s220 + $0x71] sm:$0x1]
      %v363 = vld [vmem:[%s220 + $0x72] sm:$0x1]
      %v364 = vld [vmem:[%s220 + $0x73] sm:$0x1]
      %v365 = vld [vmem:[%s220 + $0x74] sm:$0x1]
      %v366 = vld [vmem:[%s220 + $0x75] sm:$0x1]
      %v367 = vld [vmem:[%s220 + $0x76] sm:$0x1]
      %v368 = vld [vmem:[%s220 + $0x77] sm:$0x1]
      %v369 = vld [vmem:[%s220 + $0x78] sm:$0x1]
      %v370 = vld [vmem:[%s220 + $0x79] sm:$0x1]
      %v371 = vld [vmem:[%s220 + $0x7a] sm:$0x1]
      %v372 = vld [vmem:[%s220 + $0x7b] sm:$0x1]
      %v373 = vld [vmem:[%s220 + $0x7c] sm:$0x1]
      %v374 = vld [vmem:[%s220 + $0x7d] sm:$0x1]
      %v375 = vld [vmem:[%s220 + $0x7e] sm:$0x1]
      %v376 = vld [vmem:[%s220 + $0x7f] sm:$0x1]
      %v377 = vld [vmem:[%s220 + $0x80] sm:$0x1]
      %v378 = vld [vmem:[%s220 + $0x81] sm:$0x1]
      %v379 = vld [vmem:[%s220 + $0x82] sm:$0x1]
      %v380 = vld [vmem:[%s220 + $0x83] sm:$0x1]
      %v381 = vld [vmem:[%s220 + $0x84] sm:$0x1]
      %v382 = vld [vmem:[%s220 + $0x85] sm:$0x1]
      %v383 = vld [vmem:[%s220 + $0x86] sm:$0x1]
      %v384 = vld [vmem:[%s220 + $0x87] sm:$0x1]
      %v385 = vld [vmem:[%s220 + $0x88] sm:$0x1]
      %v386 = vld [vmem:[%s220 + $0x89] sm:$0x1]
      %v387 = vld [vmem:[%s220 + $0x8a] sm:$0x1]
      %v388 = vld [vmem:[%s220 + $0x8b] sm:$0x1]
      %v389 = vld [vmem:[%s220 + $0x8c] sm:$0x1]
      %v390 = vld [vmem:[%s220 + $0x8d] sm:$0x1]
      %v391 = vld [vmem:[%s220 + $0x8e] sm:$0x1]
      %v392 = vld [vmem:[%s220 + $0x8f] sm:$0x1]
      %v393 = vld [vmem:[%s235] sm:$0x1]
      %v394 = vld [vmem:[%s235 + $0x1] sm:$0x1]
      %v395 = vld [vmem:[%s235 + $0x2] sm:$0x1]
      %v396 = vld [vmem:[%s235 + $0x3] sm:$0x1]
      %v397 = vld [vmem:[%s235 + $0x4] sm:$0x1]
      %v398 = vld [vmem:[%s235 + $0x5] sm:$0x1]
      %v399 = vld [vmem:[%s235 + $0x6] sm:$0x1]
      %v400 = vld [vmem:[%s235 + $0x7] sm:$0x1]
      %v401 = vld [vmem:[%s235 + $0x8] sm:$0x1]
      %v402 = vunpack.c.l.bf16 %v249
      %v403 = vunpack.c.l.bf16 %v250
      %v404 = vunpack.c.l.bf16 %v251
      %v405 = vunpack.c.l.bf16 %v252
      %v406 = vunpack.c.l.bf16 %v253
      %v407 = vunpack.c.l.bf16 %v254
      %v408 = vunpack.c.l.bf16 %v255
      %v409 = vunpack.c.l.bf16 %v256
      %v410 = vunpack.c.l.bf16 %v257
      %v411 = vunpack.c.l.bf16 %v267
      %v412 = vunpack.c.l.bf16 %v268
      %v413 = vunpack.c.l.bf16 %v269
      %v414 = vunpack.c.l.bf16 %v270
      %v415 = vunpack.c.l.bf16 %v271
      %v416 = vunpack.c.l.bf16 %v272
      %v417 = vunpack.c.l.bf16 %v273
      %v418 = vunpack.c.l.bf16 %v274
      %v419 = vunpack.c.l.bf16 %v275
      %v420 = vunpack.c.l.bf16 %v285
      %v421 = vunpack.c.l.bf16 %v286
      %v422 = vunpack.c.l.bf16 %v287
      %v423 = vunpack.c.l.bf16 %v288
      %v424 = vunpack.c.l.bf16 %v289
      %v425 = vunpack.c.l.bf16 %v290
      %v426 = vunpack.c.l.bf16 %v291
      %v427 = vunpack.c.l.bf16 %v292
      %v428 = vunpack.c.l.bf16 %v293
      %v429 = vunpack.c.l.bf16 %v303
      %v430 = vunpack.c.l.bf16 %v304
      %v431 = vunpack.c.l.bf16 %v305
      %v432 = vunpack.c.l.bf16 %v306
      %v433 = vunpack.c.l.bf16 %v307
      %v434 = vunpack.c.l.bf16 %v308
      %v435 = vunpack.c.l.bf16 %v309
      %v436 = vunpack.c.l.bf16 %v310
      %v437 = vunpack.c.l.bf16 %v311
      %v438 = vunpack.c.l.bf16 %v321
      %v439 = vunpack.c.l.bf16 %v322
      %v440 = vunpack.c.l.bf16 %v323
      %v441 = vunpack.c.l.bf16 %v324
      %v442 = vunpack.c.l.bf16 %v325
      %v443 = vunpack.c.l.bf16 %v326
      %v444 = vunpack.c.l.bf16 %v327
      %v445 = vunpack.c.l.bf16 %v328
      %v446 = vunpack.c.l.bf16 %v329
      %v447 = vunpack.c.l.bf16 %v339
      %v448 = vunpack.c.l.bf16 %v340
      %v449 = vunpack.c.l.bf16 %v341
      %v450 = vunpack.c.l.bf16 %v342
      %v451 = vunpack.c.l.bf16 %v343
      %v452 = vunpack.c.l.bf16 %v344
      %v453 = vunpack.c.l.bf16 %v345
      %v454 = vunpack.c.l.bf16 %v346
      %v455 = vunpack.c.l.bf16 %v347
      %v456 = vunpack.c.l.bf16 %v357
      %v457 = vunpack.c.l.bf16 %v358
      %v458 = vunpack.c.l.bf16 %v359
      %v459 = vunpack.c.l.bf16 %v360
      %v460 = vunpack.c.l.bf16 %v361
      %v461 = vunpack.c.l.bf16 %v362
      %v462 = vunpack.c.l.bf16 %v363
      %v463 = vunpack.c.l.bf16 %v364
      %v464 = vunpack.c.l.bf16 %v365
      %v465 = vunpack.c.l.bf16 %v375
      %v466 = vunpack.c.l.bf16 %v376
      %v467 = vunpack.c.l.bf16 %v377
      %v468 = vunpack.c.l.bf16 %v378
      %v469 = vunpack.c.l.bf16 %v379
      %v470 = vunpack.c.l.bf16 %v380
      %v471 = vunpack.c.l.bf16 %v381
      %v472 = vunpack.c.l.bf16 %v382
      %v473 = vunpack.c.l.bf16 %v383
      %v474 = vunpack.c.l.bf16 %v258
      %v475 = vunpack.c.l.bf16 %v259
      %v476 = vunpack.c.l.bf16 %v260
      %v477 = vunpack.c.l.bf16 %v261
      %v478 = vunpack.c.l.bf16 %v262
      %v479 = vunpack.c.l.bf16 %v263
      %v480 = vunpack.c.l.bf16 %v264
      %v481 = vunpack.c.l.bf16 %v265
      %v482 = vunpack.c.l.bf16 %v266
      %v483 = vunpack.c.l.bf16 %v276
      %v484 = vunpack.c.l.bf16 %v277
      %v485 = vunpack.c.l.bf16 %v278
      %v486 = vunpack.c.l.bf16 %v279
      %v487 = vunpack.c.l.bf16 %v280
      %v488 = vunpack.c.l.bf16 %v281
      %v489 = vunpack.c.l.bf16 %v282
      %v490 = vunpack.c.l.bf16 %v283
      %v491 = vunpack.c.l.bf16 %v284
      %v492 = vunpack.c.l.bf16 %v294
      %v493 = vunpack.c.l.bf16 %v295
      %v494 = vunpack.c.l.bf16 %v296
      %v495 = vunpack.c.l.bf16 %v297
      %v496 = vunpack.c.l.bf16 %v298
      %v497 = vunpack.c.l.bf16 %v299
      %v498 = vunpack.c.l.bf16 %v300
      %v499 = vunpack.c.l.bf16 %v301
      %v500 = vunpack.c.l.bf16 %v302
      %v501 = vunpack.c.l.bf16 %v312
      %v502 = vunpack.c.l.bf16 %v313
      %v503 = vunpack.c.l.bf16 %v314
      %v504 = vunpack.c.l.bf16 %v315
      %v505 = vunpack.c.l.bf16 %v316
      %v506 = vunpack.c.l.bf16 %v317
      %v507 = vunpack.c.l.bf16 %v318
      %v508 = vunpack.c.l.bf16 %v319
      %v509 = vunpack.c.l.bf16 %v320
      %v510 = vunpack.c.l.bf16 %v330
      %v511 = vunpack.c.l.bf16 %v331
      %v512 = vunpack.c.l.bf16 %v332
      %v513 = vunpack.c.l.bf16 %v333
      %v514 = vunpack.c.l.bf16 %v334
      %v515 = vunpack.c.l.bf16 %v335
      %v516 = vunpack.c.l.bf16 %v336
      %v517 = vunpack.c.l.bf16 %v337
      %v518 = vunpack.c.l.bf16 %v338
      %v519 = vunpack.c.l.bf16 %v348
      %v520 = vunpack.c.l.bf16 %v349
      %v521 = vunpack.c.l.bf16 %v350
      %v522 = vunpack.c.l.bf16 %v351
      %v523 = vunpack.c.l.bf16 %v352
      %v524 = vunpack.c.l.bf16 %v353
      %v525 = vunpack.c.l.bf16 %v354
      %v526 = vunpack.c.l.bf16 %v355
      %v527 = vunpack.c.l.bf16 %v356
      %v528 = vunpack.c.l.bf16 %v366
      %v529 = vunpack.c.l.bf16 %v367
      %v530 = vunpack.c.l.bf16 %v368
      %v531 = vunpack.c.l.bf16 %v369
      %v532 = vunpack.c.l.bf16 %v370
      %v533 = vunpack.c.l.bf16 %v371
      %v534 = vunpack.c.l.bf16 %v372
      %v535 = vunpack.c.l.bf16 %v373
      %v536 = vunpack.c.l.bf16 %v374
      %v537 = vunpack.c.l.bf16 %v384
      %v538 = vunpack.c.l.bf16 %v385
      %v539 = vunpack.c.l.bf16 %v386
      %v540 = vunpack.c.l.bf16 %v387
      %v541 = vunpack.c.l.bf16 %v388
      %v542 = vunpack.c.l.bf16 %v389
      %v543 = vunpack.c.l.bf16 %v390
      %v544 = vunpack.c.l.bf16 %v391
      %v545 = vunpack.c.l.bf16 %v392
      %v546 = vmax.f32 %v402, %v474
      %v547 = vmax.f32 %v403, %v475
      %v548 = vmax.f32 %v404, %v476
      %v549 = vmax.f32 %v405, %v477
      %v550 = vmax.f32 %v406, %v478
      %v551 = vmax.f32 %v407, %v479
      %v552 = vmax.f32 %v408, %v480
      %v553 = vmax.f32 %v409, %v481
      %v554 = vmax.f32 %v410, %v482
      %v555 = vmax.f32 %v411, %v483
      %v556 = vmax.f32 %v412, %v484
      %v557 = vmax.f32 %v413, %v485
      %v558 = vmax.f32 %v414, %v486
      %v559 = vmax.f32 %v415, %v487
      %v560 = vmax.f32 %v416, %v488
      %v561 = vmax.f32 %v417, %v489
      %v562 = vmax.f32 %v418, %v490
      %v563 = vmax.f32 %v419, %v491
      %v564 = vmax.f32 %v420, %v492
      %v565 = vmax.f32 %v421, %v493
      %v566 = vmax.f32 %v422, %v494
      %v567 = vmax.f32 %v423, %v495
      %v568 = vmax.f32 %v424, %v496
      %v569 = vmax.f32 %v425, %v497
      %v570 = vmax.f32 %v426, %v498
      %v571 = vmax.f32 %v427, %v499
      %v572 = vmax.f32 %v428, %v500
      %v573 = vmax.f32 %v429, %v501
      %v574 = vmax.f32 %v430, %v502
      %v575 = vmax.f32 %v431, %v503
      %v576 = vmax.f32 %v432, %v504
      %v577 = vmax.f32 %v433, %v505
      %v578 = vmax.f32 %v434, %v506
      %v579 = vmax.f32 %v435, %v507
      %v580 = vmax.f32 %v436, %v508
      %v581 = vmax.f32 %v437, %v509
      %v582 = vmax.f32 %v438, %v510
      %v583 = vmax.f32 %v439, %v511
      %v584 = vmax.f32 %v440, %v512
      %v585 = vmax.f32 %v441, %v513
      %v586 = vmax.f32 %v442, %v514
      %v587 = vmax.f32 %v443, %v515
      %v588 = vmax.f32 %v444, %v516
      %v589 = vmax.f32 %v445, %v517
      %v590 = vmax.f32 %v446, %v518
      %v591 = vmax.f32 %v447, %v519
      %v592 = vmax.f32 %v448, %v520
      %v593 = vmax.f32 %v449, %v521
      %v594 = vmax.f32 %v450, %v522
      %v595 = vmax.f32 %v451, %v523
      %v596 = vmax.f32 %v452, %v524
      %v597 = vmax.f32 %v453, %v525
      %v598 = vmax.f32 %v454, %v526
      %v599 = vmax.f32 %v455, %v527
      %v600 = vmax.f32 %v456, %v528
      %v601 = vmax.f32 %v457, %v529
      %v602 = vmax.f32 %v458, %v530
      %v603 = vmax.f32 %v459, %v531
      %v604 = vmax.f32 %v460, %v532
      %v605 = vmax.f32 %v461, %v533
      %v606 = vmax.f32 %v462, %v534
      %v607 = vmax.f32 %v463, %v535
      %v608 = vmax.f32 %v464, %v536
      %v609 = vmax.f32 %v465, %v537
      %v610 = vmax.f32 %v466, %v538
      %v611 = vmax.f32 %v467, %v539
      %v612 = vmax.f32 %v468, %v540
      %v613 = vmax.f32 %v469, %v541
      %v614 = vmax.f32 %v470, %v542
      %v615 = vmax.f32 %v471, %v543
      %v616 = vmax.f32 %v472, %v544
      %v617 = vmax.f32 %v473, %v545
      %v618 = vpack.c.bf16 %v546, %v546
      %v619 = vpack.c.bf16 %v547, %v547
      %v620 = vpack.c.bf16 %v548, %v548
      %v621 = vpack.c.bf16 %v549, %v549
      %v622 = vpack.c.bf16 %v550, %v550
      %v623 = vpack.c.bf16 %v551, %v551
      %v624 = vpack.c.bf16 %v552, %v552
      %v625 = vpack.c.bf16 %v553, %v553
      %v626 = vpack.c.bf16 %v554, %v554
      %v627 = vpack.c.bf16 %v555, %v555
      %v628 = vpack.c.bf16 %v556, %v556
      %v629 = vpack.c.bf16 %v557, %v557
      %v630 = vpack.c.bf16 %v558, %v558
      %v631 = vpack.c.bf16 %v559, %v559
      %v632 = vpack.c.bf16 %v560, %v560
      %v633 = vpack.c.bf16 %v561, %v561
      %v634 = vpack.c.bf16 %v562, %v562
      %v635 = vpack.c.bf16 %v563, %v563
      %v636 = vpack.c.bf16 %v564, %v564
      %v637 = vpack.c.bf16 %v565, %v565
      %v638 = vpack.c.bf16 %v566, %v566
      %v639 = vpack.c.bf16 %v567, %v567
      %v640 = vpack.c.bf16 %v568, %v568
      %v641 = vpack.c.bf16 %v569, %v569
      %v642 = vpack.c.bf16 %v570, %v570
      %v643 = vpack.c.bf16 %v571, %v571
      %v644 = vpack.c.bf16 %v572, %v572
      %v645 = vpack.c.bf16 %v573, %v573
      %v646 = vpack.c.bf16 %v574, %v574
      %v647 = vpack.c.bf16 %v575, %v575
      %v648 = vpack.c.bf16 %v576, %v576
      %v649 = vpack.c.bf16 %v577, %v577
      %v650 = vpack.c.bf16 %v578, %v578
      %v651 = vpack.c.bf16 %v579, %v579
      %v652 = vpack.c.bf16 %v580, %v580
      %v653 = vpack.c.bf16 %v581, %v581
      %v654 = vpack.c.bf16 %v582, %v582
      %v655 = vpack.c.bf16 %v583, %v583
      %v656 = vpack.c.bf16 %v584, %v584
      %v657 = vpack.c.bf16 %v585, %v585
      %v658 = vpack.c.bf16 %v586, %v586
      %v659 = vpack.c.bf16 %v587, %v587
      %v660 = vpack.c.bf16 %v588, %v588
      %v661 = vpack.c.bf16 %v589, %v589
      %v662 = vpack.c.bf16 %v590, %v590
      %v663 = vpack.c.bf16 %v591, %v591
      %v664 = vpack.c.bf16 %v592, %v592
      %v665 = vpack.c.bf16 %v593, %v593
      %v666 = vpack.c.bf16 %v594, %v594
      %v667 = vpack.c.bf16 %v595, %v595
      %v668 = vpack.c.bf16 %v596, %v596
      %v669 = vpack.c.bf16 %v597, %v597
      %v670 = vpack.c.bf16 %v598, %v598
      %v671 = vpack.c.bf16 %v599, %v599
      %v672 = vpack.c.bf16 %v600, %v600
      %v673 = vpack.c.bf16 %v601, %v601
      %v674 = vpack.c.bf16 %v602, %v602
      %v675 = vpack.c.bf16 %v603, %v603
      %v676 = vpack.c.bf16 %v604, %v604
      %v677 = vpack.c.bf16 %v605, %v605
      %v678 = vpack.c.bf16 %v606, %v606
      %v679 = vpack.c.bf16 %v607, %v607
      %v680 = vpack.c.bf16 %v608, %v608
      %v681 = vpack.c.bf16 %v609, %v609
      %v682 = vpack.c.bf16 %v610, %v610
      %v683 = vpack.c.bf16 %v611, %v611
      %v684 = vpack.c.bf16 %v612, %v612
      %v685 = vpack.c.bf16 %v613, %v613
      %v686 = vpack.c.bf16 %v614, %v614
      %v687 = vpack.c.bf16 %v615, %v615
      %v688 = vpack.c.bf16 %v616, %v616
      %v689 = vpack.c.bf16 %v617, %v617
      %v690 = vunpack.c.l.bf16 %v618
      %v691 = vunpack.c.l.bf16 %v619
      %v692 = vunpack.c.l.bf16 %v620
      %v693 = vunpack.c.l.bf16 %v621
      %v694 = vunpack.c.l.bf16 %v622
      %v695 = vunpack.c.l.bf16 %v623
      %v696 = vunpack.c.l.bf16 %v624
      %v697 = vunpack.c.l.bf16 %v625
      %v698 = vunpack.c.l.bf16 %v626
      %v699 = vunpack.c.l.bf16 %v627
      %v700 = vunpack.c.l.bf16 %v628
      %v701 = vunpack.c.l.bf16 %v629
      %v702 = vunpack.c.l.bf16 %v630
      %v703 = vunpack.c.l.bf16 %v631
      %v704 = vunpack.c.l.bf16 %v632
      %v705 = vunpack.c.l.bf16 %v633
      %v706 = vunpack.c.l.bf16 %v634
      %v707 = vunpack.c.l.bf16 %v635
      %v708 = vunpack.c.l.bf16 %v636
      %v709 = vunpack.c.l.bf16 %v637
      %v710 = vunpack.c.l.bf16 %v638
      %v711 = vunpack.c.l.bf16 %v639
      %v712 = vunpack.c.l.bf16 %v640
      %v713 = vunpack.c.l.bf16 %v641
      %v714 = vunpack.c.l.bf16 %v642
      %v715 = vunpack.c.l.bf16 %v643
      %v716 = vunpack.c.l.bf16 %v644
      %v717 = vunpack.c.l.bf16 %v645
      %v718 = vunpack.c.l.bf16 %v646
      %v719 = vunpack.c.l.bf16 %v647
      %v720 = vunpack.c.l.bf16 %v648
      %v721 = vunpack.c.l.bf16 %v649
      %v722 = vunpack.c.l.bf16 %v650
      %v723 = vunpack.c.l.bf16 %v651
      %v724 = vunpack.c.l.bf16 %v652
      %v725 = vunpack.c.l.bf16 %v653
      %v726 = vunpack.c.l.bf16 %v654
      %v727 = vunpack.c.l.bf16 %v655
      %v728 = vunpack.c.l.bf16 %v656
      %v729 = vunpack.c.l.bf16 %v657
      %v730 = vunpack.c.l.bf16 %v658
      %v731 = vunpack.c.l.bf16 %v659
      %v732 = vunpack.c.l.bf16 %v660
      %v733 = vunpack.c.l.bf16 %v661
      %v734 = vunpack.c.l.bf16 %v662
      %v735 = vunpack.c.l.bf16 %v663
      %v736 = vunpack.c.l.bf16 %v664
      %v737 = vunpack.c.l.bf16 %v665
      %v738 = vunpack.c.l.bf16 %v666
      %v739 = vunpack.c.l.bf16 %v667
      %v740 = vunpack.c.l.bf16 %v668
      %v741 = vunpack.c.l.bf16 %v669
      %v742 = vunpack.c.l.bf16 %v670
      %v743 = vunpack.c.l.bf16 %v671
      %v744 = vunpack.c.l.bf16 %v672
      %v745 = vunpack.c.l.bf16 %v673
      %v746 = vunpack.c.l.bf16 %v674
      %v747 = vunpack.c.l.bf16 %v675
      %v748 = vunpack.c.l.bf16 %v676
      %v749 = vunpack.c.l.bf16 %v677
      %v750 = vunpack.c.l.bf16 %v678
      %v751 = vunpack.c.l.bf16 %v679
      %v752 = vunpack.c.l.bf16 %v680
      %v753 = vunpack.c.l.bf16 %v681
      %v754 = vunpack.c.l.bf16 %v682
      %v755 = vunpack.c.l.bf16 %v683
      %v756 = vunpack.c.l.bf16 %v684
      %v757 = vunpack.c.l.bf16 %v685
      %v758 = vunpack.c.l.bf16 %v686
      %v759 = vunpack.c.l.bf16 %v687
      %v760 = vunpack.c.l.bf16 %v688
      %v761 = vunpack.c.l.bf16 %v689
      %v762 = vunpack.c.l.bf16 %v393
      %v763 = vunpack.c.l.bf16 %v394
      %v764 = vunpack.c.l.bf16 %v395
      %v765 = vunpack.c.l.bf16 %v396
      %v766 = vunpack.c.l.bf16 %v397
      %v767 = vunpack.c.l.bf16 %v398
      %v768 = vunpack.c.l.bf16 %v399
      %v769 = vunpack.c.l.bf16 %v400
      %v770 = vunpack.c.l.bf16 %v401
      %v771 = vmax.f32 %v690, %v411
      %v772 = vmax.f32 %v691, %v412
      %v773 = vmax.f32 %v692, %v413
      %v774 = vmax.f32 %v693, %v414
      %v775 = vmax.f32 %v694, %v415
      %v776 = vmax.f32 %v695, %v416
      %v777 = vmax.f32 %v696, %v417
      %v778 = vmax.f32 %v697, %v418
      %v779 = vmax.f32 %v698, %v419
      %v780 = vmax.f32 %v699, %v420
      %v781 = vmax.f32 %v700, %v421
      %v782 = vmax.f32 %v701, %v422
      %v783 = vmax.f32 %v702, %v423
      %v784 = vmax.f32 %v703, %v424
      %v785 = vmax.f32 %v704, %v425
      %v786 = vmax.f32 %v705, %v426
      %v787 = vmax.f32 %v706, %v427
      %v788 = vmax.f32 %v707, %v428
      %v789 = vmax.f32 %v708, %v429
      %v790 = vmax.f32 %v709, %v430
      %v791 = vmax.f32 %v710, %v431
      %v792 = vmax.f32 %v711, %v432
      %v793 = vmax.f32 %v712, %v433
      %v794 = vmax.f32 %v713, %v434
      %v795 = vmax.f32 %v714, %v435
      %v796 = vmax.f32 %v715, %v436
      %v797 = vmax.f32 %v716, %v437
      %v798 = vmax.f32 %v717, %v438
      %v799 = vmax.f32 %v718, %v439
      %v800 = vmax.f32 %v719, %v440
      %v801 = vmax.f32 %v720, %v441
      %v802 = vmax.f32 %v721, %v442
      %v803 = vmax.f32 %v722, %v443
      %v804 = vmax.f32 %v723, %v444
      %v805 = vmax.f32 %v724, %v445
      %v806 = vmax.f32 %v725, %v446
      %v807 = vmax.f32 %v726, %v447
      %v808 = vmax.f32 %v727, %v448
      %v809 = vmax.f32 %v728, %v449
      %v810 = vmax.f32 %v729, %v450
      %v811 = vmax.f32 %v730, %v451
      %v812 = vmax.f32 %v731, %v452
      %v813 = vmax.f32 %v732, %v453
      %v814 = vmax.f32 %v733, %v454
      %v815 = vmax.f32 %v734, %v455
      %v816 = vmax.f32 %v735, %v456
      %v817 = vmax.f32 %v736, %v457
      %v818 = vmax.f32 %v737, %v458
      %v819 = vmax.f32 %v738, %v459
      %v820 = vmax.f32 %v739, %v460
      %v821 = vmax.f32 %v740, %v461
      %v822 = vmax.f32 %v741, %v462
      %v823 = vmax.f32 %v742, %v463
      %v824 = vmax.f32 %v743, %v464
      %v825 = vmax.f32 %v744, %v465
      %v826 = vmax.f32 %v745, %v466
      %v827 = vmax.f32 %v746, %v467
      %v828 = vmax.f32 %v747, %v468
      %v829 = vmax.f32 %v748, %v469
      %v830 = vmax.f32 %v749, %v470
      %v831 = vmax.f32 %v750, %v471
      %v832 = vmax.f32 %v751, %v472
      %v833 = vmax.f32 %v752, %v473
      %v834 = vmax.f32 %v753, %v762
      %v835 = vmax.f32 %v754, %v763
      %v836 = vmax.f32 %v755, %v764
      %v837 = vmax.f32 %v756, %v765
      %v838 = vmax.f32 %v757, %v766
      %v839 = vmax.f32 %v758, %v767
      %v840 = vmax.f32 %v759, %v768
      %v841 = vmax.f32 %v760, %v769
      %v842 = vmax.f32 %v761, %v770
      %v843 = vpack.c.bf16 %v771, %v771
      %v844 = vpack.c.bf16 %v772, %v772
      %v845 = vpack.c.bf16 %v773, %v773
      %v846 = vpack.c.bf16 %v774, %v774
      %v847 = vpack.c.bf16 %v775, %v775
      %v848 = vpack.c.bf16 %v776, %v776
      %v849 = vpack.c.bf16 %v777, %v777
      %v850 = vpack.c.bf16 %v778, %v778
      %v851 = vpack.c.bf16 %v779, %v779
      %v852 = vpack.c.bf16 %v780, %v780
      %v853 = vpack.c.bf16 %v781, %v781
      %v854 = vpack.c.bf16 %v782, %v782
      %v855 = vpack.c.bf16 %v783, %v783
      %v856 = vpack.c.bf16 %v784, %v784
      %v857 = vpack.c.bf16 %v785, %v785
      %v858 = vpack.c.bf16 %v786, %v786
      %v859 = vpack.c.bf16 %v787, %v787
      %v860 = vpack.c.bf16 %v788, %v788
      %v861 = vpack.c.bf16 %v789, %v789
      %v862 = vpack.c.bf16 %v790, %v790
      %v863 = vpack.c.bf16 %v791, %v791
      %v864 = vpack.c.bf16 %v792, %v792
      %v865 = vpack.c.bf16 %v793, %v793
      %v866 = vpack.c.bf16 %v794, %v794
      %v867 = vpack.c.bf16 %v795, %v795
      %v868 = vpack.c.bf16 %v796, %v796
      %v869 = vpack.c.bf16 %v797, %v797
      %v870 = vpack.c.bf16 %v798, %v798
      %v871 = vpack.c.bf16 %v799, %v799
      %v872 = vpack.c.bf16 %v800, %v800
      %v873 = vpack.c.bf16 %v801, %v801
      %v874 = vpack.c.bf16 %v802, %v802
      %v875 = vpack.c.bf16 %v803, %v803
      %v876 = vpack.c.bf16 %v804, %v804
      %v877 = vpack.c.bf16 %v805, %v805
      %v878 = vpack.c.bf16 %v806, %v806
      %v879 = vpack.c.bf16 %v807, %v807
      %v880 = vpack.c.bf16 %v808, %v808
      %v881 = vpack.c.bf16 %v809, %v809
      %v882 = vpack.c.bf16 %v810, %v810
      %v883 = vpack.c.bf16 %v811, %v811
      %v884 = vpack.c.bf16 %v812, %v812
      %v885 = vpack.c.bf16 %v813, %v813
      %v886 = vpack.c.bf16 %v814, %v814
      %v887 = vpack.c.bf16 %v815, %v815
      %v888 = vpack.c.bf16 %v816, %v816
      %v889 = vpack.c.bf16 %v817, %v817
      %v890 = vpack.c.bf16 %v818, %v818
      %v891 = vpack.c.bf16 %v819, %v819
      %v892 = vpack.c.bf16 %v820, %v820
      %v893 = vpack.c.bf16 %v821, %v821
      %v894 = vpack.c.bf16 %v822, %v822
      %v895 = vpack.c.bf16 %v823, %v823
      %v896 = vpack.c.bf16 %v824, %v824
      %v897 = vpack.c.bf16 %v825, %v825
      %v898 = vpack.c.bf16 %v826, %v826
      %v899 = vpack.c.bf16 %v827, %v827
      %v900 = vpack.c.bf16 %v828, %v828
      %v901 = vpack.c.bf16 %v829, %v829
      %v902 = vpack.c.bf16 %v830, %v830
      %v903 = vpack.c.bf16 %v831, %v831
      %v904 = vpack.c.bf16 %v832, %v832
      %v905 = vpack.c.bf16 %v833, %v833
      %v906 = vpack.c.bf16 %v834, %v834
      %v907 = vpack.c.bf16 %v835, %v835
      %v908 = vpack.c.bf16 %v836, %v836
      %v909 = vpack.c.bf16 %v837, %v837
      %v910 = vpack.c.bf16 %v838, %v838
      %v911 = vpack.c.bf16 %v839, %v839
      %v912 = vpack.c.bf16 %v840, %v840
      %v913 = vpack.c.bf16 %v841, %v841
      %v914 = vpack.c.bf16 %v842, %v842
      %v915 = vunpack.c.l.bf16 %v843
      %v916 = vunpack.c.l.bf16 %v844
      %v917 = vunpack.c.l.bf16 %v845
      %v918 = vunpack.c.l.bf16 %v846
      %v919 = vunpack.c.l.bf16 %v847
      %v920 = vunpack.c.l.bf16 %v848
      %v921 = vunpack.c.l.bf16 %v849
      %v922 = vunpack.c.l.bf16 %v850
      %v923 = vunpack.c.l.bf16 %v852
      %v924 = vunpack.c.l.bf16 %v853
      %v925 = vunpack.c.l.bf16 %v854
      %v926 = vunpack.c.l.bf16 %v855
      %v927 = vunpack.c.l.bf16 %v856
      %v928 = vunpack.c.l.bf16 %v857
      %v929 = vunpack.c.l.bf16 %v858
      %v930 = vunpack.c.l.bf16 %v859
      %v931 = vunpack.c.l.bf16 %v861
      %v932 = vunpack.c.l.bf16 %v862
      %v933 = vunpack.c.l.bf16 %v863
      %v934 = vunpack.c.l.bf16 %v864
      %v935 = vunpack.c.l.bf16 %v865
      %v936 = vunpack.c.l.bf16 %v866
      %v937 = vunpack.c.l.bf16 %v867
      %v938 = vunpack.c.l.bf16 %v868
      %v939 = vunpack.c.l.bf16 %v870
      %v940 = vunpack.c.l.bf16 %v871
      %v941 = vunpack.c.l.bf16 %v872
      %v942 = vunpack.c.l.bf16 %v873
      %v943 = vunpack.c.l.bf16 %v874
      %v944 = vunpack.c.l.bf16 %v875
      %v945 = vunpack.c.l.bf16 %v876
      %v946 = vunpack.c.l.bf16 %v877
      %v947 = vunpack.c.l.bf16 %v879
      %v948 = vunpack.c.l.bf16 %v880
      %v949 = vunpack.c.l.bf16 %v881
      %v950 = vunpack.c.l.bf16 %v882
      %v951 = vunpack.c.l.bf16 %v883
      %v952 = vunpack.c.l.bf16 %v884
      %v953 = vunpack.c.l.bf16 %v885
      %v954 = vunpack.c.l.bf16 %v886
      %v955 = vunpack.c.l.bf16 %v888
      %v956 = vunpack.c.l.bf16 %v889
      %v957 = vunpack.c.l.bf16 %v890
      %v958 = vunpack.c.l.bf16 %v891
      %v959 = vunpack.c.l.bf16 %v892
      %v960 = vunpack.c.l.bf16 %v893
      %v961 = vunpack.c.l.bf16 %v894
      %v962 = vunpack.c.l.bf16 %v895
      %v963 = vunpack.c.l.bf16 %v897
      %v964 = vunpack.c.l.bf16 %v898
      %v965 = vunpack.c.l.bf16 %v899
      %v966 = vunpack.c.l.bf16 %v900
      %v967 = vunpack.c.l.bf16 %v901
      %v968 = vunpack.c.l.bf16 %v902
      %v969 = vunpack.c.l.bf16 %v903
      %v970 = vunpack.c.l.bf16 %v904
      %v971 = vunpack.c.l.bf16 %v906
      %v972 = vunpack.c.l.bf16 %v907
      %v973 = vunpack.c.l.bf16 %v908
      %v974 = vunpack.c.l.bf16 %v909
      %v975 = vunpack.c.l.bf16 %v910
      %v976 = vunpack.c.l.bf16 %v911
      %v977 = vunpack.c.l.bf16 %v912
      %v978 = vunpack.c.l.bf16 %v913
      %vm979 = vcmask 1041408
      %v980 = vsel %vm979, %v915, -inf
      %v981 = vrot.slane %v980, 4
      %v982 = vmax.f32 %v980, %v981
      %v983 = vrot.slane %v982, 2
      %v984 = vmax.f32 %v982, %v983
      %v985 = vrot.slane %v984, 1
      %v986 = vmax.f32 %v984, %v985
      %v987 = vsel %vm979, %v916, -inf
      %v988 = vrot.slane %v987, 4
      %v989 = vmax.f32 %v987, %v988
      %v990 = vrot.slane %v989, 2
      %v991 = vmax.f32 %v989, %v990
      %v992 = vrot.slane %v991, 1
      %v993 = vmax.f32 %v991, %v992
      %v994 = vsel %vm979, %v917, -inf
      %v995 = vrot.slane %v994, 4
      %v996 = vmax.f32 %v994, %v995
      %v997 = vrot.slane %v996, 2
      %v998 = vmax.f32 %v996, %v997
      %v999 = vrot.slane %v998, 1
      %v1000 = vmax.f32 %v998, %v999
      %v1001 = vsel %vm979, %v918, -inf
      %v1002 = vrot.slane %v1001, 4
      %v1003 = vmax.f32 %v1001, %v1002
      %v1004 = vrot.slane %v1003, 2
      %v1005 = vmax.f32 %v1003, %v1004
      %v1006 = vrot.slane %v1005, 1
      %v1007 = vmax.f32 %v1005, %v1006
      %v1008 = vsel %vm979, %v919, -inf
      %v1009 = vrot.slane %v1008, 4
      %v1010 = vmax.f32 %v1008, %v1009
      %v1011 = vrot.slane %v1010, 2
      %v1012 = vmax.f32 %v1010, %v1011
      %v1013 = vrot.slane %v1012, 1
      %v1014 = vmax.f32 %v1012, %v1013
      %v1015 = vsel %vm979, %v920, -inf
      %v1016 = vrot.slane %v1015, 4
      %v1017 = vmax.f32 %v1015, %v1016
      %v1018 = vrot.slane %v1017, 2
      %v1019 = vmax.f32 %v1017, %v1018
      %v1020 = vrot.slane %v1019, 1
      %v1021 = vmax.f32 %v1019, %v1020
      %v1022 = vsel %vm979, %v921, -inf
      %v1023 = vrot.slane %v1022, 4
      %v1024 = vmax.f32 %v1022, %v1023
      %v1025 = vrot.slane %v1024, 2
      %v1026 = vmax.f32 %v1024, %v1025
      %v1027 = vrot.slane %v1026, 1
      %v1028 = vmax.f32 %v1026, %v1027
      %v1029 = vsel %vm979, %v922, -inf
      %v1030 = vrot.slane %v1029, 4
      %v1031 = vmax.f32 %v1029, %v1030
      %v1032 = vrot.slane %v1031, 2
      %v1033 = vmax.f32 %v1031, %v1032
      %v1034 = vrot.slane %v1033, 1
      %v1035 = vmax.f32 %v1033, %v1034
      %v1036 = vsel %vm979, %v923, -inf
      %v1037 = vrot.slane %v1036, 4
      %v1038 = vmax.f32 %v1036, %v1037
      %v1039 = vrot.slane %v1038, 2
      %v1040 = vmax.f32 %v1038, %v1039
      %v1041 = vrot.slane %v1040, 1
      %v1042 = vmax.f32 %v1040, %v1041
      %v1043 = vsel %vm979, %v924, -inf
      %v1044 = vrot.slane %v1043, 4
      %v1045 = vmax.f32 %v1043, %v1044
      %v1046 = vrot.slane %v1045, 2
      %v1047 = vmax.f32 %v1045, %v1046
      %v1048 = vrot.slane %v1047, 1
      %v1049 = vmax.f32 %v1047, %v1048
      %v1050 = vsel %vm979, %v925, -inf
      %v1051 = vrot.slane %v1050, 4
      %v1052 = vmax.f32 %v1050, %v1051
      %v1053 = vrot.slane %v1052, 2
      %v1054 = vmax.f32 %v1052, %v1053
      %v1055 = vrot.slane %v1054, 1
      %v1056 = vmax.f32 %v1054, %v1055
      %v1057 = vsel %vm979, %v926, -inf
      %v1058 = vrot.slane %v1057, 4
      %v1059 = vmax.f32 %v1057, %v1058
      %v1060 = vrot.slane %v1059, 2
      %v1061 = vmax.f32 %v1059, %v1060
      %v1062 = vrot.slane %v1061, 1
      %v1063 = vmax.f32 %v1061, %v1062
      %v1064 = vsel %vm979, %v927, -inf
      %v1065 = vrot.slane %v1064, 4
      %v1066 = vmax.f32 %v1064, %v1065
      %v1067 = vrot.slane %v1066, 2
      %v1068 = vmax.f32 %v1066, %v1067
      %v1069 = vrot.slane %v1068, 1
      %v1070 = vmax.f32 %v1068, %v1069
      %v1071 = vsel %vm979, %v928, -inf
      %v1072 = vrot.slane %v1071, 4
      %v1073 = vmax.f32 %v1071, %v1072
      %v1074 = vrot.slane %v1073, 2
      %v1075 = vmax.f32 %v1073, %v1074
      %v1076 = vrot.slane %v1075, 1
      %v1077 = vmax.f32 %v1075, %v1076
      %v1078 = vsel %vm979, %v929, -inf
      %v1079 = vrot.slane %v1078, 4
      %v1080 = vmax.f32 %v1078, %v1079
      %v1081 = vrot.slane %v1080, 2
      %v1082 = vmax.f32 %v1080, %v1081
      %v1083 = vrot.slane %v1082, 1
      %v1084 = vmax.f32 %v1082, %v1083
      %v1085 = vsel %vm979, %v930, -inf
      %v1086 = vrot.slane %v1085, 4
      %v1087 = vmax.f32 %v1085, %v1086
      %v1088 = vrot.slane %v1087, 2
      %v1089 = vmax.f32 %v1087, %v1088
      %v1090 = vrot.slane %v1089, 1
      %v1091 = vmax.f32 %v1089, %v1090
      %v1092 = vsel %vm979, %v931, -inf
      %v1093 = vrot.slane %v1092, 4
      %v1094 = vmax.f32 %v1092, %v1093
      %v1095 = vrot.slane %v1094, 2
      %v1096 = vmax.f32 %v1094, %v1095
      %v1097 = vrot.slane %v1096, 1
      %v1098 = vmax.f32 %v1096, %v1097
      %v1099 = vsel %vm979, %v932, -inf
      %v1100 = vrot.slane %v1099, 4
      %v1101 = vmax.f32 %v1099, %v1100
      %v1102 = vrot.slane %v1101, 2
      %v1103 = vmax.f32 %v1101, %v1102
      %v1104 = vrot.slane %v1103, 1
      %v1105 = vmax.f32 %v1103, %v1104
      %v1106 = vsel %vm979, %v933, -inf
      %v1107 = vrot.slane %v1106, 4
      %v1108 = vmax.f32 %v1106, %v1107
      %v1109 = vrot.slane %v1108, 2
      %v1110 = vmax.f32 %v1108, %v1109
      %v1111 = vrot.slane %v1110, 1
      %v1112 = vmax.f32 %v1110, %v1111
      %v1113 = vsel %vm979, %v934, -inf
      %v1114 = vrot.slane %v1113, 4
      %v1115 = vmax.f32 %v1113, %v1114
      %v1116 = vrot.slane %v1115, 2
      %v1117 = vmax.f32 %v1115, %v1116
      %v1118 = vrot.slane %v1117, 1
      %v1119 = vmax.f32 %v1117, %v1118
      %v1120 = vsel %vm979, %v935, -inf
      %v1121 = vrot.slane %v1120, 4
      %v1122 = vmax.f32 %v1120, %v1121
      %v1123 = vrot.slane %v1122, 2
      %v1124 = vmax.f32 %v1122, %v1123
      %v1125 = vrot.slane %v1124, 1
      %v1126 = vmax.f32 %v1124, %v1125
      %v1127 = vsel %vm979, %v936, -inf
      %v1128 = vrot.slane %v1127, 4
      %v1129 = vmax.f32 %v1127, %v1128
      %v1130 = vrot.slane %v1129, 2
      %v1131 = vmax.f32 %v1129, %v1130
      %v1132 = vrot.slane %v1131, 1
      %v1133 = vmax.f32 %v1131, %v1132
      %v1134 = vsel %vm979, %v937, -inf
      %v1135 = vrot.slane %v1134, 4
      %v1136 = vmax.f32 %v1134, %v1135
      %v1137 = vrot.slane %v1136, 2
      %v1138 = vmax.f32 %v1136, %v1137
      %v1139 = vrot.slane %v1138, 1
      %v1140 = vmax.f32 %v1138, %v1139
      %v1141 = vsel %vm979, %v938, -inf
      %v1142 = vrot.slane %v1141, 4
      %v1143 = vmax.f32 %v1141, %v1142
      %v1144 = vrot.slane %v1143, 2
      %v1145 = vmax.f32 %v1143, %v1144
      %v1146 = vrot.slane %v1145, 1
      %v1147 = vmax.f32 %v1145, %v1146
      %v1148 = vsel %vm979, %v939, -inf
      %v1149 = vrot.slane %v1148, 4
      %v1150 = vmax.f32 %v1148, %v1149
      %v1151 = vrot.slane %v1150, 2
      %v1152 = vmax.f32 %v1150, %v1151
      %v1153 = vrot.slane %v1152, 1
      %v1154 = vmax.f32 %v1152, %v1153
      %v1155 = vsel %vm979, %v940, -inf
      %v1156 = vrot.slane %v1155, 4
      %v1157 = vmax.f32 %v1155, %v1156
      %v1158 = vrot.slane %v1157, 2
      %v1159 = vmax.f32 %v1157, %v1158
      %v1160 = vrot.slane %v1159, 1
      %v1161 = vmax.f32 %v1159, %v1160
      %v1162 = vsel %vm979, %v941, -inf
      %v1163 = vrot.slane %v1162, 4
      %v1164 = vmax.f32 %v1162, %v1163
      %v1165 = vrot.slane %v1164, 2
      %v1166 = vmax.f32 %v1164, %v1165
      %v1167 = vrot.slane %v1166, 1
      %v1168 = vmax.f32 %v1166, %v1167
      %v1169 = vsel %vm979, %v942, -inf
      %v1170 = vrot.slane %v1169, 4
      %v1171 = vmax.f32 %v1169, %v1170
      %v1172 = vrot.slane %v1171, 2
      %v1173 = vmax.f32 %v1171, %v1172
      %v1174 = vrot.slane %v1173, 1
      %v1175 = vmax.f32 %v1173, %v1174
      %v1176 = vsel %vm979, %v943, -inf
      %v1177 = vrot.slane %v1176, 4
      %v1178 = vmax.f32 %v1176, %v1177
      %v1179 = vrot.slane %v1178, 2
      %v1180 = vmax.f32 %v1178, %v1179
      %v1181 = vrot.slane %v1180, 1
      %v1182 = vmax.f32 %v1180, %v1181
      %v1183 = vsel %vm979, %v944, -inf
      %v1184 = vrot.slane %v1183, 4
      %v1185 = vmax.f32 %v1183, %v1184
      %v1186 = vrot.slane %v1185, 2
      %v1187 = vmax.f32 %v1185, %v1186
      %v1188 = vrot.slane %v1187, 1
      %v1189 = vmax.f32 %v1187, %v1188
      %v1190 = vsel %vm979, %v945, -inf
      %v1191 = vrot.slane %v1190, 4
      %v1192 = vmax.f32 %v1190, %v1191
      %v1193 = vrot.slane %v1192, 2
      %v1194 = vmax.f32 %v1192, %v1193
      %v1195 = vrot.slane %v1194, 1
      %v1196 = vmax.f32 %v1194, %v1195
      %v1197 = vsel %vm979, %v946, -inf
      %v1198 = vrot.slane %v1197, 4
      %v1199 = vmax.f32 %v1197, %v1198
      %v1200 = vrot.slane %v1199, 2
      %v1201 = vmax.f32 %v1199, %v1200
      %v1202 = vrot.slane %v1201, 1
      %v1203 = vmax.f32 %v1201, %v1202
      %v1204 = vsel %vm979, %v947, -inf
      %v1205 = vrot.slane %v1204, 4
      %v1206 = vmax.f32 %v1204, %v1205
      %v1207 = vrot.slane %v1206, 2
      %v1208 = vmax.f32 %v1206, %v1207
      %v1209 = vrot.slane %v1208, 1
      %v1210 = vmax.f32 %v1208, %v1209
      %v1211 = vsel %vm979, %v948, -inf
      %v1212 = vrot.slane %v1211, 4
      %v1213 = vmax.f32 %v1211, %v1212
      %v1214 = vrot.slane %v1213, 2
      %v1215 = vmax.f32 %v1213, %v1214
      %v1216 = vrot.slane %v1215, 1
      %v1217 = vmax.f32 %v1215, %v1216
      %v1218 = vsel %vm979, %v949, -inf
      %v1219 = vrot.slane %v1218, 4
      %v1220 = vmax.f32 %v1218, %v1219
      %v1221 = vrot.slane %v1220, 2
      %v1222 = vmax.f32 %v1220, %v1221
      %v1223 = vrot.slane %v1222, 1
      %v1224 = vmax.f32 %v1222, %v1223
      %v1225 = vsel %vm979, %v950, -inf
      %v1226 = vrot.slane %v1225, 4
      %v1227 = vmax.f32 %v1225, %v1226
      %v1228 = vrot.slane %v1227, 2
      %v1229 = vmax.f32 %v1227, %v1228
      %v1230 = vrot.slane %v1229, 1
      %v1231 = vmax.f32 %v1229, %v1230
      %v1232 = vsel %vm979, %v951, -inf
      %v1233 = vrot.slane %v1232, 4
      %v1234 = vmax.f32 %v1232, %v1233
      %v1235 = vrot.slane %v1234, 2
      %v1236 = vmax.f32 %v1234, %v1235
      %v1237 = vrot.slane %v1236, 1
      %v1238 = vmax.f32 %v1236, %v1237
      %v1239 = vsel %vm979, %v952, -inf
      %v1240 = vrot.slane %v1239, 4
      %v1241 = vmax.f32 %v1239, %v1240
      %v1242 = vrot.slane %v1241, 2
      %v1243 = vmax.f32 %v1241, %v1242
      %v1244 = vrot.slane %v1243, 1
      %v1245 = vmax.f32 %v1243, %v1244
      %v1246 = vsel %vm979, %v953, -inf
      %v1247 = vrot.slane %v1246, 4
      %v1248 = vmax.f32 %v1246, %v1247
      %v1249 = vrot.slane %v1248, 2
      %v1250 = vmax.f32 %v1248, %v1249
      %v1251 = vrot.slane %v1250, 1
      %v1252 = vmax.f32 %v1250, %v1251
      %v1253 = vsel %vm979, %v954, -inf
      %v1254 = vrot.slane %v1253, 4
      %v1255 = vmax.f32 %v1253, %v1254
      %v1256 = vrot.slane %v1255, 2
      %v1257 = vmax.f32 %v1255, %v1256
      %v1258 = vrot.slane %v1257, 1
      %v1259 = vmax.f32 %v1257, %v1258
      %v1260 = vsel %vm979, %v955, -inf
      %v1261 = vrot.slane %v1260, 4
      %v1262 = vmax.f32 %v1260, %v1261
      %v1263 = vrot.slane %v1262, 2
      %v1264 = vmax.f32 %v1262, %v1263
      %v1265 = vrot.slane %v1264, 1
      %v1266 = vmax.f32 %v1264, %v1265
      %v1267 = vsel %vm979, %v956, -inf
      %v1268 = vrot.slane %v1267, 4
      %v1269 = vmax.f32 %v1267, %v1268
      %v1270 = vrot.slane %v1269, 2
      %v1271 = vmax.f32 %v1269, %v1270
      %v1272 = vrot.slane %v1271, 1
      %v1273 = vmax.f32 %v1271, %v1272
      %v1274 = vsel %vm979, %v957, -inf
      %v1275 = vrot.slane %v1274, 4
      %v1276 = vmax.f32 %v1274, %v1275
      %v1277 = vrot.slane %v1276, 2
      %v1278 = vmax.f32 %v1276, %v1277
      %v1279 = vrot.slane %v1278, 1
      %v1280 = vmax.f32 %v1278, %v1279
      %v1281 = vsel %vm979, %v958, -inf
      %v1282 = vrot.slane %v1281, 4
      %v1283 = vmax.f32 %v1281, %v1282
      %v1284 = vrot.slane %v1283, 2
      %v1285 = vmax.f32 %v1283, %v1284
      %v1286 = vrot.slane %v1285, 1
      %v1287 = vmax.f32 %v1285, %v1286
      %v1288 = vsel %vm979, %v959, -inf
      %v1289 = vrot.slane %v1288, 4
      %v1290 = vmax.f32 %v1288, %v1289
      %v1291 = vrot.slane %v1290, 2
      %v1292 = vmax.f32 %v1290, %v1291
      %v1293 = vrot.slane %v1292, 1
      %v1294 = vmax.f32 %v1292, %v1293
      %v1295 = vsel %vm979, %v960, -inf
      %v1296 = vrot.slane %v1295, 4
      %v1297 = vmax.f32 %v1295, %v1296
      %v1298 = vrot.slane %v1297, 2
      %v1299 = vmax.f32 %v1297, %v1298
      %v1300 = vrot.slane %v1299, 1
      %v1301 = vmax.f32 %v1299, %v1300
      %v1302 = vsel %vm979, %v961, -inf
      %v1303 = vrot.slane %v1302, 4
      %v1304 = vmax.f32 %v1302, %v1303
      %v1305 = vrot.slane %v1304, 2
      %v1306 = vmax.f32 %v1304, %v1305
      %v1307 = vrot.slane %v1306, 1
      %v1308 = vmax.f32 %v1306, %v1307
      %v1309 = vsel %vm979, %v962, -inf
      %v1310 = vrot.slane %v1309, 4
      %v1311 = vmax.f32 %v1309, %v1310
      %v1312 = vrot.slane %v1311, 2
      %v1313 = vmax.f32 %v1311, %v1312
      %v1314 = vrot.slane %v1313, 1
      %v1315 = vmax.f32 %v1313, %v1314
      %v1316 = vsel %vm979, %v963, -inf
      %v1317 = vrot.slane %v1316, 4
      %v1318 = vmax.f32 %v1316, %v1317
      %v1319 = vrot.slane %v1318, 2
      %v1320 = vmax.f32 %v1318, %v1319
      %v1321 = vrot.slane %v1320, 1
      %v1322 = vmax.f32 %v1320, %v1321
      %v1323 = vsel %vm979, %v964, -inf
      %v1324 = vrot.slane %v1323, 4
      %v1325 = vmax.f32 %v1323, %v1324
      %v1326 = vrot.slane %v1325, 2
      %v1327 = vmax.f32 %v1325, %v1326
      %v1328 = vrot.slane %v1327, 1
      %v1329 = vmax.f32 %v1327, %v1328
      %v1330 = vsel %vm979, %v965, -inf
      %v1331 = vrot.slane %v1330, 4
      %v1332 = vmax.f32 %v1330, %v1331
      %v1333 = vrot.slane %v1332, 2
      %v1334 = vmax.f32 %v1332, %v1333
      %v1335 = vrot.slane %v1334, 1
      %v1336 = vmax.f32 %v1334, %v1335
      %v1337 = vsel %vm979, %v966, -inf
      %v1338 = vrot.slane %v1337, 4
      %v1339 = vmax.f32 %v1337, %v1338
      %v1340 = vrot.slane %v1339, 2
      %v1341 = vmax.f32 %v1339, %v1340
      %v1342 = vrot.slane %v1341, 1
      %v1343 = vmax.f32 %v1341, %v1342
      %v1344 = vsel %vm979, %v967, -inf
      %v1345 = vrot.slane %v1344, 4
      %v1346 = vmax.f32 %v1344, %v1345
      %v1347 = vrot.slane %v1346, 2
      %v1348 = vmax.f32 %v1346, %v1347
      %v1349 = vrot.slane %v1348, 1
      %v1350 = vmax.f32 %v1348, %v1349
      %v1351 = vsel %vm979, %v968, -inf
      %v1352 = vrot.slane %v1351, 4
      %v1353 = vmax.f32 %v1351, %v1352
      %v1354 = vrot.slane %v1353, 2
      %v1355 = vmax.f32 %v1353, %v1354
      %v1356 = vrot.slane %v1355, 1
      %v1357 = vmax.f32 %v1355, %v1356
      %v1358 = vsel %vm979, %v969, -inf
      %v1359 = vrot.slane %v1358, 4
      %v1360 = vmax.f32 %v1358, %v1359
      %v1361 = vrot.slane %v1360, 2
      %v1362 = vmax.f32 %v1360, %v1361
      %v1363 = vrot.slane %v1362, 1
      %v1364 = vmax.f32 %v1362, %v1363
      %v1365 = vsel %vm979, %v970, -inf
      %v1366 = vrot.slane %v1365, 4
      %v1367 = vmax.f32 %v1365, %v1366
      %v1368 = vrot.slane %v1367, 2
      %v1369 = vmax.f32 %v1367, %v1368
      %v1370 = vrot.slane %v1369, 1
      %v1371 = vmax.f32 %v1369, %v1370
      %v1372 = vsel %vm979, %v971, -inf
      %v1373 = vrot.slane %v1372, 4
      %v1374 = vmax.f32 %v1372, %v1373
      %v1375 = vrot.slane %v1374, 2
      %v1376 = vmax.f32 %v1374, %v1375
      %v1377 = vrot.slane %v1376, 1
      %v1378 = vmax.f32 %v1376, %v1377
      %v1379 = vsel %vm979, %v972, -inf
      %v1380 = vrot.slane %v1379, 4
      %v1381 = vmax.f32 %v1379, %v1380
      %v1382 = vrot.slane %v1381, 2
      %v1383 = vmax.f32 %v1381, %v1382
      %v1384 = vrot.slane %v1383, 1
      %v1385 = vmax.f32 %v1383, %v1384
      %v1386 = vsel %vm979, %v973, -inf
      %v1387 = vrot.slane %v1386, 4
      %v1388 = vmax.f32 %v1386, %v1387
      %v1389 = vrot.slane %v1388, 2
      %v1390 = vmax.f32 %v1388, %v1389
      %v1391 = vrot.slane %v1390, 1
      %v1392 = vmax.f32 %v1390, %v1391
      %v1393 = vsel %vm979, %v974, -inf
      %v1394 = vrot.slane %v1393, 4
      %v1395 = vmax.f32 %v1393, %v1394
      %v1396 = vrot.slane %v1395, 2
      %v1397 = vmax.f32 %v1395, %v1396
      %v1398 = vrot.slane %v1397, 1
      %v1399 = vmax.f32 %v1397, %v1398
      %v1400 = vsel %vm979, %v975, -inf
      %v1401 = vrot.slane %v1400, 4
      %v1402 = vmax.f32 %v1400, %v1401
      %v1403 = vrot.slane %v1402, 2
      %v1404 = vmax.f32 %v1402, %v1403
      %v1405 = vrot.slane %v1404, 1
      %v1406 = vmax.f32 %v1404, %v1405
      %v1407 = vsel %vm979, %v976, -inf
      %v1408 = vrot.slane %v1407, 4
      %v1409 = vmax.f32 %v1407, %v1408
      %v1410 = vrot.slane %v1409, 2
      %v1411 = vmax.f32 %v1409, %v1410
      %v1412 = vrot.slane %v1411, 1
      %v1413 = vmax.f32 %v1411, %v1412
      %v1414 = vsel %vm979, %v977, -inf
      %v1415 = vrot.slane %v1414, 4
      %v1416 = vmax.f32 %v1414, %v1415
      %v1417 = vrot.slane %v1416, 2
      %v1418 = vmax.f32 %v1416, %v1417
      %v1419 = vrot.slane %v1418, 1
      %v1420 = vmax.f32 %v1418, %v1419
      %v1421 = vsel %vm979, %v978, -inf
      %v1422 = vrot.slane %v1421, 4
      %v1423 = vmax.f32 %v1421, %v1422
      %v1424 = vrot.slane %v1423, 2
      %v1425 = vmax.f32 %v1423, %v1424
      %v1426 = vrot.slane %v1425, 1
      %v1427 = vmax.f32 %v1425, %v1426
      %v1428 = vpack.c.bf16 %v986, %v986
      %v1429 = vpack.c.bf16 %v993, %v993
      %v1430 = vpack.c.bf16 %v1000, %v1000
      %v1431 = vpack.c.bf16 %v1007, %v1007
      %v1432 = vpack.c.bf16 %v1014, %v1014
      %v1433 = vpack.c.bf16 %v1021, %v1021
      %v1434 = vpack.c.bf16 %v1028, %v1028
      %v1435 = vpack.c.bf16 %v1035, %v1035
      %v1436 = vpack.c.bf16 %v1042, %v1042
      %v1437 = vpack.c.bf16 %v1049, %v1049
      %v1438 = vpack.c.bf16 %v1056, %v1056
      %v1439 = vpack.c.bf16 %v1063, %v1063
      %v1440 = vpack.c.bf16 %v1070, %v1070
      %v1441 = vpack.c.bf16 %v1077, %v1077
      %v1442 = vpack.c.bf16 %v1084, %v1084
      %v1443 = vpack.c.bf16 %v1091, %v1091
      %v1444 = vpack.c.bf16 %v1098, %v1098
      %v1445 = vpack.c.bf16 %v1105, %v1105
      %v1446 = vpack.c.bf16 %v1112, %v1112
      %v1447 = vpack.c.bf16 %v1119, %v1119
      %v1448 = vpack.c.bf16 %v1126, %v1126
      %v1449 = vpack.c.bf16 %v1133, %v1133
      %v1450 = vpack.c.bf16 %v1140, %v1140
      %v1451 = vpack.c.bf16 %v1147, %v1147
      %v1452 = vpack.c.bf16 %v1154, %v1154
      %v1453 = vpack.c.bf16 %v1161, %v1161
      %v1454 = vpack.c.bf16 %v1168, %v1168
      %v1455 = vpack.c.bf16 %v1175, %v1175
      %v1456 = vpack.c.bf16 %v1182, %v1182
      %v1457 = vpack.c.bf16 %v1189, %v1189
      %v1458 = vpack.c.bf16 %v1196, %v1196
      %v1459 = vpack.c.bf16 %v1203, %v1203
      %v1460 = vpack.c.bf16 %v1210, %v1210
      %v1461 = vpack.c.bf16 %v1217, %v1217
      %v1462 = vpack.c.bf16 %v1224, %v1224
      %v1463 = vpack.c.bf16 %v1231, %v1231
      %v1464 = vpack.c.bf16 %v1238, %v1238
      %v1465 = vpack.c.bf16 %v1245, %v1245
      %v1466 = vpack.c.bf16 %v1252, %v1252
      %v1467 = vpack.c.bf16 %v1259, %v1259
      %v1468 = vpack.c.bf16 %v1266, %v1266
      %v1469 = vpack.c.bf16 %v1273, %v1273
      %v1470 = vpack.c.bf16 %v1280, %v1280
      %v1471 = vpack.c.bf16 %v1287, %v1287
      %v1472 = vpack.c.bf16 %v1294, %v1294
      %v1473 = vpack.c.bf16 %v1301, %v1301
      %v1474 = vpack.c.bf16 %v1308, %v1308
      %v1475 = vpack.c.bf16 %v1315, %v1315
      %v1476 = vpack.c.bf16 %v1322, %v1322
      %v1477 = vpack.c.bf16 %v1329, %v1329
      %v1478 = vpack.c.bf16 %v1336, %v1336
      %v1479 = vpack.c.bf16 %v1343, %v1343
      %v1480 = vpack.c.bf16 %v1350, %v1350
      %v1481 = vpack.c.bf16 %v1357, %v1357
      %v1482 = vpack.c.bf16 %v1364, %v1364
      %v1483 = vpack.c.bf16 %v1371, %v1371
      %v1484 = vpack.c.bf16 %v1378, %v1378
      %v1485 = vpack.c.bf16 %v1385, %v1385
      %v1486 = vpack.c.bf16 %v1392, %v1392
      %v1487 = vpack.c.bf16 %v1399, %v1399
      %v1488 = vpack.c.bf16 %v1406, %v1406
      %v1489 = vpack.c.bf16 %v1413, %v1413
      %v1490 = vpack.c.bf16 %v1420, %v1420
      %v1491 = vpack.c.bf16 %v1427, %v1427
      %v1492 = vlaneseq
      %v1493 = vshrl.u32 %v1492, 7
      %vm1494 = vcmp.eq.s32.totalorder %v1493, 0
      %vm1495 = vmpackc.low %vm1494, %vm1494
      %v1496 = vsel %vm1495, %v844, 0
      %v1497 = vsel %vm1495, %v845, 0
      %v1498 = vsel %vm1495, %v846, 0
      %v1499 = vsel %vm1495, %v847, 0
      %v1500 = vsel %vm1495, %v848, 0
      %v1501 = vsel %vm1495, %v849, 0
      %v1502 = vsel %vm1495, %v850, 0
      %v1503 = vsel %vm1495, %v851, 0
      %v1504 = vsel %vm1495, %v853, 0
      %v1505 = vsel %vm1495, %v854, 0
      %v1506 = vsel %vm1495, %v855, 0
      %v1507 = vsel %vm1495, %v856, 0
      %v1508 = vsel %vm1495, %v857, 0
      %v1509 = vsel %vm1495, %v858, 0
      %v1510 = vsel %vm1495, %v859, 0
      %v1511 = vsel %vm1495, %v860, 0
      %v1512 = vsel %vm1495, %v862, 0
      %v1513 = vsel %vm1495, %v863, 0
      %v1514 = vsel %vm1495, %v864, 0
      %v1515 = vsel %vm1495, %v865, 0
      %v1516 = vsel %vm1495, %v866, 0
      %v1517 = vsel %vm1495, %v867, 0
      %v1518 = vsel %vm1495, %v868, 0
      %v1519 = vsel %vm1495, %v869, 0
      %v1520 = vsel %vm1495, %v871, 0
      %v1521 = vsel %vm1495, %v872, 0
      %v1522 = vsel %vm1495, %v873, 0
      %v1523 = vsel %vm1495, %v874, 0
      %v1524 = vsel %vm1495, %v875, 0
      %v1525 = vsel %vm1495, %v876, 0
      %v1526 = vsel %vm1495, %v877, 0
      %v1527 = vsel %vm1495, %v878, 0
      %v1528 = vsel %vm1495, %v880, 0
      %v1529 = vsel %vm1495, %v881, 0
      %v1530 = vsel %vm1495, %v882, 0
      %v1531 = vsel %vm1495, %v883, 0
      %v1532 = vsel %vm1495, %v884, 0
      %v1533 = vsel %vm1495, %v885, 0
      %v1534 = vsel %vm1495, %v886, 0
      %v1535 = vsel %vm1495, %v887, 0
      %v1536 = vsel %vm1495, %v889, 0
      %v1537 = vsel %vm1495, %v890, 0
      %v1538 = vsel %vm1495, %v891, 0
      %v1539 = vsel %vm1495, %v892, 0
      %v1540 = vsel %vm1495, %v893, 0
      %v1541 = vsel %vm1495, %v894, 0
      %v1542 = vsel %vm1495, %v895, 0
      %v1543 = vsel %vm1495, %v896, 0
      %v1544 = vsel %vm1495, %v898, 0
      %v1545 = vsel %vm1495, %v899, 0
      %v1546 = vsel %vm1495, %v900, 0
      %v1547 = vsel %vm1495, %v901, 0
      %v1548 = vsel %vm1495, %v902, 0
      %v1549 = vsel %vm1495, %v903, 0
      %v1550 = vsel %vm1495, %v904, 0
      %v1551 = vsel %vm1495, %v905, 0
      %v1552 = vsel %vm1495, %v907, 0
      %v1553 = vsel %vm1495, %v908, 0
      %v1554 = vsel %vm1495, %v909, 0
      %v1555 = vsel %vm1495, %v910, 0
      %v1556 = vsel %vm1495, %v911, 0
      %v1557 = vsel %vm1495, %v912, 0
      %v1558 = vsel %vm1495, %v913, 0
      %v1559 = vsel %vm1495, %v914, 0
      %v1560 = vunpack.c.l.bf16 %v1496
      %v1561 = vunpack.c.l.bf16 %v1497
      %v1562 = vunpack.c.l.bf16 %v1498
      %v1563 = vunpack.c.l.bf16 %v1499
      %v1564 = vunpack.c.l.bf16 %v1500
      %v1565 = vunpack.c.l.bf16 %v1501
      %v1566 = vunpack.c.l.bf16 %v1502
      %v1567 = vunpack.c.l.bf16 %v1503
      %v1568 = vunpack.c.l.bf16 %v1504
      %v1569 = vunpack.c.l.bf16 %v1505
      %v1570 = vunpack.c.l.bf16 %v1506
      %v1571 = vunpack.c.l.bf16 %v1507
      %v1572 = vunpack.c.l.bf16 %v1508
      %v1573 = vunpack.c.l.bf16 %v1509
      %v1574 = vunpack.c.l.bf16 %v1510
      %v1575 = vunpack.c.l.bf16 %v1511
      %v1576 = vunpack.c.l.bf16 %v1512
      %v1577 = vunpack.c.l.bf16 %v1513
      %v1578 = vunpack.c.l.bf16 %v1514
      %v1579 = vunpack.c.l.bf16 %v1515
      %v1580 = vunpack.c.l.bf16 %v1516
      %v1581 = vunpack.c.l.bf16 %v1517
      %v1582 = vunpack.c.l.bf16 %v1518
      %v1583 = vunpack.c.l.bf16 %v1519
      %v1584 = vunpack.c.l.bf16 %v1520
      %v1585 = vunpack.c.l.bf16 %v1521
      %v1586 = vunpack.c.l.bf16 %v1522
      %v1587 = vunpack.c.l.bf16 %v1523
      %v1588 = vunpack.c.l.bf16 %v1524
      %v1589 = vunpack.c.l.bf16 %v1525
      %v1590 = vunpack.c.l.bf16 %v1526
      %v1591 = vunpack.c.l.bf16 %v1527
      %v1592 = vunpack.c.l.bf16 %v1528
      %v1593 = vunpack.c.l.bf16 %v1529
      %v1594 = vunpack.c.l.bf16 %v1530
      %v1595 = vunpack.c.l.bf16 %v1531
      %v1596 = vunpack.c.l.bf16 %v1532
      %v1597 = vunpack.c.l.bf16 %v1533
      %v1598 = vunpack.c.l.bf16 %v1534
      %v1599 = vunpack.c.l.bf16 %v1535
      %v1600 = vunpack.c.l.bf16 %v1536
      %v1601 = vunpack.c.l.bf16 %v1537
      %v1602 = vunpack.c.l.bf16 %v1538
      %v1603 = vunpack.c.l.bf16 %v1539
      %v1604 = vunpack.c.l.bf16 %v1540
      %v1605 = vunpack.c.l.bf16 %v1541
      %v1606 = vunpack.c.l.bf16 %v1542
      %v1607 = vunpack.c.l.bf16 %v1543
      %v1608 = vunpack.c.l.bf16 %v1544
      %v1609 = vunpack.c.l.bf16 %v1545
      %v1610 = vunpack.c.l.bf16 %v1546
      %v1611 = vunpack.c.l.bf16 %v1547
      %v1612 = vunpack.c.l.bf16 %v1548
      %v1613 = vunpack.c.l.bf16 %v1549
      %v1614 = vunpack.c.l.bf16 %v1550
      %v1615 = vunpack.c.l.bf16 %v1551
      %v1616 = vunpack.c.l.bf16 %v1552
      %v1617 = vunpack.c.l.bf16 %v1553
      %v1618 = vunpack.c.l.bf16 %v1554
      %v1619 = vunpack.c.l.bf16 %v1555
      %v1620 = vunpack.c.l.bf16 %v1556
      %v1621 = vunpack.c.l.bf16 %v1557
      %v1622 = vunpack.c.l.bf16 %v1558
      %v1623 = vunpack.c.l.bf16 %v1559
      %v1624 = vsel %vm979, %v1560, -inf
      %v1625 = vrot.slane %v1624, 4
      %v1626 = vmax.f32 %v1624, %v1625
      %v1627 = vrot.slane %v1626, 2
      %v1628 = vmax.f32 %v1626, %v1627
      %v1629 = vrot.slane %v1628, 1
      %v1630 = vmax.f32 %v1628, %v1629
      %v1631 = vsel %vm979, %v1561, -inf
      %v1632 = vrot.slane %v1631, 4
      %v1633 = vmax.f32 %v1631, %v1632
      %v1634 = vrot.slane %v1633, 2
      %v1635 = vmax.f32 %v1633, %v1634
      %v1636 = vrot.slane %v1635, 1
      %v1637 = vmax.f32 %v1635, %v1636
      %v1638 = vsel %vm979, %v1562, -inf
      %v1639 = vrot.slane %v1638, 4
      %v1640 = vmax.f32 %v1638, %v1639
      %v1641 = vrot.slane %v1640, 2
      %v1642 = vmax.f32 %v1640, %v1641
      %v1643 = vrot.slane %v1642, 1
      %v1644 = vmax.f32 %v1642, %v1643
      %v1645 = vsel %vm979, %v1563, -inf
      %v1646 = vrot.slane %v1645, 4
      %v1647 = vmax.f32 %v1645, %v1646
      %v1648 = vrot.slane %v1647, 2
      %v1649 = vmax.f32 %v1647, %v1648
      %v1650 = vrot.slane %v1649, 1
      %v1651 = vmax.f32 %v1649, %v1650
      %v1652 = vsel %vm979, %v1564, -inf
      %v1653 = vrot.slane %v1652, 4
      %v1654 = vmax.f32 %v1652, %v1653
      %v1655 = vrot.slane %v1654, 2
      %v1656 = vmax.f32 %v1654, %v1655
      %v1657 = vrot.slane %v1656, 1
      %v1658 = vmax.f32 %v1656, %v1657
      %v1659 = vsel %vm979, %v1565, -inf
      %v1660 = vrot.slane %v1659, 4
      %v1661 = vmax.f32 %v1659, %v1660
      %v1662 = vrot.slane %v1661, 2
      %v1663 = vmax.f32 %v1661, %v1662
      %v1664 = vrot.slane %v1663, 1
      %v1665 = vmax.f32 %v1663, %v1664
      %v1666 = vsel %vm979, %v1566, -inf
      %v1667 = vrot.slane %v1666, 4
      %v1668 = vmax.f32 %v1666, %v1667
      %v1669 = vrot.slane %v1668, 2
      %v1670 = vmax.f32 %v1668, %v1669
      %v1671 = vrot.slane %v1670, 1
      %v1672 = vmax.f32 %v1670, %v1671
      %v1673 = vsel %vm979, %v1567, -inf
      %v1674 = vrot.slane %v1673, 4
      %v1675 = vmax.f32 %v1673, %v1674
      %v1676 = vrot.slane %v1675, 2
      %v1677 = vmax.f32 %v1675, %v1676
      %v1678 = vrot.slane %v1677, 1
      %v1679 = vmax.f32 %v1677, %v1678
      %v1680 = vsel %vm979, %v1568, -inf
      %v1681 = vrot.slane %v1680, 4
      %v1682 = vmax.f32 %v1680, %v1681
      %v1683 = vrot.slane %v1682, 2
      %v1684 = vmax.f32 %v1682, %v1683
      %v1685 = vrot.slane %v1684, 1
      %v1686 = vmax.f32 %v1684, %v1685
      %v1687 = vsel %vm979, %v1569, -inf
      %v1688 = vrot.slane %v1687, 4
      %v1689 = vmax.f32 %v1687, %v1688
      %v1690 = vrot.slane %v1689, 2
      %v1691 = vmax.f32 %v1689, %v1690
      %v1692 = vrot.slane %v1691, 1
      %v1693 = vmax.f32 %v1691, %v1692
      %v1694 = vsel %vm979, %v1570, -inf
      %v1695 = vrot.slane %v1694, 4
      %v1696 = vmax.f32 %v1694, %v1695
      %v1697 = vrot.slane %v1696, 2
      %v1698 = vmax.f32 %v1696, %v1697
      %v1699 = vrot.slane %v1698, 1
      %v1700 = vmax.f32 %v1698, %v1699
      %v1701 = vsel %vm979, %v1571, -inf
      %v1702 = vrot.slane %v1701, 4
      %v1703 = vmax.f32 %v1701, %v1702
      %v1704 = vrot.slane %v1703, 2
      %v1705 = vmax.f32 %v1703, %v1704
      %v1706 = vrot.slane %v1705, 1
      %v1707 = vmax.f32 %v1705, %v1706
      %v1708 = vsel %vm979, %v1572, -inf
      %v1709 = vrot.slane %v1708, 4
      %v1710 = vmax.f32 %v1708, %v1709
      %v1711 = vrot.slane %v1710, 2
      %v1712 = vmax.f32 %v1710, %v1711
      %v1713 = vrot.slane %v1712, 1
      %v1714 = vmax.f32 %v1712, %v1713
      %v1715 = vsel %vm979, %v1573, -inf
      %v1716 = vrot.slane %v1715, 4
      %v1717 = vmax.f32 %v1715, %v1716
      %v1718 = vrot.slane %v1717, 2
      %v1719 = vmax.f32 %v1717, %v1718
      %v1720 = vrot.slane %v1719, 1
      %v1721 = vmax.f32 %v1719, %v1720
      %v1722 = vsel %vm979, %v1574, -inf
      %v1723 = vrot.slane %v1722, 4
      %v1724 = vmax.f32 %v1722, %v1723
      %v1725 = vrot.slane %v1724, 2
      %v1726 = vmax.f32 %v1724, %v1725
      %v1727 = vrot.slane %v1726, 1
      %v1728 = vmax.f32 %v1726, %v1727
      %v1729 = vsel %vm979, %v1575, -inf
      %v1730 = vrot.slane %v1729, 4
      %v1731 = vmax.f32 %v1729, %v1730
      %v1732 = vrot.slane %v1731, 2
      %v1733 = vmax.f32 %v1731, %v1732
      %v1734 = vrot.slane %v1733, 1
      %v1735 = vmax.f32 %v1733, %v1734
      %v1736 = vsel %vm979, %v1576, -inf
      %v1737 = vrot.slane %v1736, 4
      %v1738 = vmax.f32 %v1736, %v1737
      %v1739 = vrot.slane %v1738, 2
      %v1740 = vmax.f32 %v1738, %v1739
      %v1741 = vrot.slane %v1740, 1
      %v1742 = vmax.f32 %v1740, %v1741
      %v1743 = vsel %vm979, %v1577, -inf
      %v1744 = vrot.slane %v1743, 4
      %v1745 = vmax.f32 %v1743, %v1744
      %v1746 = vrot.slane %v1745, 2
      %v1747 = vmax.f32 %v1745, %v1746
      %v1748 = vrot.slane %v1747, 1
      %v1749 = vmax.f32 %v1747, %v1748
      %v1750 = vsel %vm979, %v1578, -inf
      %v1751 = vrot.slane %v1750, 4
      %v1752 = vmax.f32 %v1750, %v1751
      %v1753 = vrot.slane %v1752, 2
      %v1754 = vmax.f32 %v1752, %v1753
      %v1755 = vrot.slane %v1754, 1
      %v1756 = vmax.f32 %v1754, %v1755
      %v1757 = vsel %vm979, %v1579, -inf
      %v1758 = vrot.slane %v1757, 4
      %v1759 = vmax.f32 %v1757, %v1758
      %v1760 = vrot.slane %v1759, 2
      %v1761 = vmax.f32 %v1759, %v1760
      %v1762 = vrot.slane %v1761, 1
      %v1763 = vmax.f32 %v1761, %v1762
      %v1764 = vsel %vm979, %v1580, -inf
      %v1765 = vrot.slane %v1764, 4
      %v1766 = vmax.f32 %v1764, %v1765
      %v1767 = vrot.slane %v1766, 2
      %v1768 = vmax.f32 %v1766, %v1767
      %v1769 = vrot.slane %v1768, 1
      %v1770 = vmax.f32 %v1768, %v1769
      %v1771 = vsel %vm979, %v1581, -inf
      %v1772 = vrot.slane %v1771, 4
      %v1773 = vmax.f32 %v1771, %v1772
      %v1774 = vrot.slane %v1773, 2
      %v1775 = vmax.f32 %v1773, %v1774
      %v1776 = vrot.slane %v1775, 1
      %v1777 = vmax.f32 %v1775, %v1776
      %v1778 = vsel %vm979, %v1582, -inf
      %v1779 = vrot.slane %v1778, 4
      %v1780 = vmax.f32 %v1778, %v1779
      %v1781 = vrot.slane %v1780, 2
      %v1782 = vmax.f32 %v1780, %v1781
      %v1783 = vrot.slane %v1782, 1
      %v1784 = vmax.f32 %v1782, %v1783
      %v1785 = vsel %vm979, %v1583, -inf
      %v1786 = vrot.slane %v1785, 4
      %v1787 = vmax.f32 %v1785, %v1786
      %v1788 = vrot.slane %v1787, 2
      %v1789 = vmax.f32 %v1787, %v1788
      %v1790 = vrot.slane %v1789, 1
      %v1791 = vmax.f32 %v1789, %v1790
      %v1792 = vsel %vm979, %v1584, -inf
      %v1793 = vrot.slane %v1792, 4
      %v1794 = vmax.f32 %v1792, %v1793
      %v1795 = vrot.slane %v1794, 2
      %v1796 = vmax.f32 %v1794, %v1795
      %v1797 = vrot.slane %v1796, 1
      %v1798 = vmax.f32 %v1796, %v1797
      %v1799 = vsel %vm979, %v1585, -inf
      %v1800 = vrot.slane %v1799, 4
      %v1801 = vmax.f32 %v1799, %v1800
      %v1802 = vrot.slane %v1801, 2
      %v1803 = vmax.f32 %v1801, %v1802
      %v1804 = vrot.slane %v1803, 1
      %v1805 = vmax.f32 %v1803, %v1804
      %v1806 = vsel %vm979, %v1586, -inf
      %v1807 = vrot.slane %v1806, 4
      %v1808 = vmax.f32 %v1806, %v1807
      %v1809 = vrot.slane %v1808, 2
      %v1810 = vmax.f32 %v1808, %v1809
      %v1811 = vrot.slane %v1810, 1
      %v1812 = vmax.f32 %v1810, %v1811
      %v1813 = vsel %vm979, %v1587, -inf
      %v1814 = vrot.slane %v1813, 4
      %v1815 = vmax.f32 %v1813, %v1814
      %v1816 = vrot.slane %v1815, 2
      %v1817 = vmax.f32 %v1815, %v1816
      %v1818 = vrot.slane %v1817, 1
      %v1819 = vmax.f32 %v1817, %v1818
      %v1820 = vsel %vm979, %v1588, -inf
      %v1821 = vrot.slane %v1820, 4
      %v1822 = vmax.f32 %v1820, %v1821
      %v1823 = vrot.slane %v1822, 2
      %v1824 = vmax.f32 %v1822, %v1823
      %v1825 = vrot.slane %v1824, 1
      %v1826 = vmax.f32 %v1824, %v1825
      %v1827 = vsel %vm979, %v1589, -inf
      %v1828 = vrot.slane %v1827, 4
      %v1829 = vmax.f32 %v1827, %v1828
      %v1830 = vrot.slane %v1829, 2
      %v1831 = vmax.f32 %v1829, %v1830
      %v1832 = vrot.slane %v1831, 1
      %v1833 = vmax.f32 %v1831, %v1832
      %v1834 = vsel %vm979, %v1590, -inf
      %v1835 = vrot.slane %v1834, 4
      %v1836 = vmax.f32 %v1834, %v1835
      %v1837 = vrot.slane %v1836, 2
      %v1838 = vmax.f32 %v1836, %v1837
      %v1839 = vrot.slane %v1838, 1
      %v1840 = vmax.f32 %v1838, %v1839
      %v1841 = vsel %vm979, %v1591, -inf
      %v1842 = vrot.slane %v1841, 4
      %v1843 = vmax.f32 %v1841, %v1842
      %v1844 = vrot.slane %v1843, 2
      %v1845 = vmax.f32 %v1843, %v1844
      %v1846 = vrot.slane %v1845, 1
      %v1847 = vmax.f32 %v1845, %v1846
      %v1848 = vsel %vm979, %v1592, -inf
      %v1849 = vrot.slane %v1848, 4
      %v1850 = vmax.f32 %v1848, %v1849
      %v1851 = vrot.slane %v1850, 2
      %v1852 = vmax.f32 %v1850, %v1851
      %v1853 = vrot.slane %v1852, 1
      %v1854 = vmax.f32 %v1852, %v1853
      %v1855 = vsel %vm979, %v1593, -inf
      %v1856 = vrot.slane %v1855, 4
      %v1857 = vmax.f32 %v1855, %v1856
      %v1858 = vrot.slane %v1857, 2
      %v1859 = vmax.f32 %v1857, %v1858
      %v1860 = vrot.slane %v1859, 1
      %v1861 = vmax.f32 %v1859, %v1860
      %v1862 = vsel %vm979, %v1594, -inf
      %v1863 = vrot.slane %v1862, 4
      %v1864 = vmax.f32 %v1862, %v1863
      %v1865 = vrot.slane %v1864, 2
      %v1866 = vmax.f32 %v1864, %v1865
      %v1867 = vrot.slane %v1866, 1
      %v1868 = vmax.f32 %v1866, %v1867
      %v1869 = vsel %vm979, %v1595, -inf
      %v1870 = vrot.slane %v1869, 4
      %v1871 = vmax.f32 %v1869, %v1870
      %v1872 = vrot.slane %v1871, 2
      %v1873 = vmax.f32 %v1871, %v1872
      %v1874 = vrot.slane %v1873, 1
      %v1875 = vmax.f32 %v1873, %v1874
      %v1876 = vsel %vm979, %v1596, -inf
      %v1877 = vrot.slane %v1876, 4
      %v1878 = vmax.f32 %v1876, %v1877
      %v1879 = vrot.slane %v1878, 2
      %v1880 = vmax.f32 %v1878, %v1879
      %v1881 = vrot.slane %v1880, 1
      %v1882 = vmax.f32 %v1880, %v1881
      %v1883 = vsel %vm979, %v1597, -inf
      %v1884 = vrot.slane %v1883, 4
      %v1885 = vmax.f32 %v1883, %v1884
      %v1886 = vrot.slane %v1885, 2
      %v1887 = vmax.f32 %v1885, %v1886
      %v1888 = vrot.slane %v1887, 1
      %v1889 = vmax.f32 %v1887, %v1888
      %v1890 = vsel %vm979, %v1598, -inf
      %v1891 = vrot.slane %v1890, 4
      %v1892 = vmax.f32 %v1890, %v1891
      %v1893 = vrot.slane %v1892, 2
      %v1894 = vmax.f32 %v1892, %v1893
      %v1895 = vrot.slane %v1894, 1
      %v1896 = vmax.f32 %v1894, %v1895
      %v1897 = vsel %vm979, %v1599, -inf
      %v1898 = vrot.slane %v1897, 4
      %v1899 = vmax.f32 %v1897, %v1898
      %v1900 = vrot.slane %v1899, 2
      %v1901 = vmax.f32 %v1899, %v1900
      %v1902 = vrot.slane %v1901, 1
      %v1903 = vmax.f32 %v1901, %v1902
      %v1904 = vsel %vm979, %v1600, -inf
      %v1905 = vrot.slane %v1904, 4
      %v1906 = vmax.f32 %v1904, %v1905
      %v1907 = vrot.slane %v1906, 2
      %v1908 = vmax.f32 %v1906, %v1907
      %v1909 = vrot.slane %v1908, 1
      %v1910 = vmax.f32 %v1908, %v1909
      %v1911 = vsel %vm979, %v1601, -inf
      %v1912 = vrot.slane %v1911, 4
      %v1913 = vmax.f32 %v1911, %v1912
      %v1914 = vrot.slane %v1913, 2
      %v1915 = vmax.f32 %v1913, %v1914
      %v1916 = vrot.slane %v1915, 1
      %v1917 = vmax.f32 %v1915, %v1916
      %v1918 = vsel %vm979, %v1602, -inf
      %v1919 = vrot.slane %v1918, 4
      %v1920 = vmax.f32 %v1918, %v1919
      %v1921 = vrot.slane %v1920, 2
      %v1922 = vmax.f32 %v1920, %v1921
      %v1923 = vrot.slane %v1922, 1
      %v1924 = vmax.f32 %v1922, %v1923
      %v1925 = vsel %vm979, %v1603, -inf
      %v1926 = vrot.slane %v1925, 4
      %v1927 = vmax.f32 %v1925, %v1926
      %v1928 = vrot.slane %v1927, 2
      %v1929 = vmax.f32 %v1927, %v1928
      %v1930 = vrot.slane %v1929, 1
      %v1931 = vmax.f32 %v1929, %v1930
      %v1932 = vsel %vm979, %v1604, -inf
      %v1933 = vrot.slane %v1932, 4
      %v1934 = vmax.f32 %v1932, %v1933
      %v1935 = vrot.slane %v1934, 2
      %v1936 = vmax.f32 %v1934, %v1935
      %v1937 = vrot.slane %v1936, 1
      %v1938 = vmax.f32 %v1936, %v1937
      %v1939 = vsel %vm979, %v1605, -inf
      %v1940 = vrot.slane %v1939, 4
      %v1941 = vmax.f32 %v1939, %v1940
      %v1942 = vrot.slane %v1941, 2
      %v1943 = vmax.f32 %v1941, %v1942
      %v1944 = vrot.slane %v1943, 1
      %v1945 = vmax.f32 %v1943, %v1944
      %v1946 = vsel %vm979, %v1606, -inf
      %v1947 = vrot.slane %v1946, 4
      %v1948 = vmax.f32 %v1946, %v1947
      %v1949 = vrot.slane %v1948, 2
      %v1950 = vmax.f32 %v1948, %v1949
      %v1951 = vrot.slane %v1950, 1
      %v1952 = vmax.f32 %v1950, %v1951
      %v1953 = vsel %vm979, %v1607, -inf
      %v1954 = vrot.slane %v1953, 4
      %v1955 = vmax.f32 %v1953, %v1954
      %v1956 = vrot.slane %v1955, 2
      %v1957 = vmax.f32 %v1955, %v1956
      %v1958 = vrot.slane %v1957, 1
      %v1959 = vmax.f32 %v1957, %v1958
      %v1960 = vsel %vm979, %v1608, -inf
      %v1961 = vrot.slane %v1960, 4
      %v1962 = vmax.f32 %v1960, %v1961
      %v1963 = vrot.slane %v1962, 2
      %v1964 = vmax.f32 %v1962, %v1963
      %v1965 = vrot.slane %v1964, 1
      %v1966 = vmax.f32 %v1964, %v1965
      %v1967 = vsel %vm979, %v1609, -inf
      %v1968 = vrot.slane %v1967, 4
      %v1969 = vmax.f32 %v1967, %v1968
      %v1970 = vrot.slane %v1969, 2
      %v1971 = vmax.f32 %v1969, %v1970
      %v1972 = vrot.slane %v1971, 1
      %v1973 = vmax.f32 %v1971, %v1972
      %v1974 = vsel %vm979, %v1610, -inf
      %v1975 = vrot.slane %v1974, 4
      %v1976 = vmax.f32 %v1974, %v1975
      %v1977 = vrot.slane %v1976, 2
      %v1978 = vmax.f32 %v1976, %v1977
      %v1979 = vrot.slane %v1978, 1
      %v1980 = vmax.f32 %v1978, %v1979
      %v1981 = vsel %vm979, %v1611, -inf
      %v1982 = vrot.slane %v1981, 4
      %v1983 = vmax.f32 %v1981, %v1982
      %v1984 = vrot.slane %v1983, 2
      %v1985 = vmax.f32 %v1983, %v1984
      %v1986 = vrot.slane %v1985, 1
      %v1987 = vmax.f32 %v1985, %v1986
      %v1988 = vsel %vm979, %v1612, -inf
      %v1989 = vrot.slane %v1988, 4
      %v1990 = vmax.f32 %v1988, %v1989
      %v1991 = vrot.slane %v1990, 2
      %v1992 = vmax.f32 %v1990, %v1991
      %v1993 = vrot.slane %v1992, 1
      %v1994 = vmax.f32 %v1992, %v1993
      %v1995 = vsel %vm979, %v1613, -inf
      %v1996 = vrot.slane %v1995, 4
      %v1997 = vmax.f32 %v1995, %v1996
      %v1998 = vrot.slane %v1997, 2
      %v1999 = vmax.f32 %v1997, %v1998
      %v2000 = vrot.slane %v1999, 1
      %v2001 = vmax.f32 %v1999, %v2000
      %v2002 = vsel %vm979, %v1614, -inf
      %v2003 = vrot.slane %v2002, 4
      %v2004 = vmax.f32 %v2002, %v2003
      %v2005 = vrot.slane %v2004, 2
      %v2006 = vmax.f32 %v2004, %v2005
      %v2007 = vrot.slane %v2006, 1
      %v2008 = vmax.f32 %v2006, %v2007
      %v2009 = vsel %vm979, %v1615, -inf
      %v2010 = vrot.slane %v2009, 4
      %v2011 = vmax.f32 %v2009, %v2010
      %v2012 = vrot.slane %v2011, 2
      %v2013 = vmax.f32 %v2011, %v2012
      %v2014 = vrot.slane %v2013, 1
      %v2015 = vmax.f32 %v2013, %v2014
      %v2016 = vsel %vm979, %v1616, -inf
      %v2017 = vrot.slane %v2016, 4
      %v2018 = vmax.f32 %v2016, %v2017
      %v2019 = vrot.slane %v2018, 2
      %v2020 = vmax.f32 %v2018, %v2019
      %v2021 = vrot.slane %v2020, 1
      %v2022 = vmax.f32 %v2020, %v2021
      %v2023 = vsel %vm979, %v1617, -inf
      %v2024 = vrot.slane %v2023, 4
      %v2025 = vmax.f32 %v2023, %v2024
      %v2026 = vrot.slane %v2025, 2
      %v2027 = vmax.f32 %v2025, %v2026
      %v2028 = vrot.slane %v2027, 1
      %v2029 = vmax.f32 %v2027, %v2028
      %v2030 = vsel %vm979, %v1618, -inf
      %v2031 = vrot.slane %v2030, 4
      %v2032 = vmax.f32 %v2030, %v2031
      %v2033 = vrot.slane %v2032, 2
      %v2034 = vmax.f32 %v2032, %v2033
      %v2035 = vrot.slane %v2034, 1
      %v2036 = vmax.f32 %v2034, %v2035
      %v2037 = vsel %vm979, %v1619, -inf
      %v2038 = vrot.slane %v2037, 4
      %v2039 = vmax.f32 %v2037, %v2038
      %v2040 = vrot.slane %v2039, 2
      %v2041 = vmax.f32 %v2039, %v2040
      %v2042 = vrot.slane %v2041, 1
      %v2043 = vmax.f32 %v2041, %v2042
      %v2044 = vsel %vm979, %v1620, -inf
      %v2045 = vrot.slane %v2044, 4
      %v2046 = vmax.f32 %v2044, %v2045
      %v2047 = vrot.slane %v2046, 2
      %v2048 = vmax.f32 %v2046, %v2047
      %v2049 = vrot.slane %v2048, 1
      %v2050 = vmax.f32 %v2048, %v2049
      %v2051 = vsel %vm979, %v1621, -inf
      %v2052 = vrot.slane %v2051, 4
      %v2053 = vmax.f32 %v2051, %v2052
      %v2054 = vrot.slane %v2053, 2
      %v2055 = vmax.f32 %v2053, %v2054
      %v2056 = vrot.slane %v2055, 1
      %v2057 = vmax.f32 %v2055, %v2056
      %v2058 = vsel %vm979, %v1622, -inf
      %v2059 = vrot.slane %v2058, 4
      %v2060 = vmax.f32 %v2058, %v2059
      %v2061 = vrot.slane %v2060, 2
      %v2062 = vmax.f32 %v2060, %v2061
      %v2063 = vrot.slane %v2062, 1
      %v2064 = vmax.f32 %v2062, %v2063
      %v2065 = vsel %vm979, %v1623, -inf
      %v2066 = vrot.slane %v2065, 4
      %v2067 = vmax.f32 %v2065, %v2066
      %v2068 = vrot.slane %v2067, 2
      %v2069 = vmax.f32 %v2067, %v2068
      %v2070 = vrot.slane %v2069, 1
      %v2071 = vmax.f32 %v2069, %v2070
      %v2072 = vpack.c.bf16 %v1630, %v1630
      %v2073 = vpack.c.bf16 %v1637, %v1637
      %v2074 = vpack.c.bf16 %v1644, %v1644
      %v2075 = vpack.c.bf16 %v1651, %v1651
      %v2076 = vpack.c.bf16 %v1658, %v1658
      %v2077 = vpack.c.bf16 %v1665, %v1665
      %v2078 = vpack.c.bf16 %v1672, %v1672
      %v2079 = vpack.c.bf16 %v1679, %v1679
      %v2080 = vpack.c.bf16 %v1686, %v1686
      %v2081 = vpack.c.bf16 %v1693, %v1693
      %v2082 = vpack.c.bf16 %v1700, %v1700
      %v2083 = vpack.c.bf16 %v1707, %v1707
      %v2084 = vpack.c.bf16 %v1714, %v1714
      %v2085 = vpack.c.bf16 %v1721, %v1721
      %v2086 = vpack.c.bf16 %v1728, %v1728
      %v2087 = vpack.c.bf16 %v1735, %v1735
      %v2088 = vpack.c.bf16 %v1742, %v1742
      %v2089 = vpack.c.bf16 %v1749, %v1749
      %v2090 = vpack.c.bf16 %v1756, %v1756
      %v2091 = vpack.c.bf16 %v1763, %v1763
      %v2092 = vpack.c.bf16 %v1770, %v1770
      %v2093 = vpack.c.bf16 %v1777, %v1777
      %v2094 = vpack.c.bf16 %v1784, %v1784
      %v2095 = vpack.c.bf16 %v1791, %v1791
      %v2096 = vpack.c.bf16 %v1798, %v1798
      %v2097 = vpack.c.bf16 %v1805, %v1805
      %v2098 = vpack.c.bf16 %v1812, %v1812
      %v2099 = vpack.c.bf16 %v1819, %v1819
      %v2100 = vpack.c.bf16 %v1826, %v1826
      %v2101 = vpack.c.bf16 %v1833, %v1833
      %v2102 = vpack.c.bf16 %v1840, %v1840
      %v2103 = vpack.c.bf16 %v1847, %v1847
      %v2104 = vpack.c.bf16 %v1854, %v1854
      %v2105 = vpack.c.bf16 %v1861, %v1861
      %v2106 = vpack.c.bf16 %v1868, %v1868
      %v2107 = vpack.c.bf16 %v1875, %v1875
      %v2108 = vpack.c.bf16 %v1882, %v1882
      %v2109 = vpack.c.bf16 %v1889, %v1889
      %v2110 = vpack.c.bf16 %v1896, %v1896
      %v2111 = vpack.c.bf16 %v1903, %v1903
      %v2112 = vpack.c.bf16 %v1910, %v1910
      %v2113 = vpack.c.bf16 %v1917, %v1917
      %v2114 = vpack.c.bf16 %v1924, %v1924
      %v2115 = vpack.c.bf16 %v1931, %v1931
      %v2116 = vpack.c.bf16 %v1938, %v1938
      %v2117 = vpack.c.bf16 %v1945, %v1945
      %v2118 = vpack.c.bf16 %v1952, %v1952
      %v2119 = vpack.c.bf16 %v1959, %v1959
      %v2120 = vpack.c.bf16 %v1966, %v1966
      %v2121 = vpack.c.bf16 %v1973, %v1973
      %v2122 = vpack.c.bf16 %v1980, %v1980
      %v2123 = vpack.c.bf16 %v1987, %v1987
      %v2124 = vpack.c.bf16 %v1994, %v1994
      %v2125 = vpack.c.bf16 %v2001, %v2001
      %v2126 = vpack.c.bf16 %v2008, %v2008
      %v2127 = vpack.c.bf16 %v2015, %v2015
      %v2128 = vpack.c.bf16 %v2022, %v2022
      %v2129 = vpack.c.bf16 %v2029, %v2029
      %v2130 = vpack.c.bf16 %v2036, %v2036
      %v2131 = vpack.c.bf16 %v2043, %v2043
      %v2132 = vpack.c.bf16 %v2050, %v2050
      %v2133 = vpack.c.bf16 %v2057, %v2057
      %v2134 = vpack.c.bf16 %v2064, %v2064
      %v2135 = vpack.c.bf16 %v2071, %v2071
      %v2136 = vunpack.c.l.bf16 %v1428
      %v2137 = vunpack.c.l.bf16 %v1429
      %v2138 = vunpack.c.l.bf16 %v1430
      %v2139 = vunpack.c.l.bf16 %v1431
      %v2140 = vunpack.c.l.bf16 %v1432
      %v2141 = vunpack.c.l.bf16 %v1433
      %v2142 = vunpack.c.l.bf16 %v1434
      %v2143 = vunpack.c.l.bf16 %v1435
      %v2144 = vunpack.c.l.bf16 %v1436
      %v2145 = vunpack.c.l.bf16 %v1437
      %v2146 = vunpack.c.l.bf16 %v1438
      %v2147 = vunpack.c.l.bf16 %v1439
      %v2148 = vunpack.c.l.bf16 %v1440
      %v2149 = vunpack.c.l.bf16 %v1441
      %v2150 = vunpack.c.l.bf16 %v1442
      %v2151 = vunpack.c.l.bf16 %v1443
      %v2152 = vunpack.c.l.bf16 %v1444
      %v2153 = vunpack.c.l.bf16 %v1445
      %v2154 = vunpack.c.l.bf16 %v1446
      %v2155 = vunpack.c.l.bf16 %v1447
      %v2156 = vunpack.c.l.bf16 %v1448
      %v2157 = vunpack.c.l.bf16 %v1449
      %v2158 = vunpack.c.l.bf16 %v1450
      %v2159 = vunpack.c.l.bf16 %v1451
      %v2160 = vunpack.c.l.bf16 %v1452
      %v2161 = vunpack.c.l.bf16 %v1453
      %v2162 = vunpack.c.l.bf16 %v1454
      %v2163 = vunpack.c.l.bf16 %v1455
      %v2164 = vunpack.c.l.bf16 %v1456
      %v2165 = vunpack.c.l.bf16 %v1457
      %v2166 = vunpack.c.l.bf16 %v1458
      %v2167 = vunpack.c.l.bf16 %v1459
      %v2168 = vunpack.c.l.bf16 %v1460
      %v2169 = vunpack.c.l.bf16 %v1461
      %v2170 = vunpack.c.l.bf16 %v1462
      %v2171 = vunpack.c.l.bf16 %v1463
      %v2172 = vunpack.c.l.bf16 %v1464
      %v2173 = vunpack.c.l.bf16 %v1465
      %v2174 = vunpack.c.l.bf16 %v1466
      %v2175 = vunpack.c.l.bf16 %v1467
      %v2176 = vunpack.c.l.bf16 %v1468
      %v2177 = vunpack.c.l.bf16 %v1469
      %v2178 = vunpack.c.l.bf16 %v1470
      %v2179 = vunpack.c.l.bf16 %v1471
      %v2180 = vunpack.c.l.bf16 %v1472
      %v2181 = vunpack.c.l.bf16 %v1473
      %v2182 = vunpack.c.l.bf16 %v1474
      %v2183 = vunpack.c.l.bf16 %v1475
      %v2184 = vunpack.c.l.bf16 %v1476
      %v2185 = vunpack.c.l.bf16 %v1477
      %v2186 = vunpack.c.l.bf16 %v1478
      %v2187 = vunpack.c.l.bf16 %v1479
      %v2188 = vunpack.c.l.bf16 %v1480
      %v2189 = vunpack.c.l.bf16 %v1481
      %v2190 = vunpack.c.l.bf16 %v1482
      %v2191 = vunpack.c.l.bf16 %v1483
      %v2192 = vunpack.c.l.bf16 %v1484
      %v2193 = vunpack.c.l.bf16 %v1485
      %v2194 = vunpack.c.l.bf16 %v1486
      %v2195 = vunpack.c.l.bf16 %v1487
      %v2196 = vunpack.c.l.bf16 %v1488
      %v2197 = vunpack.c.l.bf16 %v1489
      %v2198 = vunpack.c.l.bf16 %v1490
      %v2199 = vunpack.c.l.bf16 %v1491
      %v2200 = vunpack.c.l.bf16 %v2072
      %v2201 = vunpack.c.l.bf16 %v2073
      %v2202 = vunpack.c.l.bf16 %v2074
      %v2203 = vunpack.c.l.bf16 %v2075
      %v2204 = vunpack.c.l.bf16 %v2076
      %v2205 = vunpack.c.l.bf16 %v2077
      %v2206 = vunpack.c.l.bf16 %v2078
      %v2207 = vunpack.c.l.bf16 %v2079
      %v2208 = vunpack.c.l.bf16 %v2080
      %v2209 = vunpack.c.l.bf16 %v2081
      %v2210 = vunpack.c.l.bf16 %v2082
      %v2211 = vunpack.c.l.bf16 %v2083
      %v2212 = vunpack.c.l.bf16 %v2084
      %v2213 = vunpack.c.l.bf16 %v2085
      %v2214 = vunpack.c.l.bf16 %v2086
      %v2215 = vunpack.c.l.bf16 %v2087
      %v2216 = vunpack.c.l.bf16 %v2088
      %v2217 = vunpack.c.l.bf16 %v2089
      %v2218 = vunpack.c.l.bf16 %v2090
      %v2219 = vunpack.c.l.bf16 %v2091
      %v2220 = vunpack.c.l.bf16 %v2092
      %v2221 = vunpack.c.l.bf16 %v2093
      %v2222 = vunpack.c.l.bf16 %v2094
      %v2223 = vunpack.c.l.bf16 %v2095
      %v2224 = vunpack.c.l.bf16 %v2096
      %v2225 = vunpack.c.l.bf16 %v2097
      %v2226 = vunpack.c.l.bf16 %v2098
      %v2227 = vunpack.c.l.bf16 %v2099
      %v2228 = vunpack.c.l.bf16 %v2100
      %v2229 = vunpack.c.l.bf16 %v2101
      %v2230 = vunpack.c.l.bf16 %v2102
      %v2231 = vunpack.c.l.bf16 %v2103
      %v2232 = vunpack.c.l.bf16 %v2104
      %v2233 = vunpack.c.l.bf16 %v2105
      %v2234 = vunpack.c.l.bf16 %v2106
      %v2235 = vunpack.c.l.bf16 %v2107
      %v2236 = vunpack.c.l.bf16 %v2108
      %v2237 = vunpack.c.l.bf16 %v2109
      %v2238 = vunpack.c.l.bf16 %v2110
      %v2239 = vunpack.c.l.bf16 %v2111
      %v2240 = vunpack.c.l.bf16 %v2112
      %v2241 = vunpack.c.l.bf16 %v2113
      %v2242 = vunpack.c.l.bf16 %v2114
      %v2243 = vunpack.c.l.bf16 %v2115
      %v2244 = vunpack.c.l.bf16 %v2116
      %v2245 = vunpack.c.l.bf16 %v2117
      %v2246 = vunpack.c.l.bf16 %v2118
      %v2247 = vunpack.c.l.bf16 %v2119
      %v2248 = vunpack.c.l.bf16 %v2120
      %v2249 = vunpack.c.l.bf16 %v2121
      %v2250 = vunpack.c.l.bf16 %v2122
      %v2251 = vunpack.c.l.bf16 %v2123
      %v2252 = vunpack.c.l.bf16 %v2124
      %v2253 = vunpack.c.l.bf16 %v2125
      %v2254 = vunpack.c.l.bf16 %v2126
      %v2255 = vunpack.c.l.bf16 %v2127
      %v2256 = vunpack.c.l.bf16 %v2128
      %v2257 = vunpack.c.l.bf16 %v2129
      %v2258 = vunpack.c.l.bf16 %v2130
      %v2259 = vunpack.c.l.bf16 %v2131
      %v2260 = vunpack.c.l.bf16 %v2132
      %v2261 = vunpack.c.l.bf16 %v2133
      %v2262 = vunpack.c.l.bf16 %v2134
      %v2263 = vunpack.c.l.bf16 %v2135
      %v2264 = vmax.f32 %v2136, %v2200
      %v2265 = vmax.f32 %v2137, %v2201
      %v2266 = vmax.f32 %v2138, %v2202
      %v2267 = vmax.f32 %v2139, %v2203
      %v2268 = vmax.f32 %v2140, %v2204
      %v2269 = vmax.f32 %v2141, %v2205
      %v2270 = vmax.f32 %v2142, %v2206
      %v2271 = vmax.f32 %v2143, %v2207
      %v2272 = vmax.f32 %v2144, %v2208
      %v2273 = vmax.f32 %v2145, %v2209
      %v2274 = vmax.f32 %v2146, %v2210
      %v2275 = vmax.f32 %v2147, %v2211
      %v2276 = vmax.f32 %v2148, %v2212
      %v2277 = vmax.f32 %v2149, %v2213
      %v2278 = vmax.f32 %v2150, %v2214
      %v2279 = vmax.f32 %v2151, %v2215
      %v2280 = vmax.f32 %v2152, %v2216
      %v2281 = vmax.f32 %v2153, %v2217
      %v2282 = vmax.f32 %v2154, %v2218
      %v2283 = vmax.f32 %v2155, %v2219
      %v2284 = vmax.f32 %v2156, %v2220
      %v2285 = vmax.f32 %v2157, %v2221
      %v2286 = vmax.f32 %v2158, %v2222
      %v2287 = vmax.f32 %v2159, %v2223
      %v2288 = vmax.f32 %v2160, %v2224
      %v2289 = vmax.f32 %v2161, %v2225
      %v2290 = vmax.f32 %v2162, %v2226
      %v2291 = vmax.f32 %v2163, %v2227
      %v2292 = vmax.f32 %v2164, %v2228
      %v2293 = vmax.f32 %v2165, %v2229
      %v2294 = vmax.f32 %v2166, %v2230
      %v2295 = vmax.f32 %v2167, %v2231
      %v2296 = vmax.f32 %v2168, %v2232
      %v2297 = vmax.f32 %v2169, %v2233
      %v2298 = vmax.f32 %v2170, %v2234
      %v2299 = vmax.f32 %v2171, %v2235
      %v2300 = vmax.f32 %v2172, %v2236
      %v2301 = vmax.f32 %v2173, %v2237
      %v2302 = vmax.f32 %v2174, %v2238
      %v2303 = vmax.f32 %v2175, %v2239
      %v2304 = vmax.f32 %v2176, %v2240
      %v2305 = vmax.f32 %v2177, %v2241
      %v2306 = vmax.f32 %v2178, %v2242
      %v2307 = vmax.f32 %v2179, %v2243
      %v2308 = vmax.f32 %v2180, %v2244
      %v2309 = vmax.f32 %v2181, %v2245
      %v2310 = vmax.f32 %v2182, %v2246
      %v2311 = vmax.f32 %v2183, %v2247
      %v2312 = vmax.f32 %v2184, %v2248
      %v2313 = vmax.f32 %v2185, %v2249
      %v2314 = vmax.f32 %v2186, %v2250
      %v2315 = vmax.f32 %v2187, %v2251
      %v2316 = vmax.f32 %v2188, %v2252
      %v2317 = vmax.f32 %v2189, %v2253
      %v2318 = vmax.f32 %v2190, %v2254
      %v2319 = vmax.f32 %v2191, %v2255
      %v2320 = vmax.f32 %v2192, %v2256
      %v2321 = vmax.f32 %v2193, %v2257
      %v2322 = vmax.f32 %v2194, %v2258
      %v2323 = vmax.f32 %v2195, %v2259
      %v2324 = vmax.f32 %v2196, %v2260
      %v2325 = vmax.f32 %v2197, %v2261
      %v2326 = vmax.f32 %v2198, %v2262
      %v2327 = vmax.f32 %v2199, %v2263
      %v2328 = vpack.c.bf16 %v2264, %v2264
      %v2329 = vpack.c.bf16 %v2265, %v2265
      %v2330 = vpack.c.bf16 %v2266, %v2266
      %v2331 = vpack.c.bf16 %v2267, %v2267
      %v2332 = vpack.c.bf16 %v2268, %v2268
      %v2333 = vpack.c.bf16 %v2269, %v2269
      %v2334 = vpack.c.bf16 %v2270, %v2270
      %v2335 = vpack.c.bf16 %v2271, %v2271
      %v2336 = vpack.c.bf16 %v2272, %v2272
      %v2337 = vpack.c.bf16 %v2273, %v2273
      %v2338 = vpack.c.bf16 %v2274, %v2274
      %v2339 = vpack.c.bf16 %v2275, %v2275
      %v2340 = vpack.c.bf16 %v2276, %v2276
      %v2341 = vpack.c.bf16 %v2277, %v2277
      %v2342 = vpack.c.bf16 %v2278, %v2278
      %v2343 = vpack.c.bf16 %v2279, %v2279
      %v2344 = vpack.c.bf16 %v2280, %v2280
      %v2345 = vpack.c.bf16 %v2281, %v2281
      %v2346 = vpack.c.bf16 %v2282, %v2282
      %v2347 = vpack.c.bf16 %v2283, %v2283
      %v2348 = vpack.c.bf16 %v2284, %v2284
      %v2349 = vpack.c.bf16 %v2285, %v2285
      %v2350 = vpack.c.bf16 %v2286, %v2286
      %v2351 = vpack.c.bf16 %v2287, %v2287
      %v2352 = vpack.c.bf16 %v2288, %v2288
      %v2353 = vpack.c.bf16 %v2289, %v2289
      %v2354 = vpack.c.bf16 %v2290, %v2290
      %v2355 = vpack.c.bf16 %v2291, %v2291
      %v2356 = vpack.c.bf16 %v2292, %v2292
      %v2357 = vpack.c.bf16 %v2293, %v2293
      %v2358 = vpack.c.bf16 %v2294, %v2294
      %v2359 = vpack.c.bf16 %v2295, %v2295
      %v2360 = vpack.c.bf16 %v2296, %v2296
      %v2361 = vpack.c.bf16 %v2297, %v2297
      %v2362 = vpack.c.bf16 %v2298, %v2298
      %v2363 = vpack.c.bf16 %v2299, %v2299
      %v2364 = vpack.c.bf16 %v2300, %v2300
      %v2365 = vpack.c.bf16 %v2301, %v2301
      %v2366 = vpack.c.bf16 %v2302, %v2302
      %v2367 = vpack.c.bf16 %v2303, %v2303
      %v2368 = vpack.c.bf16 %v2304, %v2304
      %v2369 = vpack.c.bf16 %v2305, %v2305
      %v2370 = vpack.c.bf16 %v2306, %v2306
      %v2371 = vpack.c.bf16 %v2307, %v2307
      %v2372 = vpack.c.bf16 %v2308, %v2308
      %v2373 = vpack.c.bf16 %v2309, %v2309
      %v2374 = vpack.c.bf16 %v2310, %v2310
      %v2375 = vpack.c.bf16 %v2311, %v2311
      %v2376 = vpack.c.bf16 %v2312, %v2312
      %v2377 = vpack.c.bf16 %v2313, %v2313
      %v2378 = vpack.c.bf16 %v2314, %v2314
      %v2379 = vpack.c.bf16 %v2315, %v2315
      %v2380 = vpack.c.bf16 %v2316, %v2316
      %v2381 = vpack.c.bf16 %v2317, %v2317
      %v2382 = vpack.c.bf16 %v2318, %v2318
      %v2383 = vpack.c.bf16 %v2319, %v2319
      %v2384 = vpack.c.bf16 %v2320, %v2320
      %v2385 = vpack.c.bf16 %v2321, %v2321
      %v2386 = vpack.c.bf16 %v2322, %v2322
      %v2387 = vpack.c.bf16 %v2323, %v2323
      %v2388 = vpack.c.bf16 %v2324, %v2324
      %v2389 = vpack.c.bf16 %v2325, %v2325
      %v2390 = vpack.c.bf16 %v2326, %v2326
      %v2391 = vpack.c.bf16 %v2327, %v2327
      %v2456 = vunpack.c.l.b16 %v2328
      %v2457 = vunpack.c.l.b16 %v2329
      %v2458 = vunpack.c.l.b16 %v2330
      %v2459 = vunpack.c.l.b16 %v2331
      %v2460 = vunpack.c.l.b16 %v2332
      %v2461 = vunpack.c.l.b16 %v2333
      %v2462 = vunpack.c.l.b16 %v2334
      %v2463 = vunpack.c.l.b16 %v2335
      %v2464 = vunpack.c.l.b16 %v2336
      %v2465 = vunpack.c.l.b16 %v2337
      %v2466 = vunpack.c.l.b16 %v2338
      %v2467 = vunpack.c.l.b16 %v2339
      %v2468 = vunpack.c.l.b16 %v2340
      %v2469 = vunpack.c.l.b16 %v2341
      %v2470 = vunpack.c.l.b16 %v2342
      %v2471 = vunpack.c.l.b16 %v2343
      %v2472 = vunpack.c.l.b16 %v2344
      %v2473 = vunpack.c.l.b16 %v2345
      %v2474 = vunpack.c.l.b16 %v2346
      %v2475 = vunpack.c.l.b16 %v2347
      %v2476 = vunpack.c.l.b16 %v2348
      %v2477 = vunpack.c.l.b16 %v2349
      %v2478 = vunpack.c.l.b16 %v2350
      %v2479 = vunpack.c.l.b16 %v2351
      %v2480 = vunpack.c.l.b16 %v2352
      %v2481 = vunpack.c.l.b16 %v2353
      %v2482 = vunpack.c.l.b16 %v2354
      %v2483 = vunpack.c.l.b16 %v2355
      %v2484 = vunpack.c.l.b16 %v2356
      %v2485 = vunpack.c.l.b16 %v2357
      %v2486 = vunpack.c.l.b16 %v2358
      %v2487 = vunpack.c.l.b16 %v2359
      %v2488 = vunpack.c.l.b16 %v2360
      %v2489 = vunpack.c.l.b16 %v2361
      %v2490 = vunpack.c.l.b16 %v2362
      %v2491 = vunpack.c.l.b16 %v2363
      %v2492 = vunpack.c.l.b16 %v2364
      %v2493 = vunpack.c.l.b16 %v2365
      %v2494 = vunpack.c.l.b16 %v2366
      %v2495 = vunpack.c.l.b16 %v2367
      %v2496 = vunpack.c.l.b16 %v2368
      %v2497 = vunpack.c.l.b16 %v2369
      %v2498 = vunpack.c.l.b16 %v2370
      %v2499 = vunpack.c.l.b16 %v2371
      %v2500 = vunpack.c.l.b16 %v2372
      %v2501 = vunpack.c.l.b16 %v2373
      %v2502 = vunpack.c.l.b16 %v2374
      %v2503 = vunpack.c.l.b16 %v2375
      %v2504 = vunpack.c.l.b16 %v2376
      %v2505 = vunpack.c.l.b16 %v2377
      %v2506 = vunpack.c.l.b16 %v2378
      %v2507 = vunpack.c.l.b16 %v2379
      %v2508 = vunpack.c.l.b16 %v2380
      %v2509 = vunpack.c.l.b16 %v2381
      %v2510 = vunpack.c.l.b16 %v2382
      %v2511 = vunpack.c.l.b16 %v2383
      %v2512 = vunpack.c.l.b16 %v2384
      %v2513 = vunpack.c.l.b16 %v2385
      %v2514 = vunpack.c.l.b16 %v2386
      %v2515 = vunpack.c.l.b16 %v2387
      %v2516 = vunpack.c.l.b16 %v2388
      %v2517 = vunpack.c.l.b16 %v2389
      %v2518 = vunpack.c.l.b16 %v2390
      %v2519 = vunpack.c.l.b16 %v2391
      %vm2520 = vcmask 1041409
      %v2521 = vsel %vm2520, %v2457, %v2456
      %vm2522 = vcmask 1042434
      %v2523 = vsel %vm2522, %v2458, %v2521
      %vm2524 = vcmask 1043459
      %v2525 = vsel %vm2524, %v2459, %v2523
      %vm2526 = vcmask 1044484
      %v2527 = vsel %vm2526, %v2460, %v2525
      %vm2528 = vcmask 1045509
      %v2529 = vsel %vm2528, %v2461, %v2527
      %vm2530 = vcmask 1046534
      %v2531 = vsel %vm2530, %v2462, %v2529
      %vm2532 = vcmask 1047559
      %v2533 = vsel %vm2532, %v2463, %v2531
      %v2534 = vsel %vm2520, %v2465, %v2464
      %v2535 = vsel %vm2522, %v2466, %v2534
      %v2536 = vsel %vm2524, %v2467, %v2535
      %v2537 = vsel %vm2526, %v2468, %v2536
      %v2538 = vsel %vm2528, %v2469, %v2537
      %v2539 = vsel %vm2530, %v2470, %v2538
      %v2540 = vsel %vm2532, %v2471, %v2539
      %v2541 = vsel %vm2520, %v2473, %v2472
      %v2542 = vsel %vm2522, %v2474, %v2541
      %v2543 = vsel %vm2524, %v2475, %v2542
      %v2544 = vsel %vm2526, %v2476, %v2543
      %v2545 = vsel %vm2528, %v2477, %v2544
      %v2546 = vsel %vm2530, %v2478, %v2545
      %v2547 = vsel %vm2532, %v2479, %v2546
      %v2548 = vsel %vm2520, %v2481, %v2480
      %v2549 = vsel %vm2522, %v2482, %v2548
      %v2550 = vsel %vm2524, %v2483, %v2549
      %v2551 = vsel %vm2526, %v2484, %v2550
      %v2552 = vsel %vm2528, %v2485, %v2551
      %v2553 = vsel %vm2530, %v2486, %v2552
      %v2554 = vsel %vm2532, %v2487, %v2553
      %v2555 = vsel %vm2520, %v2489, %v2488
      %v2556 = vsel %vm2522, %v2490, %v2555
      %v2557 = vsel %vm2524, %v2491, %v2556
      %v2558 = vsel %vm2526, %v2492, %v2557
      %v2559 = vsel %vm2528, %v2493, %v2558
      %v2560 = vsel %vm2530, %v2494, %v2559
      %v2561 = vsel %vm2532, %v2495, %v2560
      %v2562 = vsel %vm2520, %v2497, %v2496
      %v2563 = vsel %vm2522, %v2498, %v2562
      %v2564 = vsel %vm2524, %v2499, %v2563
      %v2565 = vsel %vm2526, %v2500, %v2564
      %v2566 = vsel %vm2528, %v2501, %v2565
      %v2567 = vsel %vm2530, %v2502, %v2566
      %v2568 = vsel %vm2532, %v2503, %v2567
      %v2569 = vsel %vm2520, %v2505, %v2504
      %v2570 = vsel %vm2522, %v2506, %v2569
      %v2571 = vsel %vm2524, %v2507, %v2570
      %v2572 = vsel %vm2526, %v2508, %v2571
      %v2573 = vsel %vm2528, %v2509, %v2572
      %v2574 = vsel %vm2530, %v2510, %v2573
      %v2575 = vsel %vm2532, %v2511, %v2574
      %v2576 = vsel %vm2520, %v2513, %v2512
      %v2577 = vsel %vm2522, %v2514, %v2576
      %v2578 = vsel %vm2524, %v2515, %v2577
      %v2579 = vsel %vm2526, %v2516, %v2578
      %v2580 = vsel %vm2528, %v2517, %v2579
      %v2581 = vsel %vm2530, %v2518, %v2580
      %v2582 = vsel %vm2532, %v2519, %v2581
      %v2583 = vpack.c.b16 %v2533, %v2533
      %v2584 = vpack.c.b16 %v2540, %v2540
      %v2585 = vpack.c.b16 %v2547, %v2547
      %v2586 = vpack.c.b16 %v2554, %v2554
      %v2587 = vpack.c.b16 %v2561, %v2561
      %v2588 = vpack.c.b16 %v2568, %v2568
      %v2589 = vpack.c.b16 %v2575, %v2575
      %v2590 = vpack.c.b16 %v2582, %v2582
      %2599 = vst [vmem:[%s246] sm:$0xf] %v2583
      %2600 = vst [vmem:[%s246 + $0x4] sm:$0xf] %v2584
      %2601 = vst [vmem:[%s246 + $0x8] sm:$0xf] %v2585
      %2602 = vst [vmem:[%s246 + $0xc] sm:$0xf] %v2586
      %2603 = vst [vmem:[%s246 + $0x10] sm:$0xf] %v2587
      %2604 = vst [vmem:[%s246 + $0x14] sm:$0xf] %v2588
      %2605 = vst [vmem:[%s246 + $0x18] sm:$0xf] %v2589
      %2606 = vst [vmem:[%s246 + $0x1c] sm:$0xf] %v2590
      %s2607 = smul.u32 8, %s18
      %p2608 = scmp.lt.s32.totalorder %s17, 1
      %s2609 = scalar_select %p2608, %s17, 1
      %p2610 = scmp.lt.s32.totalorder %s2607, 7
      %s2611 = scalar_select %p2610, %s2607, 7
      %s2612 = smul.addr %s2609, 8
      %s2613 = sadd.s32 %s2611, %s2612
      %s2614 = smul.addr %s2613, 4
      %s2615 = scalar_lea.vmem %s2, %s2614
      // Predicated region
      $region29: #{densenet_forward.14} parent=27 // pred_check
        %p2616 = pneg %p105
      $region30: #{densenet_forward.14} parent=27 // pred_check_branch
        %2618 = sbr.rel (%p2616) target = $region32
      $region31: #{densenet_forward.14} parent=27 // pred_region
        %s2619 = smul.u32 8, %s18
      $region32: #{densenet_forward.14} parent=27 // pred_fallthru
        _
    $region28: #{densenet_forward.14} parent=5 // pred_fallthru
      _
    %p2620 = scmp.le.s32.totalorder 2, %s8
    // Predicated region
    $region33: #{densenet_forward.14} parent=5 // pred_check
      %p2621 = pneg %p2620
    $region34: #{densenet_forward.14} parent=5 // pred_check_branch
      %2623 = sbr.rel (%p2621) target = $region36
    $region35: #{densenet_forward.14} parent=5 // pred_region
      %s2624 = ssub.s32 %s8, 2
      // Predicated region
      $region37: #{densenet_forward.14} parent=35 // pred_check
        %p2625 = pneg %p111
      $region38: #{densenet_forward.14} parent=35 // pred_check_branch
        %2627 = sbr.rel (%p2625) target = $region40
      $region39: #{densenet_forward.14} parent=35 // pred_region
        %s2628 = smul.u32 8, %s20
        %p2629 = scmp.lt.s32.totalorder %s19, 1
        %s2630 = scalar_select %p2629, %s19, 1
        %p2631 = scmp.lt.s32.totalorder %s2628, 7
        %s2632 = scalar_select %p2631, %s2628, 7
        %s2633 = smul.addr %s2630, 8
        %s2634 = sadd.s32 %s2632, %s2633
        %s2635 = smul.addr %s2634, 4
        %s2636 = scalar_lea.vmem %s2, %s2635
      $region40: #{densenet_forward.14} parent=35 // pred_fallthru
        _
    $region36: #{densenet_forward.14} parent=5 // pred_fallthru
      _
  $region6: #{densenet_forward.14} parent=0 // loop_footer
    %s12 = sadd.s32 1, %s8
  $region7: #{densenet_forward.14} parent=0 // loop_footer_branch
    %7 = sbr.rel target = $region3
  $region8: #{densenet_forward.14} parent=0 // loop_exit
    _

// kernel: densenet_forward.16
$region0: #{densenet_forward.16}
  #allocation0 [shape = 'u32[]', space=smem, size = 0x4, offset = 0x4, fixed_abs, tag = 'smem constant byte address 0x4 - core index']
  #allocation1 [shape = 'u32[72,128]{1,0:T(1,128)}', space=vmem, size = 0x9000, scoped, tag = 'internal scratch']
  #allocation2 [shape = 'bf16[192,128]{1,0:T(8,128)(2,1)}', space=vmem, size = 0xc000, scoped, tag = 'scratch operand']
  #allocation3 [shape = 'bf16[176,384]{1,0:T(8,128)(2,1)}', space=vmem, size = 0x21000, scoped, tag = 'scratch operand']
  %s0 = inlined_call_operand.vmem [shape: bf16[2,192,128], index: 0, kind: input, shape index: {}, may-alias: {0,1}]
  %s1 = inlined_call_operand.vmem [shape: bf16[2,192,128], index: 1, kind: input, shape index: {}, may-alias: {0,1}]
  %s2 = inlined_call_operand.vmem [shape: bf16[3,384,32], index: 2, kind: input, shape index: {}]
  %s3 = inlined_call_operand.vmem [shape: bf16[2,144,32], index: 3, kind: output, shape index: {}]
  %s4 = sld [smem:[#allocation0]]
  $region45: #{densenet_forward.16} parent=0
    _
  %s6 = ssub.s32 1, %s4
  %s7 = scalar_select 0, %s6, %s4
  loop: start=0, step=1, limit=4
  $region2: #{densenet_forward.16} parent=0 // loop_pre_header
    _
  $region3: #{densenet_forward.16} parent=0 // loop_header
    %s9 = sphi 0, %s13
    %p10 = scmp.ge.s32.totalorder %s9, 4
    %s16 = sphi 0, %s28
    %s17 = sphi 0, %s24
    %s18 = sphi 0, %s16
    %s19 = sphi 0, %s17
    %s20 = sphi 0, %s18
    %s21 = sphi 0, %s19
    %s33 = sphi 0, %s35
    %s36 = sphi 0, %s33
    %s37 = sphi 0, %s36
    %s53 = sphi 0, %s37
    %s65 = sphi 0, %s67
    %s68 = sphi 0, %s65
    %s69 = sphi 0, %s68
    %s85 = sphi 0, %s69
    %s89 = sphi 0, %s89
    %s91 = sphi 0, %s89
    %s92 = sphi 0, %s91
    %s106 = sphi 0, %s92
    %s114 = sphi 0, %s116
    %s117 = sphi 0, %s114
    %s118 = sphi 0, %s117
    %s134 = sphi 0, %s118
  $region4: #{densenet_forward.16} parent=0 // loop_header_branch
    %12 = sbr.rel (%p10) target = $region8
  $region5: #{densenet_forward.16} parent=0 // loop_body
    %s14 = ssub.s32 %s9, 1
    %s15 = ssub.s32 %s9, 2
    %s22 = sadd.s32 1, %s17
    %p23 = scmp.ge.s32.totalorder %s22, 1
    %s24 = scalar_select %p23, 0, %s22
    %s25 = sadd.s32 1, %s16
    %s26 = scalar_select %p23, %s25, %s16
    %p27 = scmp.ge.s32.totalorder %s26, 2
    %s28 = scalar_select %p27, 0, %s26
    %s29 = ssub.s32 %s16, %s28
    %s30 = ssub.s32 %s17, %s24
    %s31 = sor.u32 %s29, %s30
    %p32 = scmp.eq.s32.totalorder %s31, 0
    %s34 = sadd.s32 %s33, 1
    %s35 = scalar_select %p32, %s33, %s34
    %p38 = pneg %p32
    %p39 = scmp.eq.s32.totalorder %s9, 1
    %p40 = por %p38, %p39
    %p41 = scmp.ne.s32.totalorder %s33, %s36
    %p42 = scmp.eq.s32.totalorder %s9, 0
    %p43 = por %p41, %p42
    %p44 = scmp.ne.s32.totalorder %s33, %s36
    %p45 = scmp.eq.s32.totalorder %s14, 1
    %p46 = por %p44, %p45
    %p47 = scmp.ne.s32.totalorder %s36, %s37
    %p48 = scmp.eq.s32.totalorder %s14, 0
    %p49 = por %p47, %p48
    %p50 = scmp.ne.s32.totalorder %s36, %s37
    %p51 = scmp.eq.s32.totalorder %s15, 1
    %p52 = por %p50, %p51
    %p54 = scmp.ne.s32.totalorder %s37, %s53
    %p55 = scmp.eq.s32.totalorder %s15, 0
    %p56 = por %p54, %p55
    %s57 = sadd.s32 %s17, 1
    %s58 = smul.u32 %s57, 3
    %s59 = sadd.s32 %s24, 1
    %s60 = smul.u32 %s59, 3
    %s61 = ssub.s32 %s16, %s28
    %s62 = ssub.s32 %s58, %s60
    %s63 = sor.u32 %s61, %s62
    %p64 = scmp.eq.s32.totalorder %s63, 0
    %s66 = sadd.s32 %s65, 1
    %s67 = scalar_select %p64, %s65, %s66
    %p70 = pneg %p64
    %p71 = scmp.eq.s32.totalorder %s9, 1
    %p72 = por %p70, %p71
    %p73 = scmp.ne.s32.totalorder %s65, %s68
    %p74 = scmp.eq.s32.totalorder %s9, 0
    %p75 = por %p73, %p74
    %p76 = scmp.ne.s32.totalorder %s65, %s68
    %p77 = scmp.eq.s32.totalorder %s14, 1
    %p78 = por %p76, %p77
    %p79 = scmp.ne.s32.totalorder %s68, %s69
    %p80 = scmp.eq.s32.totalorder %s14, 0
    %p81 = por %p79, %p80
    %p82 = scmp.ne.s32.totalorder %s68, %s69
    %p83 = scmp.eq.s32.totalorder %s15, 1
    %p84 = por %p82, %p83
    %p86 = scmp.ne.s32.totalorder %s69, %s85
    %p87 = scmp.eq.s32.totalorder %s15, 0
    %p88 = por %p86, %p87
    %s90 = sadd.s32 %s89, 1
    %p93 = scmp.eq.s32.totalorder %s9, 1
    %p94 = scmp.ne.s32.totalorder %s89, %s91
    %p95 = scmp.eq.s32.totalorder %s9, 0
    %p96 = por %p94, %p95
    %p97 = scmp.ne.s32.totalorder %s89, %s91
    %p98 = scmp.eq.s32.totalorder %s14, 1
    %p99 = por %p97, %p98
    %p100 = scmp.ne.s32.totalorder %s91, %s92
    %p101 = scmp.eq.s32.totalorder %s14, 0
    %p102 = por %p100, %p101
    %p103 = scmp.ne.s32.totalorder %s91, %s92
    %p104 = scmp.eq.s32.totalorder %s15, 1
    %p105 = por %p103, %p104
    %p107 = scmp.ne.s32.totalorder %s92, %s106
    %p108 = scmp.eq.s32.totalorder %s15, 0
    %p109 = por %p107, %p108
    %s110 = ssub.s32 %s16, %s28
    %s111 = ssub.s32 %s17, %s24
    %s112 = sor.u32 %s110, %s111
    %p113 = scmp.eq.s32.totalorder %s112, 0
    %s115 = sadd.s32 %s114, 1
    %s116 = scalar_select %p113, %s114, %s115
    %p119 = pneg %p113
    %p120 = scmp.eq.s32.totalorder %s9, 1
    %p121 = por %p119, %p120
    %p122 = scmp.ne.s32.totalorder %s114, %s117
    %p123 = scmp.eq.s32.totalorder %s9, 0
    %p124 = por %p122, %p123
    %p125 = scmp.ne.s32.totalorder %s114, %s117
    %p126 = scmp.eq.s32.totalorder %s14, 1
    %p127 = por %p125, %p126
    %p128 = scmp.ne.s32.totalorder %s117, %s118
    %p129 = scmp.eq.s32.totalorder %s14, 0
    %p130 = por %p128, %p129
    %p131 = scmp.ne.s32.totalorder %s117, %s118
    %p132 = scmp.eq.s32.totalorder %s15, 1
    %p133 = por %p131, %p132
    %p135 = scmp.ne.s32.totalorder %s118, %s134
    %p136 = scmp.eq.s32.totalorder %s15, 0
    %p137 = por %p135, %p136
    %p138 = scmp.le.s32.totalorder 1, %s9
    %p139 = scmp.lt.s32.totalorder %s9, 3
    %p140 = pnand %p138, %p139
    %p141 = pneg %p140
    // Predicated region
    $region9: #{densenet_forward.16} parent=5 // pred_check
      _
    $region10: #{densenet_forward.16} parent=5 // pred_check_branch
      %143 = sbr.rel (%p140) target = $region12
    $region11: #{densenet_forward.16} parent=5 // pred_region
      %s144 = ssub.s32 %s9, 1
      // Predicated region
      $region13: #{densenet_forward.16} parent=11 // pred_check
        %p145 = pneg %p102
      $region14: #{densenet_forward.16} parent=11 // pred_check_branch
        %147 = sbr.rel (%p145) target = $region16
      $region15: #{densenet_forward.16} parent=11 // pred_region
        _
      $region16: #{densenet_forward.16} parent=11 // pred_fallthru
        _
    $region12: #{densenet_forward.16} parent=5 // pred_fallthru
      _
    %p148 = scmp.lt.s32.totalorder %s9, 2
    // Predicated region
    $region17: #{densenet_forward.16} parent=5 // pred_check
      %p149 = pneg %p148
    $region18: #{densenet_forward.16} parent=5 // pred_check_branch
      %151 = sbr.rel (%p149) target = $region20
    $region19: #{densenet_forward.16} parent=5 // pred_region
      // Predicated region
      $region21: #{densenet_forward.16} parent=19 // pred_check
        %p152 = pneg %p43
      $region22: #{densenet_forward.16} parent=19 // pred_check_branch
        %154 = sbr.rel (%p152) target = $region24
      $region23: #{densenet_forward.16} parent=19 // pred_region
        %s155 = smul.u32 18, %s17
        %s156 = ssub.s32 24, %s155
        %p157 = scmp.lt.s32.totalorder %s156, 18
        %s158 = scalar_select %p157, %s156, 18
        %s159 = smul.u32 4, %s158
        %p160 = scmp.lt.s32.totalorder %s16, 1
        %s161 = scalar_select %p160, %s16, 1
        %p162 = scmp.lt.s32.totalorder %s155, 23
        %s163 = scalar_select %p162, %s155, 23
        %s164 = smul.addr %s161, 24
        %s165 = sadd.s32 %s163, %s164
        %s166 = smul.addr %s165, 4
        %s167 = scalar_lea.vmem %s0, %s166
        %s168 = smul.u32 18, %s17
        %s169 = ssub.s32 24, %s168
        %p170 = scmp.lt.s32.totalorder %s169, 18
        %s171 = scalar_select %p170, %s169, 18
        %s172 = smul.u32 4, %s171
      $region24: #{densenet_forward.16} parent=19 // pred_fallthru
        _
      // Predicated region
      $region25: #{densenet_forward.16} parent=19 // pred_check
        %p173 = pneg %p75
      $region26: #{densenet_forward.16} parent=19 // pred_check_branch
        %175 = sbr.rel (%p173) target = $region28
      $region27: #{densenet_forward.16} parent=19 // pred_region
        %s176 = sadd.s32 %s17, 1
        %s177 = smul.u32 %s176, 3
        %s178 = smul.u32 6, %s177
        %p179 = scmp.lt.s32.totalorder %s16, 1
        %s180 = scalar_select %p179, %s16, 1
        %p181 = scmp.lt.s32.totalorder %s178, 23
        %s182 = scalar_select %p181, %s178, 23
        %s183 = smul.addr %s180, 24
        %s184 = sadd.s32 %s182, %s183
        %s185 = smul.addr %s184, 4
        %s186 = scalar_lea.vmem %s1, %s185
        %s187 = sadd.s32 %s17, 1
        %s188 = smul.u32 %s187, 3
        %s189 = smul.u32 6, %s188
      $region28: #{densenet_forward.16} parent=19 // pred_fallthru
        _
    $region20: #{densenet_forward.16} parent=5 // pred_fallthru
      _
    %p190 = scmp.le.s32.totalorder 1, %s9
    %p191 = scmp.lt.s32.totalorder %s9, 3
    %p192 = pnand %p190, %p191
    %p193 = pneg %p192
    // Predicated region
    $region29: #{densenet_forward.16} parent=5 // pred_check
      _
    $region30: #{densenet_forward.16} parent=5 // pred_check_branch
      %195 = sbr.rel (%p192) target = $region32
    $region31: #{densenet_forward.16} parent=5 // pred_region
      %s196 = ssub.s32 %s9, 1
      %s197 = smul.u32 18, %s19
      %s198 = ssub.s32 24, %s197
      %p199 = scmp.lt.s32.totalorder %s198, 18
      %s200 = scalar_select %p199, %s198, 18
      %s201 = smul.u32 4, %s200
      %p202 = scmp.lt.s32.totalorder %s18, 1
      %s203 = scalar_select %p202, %s18, 1
      %p204 = scmp.lt.s32.totalorder %s197, 23
      %s205 = scalar_select %p204, %s197, 23
      %s206 = smul.addr %s203, 24
      %s207 = sadd.s32 %s205, %s206
      %s208 = smul.addr %s207, 4
      %s209 = scalar_lea.vmem %s0, %s208
      %p210 = pneg %p49
      %p211 = pneg %p46
      %s212 = sadd.s32 %s19, 1
      %s213 = smul.u32 %s212, 3
      %s214 = smul.u32 6, %s213
      %p215 = scmp.lt.s32.totalorder %s18, 1
      %s216 = scalar_select %p215, %s18, 1
      %p217 = scmp.lt.s32.totalorder %s214, 23
      %s218 = scalar_select %p217, %s214, 23
      %s219 = smul.addr %s216, 24
      %s220 = sadd.s32 %s218, %s219
      %s221 = smul.addr %s220, 4
      %s222 = scalar_lea.vmem %s1, %s221
      %p223 = pneg %p81
      %p224 = pneg %p78
      %p225 = pneg %p102
      %p226 = pneg %p99
      %p227 = pneg %p130
      %p228 = pneg %p127
      %s229 = smul.u32 18, %s19
      %p230 = scmp.lt.s32.totalorder %s18, 1
      %s231 = scalar_select %p230, %s18, 1
      %p232 = scmp.lt.s32.totalorder %s229, 17
      %s233 = scalar_select %p232, %s229, 17
      %s234 = smul.addr %s231, 18
      %s235 = sadd.s32 %s233, %s234
      %s236 = smul.addr %s235, 4
      %s237 = scalar_lea.vmem %s3, %s236
      %s238 = smul.u32 18, %s19
      %s239 = ssub.s32 24, %s238
      %p240 = scmp.lt.s32.totalorder %s239, 18
      %s241 = scalar_select %p240, %s239, 18
      %s242 = smul.u32 4, %s241
      %p243 = scmp.lt.s32.totalorder %s18, 1
      %s244 = scalar_select %p243, %s18, 1
      %p245 = scmp.lt.s32.totalorder %s238, 23
      %s246 = scalar_select %p245, %s238, 23
      %s247 = smul.addr %s244, 24
      %s248 = sadd.s32 %s246, %s247
      %s249 = smul.addr %s248, 4
      %s250 = scalar_lea.vmem %s0, %s249
      %s251 = smul.u32 18, %s19
      %s252 = ssub.s32 24, %s251
      %p253 = scmp.lt.s32.totalorder %s252, 18
      %s254 = scalar_select %p253, %s252, 18
      %s255 = smul.u32 4, %s254
      %s256 = sadd.s32 %s19, 1
      %s257 = smul.u32 %s256, 3
      %s258 = smul.u32 6, %s257
      %p259 = scmp.lt.s32.totalorder %s18, 1
      %s260 = scalar_select %p259, %s18, 1
      %p261 = scmp.lt.s32.totalorder %s258, 23
      %s262 = scalar_select %p261, %s258, 23
      %s263 = smul.addr %s260, 24
      %s264 = sadd.s32 %s262, %s263
      %s265 = smul.addr %s264, 4
      %s266 = scalar_lea.vmem %s1, %s265
      %s267 = sadd.s32 %s19, 1
      %s268 = smul.u32 %s267, 3
      %s269 = smul.u32 6, %s268
      %s270 = smul.u32 18, %s19
      %p271 = scmp.lt.s32.totalorder %s18, 1
      %s272 = scalar_select %p271, %s18, 1
      %p273 = scmp.lt.s32.totalorder %s270, 17
      %s274 = scalar_select %p273, %s270, 17
      %s275 = smul.addr %s272, 18
      %s276 = sadd.s32 %s274, %s275
      %s277 = smul.addr %s276, 4
      %s278 = scalar_lea.vmem %s3, %s277
      %s279 = smul.u32 18, %s19
      %v280 = vld [vmem:[%s250] sm:$0xf]
      %v281 = vld [vmem:[%s250 + $0x4] sm:$0xf]
      %v282 = vld [vmem:[%s250 + $0x8] sm:$0xf]
      %v283 = vld [vmem:[%s250 + $0xc] sm:$0xf]
      %v284 = vld [vmem:[%s250 + $0x10] sm:$0xf]
      %v285 = vld [vmem:[%s250 + $0x14] sm:$0xf]
      %v286 = vld [vmem:[%s250 + $0x18] sm:$0xf]
      %v287 = vld [vmem:[%s250 + $0x1c] sm:$0xf]
      %v288 = vld [vmem:[%s250 + $0x20] sm:$0xf]
      %v289 = vld [vmem:[%s250 + $0x24] sm:$0xf]
      %v290 = vld [vmem:[%s250 + $0x28] sm:$0xf]
      %v291 = vld [vmem:[%s250 + $0x2c] sm:$0xf]
      %v292 = vld [vmem:[%s250 + $0x30] sm:$0xf]
      %v293 = vld [vmem:[%s250 + $0x34] sm:$0xf]
      %v294 = vld [vmem:[%s250 + $0x38] sm:$0xf]
      %v295 = vld [vmem:[%s250 + $0x3c] sm:$0xf]
      %v296 = vld [vmem:[%s250 + $0x40] sm:$0xf]
      %v297 = vld [vmem:[%s250 + $0x44] sm:$0xf]
      %298 = vst [vmem:[#allocation2] sm:$0xf] %v280
      %299 = vst [vmem:[#allocation2 + $0x4] sm:$0xf] %v281
      %300 = vst [vmem:[#allocation2 + $0x8] sm:$0xf] %v282
      %301 = vst [vmem:[#allocation2 + $0xc] sm:$0xf] %v283
      %302 = vst [vmem:[#allocation2 + $0x10] sm:$0xf] %v284
      %303 = vst [vmem:[#allocation2 + $0x14] sm:$0xf] %v285
      %304 = vst [vmem:[#allocation2 + $0x18] sm:$0xf] %v286
      %305 = vst [vmem:[#allocation2 + $0x1c] sm:$0xf] %v287
      %306 = vst [vmem:[#allocation2 + $0x20] sm:$0xf] %v288
      %307 = vst [vmem:[#allocation2 + $0x24] sm:$0xf] %v289
      %308 = vst [vmem:[#allocation2 + $0x28] sm:$0xf] %v290
      %309 = vst [vmem:[#allocation2 + $0x2c] sm:$0xf] %v291
      %310 = vst [vmem:[#allocation2 + $0x30] sm:$0xf] %v292
      %311 = vst [vmem:[#allocation2 + $0x34] sm:$0xf] %v293
      %312 = vst [vmem:[#allocation2 + $0x38] sm:$0xf] %v294
      %313 = vst [vmem:[#allocation2 + $0x3c] sm:$0xf] %v295
      %314 = vst [vmem:[#allocation2 + $0x40] sm:$0xf] %v296
      %315 = vst [vmem:[#allocation2 + $0x44] sm:$0xf] %v297
      %v316 = vld [vmem:[%s266] sm:$0xf]
      %v317 = vld [vmem:[%s266 + $0x4] sm:$0xf]
      %v318 = vld [vmem:[%s266 + $0x8] sm:$0xf]
      %v319 = vld [vmem:[%s266 + $0xc] sm:$0xf]
      %v320 = vld [vmem:[%s266 + $0x10] sm:$0xf]
      %v321 = vld [vmem:[%s266 + $0x14] sm:$0xf]
      %322 = vst [vmem:[#allocation2 + $0x48] sm:$0xf] %v316
      %323 = vst [vmem:[#allocation2 + $0x4c] sm:$0xf] %v317
      %324 = vst [vmem:[#allocation2 + $0x50] sm:$0xf] %v318
      %325 = vst [vmem:[#allocation2 + $0x54] sm:$0xf] %v319
      %326 = vst [vmem:[#allocation2 + $0x58] sm:$0xf] %v320
      %327 = vst [vmem:[#allocation2 + $0x5c] sm:$0xf] %v321
      %v328 = vld [vmem:[#allocation2] sm:$0xf]
      %v329 = vld [vmem:[#allocation2 + $0x4] sm:$0xf]
      %v330 = vld [vmem:[#allocation2 + $0x8] sm:$0xf]
      %v331 = vld [vmem:[#allocation2 + $0xc] sm:$0xf]
      %v332 = vld [vmem:[#allocation2 + $0x10] sm:$0xf]
      %v333 = vld [vmem:[#allocation2 + $0x14] sm:$0xf]
      %v334 = vld [vmem:[#allocation2 + $0x18] sm:$0xf]
      %v335 = vld [vmem:[#allocation2 + $0x1c] sm:$0xf]
      %v336 = vld [vmem:[#allocation2 + $0x20] sm:$0xf]
      %v337 = vld [vmem:[#allocation2 + $0x24] sm:$0xf]
      %v338 = vld [vmem:[#allocation2 + $0x28] sm:$0xf]
      %v339 = vld [vmem:[#allocation2 + $0x2c] sm:$0xf]
      %v340 = vld [vmem:[#allocation2 + $0x30] sm:$0xf]
      %v341 = vld [vmem:[#allocation2 + $0x34] sm:$0xf]
      %v342 = vld [vmem:[#allocation2 + $0x38] sm:$0xf]
      %v343 = vld [vmem:[#allocation2 + $0x3c] sm:$0xf]
      %v344 = vld [vmem:[#allocation2 + $0x40] sm:$0xf]
      %v345 = vld [vmem:[#allocation2 + $0x44] sm:$0xf]
      %v346 = vld [vmem:[#allocation2 + $0x48] sm:$0xf]
      %v347 = vld [vmem:[#allocation2 + $0x4c] sm:$0xf]
      %v348 = vld [vmem:[#allocation2 + $0x50] sm:$0xf]
      %v349 = vld [vmem:[#allocation2 + $0x54] sm:$0xf]
      %350 = vst [vmem:[#allocation3] sm:$0xf] %v328
      %351 = vst [vmem:[#allocation3 + $0xc] sm:$0xf] %v329
      %352 = vst [vmem:[#allocation3 + $0x18] sm:$0xf] %v330
      %353 = vst [vmem:[#allocation3 + $0x24] sm:$0xf] %v331
      %354 = vst [vmem:[#allocation3 + $0x30] sm:$0xf] %v332
      %355 = vst [vmem:[#allocation3 + $0x3c] sm:$0xf] %v333
      %356 = vst [vmem:[#allocation3 + $0x48] sm:$0xf] %v334
      %357 = vst [vmem:[#allocation3 + $0x54] sm:$0xf] %v335
      %358 = vst [vmem:[#allocation3 + $0x60] sm:$0xf] %v336
      %359 = vst [vmem:[#allocation3 + $0x6c] sm:$0xf] %v337
      %360 = vst [vmem:[#allocation3 + $0x78] sm:$0xf] %v338
      %361 = vst [vmem:[#allocation3 + $0x84] sm:$0xf] %v339
      %362 = vst [vmem:[#allocation3 + $0x90] sm:$0xf] %v340
      %363 = vst [vmem:[#allocation3 + $0x9c] sm:$0xf] %v341
      %364 = vst [vmem:[#allocation3 + $0xa8] sm:$0xf] %v342
      %365 = vst [vmem:[#allocation3 + $0xb4] sm:$0xf] %v343
      %366 = vst [vmem:[#allocation3 + $0xc0] sm:$0xf] %v344
      %367 = vst [vmem:[#allocation3 + $0xcc] sm:$0xf] %v345
      %368 = vst [vmem:[#allocation3 + $0xd8] sm:$0xf] %v346
      %369 = vst [vmem:[#allocation3 + $0xe4] sm:$0xf] %v347
      %370 = vst [vmem:[#allocation3 + $0xf0] sm:$0xf] %v348
      %371 = vst [vmem:[#allocation3 + $0xfc] sm:$0xf] %v349
      %v372 = vld [vmem:[#allocation2] sm:$0xf]
      %v373 = vld [vmem:[#allocation2 + $0x4] sm:$0xf]
      %v374 = vld [vmem:[#allocation2 + $0x8] sm:$0xf]
      %v375 = vld [vmem:[#allocation2 + $0xc] sm:$0xf]
      %v376 = vld [vmem:[#allocation2 + $0x10] sm:$0xf]
      %v377 = vld [vmem:[#allocation2 + $0x14] sm:$0xf]
      %v378 = vld [vmem:[#allocation2 + $0x18] sm:$0xf]
      %v379 = vld [vmem:[#allocation2 + $0x1c] sm:$0xf]
      %v380 = vld [vmem:[#allocation2 + $0x20] sm:$0xf]
      %v381 = vld [vmem:[#allocation2 + $0x24] sm:$0xf]
      %v382 = vld [vmem:[#allocation2 + $0x28] sm:$0xf]
      %v383 = vld [vmem:[#allocation2 + $0x2c] sm:$0xf]
      %v384 = vld [vmem:[#allocation2 + $0x30] sm:$0xf]
      %v385 = vld [vmem:[#allocation2 + $0x34] sm:$0xf]
      %v386 = vld [vmem:[#allocation2 + $0x38] sm:$0xf]
      %v387 = vld [vmem:[#allocation2 + $0x3c] sm:$0xf]
      %v388 = vld [vmem:[#allocation2 + $0x40] sm:$0xf]
      %v389 = vld [vmem:[#allocation2 + $0x44] sm:$0xf]
      %v390 = vld [vmem:[#allocation2 + $0x48] sm:$0xf]
      %v391 = vld [vmem:[#allocation2 + $0x4c] sm:$0xf]
      %v392 = vld [vmem:[#allocation2 + $0x50] sm:$0xf]
      %v393 = vld [vmem:[#allocation2 + $0x54] sm:$0xf]
      %v394 = vld [vmem:[#allocation2 + $0x58] sm:$0x1]
      %vm395 = vsmask.f32 3328
      %vm396 = vsmask.f32 7440
      %vm397 = vmor %vm395, %vm396
      %v399 = vshrl.u32 %v372, 16
      %v401 = vrot.slane %v399, 4
      %v402 = vshll.u32 %v372, 16
      %v404 = vrot.slane %v402, 5
      %v405 = vor.u32 %v401, %v404
      %v406 = vrot.slane %v405, 4
      %v408 = vshll.u32 %v373, 16
      %v410 = vrot.slane %v408, 5
      %v411 = vsel %vm397, %v406, %v410
      %v412 = vshrl.u32 %v373, 16
      %v414 = vrot.slane %v412, 4
      %v415 = vor.u32 %v414, %v410
      %v416 = vrot.slane %v415, 4
      %v418 = vshll.u32 %v374, 16
      %v420 = vrot.slane %v418, 5
      %v421 = vsel %vm397, %v416, %v420
      %v422 = vshrl.u32 %v374, 16
      %v424 = vrot.slane %v422, 4
      %v425 = vor.u32 %v424, %v420
      %v426 = vrot.slane %v425, 4
      %v428 = vshll.u32 %v375, 16
      %v430 = vrot.slane %v428, 5
      %v431 = vsel %vm397, %v426, %v430
      %v432 = vshrl.u32 %v375, 16
      %v434 = vrot.slane %v432, 4
      %v435 = vor.u32 %v434, %v430
      %v436 = vrot.slane %v435, 4
      %v438 = vshll.u32 %v376, 16
      %v440 = vrot.slane %v438, 5
      %v441 = vsel %vm397, %v436, %v440
      %v442 = vshrl.u32 %v376, 16
      %v444 = vrot.slane %v442, 4
      %v445 = vor.u32 %v444, %v440
      %v446 = vrot.slane %v445, 4
      %v448 = vshll.u32 %v377, 16
      %v450 = vrot.slane %v448, 5
      %v451 = vsel %vm397, %v446, %v450
      %v452 = vshrl.u32 %v377, 16
      %v454 = vrot.slane %v452, 4
      %v455 = vor.u32 %v454, %v450
      %v456 = vrot.slane %v455, 4
      %v458 = vshll.u32 %v378, 16
      %v460 = vrot.slane %v458, 5
      %v461 = vsel %vm397, %v456, %v460
      %v462 = vshrl.u32 %v378, 16
      %v464 = vrot.slane %v462, 4
      %v465 = vor.u32 %v464, %v460
      %v466 = vrot.slane %v465, 4
      %v468 = vshll.u32 %v379, 16
      %v470 = vrot.slane %v468, 5
      %v471 = vsel %vm397, %v466, %v470
      %v472 = vshrl.u32 %v379, 16
      %v474 = vrot.slane %v472, 4
      %v475 = vor.u32 %v474, %v470
      %v476 = vrot.slane %v475, 4
      %v478 = vshll.u32 %v380, 16
      %v480 = vrot.slane %v478, 5
      %v481 = vsel %vm397, %v476, %v480
      %v482 = vshrl.u32 %v380, 16
      %v484 = vrot.slane %v482, 4
      %v485 = vor.u32 %v484, %v480
      %v486 = vrot.slane %v485, 4
      %v488 = vshll.u32 %v381, 16
      %v490 = vrot.slane %v488, 5
      %v491 = vsel %vm397, %v486, %v490
      %v492 = vshrl.u32 %v381, 16
      %v494 = vrot.slane %v492, 4
      %v495 = vor.u32 %v494, %v490
      %v496 = vrot.slane %v495, 4
      %v498 = vshll.u32 %v382, 16
      %v500 = vrot.slane %v498, 5
      %v501 = vsel %vm397, %v496, %v500
      %v502 = vshrl.u32 %v382, 16
      %v504 = vrot.slane %v502, 4
      %v505 = vor.u32 %v504, %v500
      %v506 = vrot.slane %v505, 4
      %v508 = vshll.u32 %v383, 16
      %v510 = vrot.slane %v508, 5
      %v511 = vsel %vm397, %v506, %v510
      %v512 = vshrl.u32 %v383, 16
      %v514 = vrot.slane %v512, 4
      %v515 = vor.u32 %v514, %v510
      %v516 = vrot.slane %v515, 4
      %v518 = vshll.u32 %v384, 16
      %v520 = vrot.slane %v518, 5
      %v521 = vsel %vm397, %v516, %v520
      %v522 = vshrl.u32 %v384, 16
      %v524 = vrot.slane %v522, 4
      %v525 = vor.u32 %v524, %v520
      %v526 = vrot.slane %v525, 4
      %v528 = vshll.u32 %v385, 16
      %v530 = vrot.slane %v528, 5
      %v531 = vsel %vm397, %v526, %v530
      %v532 = vshrl.u32 %v385, 16
      %v534 = vrot.slane %v532, 4
      %v535 = vor.u32 %v534, %v530
      %v536 = vrot.slane %v535, 4
      %v538 = vshll.u32 %v386, 16
      %v540 = vrot.slane %v538, 5
      %v541 = vsel %vm397, %v536, %v540
      %v542 = vshrl.u32 %v386, 16
      %v544 = vrot.slane %v542, 4
      %v545 = vor.u32 %v544, %v540
      %v546 = vrot.slane %v545, 4
      %v548 = vshll.u32 %v387, 16
      %v550 = vrot.slane %v548, 5
      %v551 = vsel %vm397, %v546, %v550
      %v552 = vshrl.u32 %v387, 16
      %v554 = vrot.slane %v552, 4
      %v555 = vor.u32 %v554, %v550
      %v556 = vrot.slane %v555, 4
      %v558 = vshll.u32 %v388, 16
      %v560 = vrot.slane %v558, 5
      %v561 = vsel %vm397, %v556, %v560
      %v562 = vshrl.u32 %v388, 16
      %v564 = vrot.slane %v562, 4
      %v565 = vor.u32 %v564, %v560
      %v566 = vrot.slane %v565, 4
      %v568 = vshll.u32 %v389, 16
      %v570 = vrot.slane %v568, 5
      %v571 = vsel %vm397, %v566, %v570
      %v572 = vshrl.u32 %v389, 16
      %v574 = vrot.slane %v572, 4
      %v575 = vor.u32 %v574, %v570
      %v576 = vrot.slane %v575, 4
      %v578 = vshll.u32 %v390, 16
      %v580 = vrot.slane %v578, 5
      %v581 = vsel %vm397, %v576, %v580
      %v582 = vshrl.u32 %v390, 16
      %v584 = vrot.slane %v582, 4
      %v585 = vor.u32 %v584, %v580
      %v586 = vrot.slane %v585, 4
      %v588 = vshll.u32 %v391, 16
      %v590 = vrot.slane %v588, 5
      %v591 = vsel %vm397, %v586, %v590
      %v592 = vshrl.u32 %v391, 16
      %v594 = vrot.slane %v592, 4
      %v595 = vor.u32 %v594, %v590
      %v596 = vrot.slane %v595, 4
      %v598 = vshll.u32 %v392, 16
      %v600 = vrot.slane %v598, 5
      %v601 = vsel %vm397, %v596, %v600
      %v602 = vshrl.u32 %v392, 16
      %v604 = vrot.slane %v602, 4
      %v605 = vor.u32 %v604, %v600
      %v606 = vrot.slane %v605, 4
      %v608 = vshll.u32 %v393, 16
      %v610 = vrot.slane %v608, 5
      %v611 = vsel %vm397, %v606, %v610
      %v612 = vshrl.u32 %v393, 16
      %v614 = vrot.slane %v612, 4
      %v615 = vor.u32 %v614, %v610
      %v616 = vrot.slane %v615, 4
      %v618 = vshll.u32 %v394, 16
      %v620 = vrot.slane %v618, 5
      %v621 = vsel %vm397, %v616, %v620
      %644 = vst [vmem:[#allocation3 + $0x4] sm:$0xf] %v411
      %645 = vst [vmem:[#allocation3 + $0x10] sm:$0xf] %v421
      %646 = vst [vmem:[#allocation3 + $0x1c] sm:$0xf] %v431
      %647 = vst [vmem:[#allocation3 + $0x28] sm:$0xf] %v441
      %648 = vst [vmem:[#allocation3 + $0x34] sm:$0xf] %v451
      %649 = vst [vmem:[#allocation3 + $0x40] sm:$0xf] %v461
      %650 = vst [vmem:[#allocation3 + $0x4c] sm:$0xf] %v471
      %651 = vst [vmem:[#allocation3 + $0x58] sm:$0xf] %v481
      %652 = vst [vmem:[#allocation3 + $0x64] sm:$0xf] %v491
      %653 = vst [vmem:[#allocation3 + $0x70] sm:$0xf] %v501
      %654 = vst [vmem:[#allocation3 + $0x7c] sm:$0xf] %v511
      %655 = vst [vmem:[#allocation3 + $0x88] sm:$0xf] %v521
      %656 = vst [vmem:[#allocation3 + $0x94] sm:$0xf] %v531
      %657 = vst [vmem:[#allocation3 + $0xa0] sm:$0xf] %v541
      %658 = vst [vmem:[#allocation3 + $0xac] sm:$0xf] %v551
      %659 = vst [vmem:[#allocation3 + $0xb8] sm:$0xf] %v561
      %660 = vst [vmem:[#allocation3 + $0xc4] sm:$0xf] %v571
      %661 = vst [vmem:[#allocation3 + $0xd0] sm:$0xf] %v581
      %662 = vst [vmem:[#allocation3 + $0xdc] sm:$0xf] %v591
      %663 = vst [vmem:[#allocation3 + $0xe8] sm:$0xf] %v601
      %664 = vst [vmem:[#allocation3 + $0xf4] sm:$0xf] %v611
      %665 = vst [vmem:[#allocation3 + $0x100] sm:$0xf] %v621
      %v666 = vld [vmem:[#allocation2] sm:$0xe]
      %v667 = vld [vmem:[#allocation2 + $0x4] sm:$0xf]
      %v668 = vld [vmem:[#allocation2 + $0x8] sm:$0xf]
      %v669 = vld [vmem:[#allocation2 + $0xc] sm:$0xf]
      %v670 = vld [vmem:[#allocation2 + $0x10] sm:$0xf]
      %v671 = vld [vmem:[#allocation2 + $0x14] sm:$0xf]
      %v672 = vld [vmem:[#allocation2 + $0x18] sm:$0xf]
      %v673 = vld [vmem:[#allocation2 + $0x1c] sm:$0xf]
      %v674 = vld [vmem:[#allocation2 + $0x20] sm:$0xf]
      %v675 = vld [vmem:[#allocation2 + $0x24] sm:$0xf]
      %v676 = vld [vmem:[#allocation2 + $0x28] sm:$0xf]
      %v677 = vld [vmem:[#allocation2 + $0x2c] sm:$0xf]
      %v678 = vld [vmem:[#allocation2 + $0x30] sm:$0xf]
      %v679 = vld [vmem:[#allocation2 + $0x34] sm:$0xf]
      %v680 = vld [vmem:[#allocation2 + $0x38] sm:$0xf]
      %v681 = vld [vmem:[#allocation2 + $0x3c] sm:$0xf]
      %v682 = vld [vmem:[#allocation2 + $0x40] sm:$0xf]
      %v683 = vld [vmem:[#allocation2 + $0x44] sm:$0xf]
      %v684 = vld [vmem:[#allocation2 + $0x48] sm:$0xf]
      %v685 = vld [vmem:[#allocation2 + $0x4c] sm:$0xf]
      %v686 = vld [vmem:[#allocation2 + $0x50] sm:$0xf]
      %v687 = vld [vmem:[#allocation2 + $0x54] sm:$0xf]
      %v688 = vld [vmem:[#allocation2 + $0x58] sm:$0x1]
      %vm712 = vcmask 1042432
      %vm713 = vcmask 1046532
      %vm714 = vmor %vm712, %vm713
      %v715 = vrot.slane %v666, 5
      %v716 = vrot.slane %v715, 4
      %v717 = vrot.slane %v667, 5
      %v718 = vsel %vm714, %v716, %v717
      %v719 = vrot.slane %v717, 4
      %v720 = vrot.slane %v668, 5
      %v721 = vsel %vm714, %v719, %v720
      %v722 = vrot.slane %v720, 4
      %v723 = vrot.slane %v669, 5
      %v724 = vsel %vm714, %v722, %v723
      %v725 = vrot.slane %v723, 4
      %v726 = vrot.slane %v670, 5
      %v727 = vsel %vm714, %v725, %v726
      %v728 = vrot.slane %v726, 4
      %v729 = vrot.slane %v671, 5
      %v730 = vsel %vm714, %v728, %v729
      %v731 = vrot.slane %v729, 4
      %v732 = vrot.slane %v672, 5
      %v733 = vsel %vm714, %v731, %v732
      %v734 = vrot.slane %v732, 4
      %v735 = vrot.slane %v673, 5
      %v736 = vsel %vm714, %v734, %v735
      %v737 = vrot.slane %v735, 4
      %v738 = vrot.slane %v674, 5
      %v739 = vsel %vm714, %v737, %v738
      %v740 = vrot.slane %v738, 4
      %v741 = vrot.slane %v675, 5
      %v742 = vsel %vm714, %v740, %v741
      %v743 = vrot.slane %v741, 4
      %v744 = vrot.slane %v676, 5
      %v745 = vsel %vm714, %v743, %v744
      %v746 = vrot.slane %v744, 4
      %v747 = vrot.slane %v677, 5
      %v748 = vsel %vm714, %v746, %v747
      %v749 = vrot.slane %v747, 4
      %v750 = vrot.slane %v678, 5
      %v751 = vsel %vm714, %v749, %v750
      %v752 = vrot.slane %v750, 4
      %v753 = vrot.slane %v679, 5
      %v754 = vsel %vm714, %v752, %v753
      %v755 = vrot.slane %v753, 4
      %v756 = vrot.slane %v680, 5
      %v757 = vsel %vm714, %v755, %v756
      %v758 = vrot.slane %v756, 4
      %v759 = vrot.slane %v681, 5
      %v760 = vsel %vm714, %v758, %v759
      %v761 = vrot.slane %v759, 4
      %v762 = vrot.slane %v682, 5
      %v763 = vsel %vm714, %v761, %v762
      %v764 = vrot.slane %v762, 4
      %v765 = vrot.slane %v683, 5
      %v766 = vsel %vm714, %v764, %v765
      %v767 = vrot.slane %v765, 4
      %v768 = vrot.slane %v684, 5
      %v769 = vsel %vm714, %v767, %v768
      %v770 = vrot.slane %v768, 4
      %v771 = vrot.slane %v685, 5
      %v772 = vsel %vm714, %v770, %v771
      %v773 = vrot.slane %v771, 4
      %v774 = vrot.slane %v686, 5
      %v775 = vsel %vm714, %v773, %v774
      %v776 = vrot.slane %v774, 4
      %v777 = vrot.slane %v687, 5
      %v778 = vsel %vm714, %v776, %v777
      %v779 = vrot.slane %v777, 4
      %v780 = vrot.slane %v688, 5
      %v781 = vsel %vm714, %v779, %v780
      %804 = vst [vmem:[#allocation3 + $0x8] sm:$0xf] %v718
      %805 = vst [vmem:[#allocation3 + $0x14] sm:$0xf] %v721
      %806 = vst [vmem:[#allocation3 + $0x20] sm:$0xf] %v724
      %807 = vst [vmem:[#allocation3 + $0x2c] sm:$0xf] %v727
      %808 = vst [vmem:[#allocation3 + $0x38] sm:$0xf] %v730
      %809 = vst [vmem:[#allocation3 + $0x44] sm:$0xf] %v733
      %810 = vst [vmem:[#allocation3 + $0x50] sm:$0xf] %v736
      %811 = vst [vmem:[#allocation3 + $0x5c] sm:$0xf] %v739
      %812 = vst [vmem:[#allocation3 + $0x68] sm:$0xf] %v742
      %813 = vst [vmem:[#allocation3 + $0x74] sm:$0xf] %v745
      %814 = vst [vmem:[#allocation3 + $0x80] sm:$0xf] %v748
      %815 = vst [vmem:[#allocation3 + $0x8c] sm:$0xf] %v751
      %816 = vst [vmem:[#allocation3 + $0x98] sm:$0xf] %v754
      %817 = vst [vmem:[#allocation3 + $0xa4] sm:$0xf] %v757
      %818 = vst [vmem:[#allocation3 + $0xb0] sm:$0xf] %v760
      %819 = vst [vmem:[#allocation3 + $0xbc] sm:$0xf] %v763
      %820 = vst [vmem:[#allocation3 + $0xc8] sm:$0xf] %v766
      %821 = vst [vmem:[#allocation3 + $0xd4] sm:$0xf] %v769
      %822 = vst [vmem:[#allocation3 + $0xe0] sm:$0xf] %v772
      %823 = vst [vmem:[#allocation3 + $0xec] sm:$0xf] %v775
      %824 = vst [vmem:[#allocation3 + $0xf8] sm:$0xf] %v778
      %825 = vst [vmem:[#allocation3 + $0x104] sm:$0xf] %v781
      %v826 = vld [vmem:[#allocation3] sm:$0xff]
      %v827 = vld [vmem:[#allocation3 + $0x8] sm:$0xf]
      %v828 = vld [vmem:[#allocation3 + $0xc] sm:$0xff]
      %v829 = vld [vmem:[#allocation3 + $0x14] sm:$0xf]
      %v830 = vld [vmem:[#allocation3 + $0x18] sm:$0xff]
      %v831 = vld [vmem:[#allocation3 + $0x20] sm:$0xf]
      %v832 = vld [vmem:[#allocation3 + $0x24] sm:$0xff]
      %v833 = vld [vmem:[#allocation3 + $0x2c] sm:$0xf]
      %v834 = vld [vmem:[#allocation3 + $0x30] sm:$0xff]
      %v835 = vld [vmem:[#allocation3 + $0x38] sm:$0xf]
      %v836 = vld [vmem:[#allocation3 + $0x3c] sm:$0xff]
      %v837 = vld [vmem:[#allocation3 + $0x44] sm:$0xf]
      %v838 = vld [vmem:[#allocation3 + $0x48] sm:$0xff]
      %v839 = vld [vmem:[#allocation3 + $0x50] sm:$0xf]
      %v840 = vld [vmem:[#allocation3 + $0x54] sm:$0xff]
      %v841 = vld [vmem:[#allocation3 + $0x5c] sm:$0xf]
      %v842 = vld [vmem:[#allocation3 + $0x60] sm:$0xff]
      %v843 = vld [vmem:[#allocation3 + $0x68] sm:$0xf]
      %v844 = vld [vmem:[#allocation3 + $0x6c] sm:$0xff]
      %v845 = vld [vmem:[#allocation3 + $0x74] sm:$0xf]
      %v846 = vld [vmem:[#allocation3 + $0x78] sm:$0xff]
      %v847 = vld [vmem:[#allocation3 + $0x80] sm:$0xf]
      %v848 = vld [vmem:[#allocation3 + $0x84] sm:$0xff]
      %v849 = vld [vmem:[#allocation3 + $0x8c] sm:$0xf]
      %v850 = vld [vmem:[#allocation3 + $0x90] sm:$0xff]
      %v851 = vld [vmem:[#allocation3 + $0x98] sm:$0xf]
      %v852 = vld [vmem:[#allocation3 + $0x9c] sm:$0xff]
      %v853 = vld [vmem:[#allocation3 + $0xa4] sm:$0xf]
      %v854 = vld [vmem:[#allocation3 + $0xa8] sm:$0xff]
      %v855 = vld [vmem:[#allocation3 + $0xb0] sm:$0xf]
      %v856 = vld [vmem:[#allocation3 + $0xb4] sm:$0xff]
      %v857 = vld [vmem:[#allocation3 + $0xbc] sm:$0xf]
      %v858 = vld [vmem:[#allocation3 + $0xc0] sm:$0xff]
      %v859 = vld [vmem:[#allocation3 + $0xc8] sm:$0xf]
      %v860 = vld [vmem:[#allocation3 + $0xcc] sm:$0xff]
      %v861 = vld [vmem:[#allocation3 + $0xd4] sm:$0xf]
      %v862 = vld [vmem:[%s2] sm:$0xf]
      %v863 = vld [vmem:[%s2 + $0x4] sm:$0xf]
      %v864 = vld [vmem:[%s2 + $0x8] sm:$0xf]
      %v865 = vld [vmem:[%s2 + $0xc] sm:$0xf]
      %v866 = vld [vmem:[%s2 + $0x10] sm:$0xf]
      %v867 = vld [vmem:[%s2 + $0x14] sm:$0xf]
      %v868 = vld [vmem:[%s2 + $0x18] sm:$0xf]
      %v869 = vld [vmem:[%s2 + $0x1c] sm:$0xf]
      %v870 = vld [vmem:[%s2 + $0x20] sm:$0xf]
      %v871 = vld [vmem:[%s2 + $0x24] sm:$0xf]
      %v872 = vld [vmem:[%s2 + $0x28] sm:$0xf]
      %v873 = vld [vmem:[%s2 + $0x2c] sm:$0xf]
      %v874 = vld [vmem:[%s2 + $0x30] sm:$0xf]
      %v875 = vld [vmem:[%s2 + $0x34] sm:$0xf]
      %v876 = vld [vmem:[%s2 + $0x38] sm:$0xf]
      %v877 = vld [vmem:[%s2 + $0x3c] sm:$0xf]
      %v878 = vld [vmem:[%s2 + $0x40] sm:$0xf]
      %v879 = vld [vmem:[%s2 + $0x44] sm:$0xf]
      %v880 = vld [vmem:[%s2 + $0x48] sm:$0xf]
      %v881 = vld [vmem:[%s2 + $0x4c] sm:$0xf]
      %v882 = vld [vmem:[%s2 + $0x50] sm:$0xf]
      %v883 = vld [vmem:[%s2 + $0x54] sm:$0xf]
      %v884 = vld [vmem:[%s2 + $0x58] sm:$0xf]
      %v885 = vld [vmem:[%s2 + $0x5c] sm:$0xf]
      %v886 = vld [vmem:[%s2 + $0x60] sm:$0xf]
      %v887 = vld [vmem:[%s2 + $0x64] sm:$0xf]
      %v888 = vld [vmem:[%s2 + $0x68] sm:$0xf]
      %v889 = vld [vmem:[%s2 + $0x6c] sm:$0xf]
      %v890 = vld [vmem:[%s2 + $0x70] sm:$0xf]
      %v891 = vld [vmem:[%s2 + $0x74] sm:$0xf]
      %v892 = vld [vmem:[%s2 + $0x78] sm:$0xf]
      %v893 = vld [vmem:[%s2 + $0x7c] sm:$0xf]
      %v894 = vld [vmem:[%s2 + $0x80] sm:$0xf]
      %v895 = vld [vmem:[%s2 + $0x84] sm:$0xf]
      %v896 = vld [vmem:[%s2 + $0x88] sm:$0xf]
      %v897 = vld [vmem:[%s2 + $0x8c] sm:$0xf]
      %v898 = vld [vmem:[%s2 + $0x90] sm:$0xf]
      %v899 = vld [vmem:[%s2 + $0x94] sm:$0xf]
      %v900 = vld [vmem:[%s2 + $0x98] sm:$0xf]
      %v901 = vld [vmem:[%s2 + $0x9c] sm:$0xf]
      %v902 = vld [vmem:[%s2 + $0xa0] sm:$0xf]
      %v903 = vld [vmem:[%s2 + $0xa4] sm:$0xf]
      %v904 = vld [vmem:[%s2 + $0xa8] sm:$0xf]
      %v905 = vld [vmem:[%s2 + $0xac] sm:$0xf]
      %v906 = vld [vmem:[%s2 + $0xb0] sm:$0xf]
      %v907 = vld [vmem:[%s2 + $0xb4] sm:$0xf]
      %v908 = vld [vmem:[%s2 + $0xb8] sm:$0xf]
      %v909 = vld [vmem:[%s2 + $0xbc] sm:$0xf]
      %v910 = vld [vmem:[#allocation3 + $0xd8] sm:$0xff]
      %v911 = vld [vmem:[#allocation3 + $0xe0] sm:$0xf]
      %v912 = vld [vmem:[#allocation3 + $0xe4] sm:$0xff]
      %v913 = vld [vmem:[#allocation3 + $0xec] sm:$0xf]
      %s914 = scalar_lea.vmem %s2, 192
      %v915 = vld [vmem:[%s914] sm:$0xf]
      %v916 = vld [vmem:[%s914 + $0x4] sm:$0xf]
      %v917 = vld [vmem:[%s914 + $0x8] sm:$0xf]
      %v918 = vld [vmem:[%s914 + $0xc] sm:$0xf]
      %v919 = vld [vmem:[%s914 + $0x10] sm:$0xf]
      %v920 = vld [vmem:[%s914 + $0x14] sm:$0xf]
      %v921 = vld [vmem:[%s914 + $0x18] sm:$0xf]
      %v922 = vld [vmem:[%s914 + $0x1c] sm:$0xf]
      %v923 = vld [vmem:[%s914 + $0x20] sm:$0xf]
      %v924 = vld [vmem:[%s914 + $0x24] sm:$0xf]
      %v925 = vld [vmem:[%s914 + $0x28] sm:$0xf]
      %v926 = vld [vmem:[%s914 + $0x2c] sm:$0xf]
      %v927 = vld [vmem:[%s914 + $0x30] sm:$0xf]
      %v928 = vld [vmem:[%s914 + $0x34] sm:$0xf]
      %v929 = vld [vmem:[%s914 + $0x38] sm:$0xf]
      %v930 = vld [vmem:[%s914 + $0x3c] sm:$0xf]
      %v931 = vld [vmem:[%s914 + $0x40] sm:$0xf]
      %v932 = vld [vmem:[%s914 + $0x44] sm:$0xf]
      %v933 = vld [vmem:[%s914 + $0x48] sm:$0xf]
      %v934 = vld [vmem:[%s914 + $0x4c] sm:$0xf]
      %v935 = vld [vmem:[%s914 + $0x50] sm:$0xf]
      %v936 = vld [vmem:[%s914 + $0x54] sm:$0xf]
      %v937 = vld [vmem:[%s914 + $0x58] sm:$0xf]
      %v938 = vld [vmem:[%s914 + $0x5c] sm:$0xf]
      %v939 = vld [vmem:[%s914 + $0x60] sm:$0xf]
      %v940 = vld [vmem:[%s914 + $0x64] sm:$0xf]
      %v941 = vld [vmem:[%s914 + $0x68] sm:$0xf]
      %v942 = vld [vmem:[%s914 + $0x6c] sm:$0xf]
      %v943 = vld [vmem:[%s914 + $0x70] sm:$0xf]
      %v944 = vld [vmem:[%s914 + $0x74] sm:$0xf]
      %v945 = vld [vmem:[%s914 + $0x78] sm:$0xf]
      %v946 = vld [vmem:[%s914 + $0x7c] sm:$0xf]
      %v947 = vld [vmem:[%s914 + $0x80] sm:$0xf]
      %v948 = vld [vmem:[%s914 + $0x84] sm:$0xf]
      %v949 = vld [vmem:[%s914 + $0x88] sm:$0xf]
      %v950 = vld [vmem:[%s914 + $0x8c] sm:$0xf]
      %v951 = vld [vmem:[%s914 + $0x90] sm:$0xf]
      %v952 = vld [vmem:[%s914 + $0x94] sm:$0xf]
      %v953 = vld [vmem:[%s914 + $0x98] sm:$0xf]
      %v954 = vld [vmem:[%s914 + $0x9c] sm:$0xf]
      %v955 = vld [vmem:[%s914 + $0xa0] sm:$0xf]
      %v956 = vld [vmem:[%s914 + $0xa4] sm:$0xf]
      %v957 = vld [vmem:[%s914 + $0xa8] sm:$0xf]
      %v958 = vld [vmem:[%s914 + $0xac] sm:$0xf]
      %v959 = vld [vmem:[%s914 + $0xb0] sm:$0xf]
      %v960 = vld [vmem:[%s914 + $0xb4] sm:$0xf]
      %v961 = vld [vmem:[%s914 + $0xb8] sm:$0xf]
      %v962 = vld [vmem:[%s914 + $0xbc] sm:$0xf]
      %v999 = vunpack.c.l.b16 %v830
      %v1000 = vunpack.c.h.b16 %v830
      %v1001 = vunpack.c.l.b16 %v831
      %v1002 = vunpack.c.l.b16 %v832
      %v1003 = vunpack.c.h.b16 %v832
      %v1004 = vunpack.c.l.b16 %v833
      %v1005 = vunpack.c.l.b16 %v834
      %v1006 = vunpack.c.h.b16 %v834
      %v1007 = vunpack.c.l.b16 %v835
      %v1008 = vunpack.c.l.b16 %v836
      %v1009 = vunpack.c.h.b16 %v836
      %v1010 = vunpack.c.l.b16 %v837
      %v1011 = vunpack.c.l.b16 %v838
      %v1012 = vunpack.c.h.b16 %v838
      %v1013 = vunpack.c.l.b16 %v839
      %v1014 = vunpack.c.l.b16 %v840
      %v1015 = vunpack.c.h.b16 %v840
      %v1016 = vunpack.c.l.b16 %v841
      %v1017 = vunpack.c.l.b16 %v842
      %v1018 = vunpack.c.h.b16 %v842
      %v1019 = vunpack.c.l.b16 %v843
      %v1020 = vunpack.c.l.b16 %v844
      %v1021 = vunpack.c.h.b16 %v844
      %v1022 = vunpack.c.l.b16 %v845
      %v1023 = vunpack.c.l.b16 %v846
      %v1024 = vunpack.c.h.b16 %v846
      %v1025 = vunpack.c.l.b16 %v847
      %v1026 = vunpack.c.l.b16 %v848
      %v1027 = vunpack.c.h.b16 %v848
      %v1028 = vunpack.c.l.b16 %v849
      %v1029 = vunpack.c.l.b16 %v850
      %v1030 = vunpack.c.h.b16 %v850
      %v1031 = vunpack.c.l.b16 %v851
      %v1032 = vunpack.c.l.b16 %v852
      %v1033 = vunpack.c.h.b16 %v852
      %v1034 = vunpack.c.l.b16 %v853
      %v1035 = vunpack.c.l.b16 %v854
      %v1036 = vunpack.c.h.b16 %v854
      %v1037 = vunpack.c.l.b16 %v855
      %v1038 = vunpack.c.l.b16 %v856
      %v1039 = vunpack.c.h.b16 %v856
      %v1040 = vunpack.c.l.b16 %v857
      %v1041 = vunpack.c.l.b16 %v858
      %v1042 = vunpack.c.h.b16 %v858
      %v1043 = vunpack.c.l.b16 %v859
      %v1044 = vunpack.c.l.b16 %v860
      %v1045 = vunpack.c.h.b16 %v860
      %v1046 = vunpack.c.l.b16 %v861
      %v1047 = vunpack.c.l.b16 %v910
      %v1048 = vunpack.c.h.b16 %v910
      %v1049 = vunpack.c.l.b16 %v911
      %v1050 = vunpack.c.l.b16 %v912
      %v1051 = vunpack.c.h.b16 %v912
      %v1052 = vunpack.c.l.b16 %v913
      %v1053 = vpack.c.b16 %v1002, %v999
      %v1054 = vpack.c.b16 %v1003, %v1000
      %v1055 = vpack.c.b16 %v1004, %v1001
      %v1056 = vpack.c.b16 %v1008, %v1005
      %v1057 = vpack.c.b16 %v1009, %v1006
      %v1058 = vpack.c.b16 %v1010, %v1007
      %v1059 = vpack.c.b16 %v1014, %v1011
      %v1060 = vpack.c.b16 %v1015, %v1012
      %v1061 = vpack.c.b16 %v1016, %v1013
      %v1062 = vpack.c.b16 %v1020, %v1017
      %v1063 = vpack.c.b16 %v1021, %v1018
      %v1064 = vpack.c.b16 %v1022, %v1019
      %v1065 = vpack.c.b16 %v1026, %v1023
      %v1066 = vpack.c.b16 %v1027, %v1024
      %v1067 = vpack.c.b16 %v1028, %v1025
      %v1068 = vpack.c.b16 %v1032, %v1029
      %v1069 = vpack.c.b16 %v1033, %v1030
      %v1070 = vpack.c.b16 %v1034, %v1031
      %v1071 = vpack.c.b16 %v1038, %v1035
      %v1072 = vpack.c.b16 %v1039, %v1036
      %v1073 = vpack.c.b16 %v1040, %v1037
      %v1074 = vpack.c.b16 %v1044, %v1041
      %v1075 = vpack.c.b16 %v1045, %v1042
      %v1076 = vpack.c.b16 %v1046, %v1043
      %v1077 = vpack.c.b16 %v1050, %v1047
      %v1078 = vpack.c.b16 %v1051, %v1048
      %v1079 = vpack.c.b16 %v1052, %v1049
      %v1155 = vunpack.c.l.b16 %v915
      %v1156 = vunpack.c.l.b16 %v916
      %v1157 = vunpack.c.l.b16 %v917
      %v1158 = vunpack.c.l.b16 %v918
      %v1159 = vunpack.c.l.b16 %v919
      %v1160 = vunpack.c.l.b16 %v920
      %v1161 = vunpack.c.l.b16 %v921
      %v1162 = vunpack.c.l.b16 %v922
      %v1163 = vunpack.c.l.b16 %v923
      %v1164 = vunpack.c.l.b16 %v924
      %v1165 = vunpack.c.l.b16 %v925
      %v1166 = vunpack.c.l.b16 %v926
      %v1167 = vunpack.c.l.b16 %v927
      %v1168 = vunpack.c.l.b16 %v928
      %v1169 = vunpack.c.l.b16 %v929
      %v1170 = vunpack.c.l.b16 %v930
      %v1171 = vunpack.c.l.b16 %v931
      %v1172 = vunpack.c.l.b16 %v932
      %v1173 = vunpack.c.l.b16 %v933
      %v1174 = vunpack.c.l.b16 %v934
      %v1175 = vunpack.c.l.b16 %v935
      %v1176 = vunpack.c.l.b16 %v936
      %v1177 = vunpack.c.l.b16 %v937
      %v1178 = vunpack.c.l.b16 %v938
      %v1179 = vunpack.c.l.b16 %v939
      %v1180 = vunpack.c.l.b16 %v940
      %v1181 = vunpack.c.l.b16 %v941
      %v1182 = vunpack.c.l.b16 %v942
      %v1183 = vunpack.c.l.b16 %v943
      %v1184 = vunpack.c.l.b16 %v944
      %v1185 = vunpack.c.l.b16 %v945
      %v1186 = vunpack.c.l.b16 %v946
      %v1187 = vunpack.c.l.b16 %v947
      %v1188 = vunpack.c.l.b16 %v948
      %v1189 = vunpack.c.l.b16 %v949
      %v1190 = vunpack.c.l.b16 %v950
      %v1191 = vunpack.c.l.b16 %v951
      %v1192 = vunpack.c.l.b16 %v952
      %v1193 = vunpack.c.l.b16 %v953
      %v1194 = vunpack.c.l.b16 %v954
      %v1195 = vunpack.c.l.b16 %v955
      %v1196 = vunpack.c.l.b16 %v956
      %v1197 = vunpack.c.l.b16 %v957
      %v1198 = vunpack.c.l.b16 %v958
      %v1199 = vunpack.c.l.b16 %v959
      %v1200 = vunpack.c.l.b16 %v960
      %v1201 = vunpack.c.l.b16 %v961
      %v1202 = vunpack.c.l.b16 %v962
      %v1203 = vpack.c.b16 %v1156, %v1155
      %v1204 = vpack.c.b16 %v1158, %v1157
      %v1205 = vpack.c.b16 %v1160, %v1159
      %v1206 = vpack.c.b16 %v1162, %v1161
      %v1207 = vpack.c.b16 %v1164, %v1163
      %v1208 = vpack.c.b16 %v1166, %v1165
      %v1209 = vpack.c.b16 %v1168, %v1167
      %v1210 = vpack.c.b16 %v1170, %v1169
      %v1211 = vpack.c.b16 %v1172, %v1171
      %v1212 = vpack.c.b16 %v1174, %v1173
      %v1213 = vpack.c.b16 %v1176, %v1175
      %v1214 = vpack.c.b16 %v1178, %v1177
      %v1215 = vpack.c.b16 %v1180, %v1179
      %v1216 = vpack.c.b16 %v1182, %v1181
      %v1217 = vpack.c.b16 %v1184, %v1183
      %v1218 = vpack.c.b16 %v1186, %v1185
      %v1219 = vpack.c.b16 %v1188, %v1187
      %v1220 = vpack.c.b16 %v1190, %v1189
      %v1221 = vpack.c.b16 %v1192, %v1191
      %v1222 = vpack.c.b16 %v1194, %v1193
      %v1223 = vpack.c.b16 %v1196, %v1195
      %v1224 = vpack.c.b16 %v1198, %v1197
      %v1225 = vpack.c.b16 %v1200, %v1199
      %v1226 = vpack.c.b16 %v1202, %v1201
      %1251 = vmatpush.bf16.msra.mxu0 %v1210
      %1252 = vmatpush.bf16.msra.mxu0 %v1209
      %1253 = vmatpush.bf16.msra.mxu0 %v1208
      %1254 = vmatpush.bf16.msra.mxu0 %v1207
      %1255 = vmatpush.bf16.msra.mxu0 %v1206
      %1256 = vmatpush.bf16.msra.mxu0 %v1205
      %1257 = vmatpush.bf16.msra.mxu0 %v1204
      %1258 = vmatpush.bf16.msra.mxu0 %v1203
      %1259 = vmatmul.bf16.gmra.mxu0 %v1053
      %v1260 = vpop.f32.mrf.mxu0
      %v1261 = vadd.f32 0.0, %v1260
      %v1262 = vpop.f32.mrf.mxu0
      %v1263 = vadd.f32 0.0, %v1262
      %1264 = vmatmul.bf16.gmra.mxu0 %v1056
      %v1265 = vpop.f32.mrf.mxu0
      %v1266 = vadd.f32 0.0, %v1265
      %v1267 = vpop.f32.mrf.mxu0
      %v1268 = vadd.f32 0.0, %v1267
      %1269 = vmatmul.bf16.gmra.mxu0 %v1059
      %v1270 = vpop.f32.mrf.mxu0
      %v1271 = vadd.f32 0.0, %v1270
      %v1272 = vpop.f32.mrf.mxu0
      %v1273 = vadd.f32 0.0, %v1272
      %1274 = vmatmul.bf16.gmra.mxu0 %v1062
      %v1275 = vpop.f32.mrf.mxu0
      %v1276 = vadd.f32 0.0, %v1275
      %v1277 = vpop.f32.mrf.mxu0
      %v1278 = vadd.f32 0.0, %v1277
      %1279 = vmatmul.bf16.gmra.mxu0 %v1065
      %v1280 = vpop.f32.mrf.mxu0
      %v1281 = vadd.f32 0.0, %v1280
      %v1282 = vpop.f32.mrf.mxu0
      %v1283 = vadd.f32 0.0, %v1282
      %1284 = vmatmul.bf16.gmra.mxu0 %v1068
      %v1285 = vpop.f32.mrf.mxu0
      %v1286 = vadd.f32 0.0, %v1285
      %v1287 = vpop.f32.mrf.mxu0
      %v1288 = vadd.f32 0.0, %v1287
      %1289 = vmatmul.bf16.gmra.mxu0 %v1071
      %v1290 = vpop.f32.mrf.mxu0
      %v1291 = vadd.f32 0.0, %v1290
      %v1292 = vpop.f32.mrf.mxu0
      %v1293 = vadd.f32 0.0, %v1292
      %1294 = vmatmul.bf16.gmra.mxu0 %v1074
      %v1295 = vpop.f32.mrf.mxu0
      %v1296 = vadd.f32 0.0, %v1295
      %v1297 = vpop.f32.mrf.mxu0
      %v1298 = vadd.f32 0.0, %v1297
      %1299 = vmatmul.bf16.gmra.mxu0 %v1077
      %v1300 = vpop.f32.mrf.mxu0
      %v1301 = vadd.f32 0.0, %v1300
      %v1302 = vpop.f32.mrf.mxu0
      %v1303 = vadd.f32 0.0, %v1302
      %1304 = vdwg.mxu0
      %1305 = vmatpush.bf16.msra.mxu0 %v1218
      %1306 = vmatpush.bf16.msra.mxu0 %v1217
      %1307 = vmatpush.bf16.msra.mxu0 %v1216
      %1308 = vmatpush.bf16.msra.mxu0 %v1215
      %1309 = vmatpush.bf16.msra.mxu0 %v1214
      %1310 = vmatpush.bf16.msra.mxu0 %v1213
      %1311 = vmatpush.bf16.msra.mxu0 %v1212
      %1312 = vmatpush.bf16.msra.mxu0 %v1211
      %1313 = vmatmul.bf16.gmra.mxu0 %v1054
      %v1314 = vpop.f32.mrf.mxu0
      %v1315 = vadd.f32 %v1261, %v1314
      %v1316 = vpop.f32.mrf.mxu0
      %v1317 = vadd.f32 %v1263, %v1316
      %1318 = vmatmul.bf16.gmra.mxu0 %v1057
      %v1319 = vpop.f32.mrf.mxu0
      %v1320 = vadd.f32 %v1266, %v1319
      %v1321 = vpop.f32.mrf.mxu0
      %v1322 = vadd.f32 %v1268, %v1321
      %1323 = vmatmul.bf16.gmra.mxu0 %v1060
      %v1324 = vpop.f32.mrf.mxu0
      %v1325 = vadd.f32 %v1271, %v1324
      %v1326 = vpop.f32.mrf.mxu0
      %v1327 = vadd.f32 %v1273, %v1326
      %1328 = vmatmul.bf16.gmra.mxu0 %v1063
      %v1329 = vpop.f32.mrf.mxu0
      %v1330 = vadd.f32 %v1276, %v1329
      %v1331 = vpop.f32.mrf.mxu0
      %v1332 = vadd.f32 %v1278, %v1331
      %1333 = vmatmul.bf16.gmra.mxu0 %v1066
      %v1334 = vpop.f32.mrf.mxu0
      %v1335 = vadd.f32 %v1281, %v1334
      %v1336 = vpop.f32.mrf.mxu0
      %v1337 = vadd.f32 %v1283, %v1336
      %1338 = vmatmul.bf16.gmra.mxu0 %v1069
      %v1339 = vpop.f32.mrf.mxu0
      %v1340 = vadd.f32 %v1286, %v1339
      %v1341 = vpop.f32.mrf.mxu0
      %v1342 = vadd.f32 %v1288, %v1341
      %1343 = vmatmul.bf16.gmra.mxu0 %v1072
      %v1344 = vpop.f32.mrf.mxu0
      %v1345 = vadd.f32 %v1291, %v1344
      %v1346 = vpop.f32.mrf.mxu0
      %v1347 = vadd.f32 %v1293, %v1346
      %1348 = vmatmul.bf16.gmra.mxu0 %v1075
      %v1349 = vpop.f32.mrf.mxu0
      %v1350 = vadd.f32 %v1296, %v1349
      %v1351 = vpop.f32.mrf.mxu0
      %v1352 = vadd.f32 %v1298, %v1351
      %1353 = vmatmul.bf16.gmra.mxu0 %v1078
      %v1354 = vpop.f32.mrf.mxu0
      %v1355 = vadd.f32 %v1301, %v1354
      %v1356 = vpop.f32.mrf.mxu0
      %v1357 = vadd.f32 %v1303, %v1356
      %1358 = vdwg.mxu0
      %1359 = vmatpush.bf16.msra.mxu0 %v1226
      %1360 = vmatpush.bf16.msra.mxu0 %v1225
      %1361 = vmatpush.bf16.msra.mxu0 %v1224
      %1362 = vmatpush.bf16.msra.mxu0 %v1223
      %1363 = vmatpush.bf16.msra.mxu0 %v1222
      %1364 = vmatpush.bf16.msra.mxu0 %v1221
      %1365 = vmatpush.bf16.msra.mxu0 %v1220
      %1366 = vmatpush.bf16.msra.mxu0 %v1219
      %1367 = vmatmul.bf16.gmra.mxu0 %v1055
      %v1368 = vpop.f32.mrf.mxu0
      %v1369 = vadd.f32 %v1315, %v1368
      %v1370 = vpop.f32.mrf.mxu0
      %v1371 = vadd.f32 %v1317, %v1370
      %1372 = vmatmul.bf16.gmra.mxu0 %v1058
      %v1373 = vpop.f32.mrf.mxu0
      %v1374 = vadd.f32 %v1320, %v1373
      %v1375 = vpop.f32.mrf.mxu0
      %v1376 = vadd.f32 %v1322, %v1375
      %1377 = vmatmul.bf16.gmra.mxu0 %v1061
      %v1378 = vpop.f32.mrf.mxu0
      %v1379 = vadd.f32 %v1325, %v1378
      %v1380 = vpop.f32.mrf.mxu0
      %v1381 = vadd.f32 %v1327, %v1380
      %1382 = vmatmul.bf16.gmra.mxu0 %v1064
      %v1383 = vpop.f32.mrf.mxu0
      %v1384 = vadd.f32 %v1330, %v1383
      %v1385 = vpop.f32.mrf.mxu0
      %v1386 = vadd.f32 %v1332, %v1385
      %1387 = vmatmul.bf16.gmra.mxu0 %v1067
      %v1388 = vpop.f32.mrf.mxu0
      %v1389 = vadd.f32 %v1335, %v1388
      %v1390 = vpop.f32.mrf.mxu0
      %v1391 = vadd.f32 %v1337, %v1390
      %1392 = vmatmul.bf16.gmra.mxu0 %v1070
      %v1393 = vpop.f32.mrf.mxu0
      %v1394 = vadd.f32 %v1340, %v1393
      %v1395 = vpop.f32.mrf.mxu0
      %v1396 = vadd.f32 %v1342, %v1395
      %1397 = vmatmul.bf16.gmra.mxu0 %v1073
      %v1398 = vpop.f32.mrf.mxu0
      %v1399 = vadd.f32 %v1345, %v1398
      %v1400 = vpop.f32.mrf.mxu0
      %v1401 = vadd.f32 %v1347, %v1400
      %1402 = vmatmul.bf16.gmra.mxu0 %v1076
      %v1403 = vpop.f32.mrf.mxu0
      %v1404 = vadd.f32 %v1350, %v1403
      %v1405 = vpop.f32.mrf.mxu0
      %v1406 = vadd.f32 %v1352, %v1405
      %1407 = vmatmul.bf16.gmra.mxu0 %v1079
      %v1408 = vpop.f32.mrf.mxu0
      %v1409 = vadd.f32 %v1355, %v1408
      %v1410 = vpop.f32.mrf.mxu0
      %v1411 = vadd.f32 %v1357, %v1410
      %1412 = vdwg.mxu0
      %v1417 = vunpack.c.l.b16 %v826
      %v1418 = vunpack.c.h.b16 %v826
      %v1419 = vunpack.c.l.b16 %v827
      %v1420 = vunpack.c.l.b16 %v828
      %v1421 = vunpack.c.h.b16 %v828
      %v1422 = vunpack.c.l.b16 %v829
      %v1423 = vpack.c.b16 %v1420, %v1417
      %v1424 = vpack.c.b16 %v1421, %v1418
      %v1425 = vpack.c.b16 %v1422, %v1419
      %v1477 = vunpack.c.l.b16 %v862
      %v1478 = vunpack.c.l.b16 %v863
      %v1479 = vunpack.c.l.b16 %v864
      %v1480 = vunpack.c.l.b16 %v865
      %v1481 = vunpack.c.l.b16 %v866
      %v1482 = vunpack.c.l.b16 %v867
      %v1483 = vunpack.c.l.b16 %v868
      %v1484 = vunpack.c.l.b16 %v869
      %v1485 = vunpack.c.l.b16 %v870
      %v1486 = vunpack.c.l.b16 %v871
      %v1487 = vunpack.c.l.b16 %v872
      %v1488 = vunpack.c.l.b16 %v873
      %v1489 = vunpack.c.l.b16 %v874
      %v1490 = vunpack.c.l.b16 %v875
      %v1491 = vunpack.c.l.b16 %v876
      %v1492 = vunpack.c.l.b16 %v877
      %v1493 = vunpack.c.l.b16 %v878
      %v1494 = vunpack.c.l.b16 %v879
      %v1495 = vunpack.c.l.b16 %v880
      %v1496 = vunpack.c.l.b16 %v881
      %v1497 = vunpack.c.l.b16 %v882
      %v1498 = vunpack.c.l.b16 %v883
      %v1499 = vunpack.c.l.b16 %v884
      %v1500 = vunpack.c.l.b16 %v885
      %v1501 = vunpack.c.l.b16 %v886
      %v1502 = vunpack.c.l.b16 %v887
      %v1503 = vunpack.c.l.b16 %v888
      %v1504 = vunpack.c.l.b16 %v889
      %v1505 = vunpack.c.l.b16 %v890
      %v1506 = vunpack.c.l.b16 %v891
      %v1507 = vunpack.c.l.b16 %v892
      %v1508 = vunpack.c.l.b16 %v893
      %v1509 = vunpack.c.l.b16 %v894
      %v1510 = vunpack.c.l.b16 %v895
      %v1511 = vunpack.c.l.b16 %v896
      %v1512 = vunpack.c.l.b16 %v897
      %v1513 = vunpack.c.l.b16 %v898
      %v1514 = vunpack.c.l.b16 %v899
      %v1515 = vunpack.c.l.b16 %v900
      %v1516 = vunpack.c.l.b16 %v901
      %v1517 = vunpack.c.l.b16 %v902
      %v1518 = vunpack.c.l.b16 %v903
      %v1519 = vunpack.c.l.b16 %v904
      %v1520 = vunpack.c.l.b16 %v905
      %v1521 = vunpack.c.l.b16 %v906
      %v1522 = vunpack.c.l.b16 %v907
      %v1523 = vunpack.c.l.b16 %v908
      %v1524 = vunpack.c.l.b16 %v909
      %v1525 = vpack.c.b16 %v1478, %v1477
      %v1526 = vpack.c.b16 %v1480, %v1479
      %v1527 = vpack.c.b16 %v1482, %v1481
      %v1528 = vpack.c.b16 %v1484, %v1483
      %v1529 = vpack.c.b16 %v1486, %v1485
      %v1530 = vpack.c.b16 %v1488, %v1487
      %v1531 = vpack.c.b16 %v1490, %v1489
      %v1532 = vpack.c.b16 %v1492, %v1491
      %v1533 = vpack.c.b16 %v1494, %v1493
      %v1534 = vpack.c.b16 %v1496, %v1495
      %v1535 = vpack.c.b16 %v1498, %v1497
      %v1536 = vpack.c.b16 %v1500, %v1499
      %v1537 = vpack.c.b16 %v1502, %v1501
      %v1538 = vpack.c.b16 %v1504, %v1503
      %v1539 = vpack.c.b16 %v1506, %v1505
      %v1540 = vpack.c.b16 %v1508, %v1507
      %v1541 = vpack.c.b16 %v1510, %v1509
      %v1542 = vpack.c.b16 %v1512, %v1511
      %v1543 = vpack.c.b16 %v1514, %v1513
      %v1544 = vpack.c.b16 %v1516, %v1515
      %v1545 = vpack.c.b16 %v1518, %v1517
      %v1546 = vpack.c.b16 %v1520, %v1519
      %v1547 = vpack.c.b16 %v1522, %v1521
      %v1548 = vpack.c.b16 %v1524, %v1523
      %1573 = vmatpush.bf16.msra.mxu0 %v1532
      %1574 = vmatpush.bf16.msra.mxu0 %v1531
      %1575 = vmatpush.bf16.msra.mxu0 %v1530
      %1576 = vmatpush.bf16.msra.mxu0 %v1529
      %1577 = vmatpush.bf16.msra.mxu0 %v1528
      %1578 = vmatpush.bf16.msra.mxu0 %v1527
      %1579 = vmatpush.bf16.msra.mxu0 %v1526
      %1580 = vmatpush.bf16.msra.mxu0 %v1525
      %1581 = vmatmul.bf16.gmra.mxu0 %v1423
      %v1582 = vpop.f32.mrf.mxu0
      %v1583 = vadd.f32 %v1369, %v1582
      %v1584 = vpop.f32.mrf.mxu0
      %v1585 = vadd.f32 %v1371, %v1584
      %1586 = vmatmul.bf16.gmra.mxu0 %v1053
      %v1587 = vpop.f32.mrf.mxu0
      %v1588 = vadd.f32 %v1374, %v1587
      %v1589 = vpop.f32.mrf.mxu0
      %v1590 = vadd.f32 %v1376, %v1589
      %1591 = vmatmul.bf16.gmra.mxu0 %v1056
      %v1592 = vpop.f32.mrf.mxu0
      %v1593 = vadd.f32 %v1379, %v1592
      %v1594 = vpop.f32.mrf.mxu0
      %v1595 = vadd.f32 %v1381, %v1594
      %1596 = vmatmul.bf16.gmra.mxu0 %v1059
      %v1597 = vpop.f32.mrf.mxu0
      %v1598 = vadd.f32 %v1384, %v1597
      %v1599 = vpop.f32.mrf.mxu0
      %v1600 = vadd.f32 %v1386, %v1599
      %1601 = vmatmul.bf16.gmra.mxu0 %v1062
      %v1602 = vpop.f32.mrf.mxu0
      %v1603 = vadd.f32 %v1389, %v1602
      %v1604 = vpop.f32.mrf.mxu0
      %v1605 = vadd.f32 %v1391, %v1604
      %1606 = vmatmul.bf16.gmra.mxu0 %v1065
      %v1607 = vpop.f32.mrf.mxu0
      %v1608 = vadd.f32 %v1394, %v1607
      %v1609 = vpop.f32.mrf.mxu0
      %v1610 = vadd.f32 %v1396, %v1609
      %1611 = vmatmul.bf16.gmra.mxu0 %v1068
      %v1612 = vpop.f32.mrf.mxu0
      %v1613 = vadd.f32 %v1399, %v1612
      %v1614 = vpop.f32.mrf.mxu0
      %v1615 = vadd.f32 %v1401, %v1614
      %1616 = vmatmul.bf16.gmra.mxu0 %v1071
      %v1617 = vpop.f32.mrf.mxu0
      %v1618 = vadd.f32 %v1404, %v1617
      %v1619 = vpop.f32.mrf.mxu0
      %v1620 = vadd.f32 %v1406, %v1619
      %1621 = vmatmul.bf16.gmra.mxu0 %v1074
      %v1622 = vpop.f32.mrf.mxu0
      %v1623 = vadd.f32 %v1409, %v1622
      %v1624 = vpop.f32.mrf.mxu0
      %v1625 = vadd.f32 %v1411, %v1624
      %1626 = vdwg.mxu0
      %1627 = vmatpush.bf16.msra.mxu0 %v1540
      %1628 = vmatpush.bf16.msra.mxu0 %v1539
      %1629 = vmatpush.bf16.msra.mxu0 %v1538
      %1630 = vmatpush.bf16.msra.mxu0 %v1537
      %1631 = vmatpush.bf16.msra.mxu0 %v1536
      %1632 = vmatpush.bf16.msra.mxu0 %v1535
      %1633 = vmatpush.bf16.msra.mxu0 %v1534
      %1634 = vmatpush.bf16.msra.mxu0 %v1533
      %1635 = vmatmul.bf16.gmra.mxu0 %v1424
      %v1636 = vpop.f32.mrf.mxu0
      %v1637 = vadd.f32 %v1583, %v1636
      %v1638 = vpop.f32.mrf.mxu0
      %v1639 = vadd.f32 %v1585, %v1638
      %1640 = vmatmul.bf16.gmra.mxu0 %v1054
      %v1641 = vpop.f32.mrf.mxu0
      %v1642 = vadd.f32 %v1588, %v1641
      %v1643 = vpop.f32.mrf.mxu0
      %v1644 = vadd.f32 %v1590, %v1643
      %1645 = vmatmul.bf16.gmra.mxu0 %v1057
      %v1646 = vpop.f32.mrf.mxu0
      %v1647 = vadd.f32 %v1593, %v1646
      %v1648 = vpop.f32.mrf.mxu0
      %v1649 = vadd.f32 %v1595, %v1648
      %1650 = vmatmul.bf16.gmra.mxu0 %v1060
      %v1651 = vpop.f32.mrf.mxu0
      %v1652 = vadd.f32 %v1598, %v1651
      %v1653 = vpop.f32.mrf.mxu0
      %v1654 = vadd.f32 %v1600, %v1653
      %1655 = vmatmul.bf16.gmra.mxu0 %v1063
      %v1656 = vpop.f32.mrf.mxu0
      %v1657 = vadd.f32 %v1603, %v1656
      %v1658 = vpop.f32.mrf.mxu0
      %v1659 = vadd.f32 %v1605, %v1658
      %1660 = vmatmul.bf16.gmra.mxu0 %v1066
      %v1661 = vpop.f32.mrf.mxu0
      %v1662 = vadd.f32 %v1608, %v1661
      %v1663 = vpop.f32.mrf.mxu0
      %v1664 = vadd.f32 %v1610, %v1663
      %1665 = vmatmul.bf16.gmra.mxu0 %v1069
      %v1666 = vpop.f32.mrf.mxu0
      %v1667 = vadd.f32 %v1613, %v1666
      %v1668 = vpop.f32.mrf.mxu0
      %v1669 = vadd.f32 %v1615, %v1668
      %1670 = vmatmul.bf16.gmra.mxu0 %v1072
      %v1671 = vpop.f32.mrf.mxu0
      %v1672 = vadd.f32 %v1618, %v1671
      %v1673 = vpop.f32.mrf.mxu0
      %v1674 = vadd.f32 %v1620, %v1673
      %1675 = vmatmul.bf16.gmra.mxu0 %v1075
      %v1676 = vpop.f32.mrf.mxu0
      %v1677 = vadd.f32 %v1623, %v1676
      %v1678 = vpop.f32.mrf.mxu0
      %v1679 = vadd.f32 %v1625, %v1678
      %1680 = vdwg.mxu0
      %1681 = vmatpush.bf16.msra.mxu0 %v1548
      %1682 = vmatpush.bf16.msra.mxu0 %v1547
      %1683 = vmatpush.bf16.msra.mxu0 %v1546
      %1684 = vmatpush.bf16.msra.mxu0 %v1545
      %1685 = vmatpush.bf16.msra.mxu0 %v1544
      %1686 = vmatpush.bf16.msra.mxu0 %v1543
      %1687 = vmatpush.bf16.msra.mxu0 %v1542
      %1688 = vmatpush.bf16.msra.mxu0 %v1541
      %1689 = vmatmul.bf16.gmra.mxu0 %v1425
      %v1690 = vpop.f32.mrf.mxu0
      %v1691 = vadd.f32 %v1637, %v1690
      %v1692 = vpop.f32.mrf.mxu0
      %v1693 = vadd.f32 %v1639, %v1692
      %1694 = vmatmul.bf16.gmra.mxu0 %v1055
      %v1695 = vpop.f32.mrf.mxu0
      %v1696 = vadd.f32 %v1642, %v1695
      %v1697 = vpop.f32.mrf.mxu0
      %v1698 = vadd.f32 %v1644, %v1697
      %1699 = vmatmul.bf16.gmra.mxu0 %v1058
      %v1700 = vpop.f32.mrf.mxu0
      %v1701 = vadd.f32 %v1647, %v1700
      %v1702 = vpop.f32.mrf.mxu0
      %v1703 = vadd.f32 %v1649, %v1702
      %1704 = vmatmul.bf16.gmra.mxu0 %v1061
      %v1705 = vpop.f32.mrf.mxu0
      %v1706 = vadd.f32 %v1652, %v1705
      %v1707 = vpop.f32.mrf.mxu0
      %v1708 = vadd.f32 %v1654, %v1707
      %1709 = vmatmul.bf16.gmra.mxu0 %v1064
      %v1710 = vpop.f32.mrf.mxu0
      %v1711 = vadd.f32 %v1657, %v1710
      %v1712 = vpop.f32.mrf.mxu0
      %v1713 = vadd.f32 %v1659, %v1712
      %1714 = vmatmul.bf16.gmra.mxu0 %v1067
      %v1715 = vpop.f32.mrf.mxu0
      %v1716 = vadd.f32 %v1662, %v1715
      %v1717 = vpop.f32.mrf.mxu0
      %v1718 = vadd.f32 %v1664, %v1717
      %1719 = vmatmul.bf16.gmra.mxu0 %v1070
      %v1720 = vpop.f32.mrf.mxu0
      %v1721 = vadd.f32 %v1667, %v1720
      %v1722 = vpop.f32.mrf.mxu0
      %v1723 = vadd.f32 %v1669, %v1722
      %1724 = vmatmul.bf16.gmra.mxu0 %v1073
      %v1725 = vpop.f32.mrf.mxu0
      %v1726 = vadd.f32 %v1672, %v1725
      %v1727 = vpop.f32.mrf.mxu0
      %v1728 = vadd.f32 %v1674, %v1727
      %1729 = vmatmul.bf16.gmra.mxu0 %v1076
      %v1730 = vpop.f32.mrf.mxu0
      %v1731 = vadd.f32 %v1677, %v1730
      %v1732 = vpop.f32.mrf.mxu0
      %v1733 = vadd.f32 %v1679, %v1732
      %1734 = vdwg.mxu0
      %v1735 = vld [vmem:[#allocation3 + $0x30] sm:$0xff]
      %v1736 = vld [vmem:[#allocation3 + $0x38] sm:$0xf]
      %v1737 = vld [vmem:[#allocation3 + $0x3c] sm:$0xff]
      %v1738 = vld [vmem:[#allocation3 + $0x44] sm:$0xf]
      %v1739 = vld [vmem:[#allocation3 + $0x48] sm:$0xff]
      %v1740 = vld [vmem:[#allocation3 + $0x50] sm:$0xf]
      %v1741 = vld [vmem:[#allocation3 + $0x54] sm:$0xff]
      %v1742 = vld [vmem:[#allocation3 + $0x5c] sm:$0xf]
      %v1743 = vld [vmem:[#allocation3 + $0x60] sm:$0xff]
      %v1744 = vld [vmem:[#allocation3 + $0x68] sm:$0xf]
      %v1745 = vld [vmem:[#allocation3 + $0x6c] sm:$0xff]
      %v1746 = vld [vmem:[#allocation3 + $0x74] sm:$0xf]
      %v1747 = vld [vmem:[#allocation3 + $0x78] sm:$0xff]
      %v1748 = vld [vmem:[#allocation3 + $0x80] sm:$0xf]
      %v1749 = vld [vmem:[#allocation3 + $0x84] sm:$0xff]
      %v1750 = vld [vmem:[#allocation3 + $0x8c] sm:$0xf]
      %v1751 = vld [vmem:[#allocation3 + $0x90] sm:$0xff]
      %v1752 = vld [vmem:[#allocation3 + $0x98] sm:$0xf]
      %v1753 = vld [vmem:[#allocation3 + $0x9c] sm:$0xff]
      %v1754 = vld [vmem:[#allocation3 + $0xa4] sm:$0xf]
      %v1755 = vld [vmem:[#allocation3 + $0xa8] sm:$0xff]
      %v1756 = vld [vmem:[#allocation3 + $0xb0] sm:$0xf]
      %v1757 = vld [vmem:[#allocation3 + $0xb4] sm:$0xff]
      %v1758 = vld [vmem:[#allocation3 + $0xbc] sm:$0xf]
      %v1759 = vld [vmem:[#allocation3 + $0xc0] sm:$0xff]
      %v1760 = vld [vmem:[#allocation3 + $0xc8] sm:$0xf]
      %v1761 = vld [vmem:[#allocation3 + $0xcc] sm:$0xff]
      %v1762 = vld [vmem:[#allocation3 + $0xd4] sm:$0xf]
      %v1763 = vld [vmem:[#allocation3 + $0xd8] sm:$0xff]
      %v1764 = vld [vmem:[#allocation3 + $0xe0] sm:$0xf]
      %v1765 = vld [vmem:[#allocation3 + $0xe4] sm:$0xff]
      %v1766 = vld [vmem:[#allocation3 + $0xec] sm:$0xf]
      %v1767 = vld [vmem:[#allocation3 + $0xf0] sm:$0xff]
      %v1768 = vld [vmem:[#allocation3 + $0xf8] sm:$0xf]
      %v1769 = vld [vmem:[#allocation3 + $0xfc] sm:$0xff]
      %v1770 = vld [vmem:[#allocation3 + $0x104] sm:$0xf]
      %s1771 = scalar_lea.vmem %s2, 384
      %v1772 = vld [vmem:[%s1771] sm:$0xf]
      %v1773 = vld [vmem:[%s1771 + $0x4] sm:$0xf]
      %v1774 = vld [vmem:[%s1771 + $0x8] sm:$0xf]
      %v1775 = vld [vmem:[%s1771 + $0xc] sm:$0xf]
      %v1776 = vld [vmem:[%s1771 + $0x10] sm:$0xf]
      %v1777 = vld [vmem:[%s1771 + $0x14] sm:$0xf]
      %v1778 = vld [vmem:[%s1771 + $0x18] sm:$0xf]
      %v1779 = vld [vmem:[%s1771 + $0x1c] sm:$0xf]
      %v1780 = vld [vmem:[%s1771 + $0x20] sm:$0xf]
      %v1781 = vld [vmem:[%s1771 + $0x24] sm:$0xf]
      %v1782 = vld [vmem:[%s1771 + $0x28] sm:$0xf]
      %v1783 = vld [vmem:[%s1771 + $0x2c] sm:$0xf]
      %v1784 = vld [vmem:[%s1771 + $0x30] sm:$0xf]
      %v1785 = vld [vmem:[%s1771 + $0x34] sm:$0xf]
      %v1786 = vld [vmem:[%s1771 + $0x38] sm:$0xf]
      %v1787 = vld [vmem:[%s1771 + $0x3c] sm:$0xf]
      %v1788 = vld [vmem:[%s1771 + $0x40] sm:$0xf]
      %v1789 = vld [vmem:[%s1771 + $0x44] sm:$0xf]
      %v1790 = vld [vmem:[%s1771 + $0x48] sm:$0xf]
      %v1791 = vld [vmem:[%s1771 + $0x4c] sm:$0xf]
      %v1792 = vld [vmem:[%s1771 + $0x50] sm:$0xf]
      %v1793 = vld [vmem:[%s1771 + $0x54] sm:$0xf]
      %v1794 = vld [vmem:[%s1771 + $0x58] sm:$0xf]
      %v1795 = vld [vmem:[%s1771 + $0x5c] sm:$0xf]
      %v1796 = vld [vmem:[%s1771 + $0x60] sm:$0xf]
      %v1797 = vld [vmem:[%s1771 + $0x64] sm:$0xf]
      %v1798 = vld [vmem:[%s1771 + $0x68] sm:$0xf]
      %v1799 = vld [vmem:[%s1771 + $0x6c] sm:$0xf]
      %v1800 = vld [vmem:[%s1771 + $0x70] sm:$0xf]
      %v1801 = vld [vmem:[%s1771 + $0x74] sm:$0xf]
      %v1802 = vld [vmem:[%s1771 + $0x78] sm:$0xf]
      %v1803 = vld [vmem:[%s1771 + $0x7c] sm:$0xf]
      %v1804 = vld [vmem:[%s1771 + $0x80] sm:$0xf]
      %v1805 = vld [vmem:[%s1771 + $0x84] sm:$0xf]
      %v1806 = vld [vmem:[%s1771 + $0x88] sm:$0xf]
      %v1807 = vld [vmem:[%s1771 + $0x8c] sm:$0xf]
      %v1808 = vld [vmem:[%s1771 + $0x90] sm:$0xf]
      %v1809 = vld [vmem:[%s1771 + $0x94] sm:$0xf]
      %v1810 = vld [vmem:[%s1771 + $0x98] sm:$0xf]
      %v1811 = vld [vmem:[%s1771 + $0x9c] sm:$0xf]
      %v1812 = vld [vmem:[%s1771 + $0xa0] sm:$0xf]
      %v1813 = vld [vmem:[%s1771 + $0xa4] sm:$0xf]
      %v1814 = vld [vmem:[%s1771 + $0xa8] sm:$0xf]
      %v1815 = vld [vmem:[%s1771 + $0xac] sm:$0xf]
      %v1816 = vld [vmem:[%s1771 + $0xb0] sm:$0xf]
      %v1817 = vld [vmem:[%s1771 + $0xb4] sm:$0xf]
      %v1818 = vld [vmem:[%s1771 + $0xb8] sm:$0xf]
      %v1819 = vld [vmem:[%s1771 + $0xbc] sm:$0xf]
      %v1856 = vunpack.c.l.b16 %v1735
      %v1857 = vunpack.c.h.b16 %v1735
      %v1858 = vunpack.c.l.b16 %v1736
      %v1859 = vunpack.c.l.b16 %v1737
      %v1860 = vunpack.c.h.b16 %v1737
      %v1861 = vunpack.c.l.b16 %v1738
      %v1862 = vunpack.c.l.b16 %v1739
      %v1863 = vunpack.c.h.b16 %v1739
      %v1864 = vunpack.c.l.b16 %v1740
      %v1865 = vunpack.c.l.b16 %v1741
      %v1866 = vunpack.c.h.b16 %v1741
      %v1867 = vunpack.c.l.b16 %v1742
      %v1868 = vunpack.c.l.b16 %v1743
      %v1869 = vunpack.c.h.b16 %v1743
      %v1870 = vunpack.c.l.b16 %v1744
      %v1871 = vunpack.c.l.b16 %v1745
      %v1872 = vunpack.c.h.b16 %v1745
      %v1873 = vunpack.c.l.b16 %v1746
      %v1874 = vunpack.c.l.b16 %v1747
      %v1875 = vunpack.c.h.b16 %v1747
      %v1876 = vunpack.c.l.b16 %v1748
      %v1877 = vunpack.c.l.b16 %v1749
      %v1878 = vunpack.c.h.b16 %v1749
      %v1879 = vunpack.c.l.b16 %v1750
      %v1880 = vunpack.c.l.b16 %v1751
      %v1881 = vunpack.c.h.b16 %v1751
      %v1882 = vunpack.c.l.b16 %v1752
      %v1883 = vunpack.c.l.b16 %v1753
      %v1884 = vunpack.c.h.b16 %v1753
      %v1885 = vunpack.c.l.b16 %v1754
      %v1886 = vunpack.c.l.b16 %v1755
      %v1887 = vunpack.c.h.b16 %v1755
      %v1888 = vunpack.c.l.b16 %v1756
      %v1889 = vunpack.c.l.b16 %v1757
      %v1890 = vunpack.c.h.b16 %v1757
      %v1891 = vunpack.c.l.b16 %v1758
      %v1892 = vunpack.c.l.b16 %v1759
      %v1893 = vunpack.c.h.b16 %v1759
      %v1894 = vunpack.c.l.b16 %v1760
      %v1895 = vunpack.c.l.b16 %v1761
      %v1896 = vunpack.c.h.b16 %v1761
      %v1897 = vunpack.c.l.b16 %v1762
      %v1898 = vunpack.c.l.b16 %v1763
      %v1899 = vunpack.c.h.b16 %v1763
      %v1900 = vunpack.c.l.b16 %v1764
      %v1901 = vunpack.c.l.b16 %v1765
      %v1902 = vunpack.c.h.b16 %v1765
      %v1903 = vunpack.c.l.b16 %v1766
      %v1904 = vunpack.c.l.b16 %v1767
      %v1905 = vunpack.c.h.b16 %v1767
      %v1906 = vunpack.c.l.b16 %v1768
      %v1907 = vunpack.c.l.b16 %v1769
      %v1908 = vunpack.c.h.b16 %v1769
      %v1909 = vunpack.c.l.b16 %v1770
      %v1910 = vpack.c.b16 %v1859, %v1856
      %v1911 = vpack.c.b16 %v1860, %v1857
      %v1912 = vpack.c.b16 %v1861, %v1858
      %v1913 = vpack.c.b16 %v1865, %v1862
      %v1914 = vpack.c.b16 %v1866, %v1863
      %v1915 = vpack.c.b16 %v1867, %v1864
      %v1916 = vpack.c.b16 %v1871, %v1868
      %v1917 = vpack.c.b16 %v1872, %v1869
      %v1918 = vpack.c.b16 %v1873, %v1870
      %v1919 = vpack.c.b16 %v1877, %v1874
      %v1920 = vpack.c.b16 %v1878, %v1875
      %v1921 = vpack.c.b16 %v1879, %v1876
      %v1922 = vpack.c.b16 %v1883, %v1880
      %v1923 = vpack.c.b16 %v1884, %v1881
      %v1924 = vpack.c.b16 %v1885, %v1882
      %v1925 = vpack.c.b16 %v1889, %v1886
      %v1926 = vpack.c.b16 %v1890, %v1887
      %v1927 = vpack.c.b16 %v1891, %v1888
      %v1928 = vpack.c.b16 %v1895, %v1892
      %v1929 = vpack.c.b16 %v1896, %v1893
      %v1930 = vpack.c.b16 %v1897, %v1894
      %v1931 = vpack.c.b16 %v1901, %v1898
      %v1932 = vpack.c.b16 %v1902, %v1899
      %v1933 = vpack.c.b16 %v1903, %v1900
      %v1934 = vpack.c.b16 %v1907, %v1904
      %v1935 = vpack.c.b16 %v1908, %v1905
      %v1936 = vpack.c.b16 %v1909, %v1906
      %v2012 = vunpack.c.l.b16 %v1772
      %v2013 = vunpack.c.l.b16 %v1773
      %v2014 = vunpack.c.l.b16 %v1774
      %v2015 = vunpack.c.l.b16 %v1775
      %v2016 = vunpack.c.l.b16 %v1776
      %v2017 = vunpack.c.l.b16 %v1777
      %v2018 = vunpack.c.l.b16 %v1778
      %v2019 = vunpack.c.l.b16 %v1779
      %v2020 = vunpack.c.l.b16 %v1780
      %v2021 = vunpack.c.l.b16 %v1781
      %v2022 = vunpack.c.l.b16 %v1782
      %v2023 = vunpack.c.l.b16 %v1783
      %v2024 = vunpack.c.l.b16 %v1784
      %v2025 = vunpack.c.l.b16 %v1785
      %v2026 = vunpack.c.l.b16 %v1786
      %v2027 = vunpack.c.l.b16 %v1787
      %v2028 = vunpack.c.l.b16 %v1788
      %v2029 = vunpack.c.l.b16 %v1789
      %v2030 = vunpack.c.l.b16 %v1790
      %v2031 = vunpack.c.l.b16 %v1791
      %v2032 = vunpack.c.l.b16 %v1792
      %v2033 = vunpack.c.l.b16 %v1793
      %v2034 = vunpack.c.l.b16 %v1794
      %v2035 = vunpack.c.l.b16 %v1795
      %v2036 = vunpack.c.l.b16 %v1796
      %v2037 = vunpack.c.l.b16 %v1797
      %v2038 = vunpack.c.l.b16 %v1798
      %v2039 = vunpack.c.l.b16 %v1799
      %v2040 = vunpack.c.l.b16 %v1800
      %v2041 = vunpack.c.l.b16 %v1801
      %v2042 = vunpack.c.l.b16 %v1802
      %v2043 = vunpack.c.l.b16 %v1803
      %v2044 = vunpack.c.l.b16 %v1804
      %v2045 = vunpack.c.l.b16 %v1805
      %v2046 = vunpack.c.l.b16 %v1806
      %v2047 = vunpack.c.l.b16 %v1807
      %v2048 = vunpack.c.l.b16 %v1808
      %v2049 = vunpack.c.l.b16 %v1809
      %v2050 = vunpack.c.l.b16 %v1810
      %v2051 = vunpack.c.l.b16 %v1811
      %v2052 = vunpack.c.l.b16 %v1812
      %v2053 = vunpack.c.l.b16 %v1813
      %v2054 = vunpack.c.l.b16 %v1814
      %v2055 = vunpack.c.l.b16 %v1815
      %v2056 = vunpack.c.l.b16 %v1816
      %v2057 = vunpack.c.l.b16 %v1817
      %v2058 = vunpack.c.l.b16 %v1818
      %v2059 = vunpack.c.l.b16 %v1819
      %v2060 = vpack.c.b16 %v2013, %v2012
      %v2061 = vpack.c.b16 %v2015, %v2014
      %v2062 = vpack.c.b16 %v2017, %v2016
      %v2063 = vpack.c.b16 %v2019, %v2018
      %v2064 = vpack.c.b16 %v2021, %v2020
      %v2065 = vpack.c.b16 %v2023, %v2022
      %v2066 = vpack.c.b16 %v2025, %v2024
      %v2067 = vpack.c.b16 %v2027, %v2026
      %v2068 = vpack.c.b16 %v2029, %v2028
      %v2069 = vpack.c.b16 %v2031, %v2030
      %v2070 = vpack.c.b16 %v2033, %v2032
      %v2071 = vpack.c.b16 %v2035, %v2034
      %v2072 = vpack.c.b16 %v2037, %v2036
      %v2073 = vpack.c.b16 %v2039, %v2038
      %v2074 = vpack.c.b16 %v2041, %v2040
      %v2075 = vpack.c.b16 %v2043, %v2042
      %v2076 = vpack.c.b16 %v2045, %v2044
      %v2077 = vpack.c.b16 %v2047, %v2046
      %v2078 = vpack.c.b16 %v2049, %v2048
      %v2079 = vpack.c.b16 %v2051, %v2050
      %v2080 = vpack.c.b16 %v2053, %v2052
      %v2081 = vpack.c.b16 %v2055, %v2054
      %v2082 = vpack.c.b16 %v2057, %v2056
      %v2083 = vpack.c.b16 %v2059, %v2058
      %2108 = vmatpush.bf16.msra.mxu0 %v2067
      %2109 = vmatpush.bf16.msra.mxu0 %v2066
      %2110 = vmatpush.bf16.msra.mxu0 %v2065
      %2111 = vmatpush.bf16.msra.mxu0 %v2064
      %2112 = vmatpush.bf16.msra.mxu0 %v2063
      %2113 = vmatpush.bf16.msra.mxu0 %v2062
      %2114 = vmatpush.bf16.msra.mxu0 %v2061
      %2115 = vmatpush.bf16.msra.mxu0 %v2060
      %2116 = vmatmul.bf16.gmra.mxu0 %v1910
      %v2117 = vpop.f32.mrf.mxu0
      %v2118 = vadd.f32 0.0, %v2117
      %v2119 = vpop.f32.mrf.mxu0
      %v2120 = vadd.f32 0.0, %v2119
      %2121 = vmatmul.bf16.gmra.mxu0 %v1913
      %v2122 = vpop.f32.mrf.mxu0
      %v2123 = vadd.f32 0.0, %v2122
      %v2124 = vpop.f32.mrf.mxu0
      %v2125 = vadd.f32 0.0, %v2124
      %2126 = vmatmul.bf16.gmra.mxu0 %v1916
      %v2127 = vpop.f32.mrf.mxu0
      %v2128 = vadd.f32 0.0, %v2127
      %v2129 = vpop.f32.mrf.mxu0
      %v2130 = vadd.f32 0.0, %v2129
      %2131 = vmatmul.bf16.gmra.mxu0 %v1919
      %v2132 = vpop.f32.mrf.mxu0
      %v2133 = vadd.f32 0.0, %v2132
      %v2134 = vpop.f32.mrf.mxu0
      %v2135 = vadd.f32 0.0, %v2134
      %2136 = vmatmul.bf16.gmra.mxu0 %v1922
      %v2137 = vpop.f32.mrf.mxu0
      %v2138 = vadd.f32 0.0, %v2137
      %v2139 = vpop.f32.mrf.mxu0
      %v2140 = vadd.f32 0.0, %v2139
      %2141 = vmatmul.bf16.gmra.mxu0 %v1925
      %v2142 = vpop.f32.mrf.mxu0
      %v2143 = vadd.f32 0.0, %v2142
      %v2144 = vpop.f32.mrf.mxu0
      %v2145 = vadd.f32 0.0, %v2144
      %2146 = vmatmul.bf16.gmra.mxu0 %v1928
      %v2147 = vpop.f32.mrf.mxu0
      %v2148 = vadd.f32 0.0, %v2147
      %v2149 = vpop.f32.mrf.mxu0
      %v2150 = vadd.f32 0.0, %v2149
      %2151 = vmatmul.bf16.gmra.mxu0 %v1931
      %v2152 = vpop.f32.mrf.mxu0
      %v2153 = vadd.f32 0.0, %v2152
      %v2154 = vpop.f32.mrf.mxu0
      %v2155 = vadd.f32 0.0, %v2154
      %2156 = vmatmul.bf16.gmra.mxu0 %v1934
      %v2157 = vpop.f32.mrf.mxu0
      %v2158 = vadd.f32 0.0, %v2157
      %v2159 = vpop.f32.mrf.mxu0
      %v2160 = vadd.f32 0.0, %v2159
      %2161 = vdwg.mxu0
      %2162 = vmatpush.bf16.msra.mxu0 %v2075
      %2163 = vmatpush.bf16.msra.mxu0 %v2074
      %2164 = vmatpush.bf16.msra.mxu0 %v2073
      %2165 = vmatpush.bf16.msra.mxu0 %v2072
      %2166 = vmatpush.bf16.msra.mxu0 %v2071
      %2167 = vmatpush.bf16.msra.mxu0 %v2070
      %2168 = vmatpush.bf16.msra.mxu0 %v2069
      %2169 = vmatpush.bf16.msra.mxu0 %v2068
      %2170 = vmatmul.bf16.gmra.mxu0 %v1911
      %v2171 = vpop.f32.mrf.mxu0
      %v2172 = vadd.f32 %v2118, %v2171
      %v2173 = vpop.f32.mrf.mxu0
      %v2174 = vadd.f32 %v2120, %v2173
      %2175 = vmatmul.bf16.gmra.mxu0 %v1914
      %v2176 = vpop.f32.mrf.mxu0
      %v2177 = vadd.f32 %v2123, %v2176
      %v2178 = vpop.f32.mrf.mxu0
      %v2179 = vadd.f32 %v2125, %v2178
      %2180 = vmatmul.bf16.gmra.mxu0 %v1917
      %v2181 = vpop.f32.mrf.mxu0
      %v2182 = vadd.f32 %v2128, %v2181
      %v2183 = vpop.f32.mrf.mxu0
      %v2184 = vadd.f32 %v2130, %v2183
      %2185 = vmatmul.bf16.gmra.mxu0 %v1920
      %v2186 = vpop.f32.mrf.mxu0
      %v2187 = vadd.f32 %v2133, %v2186
      %v2188 = vpop.f32.mrf.mxu0
      %v2189 = vadd.f32 %v2135, %v2188
      %2190 = vmatmul.bf16.gmra.mxu0 %v1923
      %v2191 = vpop.f32.mrf.mxu0
      %v2192 = vadd.f32 %v2138, %v2191
      %v2193 = vpop.f32.mrf.mxu0
      %v2194 = vadd.f32 %v2140, %v2193
      %2195 = vmatmul.bf16.gmra.mxu0 %v1926
      %v2196 = vpop.f32.mrf.mxu0
      %v2197 = vadd.f32 %v2143, %v2196
      %v2198 = vpop.f32.mrf.mxu0
      %v2199 = vadd.f32 %v2145, %v2198
      %2200 = vmatmul.bf16.gmra.mxu0 %v1929
      %v2201 = vpop.f32.mrf.mxu0
      %v2202 = vadd.f32 %v2148, %v2201
      %v2203 = vpop.f32.mrf.mxu0
      %v2204 = vadd.f32 %v2150, %v2203
      %2205 = vmatmul.bf16.gmra.mxu0 %v1932
      %v2206 = vpop.f32.mrf.mxu0
      %v2207 = vadd.f32 %v2153, %v2206
      %v2208 = vpop.f32.mrf.mxu0
      %v2209 = vadd.f32 %v2155, %v2208
      %2210 = vmatmul.bf16.gmra.mxu0 %v1935
      %v2211 = vpop.f32.mrf.mxu0
      %v2212 = vadd.f32 %v2158, %v2211
      %v2213 = vpop.f32.mrf.mxu0
      %v2214 = vadd.f32 %v2160, %v2213
      %2215 = vdwg.mxu0
      %2216 = vmatpush.bf16.msra.mxu0 %v2083
      %2217 = vmatpush.bf16.msra.mxu0 %v2082
      %2218 = vmatpush.bf16.msra.mxu0 %v2081
      %2219 = vmatpush.bf16.msra.mxu0 %v2080
      %2220 = vmatpush.bf16.msra.mxu0 %v2079
      %2221 = vmatpush.bf16.msra.mxu0 %v2078
      %2222 = vmatpush.bf16.msra.mxu0 %v2077
      %2223 = vmatpush.bf16.msra.mxu0 %v2076
      %2224 = vmatmul.bf16.gmra.mxu0 %v1912
      %v2225 = vpop.f32.mrf.mxu0
      %v2226 = vadd.f32 %v2172, %v2225
      %v2227 = vpop.f32.mrf.mxu0
      %v2228 = vadd.f32 %v2174, %v2227
      %2229 = vmatmul.bf16.gmra.mxu0 %v1915
      %v2230 = vpop.f32.mrf.mxu0
      %v2231 = vadd.f32 %v2177, %v2230
      %v2232 = vpop.f32.mrf.mxu0
      %v2233 = vadd.f32 %v2179, %v2232
      %2234 = vmatmul.bf16.gmra.mxu0 %v1918
      %v2235 = vpop.f32.mrf.mxu0
      %v2236 = vadd.f32 %v2182, %v2235
      %v2237 = vpop.f32.mrf.mxu0
      %v2238 = vadd.f32 %v2184, %v2237
      %2239 = vmatmul.bf16.gmra.mxu0 %v1921
      %v2240 = vpop.f32.mrf.mxu0
      %v2241 = vadd.f32 %v2187, %v2240
      %v2242 = vpop.f32.mrf.mxu0
      %v2243 = vadd.f32 %v2189, %v2242
      %2244 = vmatmul.bf16.gmra.mxu0 %v1924
      %v2245 = vpop.f32.mrf.mxu0
      %v2246 = vadd.f32 %v2192, %v2245
      %v2247 = vpop.f32.mrf.mxu0
      %v2248 = vadd.f32 %v2194, %v2247
      %2249 = vmatmul.bf16.gmra.mxu0 %v1927
      %v2250 = vpop.f32.mrf.mxu0
      %v2251 = vadd.f32 %v2197, %v2250
      %v2252 = vpop.f32.mrf.mxu0
      %v2253 = vadd.f32 %v2199, %v2252
      %2254 = vmatmul.bf16.gmra.mxu0 %v1930
      %v2255 = vpop.f32.mrf.mxu0
      %v2256 = vadd.f32 %v2202, %v2255
      %v2257 = vpop.f32.mrf.mxu0
      %v2258 = vadd.f32 %v2204, %v2257
      %2259 = vmatmul.bf16.gmra.mxu0 %v1933
      %v2260 = vpop.f32.mrf.mxu0
      %v2261 = vadd.f32 %v2207, %v2260
      %v2262 = vpop.f32.mrf.mxu0
      %v2263 = vadd.f32 %v2209, %v2262
      %2264 = vmatmul.bf16.gmra.mxu0 %v1936
      %v2265 = vpop.f32.mrf.mxu0
      %v2266 = vadd.f32 %v2212, %v2265
      %v2267 = vpop.f32.mrf.mxu0
      %v2268 = vadd.f32 %v2214, %v2267
      %2269 = vdwg.mxu0
      %v2270 = vadd.f32 %v1691, %v2226
      %v2271 = vadd.f32 %v1693, %v2228
      %v2272 = vadd.f32 %v1696, %v2231
      %v2273 = vadd.f32 %v1698, %v2233
      %v2274 = vadd.f32 %v1701, %v2236
      %v2275 = vadd.f32 %v1703, %v2238
      %v2276 = vadd.f32 %v1706, %v2241
      %v2277 = vadd.f32 %v1708, %v2243
      %v2278 = vadd.f32 %v1711, %v2246
      %v2279 = vadd.f32 %v1713, %v2248
      %v2280 = vadd.f32 %v1716, %v2251
      %v2281 = vadd.f32 %v1718, %v2253
      %v2282 = vadd.f32 %v1721, %v2256
      %v2283 = vadd.f32 %v1723, %v2258
      %v2284 = vadd.f32 %v1726, %v2261
      %v2285 = vadd.f32 %v1728, %v2263
      %v2286 = vadd.f32 %v1731, %v2266
      %v2287 = vadd.f32 %v1733, %v2268
      %v2288 = vpack.c.bf16 %v2270, %v2270
      %v2289 = vpack.c.bf16 %v2271, %v2271
      %v2290 = vpack.c.bf16 %v2272, %v2272
      %v2291 = vpack.c.bf16 %v2273, %v2273
      %v2292 = vpack.c.bf16 %v2274, %v2274
      %v2293 = vpack.c.bf16 %v2275, %v2275
      %v2294 = vpack.c.bf16 %v2276, %v2276
      %v2295 = vpack.c.bf16 %v2277, %v2277
      %v2296 = vpack.c.bf16 %v2278, %v2278
      %v2297 = vpack.c.bf16 %v2279, %v2279
      %v2298 = vpack.c.bf16 %v2280, %v2280
      %v2299 = vpack.c.bf16 %v2281, %v2281
      %v2300 = vpack.c.bf16 %v2282, %v2282
      %v2301 = vpack.c.bf16 %v2283, %v2283
      %v2302 = vpack.c.bf16 %v2284, %v2284
      %v2303 = vpack.c.bf16 %v2285, %v2285
      %v2304 = vpack.c.bf16 %v2286, %v2286
      %v2305 = vpack.c.bf16 %v2287, %v2287
      %vm2306 = vcmask 257024
      %2307 = vst.msk [vmem:[%s278] sm:$0xf] %vm2306, %v2288
      %2308 = vst.msk [vmem:[%s278 + $0x4] sm:$0xf] %vm2306, %v2289
      %2309 = vst.msk [vmem:[%s278 + $0x8] sm:$0xf] %vm2306, %v2290
      %2310 = vst.msk [vmem:[%s278 + $0xc] sm:$0xf] %vm2306, %v2291
      %2311 = vst.msk [vmem:[%s278 + $0x10] sm:$0xf] %vm2306, %v2292
      %2312 = vst.msk [vmem:[%s278 + $0x14] sm:$0xf] %vm2306, %v2293
      %2313 = vst.msk [vmem:[%s278 + $0x18] sm:$0xf] %vm2306, %v2294
      %2314 = vst.msk [vmem:[%s278 + $0x1c] sm:$0xf] %vm2306, %v2295
      %2315 = vst.msk [vmem:[%s278 + $0x20] sm:$0xf] %vm2306, %v2296
      %2316 = vst.msk [vmem:[%s278 + $0x24] sm:$0xf] %vm2306, %v2297
      %2317 = vst.msk [vmem:[%s278 + $0x28] sm:$0xf] %vm2306, %v2298
      %2318 = vst.msk [vmem:[%s278 + $0x2c] sm:$0xf] %vm2306, %v2299
      %2319 = vst.msk [vmem:[%s278 + $0x30] sm:$0xf] %vm2306, %v2300
      %2320 = vst.msk [vmem:[%s278 + $0x34] sm:$0xf] %vm2306, %v2301
      %2321 = vst.msk [vmem:[%s278 + $0x38] sm:$0xf] %vm2306, %v2302
      %2322 = vst.msk [vmem:[%s278 + $0x3c] sm:$0xf] %vm2306, %v2303
      %2323 = vst.msk [vmem:[%s278 + $0x40] sm:$0xf] %vm2306, %v2304
      %2324 = vst.msk [vmem:[%s278 + $0x44] sm:$0xf] %vm2306, %v2305
      %s2325 = smul.u32 18, %s19
      %p2326 = scmp.lt.s32.totalorder %s18, 1
      %s2327 = scalar_select %p2326, %s18, 1
      %p2328 = scmp.lt.s32.totalorder %s2325, 17
      %s2329 = scalar_select %p2328, %s2325, 17
      %s2330 = smul.addr %s2327, 18
      %s2331 = sadd.s32 %s2329, %s2330
      %s2332 = smul.addr %s2331, 4
      %s2333 = scalar_lea.vmem %s3, %s2332
      // Predicated region
      $region33: #{densenet_forward.16} parent=31 // pred_check
        %p2334 = pneg %p127
      $region34: #{densenet_forward.16} parent=31 // pred_check_branch
        %2336 = sbr.rel (%p2334) target = $region36
      $region35: #{densenet_forward.16} parent=31 // pred_region
        %s2337 = smul.u32 18, %s19
      $region36: #{densenet_forward.16} parent=31 // pred_fallthru
        _
    $region32: #{densenet_forward.16} parent=5 // pred_fallthru
      _
    %p2338 = scmp.le.s32.totalorder 2, %s9
    // Predicated region
    $region37: #{densenet_forward.16} parent=5 // pred_check
      %p2339 = pneg %p2338
    $region38: #{densenet_forward.16} parent=5 // pred_check_branch
      %2341 = sbr.rel (%p2339) target = $region40
    $region39: #{densenet_forward.16} parent=5 // pred_region
      %s2342 = ssub.s32 %s9, 2
      // Predicated region
      $region41: #{densenet_forward.16} parent=39 // pred_check
        %p2343 = pneg %p133
      $region42: #{densenet_forward.16} parent=39 // pred_check_branch
        %2345 = sbr.rel (%p2343) target = $region44
      $region43: #{densenet_forward.16} parent=39 // pred_region
        %s2346 = smul.u32 18, %s21
        %p2347 = scmp.lt.s32.totalorder %s20, 1
        %s2348 = scalar_select %p2347, %s20, 1
        %p2349 = scmp.lt.s32.totalorder %s2346, 17
        %s2350 = scalar_select %p2349, %s2346, 17
        %s2351 = smul.addr %s2348, 18
        %s2352 = sadd.s32 %s2350, %s2351
        %s2353 = smul.addr %s2352, 4
        %s2354 = scalar_lea.vmem %s3, %s2353
      $region44: #{densenet_forward.16} parent=39 // pred_fallthru
        _
    $region40: #{densenet_forward.16} parent=5 // pred_fallthru
      _
  $region6: #{densenet_forward.16} parent=0 // loop_footer
    %s13 = sadd.s32 1, %s9
  $region7: #{densenet_forward.16} parent=0 // loop_footer_branch
    %8 = sbr.rel target = $region3
  $region8: #{densenet_forward.16} parent=0 // loop_exit
    _

// kernel: densenet_forward.19
$region0: #{densenet_forward.19}
  #allocation0 [shape = 'u32[]', space=smem, size = 0x4, offset = 0x4, fixed_abs, tag = 'smem constant byte address 0x4 - core index']
  #allocation1 [shape = 'u32[72,128]{1,0:T(1,128)}', space=vmem, size = 0x9000, scoped, tag = 'internal scratch']
  %s0 = inlined_call_operand.vmem [shape: bf16[8,2,4,2,128], index: 0, kind: input, shape index: {}]
  %s1 = inlined_call_operand.vmem [shape: f32[1,128], index: 1, kind: input, shape index: {}]
  %s2 = inlined_call_operand.vmem [shape: f32[1,128], index: 2, kind: input, shape index: {}]
  %s3 = inlined_call_operand.vmem [shape: bf16[8,4,128], index: 3, kind: output, shape index: {}]
  %s4 = sld [smem:[#allocation0]]
  $region45: #{densenet_forward.19} parent=0
    _
  %s6 = ssub.s32 1, %s4
  %s7 = scalar_select 0, %s6, %s4
  loop: start=0, step=1, limit=4
  $region2: #{densenet_forward.19} parent=0 // loop_pre_header
    _
  $region3: #{densenet_forward.19} parent=0 // loop_header
    %s9 = sphi 0, %s13
    %p10 = scmp.ge.s32.totalorder %s9, 4
    %s19 = sphi 0, %s21
    %s22 = sphi 0, %s19
    %s23 = sphi 0, %s22
    %s39 = sphi 0, %s23
    %s43 = sphi 0, %s43
    %s45 = sphi 0, %s43
    %s46 = sphi 0, %s45
    %s60 = sphi 0, %s46
    %s64 = sphi 0, %s64
    %s66 = sphi 0, %s64
    %s67 = sphi 0, %s66
    %s81 = sphi 0, %s67
    %s87 = sphi 0, %s89
    %s90 = sphi 0, %s87
    %s91 = sphi 0, %s90
    %s107 = sphi 0, %s91
  $region4: #{densenet_forward.19} parent=0 // loop_header_branch
    %12 = sbr.rel (%p10) target = $region8
  $region5: #{densenet_forward.19} parent=0 // loop_body
    %s14 = ssub.s32 %s9, 1
    %s15 = ssub.s32 %s9, 2
    %s16 = sadd.s32 %s9, 1
    %s17 = ssub.s32 %s9, %s16
    %p18 = scmp.eq.s32.totalorder %s17, 0
    %s20 = sadd.s32 %s19, 1
    %s21 = scalar_select %p18, %s19, %s20
    %p24 = pneg %p18
    %p25 = scmp.eq.s32.totalorder %s9, 1
    %p26 = por %p24, %p25
    %p27 = scmp.ne.s32.totalorder %s19, %s22
    %p28 = scmp.eq.s32.totalorder %s9, 0
    %p29 = por %p27, %p28
    %p30 = scmp.ne.s32.totalorder %s19, %s22
    %p31 = scmp.eq.s32.totalorder %s14, 1
    %p32 = por %p30, %p31
    %p33 = scmp.ne.s32.totalorder %s22, %s23
    %p34 = scmp.eq.s32.totalorder %s14, 0
    %p35 = por %p33, %p34
    %p36 = scmp.ne.s32.totalorder %s22, %s23
    %p37 = scmp.eq.s32.totalorder %s15, 1
    %p38 = por %p36, %p37
    %p40 = scmp.ne.s32.totalorder %s23, %s39
    %p41 = scmp.eq.s32.totalorder %s15, 0
    %p42 = por %p40, %p41
    %s44 = sadd.s32 %s43, 1
    %p47 = scmp.eq.s32.totalorder %s9, 1
    %p48 = scmp.ne.s32.totalorder %s43, %s45
    %p49 = scmp.eq.s32.totalorder %s9, 0
    %p50 = por %p48, %p49
    %p51 = scmp.ne.s32.totalorder %s43, %s45
    %p52 = scmp.eq.s32.totalorder %s14, 1
    %p53 = por %p51, %p52
    %p54 = scmp.ne.s32.totalorder %s45, %s46
    %p55 = scmp.eq.s32.totalorder %s14, 0
    %p56 = por %p54, %p55
    %p57 = scmp.ne.s32.totalorder %s45, %s46
    %p58 = scmp.eq.s32.totalorder %s15, 1
    %p59 = por %p57, %p58
    %p61 = scmp.ne.s32.totalorder %s46, %s60
    %p62 = scmp.eq.s32.totalorder %s15, 0
    %p63 = por %p61, %p62
    %s65 = sadd.s32 %s64, 1
    %p68 = scmp.eq.s32.totalorder %s9, 1
    %p69 = scmp.ne.s32.totalorder %s64, %s66
    %p70 = scmp.eq.s32.totalorder %s9, 0
    %p71 = por %p69, %p70
    %p72 = scmp.ne.s32.totalorder %s64, %s66
    %p73 = scmp.eq.s32.totalorder %s14, 1
    %p74 = por %p72, %p73
    %p75 = scmp.ne.s32.totalorder %s66, %s67
    %p76 = scmp.eq.s32.totalorder %s14, 0
    %p77 = por %p75, %p76
    %p78 = scmp.ne.s32.totalorder %s66, %s67
    %p79 = scmp.eq.s32.totalorder %s15, 1
    %p80 = por %p78, %p79
    %p82 = scmp.ne.s32.totalorder %s67, %s81
    %p83 = scmp.eq.s32.totalorder %s15, 0
    %p84 = por %p82, %p83
    %s85 = ssub.s32 %s9, %s16
    %p86 = scmp.eq.s32.totalorder %s85, 0
    %s88 = sadd.s32 %s87, 1
    %s89 = scalar_select %p86, %s87, %s88
    %p92 = pneg %p86
    %p93 = scmp.eq.s32.totalorder %s9, 1
    %p94 = por %p92, %p93
    %p95 = scmp.ne.s32.totalorder %s87, %s90
    %p96 = scmp.eq.s32.totalorder %s9, 0
    %p97 = por %p95, %p96
    %p98 = scmp.ne.s32.totalorder %s87, %s90
    %p99 = scmp.eq.s32.totalorder %s14, 1
    %p100 = por %p98, %p99
    %p101 = scmp.ne.s32.totalorder %s90, %s91
    %p102 = scmp.eq.s32.totalorder %s14, 0
    %p103 = por %p101, %p102
    %p104 = scmp.ne.s32.totalorder %s90, %s91
    %p105 = scmp.eq.s32.totalorder %s15, 1
    %p106 = por %p104, %p105
    %p108 = scmp.ne.s32.totalorder %s91, %s107
    %p109 = scmp.eq.s32.totalorder %s15, 0
    %p110 = por %p108, %p109
    %p111 = scmp.le.s32.totalorder 1, %s9
    %p112 = scmp.lt.s32.totalorder %s9, 3
    %p113 = pnand %p111, %p112
    %p114 = pneg %p113
    // Predicated region
    $region9: #{densenet_forward.19} parent=5 // pred_check
      _
    $region10: #{densenet_forward.19} parent=5 // pred_check_branch
      %116 = sbr.rel (%p113) target = $region12
    $region11: #{densenet_forward.19} parent=5 // pred_region
      %s117 = ssub.s32 %s9, 1
      // Predicated region
      $region13: #{densenet_forward.19} parent=11 // pred_check
        %p118 = pneg %p56
      $region14: #{densenet_forward.19} parent=11 // pred_check_branch
        %120 = sbr.rel (%p118) target = $region16
      $region15: #{densenet_forward.19} parent=11 // pred_region
        _
      $region16: #{densenet_forward.19} parent=11 // pred_fallthru
        _
      // Predicated region
      $region17: #{densenet_forward.19} parent=11 // pred_check
        %p121 = pneg %p77
      $region18: #{densenet_forward.19} parent=11 // pred_check_branch
        %123 = sbr.rel (%p121) target = $region20
      $region19: #{densenet_forward.19} parent=11 // pred_region
        _
      $region20: #{densenet_forward.19} parent=11 // pred_fallthru
        _
    $region12: #{densenet_forward.19} parent=5 // pred_fallthru
      _
    %p124 = scmp.lt.s32.totalorder %s9, 2
    // Predicated region
    $region21: #{densenet_forward.19} parent=5 // pred_check
      %p125 = pneg %p124
    $region22: #{densenet_forward.19} parent=5 // pred_check_branch
      %127 = sbr.rel (%p125) target = $region24
    $region23: #{densenet_forward.19} parent=5 // pred_region
      // Predicated region
      $region25: #{densenet_forward.19} parent=23 // pred_check
        %p128 = pneg %p29
      $region26: #{densenet_forward.19} parent=23 // pred_check_branch
        %130 = sbr.rel (%p128) target = $region28
      $region27: #{densenet_forward.19} parent=23 // pred_region
        %s131 = smul.u32 4, %s9
        %p132 = scmp.lt.s32.totalorder %s131, 7
        %s133 = scalar_select %p132, %s131, 7
        %s134 = smul.addr %s133, 8
        %s135 = scalar_lea.vmem %s0, %s134
        %s136 = smul.u32 4, %s9
      $region28: #{densenet_forward.19} parent=23 // pred_fallthru
        _
    $region24: #{densenet_forward.19} parent=5 // pred_fallthru
      _
    %p137 = scmp.le.s32.totalorder 1, %s9
    %p138 = scmp.lt.s32.totalorder %s9, 3
    %p139 = pnand %p137, %p138
    %p140 = pneg %p139
    // Predicated region
    $region29: #{densenet_forward.19} parent=5 // pred_check
      _
    $region30: #{densenet_forward.19} parent=5 // pred_check_branch
      %142 = sbr.rel (%p139) target = $region32
    $region31: #{densenet_forward.19} parent=5 // pred_region
      %s143 = ssub.s32 %s9, 1
      %s144 = smul.u32 4, %s14
      %p145 = scmp.lt.s32.totalorder %s144, 7
      %s146 = scalar_select %p145, %s144, 7
      %s147 = smul.addr %s146, 8
      %s148 = scalar_lea.vmem %s0, %s147
      %p149 = pneg %p35
      %p150 = pneg %p32
      %p151 = pneg %p56
      %p152 = pneg %p53
      %p153 = pneg %p77
      %p154 = pneg %p74
      %p155 = pneg %p103
      %p156 = pneg %p100
      %s157 = smul.u32 4, %s14
      %p158 = scmp.lt.s32.totalorder %s157, 7
      %s159 = scalar_select %p158, %s157, 7
      %s160 = smul.addr %s159, 2
      %s161 = scalar_lea.vmem %s3, %s160
      %s162 = smul.u32 4, %s14
      %p163 = scmp.lt.s32.totalorder %s162, 7
      %s164 = scalar_select %p163, %s162, 7
      %s165 = smul.addr %s164, 8
      %s166 = scalar_lea.vmem %s0, %s165
      %s167 = smul.u32 4, %s14
      %s168 = smul.u32 4, %s14
      %p169 = scmp.lt.s32.totalorder %s168, 7
      %s170 = scalar_select %p169, %s168, 7
      %s171 = smul.addr %s170, 2
      %s172 = scalar_lea.vmem %s3, %s171
      %s173 = smul.u32 4, %s14
      %v174 = vld [vmem:[%s166] sm:$0x1]
      %v175 = vld [vmem:[%s166 + $0x1] sm:$0x1]
      %v176 = vld [vmem:[%s166 + $0x2] sm:$0x1]
      %v177 = vld [vmem:[%s166 + $0x3] sm:$0x1]
      %v178 = vld [vmem:[%s166 + $0x4] sm:$0x1]
      %v179 = vld [vmem:[%s166 + $0x5] sm:$0x1]
      %v180 = vld [vmem:[%s166 + $0x6] sm:$0x1]
      %v181 = vld [vmem:[%s166 + $0x7] sm:$0x1]
      %v182 = vld [vmem:[%s166 + $0x8] sm:$0x1]
      %v183 = vld [vmem:[%s166 + $0x9] sm:$0x1]
      %v184 = vld [vmem:[%s166 + $0xa] sm:$0x1]
      %v185 = vld [vmem:[%s166 + $0xb] sm:$0x1]
      %v186 = vld [vmem:[%s166 + $0xc] sm:$0x1]
      %v187 = vld [vmem:[%s166 + $0xd] sm:$0x1]
      %v188 = vld [vmem:[%s166 + $0xe] sm:$0x1]
      %v189 = vld [vmem:[%s166 + $0xf] sm:$0x1]
      %v190 = vld [vmem:[%s166 + $0x10] sm:$0x1]
      %v191 = vld [vmem:[%s166 + $0x11] sm:$0x1]
      %v192 = vld [vmem:[%s166 + $0x12] sm:$0x1]
      %v193 = vld [vmem:[%s166 + $0x13] sm:$0x1]
      %v194 = vld [vmem:[%s166 + $0x14] sm:$0x1]
      %v195 = vld [vmem:[%s166 + $0x15] sm:$0x1]
      %v196 = vld [vmem:[%s166 + $0x16] sm:$0x1]
      %v197 = vld [vmem:[%s166 + $0x17] sm:$0x1]
      %v198 = vld [vmem:[%s166 + $0x18] sm:$0x1]
      %v199 = vld [vmem:[%s166 + $0x19] sm:$0x1]
      %v200 = vld [vmem:[%s166 + $0x1a] sm:$0x1]
      %v201 = vld [vmem:[%s166 + $0x1b] sm:$0x1]
      %v202 = vld [vmem:[%s166 + $0x1c] sm:$0x1]
      %v203 = vld [vmem:[%s166 + $0x1d] sm:$0x1]
      %v204 = vld [vmem:[%s166 + $0x1e] sm:$0x1]
      %v205 = vld [vmem:[%s166 + $0x1f] sm:$0x1]
      %v206 = vunpack.c.l.bf16 %v174
      %v207 = vunpack.c.l.bf16 %v175
      %v208 = vunpack.c.l.bf16 %v176
      %v209 = vunpack.c.l.bf16 %v177
      %v210 = vunpack.c.l.bf16 %v178
      %v211 = vunpack.c.l.bf16 %v179
      %v212 = vunpack.c.l.bf16 %v180
      %v213 = vunpack.c.l.bf16 %v181
      %v214 = vunpack.c.l.bf16 %v182
      %v215 = vunpack.c.l.bf16 %v183
      %v216 = vunpack.c.l.bf16 %v184
      %v217 = vunpack.c.l.bf16 %v185
      %v218 = vunpack.c.l.bf16 %v186
      %v219 = vunpack.c.l.bf16 %v187
      %v220 = vunpack.c.l.bf16 %v188
      %v221 = vunpack.c.l.bf16 %v189
      %v222 = vunpack.c.l.bf16 %v190
      %v223 = vunpack.c.l.bf16 %v191
      %v224 = vunpack.c.l.bf16 %v192
      %v225 = vunpack.c.l.bf16 %v193
      %v226 = vunpack.c.l.bf16 %v194
      %v227 = vunpack.c.l.bf16 %v195
      %v228 = vunpack.c.l.bf16 %v196
      %v229 = vunpack.c.l.bf16 %v197
      %v230 = vunpack.c.l.bf16 %v198
      %v231 = vunpack.c.l.bf16 %v199
      %v232 = vunpack.c.l.bf16 %v200
      %v233 = vunpack.c.l.bf16 %v201
      %v234 = vunpack.c.l.bf16 %v202
      %v235 = vunpack.c.l.bf16 %v203
      %v236 = vunpack.c.l.bf16 %v204
      %v237 = vunpack.c.l.bf16 %v205
      %v238 = vld [vmem:[%s1] sm:$0x1]
      %v240 = vperm.slane %v238, 0
      %v242 = vmul.f32 %v206, %v240
      %v243 = vmul.f32 %v207, %v240
      %v244 = vmul.f32 %v208, %v240
      %v245 = vmul.f32 %v209, %v240
      %v246 = vmul.f32 %v210, %v240
      %v247 = vmul.f32 %v211, %v240
      %v248 = vmul.f32 %v212, %v240
      %v249 = vmul.f32 %v213, %v240
      %v250 = vmul.f32 %v214, %v240
      %v251 = vmul.f32 %v215, %v240
      %v252 = vmul.f32 %v216, %v240
      %v253 = vmul.f32 %v217, %v240
      %v254 = vmul.f32 %v218, %v240
      %v255 = vmul.f32 %v219, %v240
      %v256 = vmul.f32 %v220, %v240
      %v257 = vmul.f32 %v221, %v240
      %v258 = vmul.f32 %v222, %v240
      %v259 = vmul.f32 %v223, %v240
      %v260 = vmul.f32 %v224, %v240
      %v261 = vmul.f32 %v225, %v240
      %v262 = vmul.f32 %v226, %v240
      %v263 = vmul.f32 %v227, %v240
      %v264 = vmul.f32 %v228, %v240
      %v265 = vmul.f32 %v229, %v240
      %v266 = vmul.f32 %v230, %v240
      %v267 = vmul.f32 %v231, %v240
      %v268 = vmul.f32 %v232, %v240
      %v269 = vmul.f32 %v233, %v240
      %v270 = vmul.f32 %v234, %v240
      %v271 = vmul.f32 %v235, %v240
      %v272 = vmul.f32 %v236, %v240
      %v273 = vmul.f32 %v237, %v240
      %v274 = vld [vmem:[%s2] sm:$0x1]
      %v276 = vperm.slane %v274, 0
      %v278 = vadd.f32 %v242, %v276
      %v279 = vadd.f32 %v243, %v276
      %v280 = vadd.f32 %v244, %v276
      %v281 = vadd.f32 %v245, %v276
      %v282 = vadd.f32 %v246, %v276
      %v283 = vadd.f32 %v247, %v276
      %v284 = vadd.f32 %v248, %v276
      %v285 = vadd.f32 %v249, %v276
      %v286 = vadd.f32 %v250, %v276
      %v287 = vadd.f32 %v251, %v276
      %v288 = vadd.f32 %v252, %v276
      %v289 = vadd.f32 %v253, %v276
      %v290 = vadd.f32 %v254, %v276
      %v291 = vadd.f32 %v255, %v276
      %v292 = vadd.f32 %v256, %v276
      %v293 = vadd.f32 %v257, %v276
      %v294 = vadd.f32 %v258, %v276
      %v295 = vadd.f32 %v259, %v276
      %v296 = vadd.f32 %v260, %v276
      %v297 = vadd.f32 %v261, %v276
      %v298 = vadd.f32 %v262, %v276
      %v299 = vadd.f32 %v263, %v276
      %v300 = vadd.f32 %v264, %v276
      %v301 = vadd.f32 %v265, %v276
      %v302 = vadd.f32 %v266, %v276
      %v303 = vadd.f32 %v267, %v276
      %v304 = vadd.f32 %v268, %v276
      %v305 = vadd.f32 %v269, %v276
      %v306 = vadd.f32 %v270, %v276
      %v307 = vadd.f32 %v271, %v276
      %v308 = vadd.f32 %v272, %v276
      %v309 = vadd.f32 %v273, %v276
      %v310 = vmax.f32 %v278, 0.0
      %v311 = vmax.f32 %v279, 0.0
      %v312 = vmax.f32 %v280, 0.0
      %v313 = vmax.f32 %v281, 0.0
      %v314 = vmax.f32 %v282, 0.0
      %v315 = vmax.f32 %v283, 0.0
      %v316 = vmax.f32 %v284, 0.0
      %v317 = vmax.f32 %v285, 0.0
      %v318 = vmax.f32 %v286, 0.0
      %v319 = vmax.f32 %v287, 0.0
      %v320 = vmax.f32 %v288, 0.0
      %v321 = vmax.f32 %v289, 0.0
      %v322 = vmax.f32 %v290, 0.0
      %v323 = vmax.f32 %v291, 0.0
      %v324 = vmax.f32 %v292, 0.0
      %v325 = vmax.f32 %v293, 0.0
      %v326 = vmax.f32 %v294, 0.0
      %v327 = vmax.f32 %v295, 0.0
      %v328 = vmax.f32 %v296, 0.0
      %v329 = vmax.f32 %v297, 0.0
      %v330 = vmax.f32 %v298, 0.0
      %v331 = vmax.f32 %v299, 0.0
      %v332 = vmax.f32 %v300, 0.0
      %v333 = vmax.f32 %v301, 0.0
      %v334 = vmax.f32 %v302, 0.0
      %v335 = vmax.f32 %v303, 0.0
      %v336 = vmax.f32 %v304, 0.0
      %v337 = vmax.f32 %v305, 0.0
      %v338 = vmax.f32 %v306, 0.0
      %v339 = vmax.f32 %v307, 0.0
      %v340 = vmax.f32 %v308, 0.0
      %v341 = vmax.f32 %v309, 0.0
      %vm342 = vcmask 1041408
      %v343 = vsel %vm342, %v310, 0.0
      %v344 = vsel %vm342, %v314, 0.0
      %v345 = vadd.f32 %v343, %v344
      %v346 = vsel %vm342, %v311, 0.0
      %v347 = vsel %vm342, %v315, 0.0
      %v348 = vadd.f32 %v346, %v347
      %v349 = vsel %vm342, %v312, 0.0
      %v350 = vsel %vm342, %v316, 0.0
      %v351 = vadd.f32 %v349, %v350
      %v352 = vsel %vm342, %v313, 0.0
      %v353 = vsel %vm342, %v317, 0.0
      %v354 = vadd.f32 %v352, %v353
      %v355 = vsel %vm342, %v318, 0.0
      %v356 = vsel %vm342, %v322, 0.0
      %v357 = vadd.f32 %v355, %v356
      %v358 = vsel %vm342, %v319, 0.0
      %v359 = vsel %vm342, %v323, 0.0
      %v360 = vadd.f32 %v358, %v359
      %v361 = vsel %vm342, %v320, 0.0
      %v362 = vsel %vm342, %v324, 0.0
      %v363 = vadd.f32 %v361, %v362
      %v364 = vsel %vm342, %v321, 0.0
      %v365 = vsel %vm342, %v325, 0.0
      %v366 = vadd.f32 %v364, %v365
      %v367 = vsel %vm342, %v326, 0.0
      %v368 = vsel %vm342, %v330, 0.0
      %v369 = vadd.f32 %v367, %v368
      %v370 = vsel %vm342, %v327, 0.0
      %v371 = vsel %vm342, %v331, 0.0
      %v372 = vadd.f32 %v370, %v371
      %v373 = vsel %vm342, %v328, 0.0
      %v374 = vsel %vm342, %v332, 0.0
      %v375 = vadd.f32 %v373, %v374
      %v376 = vsel %vm342, %v329, 0.0
      %v377 = vsel %vm342, %v333, 0.0
      %v378 = vadd.f32 %v376, %v377
      %v379 = vsel %vm342, %v334, 0.0
      %v380 = vsel %vm342, %v338, 0.0
      %v381 = vadd.f32 %v379, %v380
      %v382 = vsel %vm342, %v335, 0.0
      %v383 = vsel %vm342, %v339, 0.0
      %v384 = vadd.f32 %v382, %v383
      %v385 = vsel %vm342, %v336, 0.0
      %v386 = vsel %vm342, %v340, 0.0
      %v387 = vadd.f32 %v385, %v386
      %v388 = vsel %vm342, %v337, 0.0
      %v389 = vsel %vm342, %v341, 0.0
      %v390 = vadd.f32 %v388, %v389
      %v391 = vsel %vm342, %v345, 0.0
      %v392 = vrot.slane %v391, 4
      %v393 = vadd.f32 %v391, %v392
      %v394 = vrot.slane %v393, 2
      %v395 = vadd.f32 %v393, %v394
      %v396 = vrot.slane %v395, 1
      %v397 = vadd.f32 %v395, %v396
      %v398 = vsel %vm342, %v348, 0.0
      %v399 = vrot.slane %v398, 4
      %v400 = vadd.f32 %v398, %v399
      %v401 = vrot.slane %v400, 2
      %v402 = vadd.f32 %v400, %v401
      %v403 = vrot.slane %v402, 1
      %v404 = vadd.f32 %v402, %v403
      %v405 = vsel %vm342, %v351, 0.0
      %v406 = vrot.slane %v405, 4
      %v407 = vadd.f32 %v405, %v406
      %v408 = vrot.slane %v407, 2
      %v409 = vadd.f32 %v407, %v408
      %v410 = vrot.slane %v409, 1
      %v411 = vadd.f32 %v409, %v410
      %v412 = vsel %vm342, %v354, 0.0
      %v413 = vrot.slane %v412, 4
      %v414 = vadd.f32 %v412, %v413
      %v415 = vrot.slane %v414, 2
      %v416 = vadd.f32 %v414, %v415
      %v417 = vrot.slane %v416, 1
      %v418 = vadd.f32 %v416, %v417
      %v419 = vsel %vm342, %v357, 0.0
      %v420 = vrot.slane %v419, 4
      %v421 = vadd.f32 %v419, %v420
      %v422 = vrot.slane %v421, 2
      %v423 = vadd.f32 %v421, %v422
      %v424 = vrot.slane %v423, 1
      %v425 = vadd.f32 %v423, %v424
      %v426 = vsel %vm342, %v360, 0.0
      %v427 = vrot.slane %v426, 4
      %v428 = vadd.f32 %v426, %v427
      %v429 = vrot.slane %v428, 2
      %v430 = vadd.f32 %v428, %v429
      %v431 = vrot.slane %v430, 1
      %v432 = vadd.f32 %v430, %v431
      %v433 = vsel %vm342, %v363, 0.0
      %v434 = vrot.slane %v433, 4
      %v435 = vadd.f32 %v433, %v434
      %v436 = vrot.slane %v435, 2
      %v437 = vadd.f32 %v435, %v436
      %v438 = vrot.slane %v437, 1
      %v439 = vadd.f32 %v437, %v438
      %v440 = vsel %vm342, %v366, 0.0
      %v441 = vrot.slane %v440, 4
      %v442 = vadd.f32 %v440, %v441
      %v443 = vrot.slane %v442, 2
      %v444 = vadd.f32 %v442, %v443
      %v445 = vrot.slane %v444, 1
      %v446 = vadd.f32 %v444, %v445
      %v447 = vsel %vm342, %v369, 0.0
      %v448 = vrot.slane %v447, 4
      %v449 = vadd.f32 %v447, %v448
      %v450 = vrot.slane %v449, 2
      %v451 = vadd.f32 %v449, %v450
      %v452 = vrot.slane %v451, 1
      %v453 = vadd.f32 %v451, %v452
      %v454 = vsel %vm342, %v372, 0.0
      %v455 = vrot.slane %v454, 4
      %v456 = vadd.f32 %v454, %v455
      %v457 = vrot.slane %v456, 2
      %v458 = vadd.f32 %v456, %v457
      %v459 = vrot.slane %v458, 1
      %v460 = vadd.f32 %v458, %v459
      %v461 = vsel %vm342, %v375, 0.0
      %v462 = vrot.slane %v461, 4
      %v463 = vadd.f32 %v461, %v462
      %v464 = vrot.slane %v463, 2
      %v465 = vadd.f32 %v463, %v464
      %v466 = vrot.slane %v465, 1
      %v467 = vadd.f32 %v465, %v466
      %v468 = vsel %vm342, %v378, 0.0
      %v469 = vrot.slane %v468, 4
      %v470 = vadd.f32 %v468, %v469
      %v471 = vrot.slane %v470, 2
      %v472 = vadd.f32 %v470, %v471
      %v473 = vrot.slane %v472, 1
      %v474 = vadd.f32 %v472, %v473
      %v475 = vsel %vm342, %v381, 0.0
      %v476 = vrot.slane %v475, 4
      %v477 = vadd.f32 %v475, %v476
      %v478 = vrot.slane %v477, 2
      %v479 = vadd.f32 %v477, %v478
      %v480 = vrot.slane %v479, 1
      %v481 = vadd.f32 %v479, %v480
      %v482 = vsel %vm342, %v384, 0.0
      %v483 = vrot.slane %v482, 4
      %v484 = vadd.f32 %v482, %v483
      %v485 = vrot.slane %v484, 2
      %v486 = vadd.f32 %v484, %v485
      %v487 = vrot.slane %v486, 1
      %v488 = vadd.f32 %v486, %v487
      %v489 = vsel %vm342, %v387, 0.0
      %v490 = vrot.slane %v489, 4
      %v491 = vadd.f32 %v489, %v490
      %v492 = vrot.slane %v491, 2
      %v493 = vadd.f32 %v491, %v492
      %v494 = vrot.slane %v493, 1
      %v495 = vadd.f32 %v493, %v494
      %v496 = vsel %vm342, %v390, 0.0
      %v497 = vrot.slane %v496, 4
      %v498 = vadd.f32 %v496, %v497
      %v499 = vrot.slane %v498, 2
      %v500 = vadd.f32 %v498, %v499
      %v501 = vrot.slane %v500, 1
      %v502 = vadd.f32 %v500, %v501
      %v503 = vmul.f32 %v397, 0.25
      %v504 = vmul.f32 %v404, 0.25
      %v505 = vmul.f32 %v411, 0.25
      %v506 = vmul.f32 %v418, 0.25
      %v507 = vmul.f32 %v425, 0.25
      %v508 = vmul.f32 %v432, 0.25
      %v509 = vmul.f32 %v439, 0.25
      %v510 = vmul.f32 %v446, 0.25
      %v511 = vmul.f32 %v453, 0.25
      %v512 = vmul.f32 %v460, 0.25
      %v513 = vmul.f32 %v467, 0.25
      %v514 = vmul.f32 %v474, 0.25
      %v515 = vmul.f32 %v481, 0.25
      %v516 = vmul.f32 %v488, 0.25
      %v517 = vmul.f32 %v495, 0.25
      %v518 = vmul.f32 %v502, 0.25
      %v519 = vpack.c.bf16 %v503, %v503
      %v520 = vpack.c.bf16 %v504, %v504
      %v521 = vpack.c.bf16 %v505, %v505
      %v522 = vpack.c.bf16 %v506, %v506
      %v523 = vpack.c.bf16 %v507, %v507
      %v524 = vpack.c.bf16 %v508, %v508
      %v525 = vpack.c.bf16 %v509, %v509
      %v526 = vpack.c.bf16 %v510, %v510
      %v527 = vpack.c.bf16 %v511, %v511
      %v528 = vpack.c.bf16 %v512, %v512
      %v529 = vpack.c.bf16 %v513, %v513
      %v530 = vpack.c.bf16 %v514, %v514
      %v531 = vpack.c.bf16 %v515, %v515
      %v532 = vpack.c.bf16 %v516, %v516
      %v533 = vpack.c.bf16 %v517, %v517
      %v534 = vpack.c.bf16 %v518, %v518
      %v551 = vrot.slane %v519, 2
      %v552 = vrot.slane %v520, 2
      %v553 = vrot.slane %v521, 2
      %v554 = vrot.slane %v522, 2
      %v555 = vrot.slane %v523, 2
      %v556 = vrot.slane %v524, 2
      %v557 = vrot.slane %v525, 2
      %v558 = vrot.slane %v526, 2
      %v559 = vrot.slane %v527, 2
      %v560 = vrot.slane %v528, 2
      %v561 = vrot.slane %v529, 2
      %v562 = vrot.slane %v530, 2
      %v563 = vrot.slane %v531, 2
      %v564 = vrot.slane %v532, 2
      %v565 = vrot.slane %v533, 2
      %v566 = vrot.slane %v534, 2
      %v569 = vsel %vm342, %v519, %v551
      %v572 = vsel %vm342, %v520, %v552
      %v575 = vsel %vm342, %v521, %v553
      %v578 = vsel %vm342, %v522, %v554
      %v581 = vsel %vm342, %v523, %v555
      %v584 = vsel %vm342, %v524, %v556
      %v587 = vsel %vm342, %v525, %v557
      %v590 = vsel %vm342, %v526, %v558
      %v593 = vsel %vm342, %v527, %v559
      %v596 = vsel %vm342, %v528, %v560
      %v599 = vsel %vm342, %v529, %v561
      %v602 = vsel %vm342, %v530, %v562
      %v605 = vsel %vm342, %v531, %v563
      %v608 = vsel %vm342, %v532, %v564
      %v611 = vsel %vm342, %v533, %v565
      %v614 = vsel %vm342, %v534, %v566
      %615 = vst [vmem:[#allocation1] ss:$2 sm:$0xff] %v569
      %v616 = vld.sshfl [vmem:[#allocation1] sm:$0xff pattern:$0x75643120]
      %s618 = scalar_lea.vmem [#allocation1], 16
      %619 = vst [vmem:[%s618] ss:$2 sm:$0xff] %v572
      %v620 = vld.sshfl [vmem:[#allocation1 + $0x10] sm:$0xff pattern:$0x75643120]
      %s622 = scalar_lea.vmem [#allocation1], 32
      %623 = vst [vmem:[%s622] ss:$2 sm:$0xff] %v575
      %v624 = vld.sshfl [vmem:[#allocation1 + $0x20] sm:$0xff pattern:$0x75643120]
      %s626 = scalar_lea.vmem [#allocation1], 48
      %627 = vst [vmem:[%s626] ss:$2 sm:$0xff] %v578
      %v628 = vld.sshfl [vmem:[#allocation1 + $0x30] sm:$0xff pattern:$0x75643120]
      %630 = vst [vmem:[#allocation1] ss:$2 sm:$0xff] %v581
      %v631 = vld.sshfl [vmem:[#allocation1] sm:$0xff pattern:$0x75643120]
      %633 = vst [vmem:[%s618] ss:$2 sm:$0xff] %v584
      %v634 = vld.sshfl [vmem:[#allocation1 + $0x10] sm:$0xff pattern:$0x75643120]
      %636 = vst [vmem:[%s622] ss:$2 sm:$0xff] %v587
      %v637 = vld.sshfl [vmem:[#allocation1 + $0x20] sm:$0xff pattern:$0x75643120]
      %639 = vst [vmem:[%s626] ss:$2 sm:$0xff] %v590
      %v640 = vld.sshfl [vmem:[#allocation1 + $0x30] sm:$0xff pattern:$0x75643120]
      %642 = vst [vmem:[#allocation1] ss:$2 sm:$0xff] %v593
      %v643 = vld.sshfl [vmem:[#allocation1] sm:$0xff pattern:$0x75643120]
      %645 = vst [vmem:[%s618] ss:$2 sm:$0xff] %v596
      %v646 = vld.sshfl [vmem:[#allocation1 + $0x10] sm:$0xff pattern:$0x75643120]
      %648 = vst [vmem:[%s622] ss:$2 sm:$0xff] %v599
      %v649 = vld.sshfl [vmem:[#allocation1 + $0x20] sm:$0xff pattern:$0x75643120]
      %651 = vst [vmem:[%s626] ss:$2 sm:$0xff] %v602
      %v652 = vld.sshfl [vmem:[#allocation1 + $0x30] sm:$0xff pattern:$0x75643120]
      %654 = vst [vmem:[#allocation1] ss:$2 sm:$0xff] %v605
      %v655 = vld.sshfl [vmem:[#allocation1] sm:$0xff pattern:$0x75643120]
      %657 = vst [vmem:[%s618] ss:$2 sm:$0xff] %v608
      %v658 = vld.sshfl [vmem:[#allocation1 + $0x10] sm:$0xff pattern:$0x75643120]
      %660 = vst [vmem:[%s622] ss:$2 sm:$0xff] %v611
      %v661 = vld.sshfl [vmem:[#allocation1 + $0x20] sm:$0xff pattern:$0x75643120]
      %663 = vst [vmem:[%s626] ss:$2 sm:$0xff] %v614
      %v664 = vld.sshfl [vmem:[#allocation1 + $0x30] sm:$0xff pattern:$0x75643120]
      %v666 = vunpack.c.l.b16 %v616
      %v667 = vunpack.c.l.b16 %v620
      %v668 = vunpack.c.l.b16 %v624
      %v669 = vunpack.c.l.b16 %v628
      %v670 = vunpack.c.l.b16 %v631
      %v671 = vunpack.c.l.b16 %v634
      %v672 = vunpack.c.l.b16 %v637
      %v673 = vunpack.c.l.b16 %v640
      %v674 = vunpack.c.l.b16 %v643
      %v675 = vunpack.c.l.b16 %v646
      %v676 = vunpack.c.l.b16 %v649
      %v677 = vunpack.c.l.b16 %v652
      %v678 = vunpack.c.l.b16 %v655
      %v679 = vunpack.c.l.b16 %v658
      %v680 = vunpack.c.l.b16 %v661
      %v681 = vunpack.c.l.b16 %v664
      %v682 = vrot.slane %v667, 7
      %vm683 = vcmask 1041409
      %v684 = vsel %vm683, %v682, %v666
      %v685 = vrot.slane %v668, 6
      %vm686 = vcmask 1042434
      %v687 = vsel %vm686, %v685, %v684
      %v688 = vrot.slane %v669, 5
      %vm689 = vcmask 1043459
      %v690 = vsel %vm689, %v688, %v687
      %v691 = vrot.slane %v671, 7
      %v692 = vsel %vm683, %v691, %v670
      %v693 = vrot.slane %v672, 6
      %v694 = vsel %vm686, %v693, %v692
      %v695 = vrot.slane %v673, 5
      %v696 = vsel %vm689, %v695, %v694
      %v697 = vrot.slane %v675, 7
      %v698 = vsel %vm683, %v697, %v674
      %v699 = vrot.slane %v676, 6
      %v700 = vsel %vm686, %v699, %v698
      %v701 = vrot.slane %v677, 5
      %v702 = vsel %vm689, %v701, %v700
      %v703 = vrot.slane %v679, 7
      %v704 = vsel %vm683, %v703, %v678
      %v705 = vrot.slane %v680, 6
      %v706 = vsel %vm686, %v705, %v704
      %v707 = vrot.slane %v681, 5
      %v708 = vsel %vm689, %v707, %v706
      %v709 = vpack.c.b16 %v690, %v690
      %v710 = vpack.c.b16 %v696, %v696
      %v711 = vpack.c.b16 %v702, %v702
      %v712 = vpack.c.b16 %v708, %v708
      %v713 = vrot.slane %v709, 2
      %v714 = vrot.slane %v710, 2
      %v715 = vrot.slane %v711, 2
      %v716 = vrot.slane %v712, 2
      %v719 = vsel %vm342, %v709, %v713
      %v722 = vsel %vm342, %v710, %v714
      %v725 = vsel %vm342, %v711, %v715
      %v728 = vsel %vm342, %v712, %v716
      %733 = vst [vmem:[%s172] sm:$0x3] %v719
      %734 = vst [vmem:[%s172 + $0x2] sm:$0x3] %v722
      %735 = vst [vmem:[%s172 + $0x4] sm:$0x3] %v725
      %736 = vst [vmem:[%s172 + $0x6] sm:$0x3] %v728
      %s737 = smul.u32 4, %s14
      %p738 = scmp.lt.s32.totalorder %s737, 7
      %s739 = scalar_select %p738, %s737, 7
      %s740 = smul.addr %s739, 2
      %s741 = scalar_lea.vmem %s3, %s740
      // Predicated region
      $region33: #{densenet_forward.19} parent=31 // pred_check
        %p742 = pneg %p100
      $region34: #{densenet_forward.19} parent=31 // pred_check_branch
        %744 = sbr.rel (%p742) target = $region36
      $region35: #{densenet_forward.19} parent=31 // pred_region
        %s745 = smul.u32 4, %s14
      $region36: #{densenet_forward.19} parent=31 // pred_fallthru
        _
    $region32: #{densenet_forward.19} parent=5 // pred_fallthru
      _
    %p746 = scmp.le.s32.totalorder 2, %s9
    // Predicated region
    $region37: #{densenet_forward.19} parent=5 // pred_check
      %p747 = pneg %p746
    $region38: #{densenet_forward.19} parent=5 // pred_check_branch
      %749 = sbr.rel (%p747) target = $region40
    $region39: #{densenet_forward.19} parent=5 // pred_region
      %s750 = ssub.s32 %s9, 2
      // Predicated region
      $region41: #{densenet_forward.19} parent=39 // pred_check
        %p751 = pneg %p106
      $region42: #{densenet_forward.19} parent=39 // pred_check_branch
        %753 = sbr.rel (%p751) target = $region44
      $region43: #{densenet_forward.19} parent=39 // pred_region
        %s754 = smul.u32 4, %s15
        %p755 = scmp.lt.s32.totalorder %s754, 7
        %s756 = scalar_select %p755, %s754, 7
        %s757 = smul.addr %s756, 2
        %s758 = scalar_lea.vmem %s3, %s757
      $region44: #{densenet_forward.19} parent=39 // pred_fallthru
        _
    $region40: #{densenet_forward.19} parent=5 // pred_fallthru
      _
  $region6: #{densenet_forward.19} parent=0 // loop_footer
    %s13 = sadd.s32 1, %s9
  $region7: #{densenet_forward.19} parent=0 // loop_footer_branch
    %8 = sbr.rel target = $region3
  $region8: #{densenet_forward.19} parent=0 // loop_exit
    _

// kernel: densenet_forward.20
$region0: #{densenet_forward.20}
  #allocation0 [shape = 'u32[]', space=smem, size = 0x4, offset = 0x4, fixed_abs, tag = 'smem constant byte address 0x4 - core index']
  #allocation1 [shape = 'u32[72,128]{1,0:T(1,128)}', space=vmem, size = 0x9000, scoped, tag = 'internal scratch']
  #allocation2 [shape = 'f32[32,128]{1,0:T(8,128)}', space=vmem, size = 0x4000, scoped, tag = 'scratch operand']
  %s0 = inlined_call_operand.vmem [shape: bf16[32,128], index: 0, kind: input, shape index: {}]
  %s1 = inlined_call_operand.vmem [shape: bf16[128,128], index: 1, kind: input, shape index: {}]
  %s2 = inlined_call_operand.vmem [shape: f32[1,128], index: 2, kind: input, shape index: {}, may-alias: {2,3,5}]
  %s3 = inlined_call_operand.vmem [shape: f32[1,128], index: 3, kind: input, shape index: {}, may-alias: {2,3,5}]
  %s4 = inlined_call_operand.vmem [shape: f32[1,128], index: 4, kind: input, shape index: {}]
  %s5 = inlined_call_operand.vmem [shape: f32[1,128], index: 5, kind: input, shape index: {}, may-alias: {2,3,5}]
  %s6 = inlined_call_operand.vmem [shape: bf16[32,128], index: 6, kind: output, shape index: {}]
  %s7 = sld [smem:[#allocation0]]
  $region42: #{densenet_forward.20} parent=0
    _
  %s9 = ssub.s32 1, %s7
  %s10 = scalar_select 0, %s9, %s7
  // Predicated region
  $region2: #{densenet_forward.20} parent=0 // pred_check
    _
  $region3: #{densenet_forward.20} parent=0 // pred_check_branch
    %12 = sbr.rel (0) target = $region5
  $region4: #{densenet_forward.20} parent=0 // pred_region
    _
  $region5: #{densenet_forward.20} parent=0 // pred_fallthru
    _
  // Predicated region
  $region6: #{densenet_forward.20} parent=0 // pred_check
    _
  $region7: #{densenet_forward.20} parent=0 // pred_check_branch
    %14 = sbr.rel (0) target = $region9
  $region8: #{densenet_forward.20} parent=0 // pred_region
    _
  $region9: #{densenet_forward.20} parent=0 // pred_fallthru
    _
  // Predicated region
  $region10: #{densenet_forward.20} parent=0 // pred_check
    _
  $region11: #{densenet_forward.20} parent=0 // pred_check_branch
    %16 = sbr.rel (0) target = $region13
  $region12: #{densenet_forward.20} parent=0 // pred_region
    _
  $region13: #{densenet_forward.20} parent=0 // pred_fallthru
    _
  // Predicated region
  $region14: #{densenet_forward.20} parent=0 // pred_check
    _
  $region15: #{densenet_forward.20} parent=0 // pred_check_branch
    %18 = sbr.rel (0) target = $region17
  $region16: #{densenet_forward.20} parent=0 // pred_region
    _
  $region17: #{densenet_forward.20} parent=0 // pred_fallthru
    _
  // Predicated region
  $region18: #{densenet_forward.20} parent=0 // pred_check
    _
  $region19: #{densenet_forward.20} parent=0 // pred_check_branch
    %20 = sbr.rel (0) target = $region21
  $region20: #{densenet_forward.20} parent=0 // pred_region
    _
  $region21: #{densenet_forward.20} parent=0 // pred_fallthru
    _
  // Predicated region
  $region22: #{densenet_forward.20} parent=0 // pred_check
    _
  $region23: #{densenet_forward.20} parent=0 // pred_check_branch
    %22 = sbr.rel (0) target = $region25
  $region24: #{densenet_forward.20} parent=0 // pred_region
    _
  $region25: #{densenet_forward.20} parent=0 // pred_fallthru
    _
  %p23 = scmp.eq.s32.totalorder 0, 0
  // Predicated region
  $region26: #{densenet_forward.20} parent=0 // pred_check
    %p24 = pneg %p23
  $region27: #{densenet_forward.20} parent=0 // pred_check_branch
    %26 = sbr.rel (%p24) target = $region29
  $region28: #{densenet_forward.20} parent=0 // pred_region
    %27 = vst [vmem:[#allocation2] sm:$0xff] 0.0
    %28 = vst [vmem:[#allocation2 + $0x8] sm:$0xff] 0.0
    %29 = vst [vmem:[#allocation2 + $0x10] sm:$0xff] 0.0
    %30 = vst [vmem:[#allocation2 + $0x18] sm:$0xff] 0.0
  $region29: #{densenet_forward.20} parent=0 // pred_fallthru
    _
  %v31 = vld [vmem:[%s0] sm:$0xf]
  %v32 = vld [vmem:[%s0 + $0x4] sm:$0xf]
  %v33 = vld [vmem:[%s0 + $0x8] sm:$0xf]
  %v34 = vld [vmem:[%s0 + $0xc] sm:$0xf]
  %v35 = vld [vmem:[#allocation2] sm:$0xff]
  %v36 = vld [vmem:[#allocation2 + $0x8] sm:$0xff]
  %v37 = vld [vmem:[#allocation2 + $0x10] sm:$0xff]
  %v38 = vld [vmem:[#allocation2 + $0x18] sm:$0xff]
  %v39 = vld [vmem:[%s1] sm:$0xf]
  %v40 = vld [vmem:[%s1 + $0x4] sm:$0xf]
  %v41 = vld [vmem:[%s1 + $0x8] sm:$0xf]
  %v42 = vld [vmem:[%s1 + $0xc] sm:$0xf]
  %v43 = vld [vmem:[%s1 + $0x10] sm:$0xf]
  %v44 = vld [vmem:[%s1 + $0x14] sm:$0xf]
  %v45 = vld [vmem:[%s1 + $0x18] sm:$0xf]
  %v46 = vld [vmem:[%s1 + $0x1c] sm:$0xf]
  %v47 = vld [vmem:[%s1 + $0x20] sm:$0xf]
  %v48 = vld [vmem:[%s1 + $0x24] sm:$0xf]
  %v49 = vld [vmem:[%s1 + $0x28] sm:$0xf]
  %v50 = vld [vmem:[%s1 + $0x2c] sm:$0xf]
  %v51 = vld [vmem:[%s1 + $0x30] sm:$0xf]
  %v52 = vld [vmem:[%s1 + $0x34] sm:$0xf]
  %v53 = vld [vmem:[%s1 + $0x38] sm:$0xf]
  %v54 = vld [vmem:[%s1 + $0x3c] sm:$0xf]
  %v59 = vunpack.c.l.b16 %v31
  %v60 = vunpack.c.l.b16 %v32
  %v61 = vunpack.c.l.b16 %v33
  %v62 = vunpack.c.l.b16 %v34
  %v63 = vpack.c.b16 %v60, %v59
  %v64 = vpack.c.b16 %v62, %v61
  %v83 = vunpack.c.l.b16 %v39
  %v84 = vunpack.c.l.b16 %v40
  %v85 = vunpack.c.l.b16 %v41
  %v86 = vunpack.c.l.b16 %v42
  %v87 = vunpack.c.l.b16 %v43
  %v88 = vunpack.c.l.b16 %v44
  %v89 = vunpack.c.l.b16 %v45
  %v90 = vunpack.c.l.b16 %v46
  %v91 = vunpack.c.l.b16 %v47
  %v92 = vunpack.c.l.b16 %v48
  %v93 = vunpack.c.l.b16 %v49
  %v94 = vunpack.c.l.b16 %v50
  %v95 = vunpack.c.l.b16 %v51
  %v96 = vunpack.c.l.b16 %v52
  %v97 = vunpack.c.l.b16 %v53
  %v98 = vunpack.c.l.b16 %v54
  %v99 = vpack.c.b16 %v84, %v83
  %v100 = vpack.c.b16 %v86, %v85
  %v101 = vpack.c.b16 %v88, %v87
  %v102 = vpack.c.b16 %v90, %v89
  %v103 = vpack.c.b16 %v92, %v91
  %v104 = vpack.c.b16 %v94, %v93
  %v105 = vpack.c.b16 %v96, %v95
  %v106 = vpack.c.b16 %v98, %v97
  %115 = vmatpush.bf16.msra.mxu0 %v106
  %116 = vmatpush.bf16.msra.mxu0 %v105
  %117 = vmatpush.bf16.msra.mxu0 %v104
  %118 = vmatpush.bf16.msra.mxu0 %v103
  %119 = vmatpush.bf16.msra.mxu0 %v102
  %120 = vmatpush.bf16.msra.mxu0 %v101
  %121 = vmatpush.bf16.msra.mxu0 %v100
  %122 = vmatpush.bf16.msra.mxu0 %v99
  %123 = vmatmul.bf16.gmra.mxu0 %v63
  %v124 = vpop.f32.mrf.mxu0
  %v125 = vadd.f32 0.0, %v124
  %v126 = vpop.f32.mrf.mxu0
  %v127 = vadd.f32 0.0, %v126
  %128 = vmatmul.bf16.gmra.mxu0 %v64
  %v129 = vpop.f32.mrf.mxu0
  %v130 = vadd.f32 0.0, %v129
  %v131 = vpop.f32.mrf.mxu0
  %v132 = vadd.f32 0.0, %v131
  %133 = vdwg.mxu0
  %v134 = vadd.f32 %v35, %v125
  %v135 = vadd.f32 %v36, %v127
  %v136 = vadd.f32 %v37, %v130
  %v137 = vadd.f32 %v38, %v132
  %138 = vst [vmem:[#allocation2] sm:$0xff] %v134
  %139 = vst [vmem:[#allocation2 + $0x8] sm:$0xff] %v135
  %140 = vst [vmem:[#allocation2 + $0x10] sm:$0xff] %v136
  %141 = vst [vmem:[#allocation2 + $0x18] sm:$0xff] %v137
  // Predicated region
  $region30: #{densenet_forward.20} parent=0 // pred_check
    %p142 = pneg %p23
  $region31: #{densenet_forward.20} parent=0 // pred_check_branch
    %144 = sbr.rel (%p142) target = $region33
  $region32: #{densenet_forward.20} parent=0 // pred_region
    %v145 = vld [vmem:[#allocation2] sm:$0xff]
    %v146 = vld [vmem:[#allocation2 + $0x8] sm:$0xff]
    %v147 = vld [vmem:[#allocation2 + $0x10] sm:$0xff]
    %v148 = vld [vmem:[#allocation2 + $0x18] sm:$0xff]
    %v149 = vpack.c.bf16 %v145, %v145
    %v150 = vpack.c.bf16 %v146, %v146
    %v151 = vpack.c.bf16 %v147, %v147
    %v152 = vpack.c.bf16 %v148, %v148
    %153 = vst [vmem:[%s6] sm:$0xf] %v149
    %154 = vst [vmem:[%s6 + $0x4] sm:$0xf] %v150
    %155 = vst [vmem:[%s6 + $0x8] sm:$0xf] %v151
    %156 = vst [vmem:[%s6 + $0xc] sm:$0xf] %v152
  $region33: #{densenet_forward.20} parent=0 // pred_fallthru
    _
  // Predicated region
  $region34: #{densenet_forward.20} parent=0 // pred_check
    _
  $region35: #{densenet_forward.20} parent=0 // pred_check_branch
    %158 = sbr.rel (0) target = $region37
  $region36: #{densenet_forward.20} parent=0 // pred_region
    _
  $region37: #{densenet_forward.20} parent=0 // pred_fallthru
    _
  // Predicated region
  $region38: #{densenet_forward.20} parent=0 // pred_check
    _
  $region39: #{densenet_forward.20} parent=0 // pred_check_branch
    %160 = sbr.rel (0) target = $region41
  $region40: #{densenet_forward.20} parent=0 // pred_region
    _
  $region41: #{densenet_forward.20} parent=0 // pred_fallthru
    _

// kernel: densenet_forward.21
$region0: #{densenet_forward.21}
  #allocation0 [shape = 'u32[]', space=smem, size = 0x4, offset = 0x4, fixed_abs, tag = 'smem constant byte address 0x4 - core index']
  #allocation1 [shape = 'u32[72,128]{1,0:T(1,128)}', space=vmem, size = 0x9000, scoped, tag = 'internal scratch']
  #allocation2 [shape = 'f32[32,128]{1,0:T(8,128)}', space=vmem, size = 0x4000, scoped, tag = 'scratch operand']
  %s0 = inlined_call_operand.vmem [shape: bf16[32,128], index: 0, kind: input, shape index: {}]
  %s1 = inlined_call_operand.vmem [shape: bf16[128,128], index: 1, kind: input, shape index: {}]
  %s2 = inlined_call_operand.vmem [shape: f32[1,128], index: 2, kind: input, shape index: {}]
  %s3 = inlined_call_operand.vmem [shape: f32[1,128], index: 3, kind: input, shape index: {}]
  %s4 = inlined_call_operand.vmem [shape: f32[1,128], index: 4, kind: input, shape index: {}]
  %s5 = inlined_call_operand.vmem [shape: f32[1,128], index: 5, kind: input, shape index: {}]
  %s6 = inlined_call_operand.vmem [shape: bf16[32,128], index: 6, kind: output, shape index: {}]
  %s7 = sld [smem:[#allocation0]]
  $region42: #{densenet_forward.21} parent=0
    _
  %s9 = ssub.s32 1, %s7
  %s10 = scalar_select 0, %s9, %s7
  // Predicated region
  $region2: #{densenet_forward.21} parent=0 // pred_check
    _
  $region3: #{densenet_forward.21} parent=0 // pred_check_branch
    %12 = sbr.rel (0) target = $region5
  $region4: #{densenet_forward.21} parent=0 // pred_region
    _
  $region5: #{densenet_forward.21} parent=0 // pred_fallthru
    _
  // Predicated region
  $region6: #{densenet_forward.21} parent=0 // pred_check
    _
  $region7: #{densenet_forward.21} parent=0 // pred_check_branch
    %14 = sbr.rel (0) target = $region9
  $region8: #{densenet_forward.21} parent=0 // pred_region
    _
  $region9: #{densenet_forward.21} parent=0 // pred_fallthru
    _
  // Predicated region
  $region10: #{densenet_forward.21} parent=0 // pred_check
    _
  $region11: #{densenet_forward.21} parent=0 // pred_check_branch
    %16 = sbr.rel (0) target = $region13
  $region12: #{densenet_forward.21} parent=0 // pred_region
    _
  $region13: #{densenet_forward.21} parent=0 // pred_fallthru
    _
  // Predicated region
  $region14: #{densenet_forward.21} parent=0 // pred_check
    _
  $region15: #{densenet_forward.21} parent=0 // pred_check_branch
    %18 = sbr.rel (0) target = $region17
  $region16: #{densenet_forward.21} parent=0 // pred_region
    _
  $region17: #{densenet_forward.21} parent=0 // pred_fallthru
    _
  // Predicated region
  $region18: #{densenet_forward.21} parent=0 // pred_check
    _
  $region19: #{densenet_forward.21} parent=0 // pred_check_branch
    %20 = sbr.rel (0) target = $region21
  $region20: #{densenet_forward.21} parent=0 // pred_region
    _
  $region21: #{densenet_forward.21} parent=0 // pred_fallthru
    _
  // Predicated region
  $region22: #{densenet_forward.21} parent=0 // pred_check
    _
  $region23: #{densenet_forward.21} parent=0 // pred_check_branch
    %22 = sbr.rel (0) target = $region25
  $region24: #{densenet_forward.21} parent=0 // pred_region
    _
  $region25: #{densenet_forward.21} parent=0 // pred_fallthru
    _
  %p23 = scmp.eq.s32.totalorder 0, 0
  // Predicated region
  $region26: #{densenet_forward.21} parent=0 // pred_check
    %p24 = pneg %p23
  $region27: #{densenet_forward.21} parent=0 // pred_check_branch
    %26 = sbr.rel (%p24) target = $region29
  $region28: #{densenet_forward.21} parent=0 // pred_region
    %27 = vst [vmem:[#allocation2] sm:$0xff] 0.0
    %28 = vst [vmem:[#allocation2 + $0x8] sm:$0xff] 0.0
    %29 = vst [vmem:[#allocation2 + $0x10] sm:$0xff] 0.0
    %30 = vst [vmem:[#allocation2 + $0x18] sm:$0xff] 0.0
  $region29: #{densenet_forward.21} parent=0 // pred_fallthru
    _
  %v31 = vld [vmem:[%s0] sm:$0xf]
  %v32 = vld [vmem:[%s0 + $0x4] sm:$0xf]
  %v33 = vld [vmem:[%s0 + $0x8] sm:$0xf]
  %v34 = vld [vmem:[%s0 + $0xc] sm:$0xf]
  %v35 = vunpack.c.l.bf16 %v31
  %v36 = vunpack.c.l.bf16 %v32
  %v37 = vunpack.c.l.bf16 %v33
  %v38 = vunpack.c.l.bf16 %v34
  %v39 = vld [vmem:[%s2] sm:$0x1]
  %v41 = vperm.slane %v39, 0
  %v43 = vmul.f32 %v35, %v41
  %v44 = vmul.f32 %v36, %v41
  %v45 = vmul.f32 %v37, %v41
  %v46 = vmul.f32 %v38, %v41
  %v47 = vld [vmem:[%s3] sm:$0x1]
  %v49 = vperm.slane %v47, 0
  %v51 = vadd.f32 %v43, %v49
  %v52 = vadd.f32 %v44, %v49
  %v53 = vadd.f32 %v45, %v49
  %v54 = vadd.f32 %v46, %v49
  %v55 = vmax.f32 %v51, 0.0
  %v56 = vmax.f32 %v52, 0.0
  %v57 = vmax.f32 %v53, 0.0
  %v58 = vmax.f32 %v54, 0.0
  %v59 = vpack.c.bf16 %v56, %v55
  %v60 = vpack.c.bf16 %v58, %v57
  %v61 = vld [vmem:[#allocation2] sm:$0xff]
  %v62 = vld [vmem:[#allocation2 + $0x8] sm:$0xff]
  %v63 = vld [vmem:[#allocation2 + $0x10] sm:$0xff]
  %v64 = vld [vmem:[#allocation2 + $0x18] sm:$0xff]
  %v65 = vld [vmem:[%s1] sm:$0xf]
  %v66 = vld [vmem:[%s1 + $0x4] sm:$0xf]
  %v67 = vld [vmem:[%s1 + $0x8] sm:$0xf]
  %v68 = vld [vmem:[%s1 + $0xc] sm:$0xf]
  %v69 = vld [vmem:[%s1 + $0x10] sm:$0xf]
  %v70 = vld [vmem:[%s1 + $0x14] sm:$0xf]
  %v71 = vld [vmem:[%s1 + $0x18] sm:$0xf]
  %v72 = vld [vmem:[%s1 + $0x1c] sm:$0xf]
  %v73 = vld [vmem:[%s1 + $0x20] sm:$0xf]
  %v74 = vld [vmem:[%s1 + $0x24] sm:$0xf]
  %v75 = vld [vmem:[%s1 + $0x28] sm:$0xf]
  %v76 = vld [vmem:[%s1 + $0x2c] sm:$0xf]
  %v77 = vld [vmem:[%s1 + $0x30] sm:$0xf]
  %v78 = vld [vmem:[%s1 + $0x34] sm:$0xf]
  %v79 = vld [vmem:[%s1 + $0x38] sm:$0xf]
  %v80 = vld [vmem:[%s1 + $0x3c] sm:$0xf]
  %v97 = vunpack.c.l.b16 %v65
  %v98 = vunpack.c.l.b16 %v66
  %v99 = vunpack.c.l.b16 %v67
  %v100 = vunpack.c.l.b16 %v68
  %v101 = vunpack.c.l.b16 %v69
  %v102 = vunpack.c.l.b16 %v70
  %v103 = vunpack.c.l.b16 %v71
  %v104 = vunpack.c.l.b16 %v72
  %v105 = vunpack.c.l.b16 %v73
  %v106 = vunpack.c.l.b16 %v74
  %v107 = vunpack.c.l.b16 %v75
  %v108 = vunpack.c.l.b16 %v76
  %v109 = vunpack.c.l.b16 %v77
  %v110 = vunpack.c.l.b16 %v78
  %v111 = vunpack.c.l.b16 %v79
  %v112 = vunpack.c.l.b16 %v80
  %v113 = vpack.c.b16 %v98, %v97
  %v114 = vpack.c.b16 %v100, %v99
  %v115 = vpack.c.b16 %v102, %v101
  %v116 = vpack.c.b16 %v104, %v103
  %v117 = vpack.c.b16 %v106, %v105
  %v118 = vpack.c.b16 %v108, %v107
  %v119 = vpack.c.b16 %v110, %v109
  %v120 = vpack.c.b16 %v112, %v111
  %129 = vmatpush.bf16.msra.mxu0 %v120
  %130 = vmatpush.bf16.msra.mxu0 %v119
  %131 = vmatpush.bf16.msra.mxu0 %v118
  %132 = vmatpush.bf16.msra.mxu0 %v117
  %133 = vmatpush.bf16.msra.mxu0 %v116
  %134 = vmatpush.bf16.msra.mxu0 %v115
  %135 = vmatpush.bf16.msra.mxu0 %v114
  %136 = vmatpush.bf16.msra.mxu0 %v113
  %137 = vmatmul.bf16.gmra.mxu0 %v59
  %v138 = vpop.f32.mrf.mxu0
  %v139 = vadd.f32 0.0, %v138
  %v140 = vpop.f32.mrf.mxu0
  %v141 = vadd.f32 0.0, %v140
  %142 = vmatmul.bf16.gmra.mxu0 %v60
  %v143 = vpop.f32.mrf.mxu0
  %v144 = vadd.f32 0.0, %v143
  %v145 = vpop.f32.mrf.mxu0
  %v146 = vadd.f32 0.0, %v145
  %147 = vdwg.mxu0
  %v148 = vadd.f32 %v61, %v139
  %v149 = vadd.f32 %v62, %v141
  %v150 = vadd.f32 %v63, %v144
  %v151 = vadd.f32 %v64, %v146
  %152 = vst [vmem:[#allocation2] sm:$0xff] %v148
  %153 = vst [vmem:[#allocation2 + $0x8] sm:$0xff] %v149
  %154 = vst [vmem:[#allocation2 + $0x10] sm:$0xff] %v150
  %155 = vst [vmem:[#allocation2 + $0x18] sm:$0xff] %v151
  // Predicated region
  $region30: #{densenet_forward.21} parent=0 // pred_check
    %p156 = pneg %p23
  $region31: #{densenet_forward.21} parent=0 // pred_check_branch
    %158 = sbr.rel (%p156) target = $region33
  $region32: #{densenet_forward.21} parent=0 // pred_region
    %v159 = vld [vmem:[#allocation2] sm:$0xff]
    %v160 = vld [vmem:[#allocation2 + $0x8] sm:$0xff]
    %v161 = vld [vmem:[#allocation2 + $0x10] sm:$0xff]
    %v162 = vld [vmem:[#allocation2 + $0x18] sm:$0xff]
    %v163 = vld [vmem:[%s4] sm:$0x1]
    %v165 = vperm.slane %v163, 0
    %v167 = vmul.f32 %v159, %v165
    %v168 = vmul.f32 %v160, %v165
    %v169 = vmul.f32 %v161, %v165
    %v170 = vmul.f32 %v162, %v165
    %v171 = vld [vmem:[%s5] sm:$0x1]
    %v173 = vperm.slane %v171, 0
    %v175 = vadd.f32 %v167, %v173
    %v176 = vadd.f32 %v168, %v173
    %v177 = vadd.f32 %v169, %v173
    %v178 = vadd.f32 %v170, %v173
    %v179 = vmax.f32 %v175, 0.0
    %v180 = vmax.f32 %v176, 0.0
    %v181 = vmax.f32 %v177, 0.0
    %v182 = vmax.f32 %v178, 0.0
    %v183 = vpack.c.bf16 %v179, %v179
    %v184 = vpack.c.bf16 %v180, %v180
    %v185 = vpack.c.bf16 %v181, %v181
    %v186 = vpack.c.bf16 %v182, %v182
    %187 = vst [vmem:[%s6] sm:$0xf] %v183
    %188 = vst [vmem:[%s6 + $0x4] sm:$0xf] %v184
    %189 = vst [vmem:[%s6 + $0x8] sm:$0xf] %v185
    %190 = vst [vmem:[%s6 + $0xc] sm:$0xf] %v186
  $region33: #{densenet_forward.21} parent=0 // pred_fallthru
    _
  // Predicated region
  $region34: #{densenet_forward.21} parent=0 // pred_check
    _
  $region35: #{densenet_forward.21} parent=0 // pred_check_branch
    %192 = sbr.rel (0) target = $region37
  $region36: #{densenet_forward.21} parent=0 // pred_region
    _
  $region37: #{densenet_forward.21} parent=0 // pred_fallthru
    _
  // Predicated region
  $region38: #{densenet_forward.21} parent=0 // pred_check
    _
  $region39: #{densenet_forward.21} parent=0 // pred_check_branch
    %194 = sbr.rel (0) target = $region41
  $region40: #{densenet_forward.21} parent=0 // pred_region
    _
  $region41: #{densenet_forward.21} parent=0 // pred_fallthru
    _

// kernel: densenet_forward.22
$region0: #{densenet_forward.22}
  #allocation0 [shape = 'u32[]', space=smem, size = 0x4, offset = 0x4, fixed_abs, tag = 'smem constant byte address 0x4 - core index']
  #allocation1 [shape = 'u32[72,128]{1,0:T(1,128)}', space=vmem, size = 0x9000, scoped, tag = 'internal scratch']
  #allocation2 [shape = 'bf16[144,128]{1,0:T(8,128)(2,1)}', space=vmem, size = 0x9000, scoped, tag = 'scratch operand']
  #allocation3 [shape = 'bf16[128,384]{1,0:T(8,128)(2,1)}', space=vmem, size = 0x18000, scoped, tag = 'scratch operand']
  %s0 = inlined_call_operand.vmem [shape: bf16[2,144,128], index: 0, kind: input, shape index: {}, may-alias: {0,1}]
  %s1 = inlined_call_operand.vmem [shape: bf16[2,144,128], index: 1, kind: input, shape index: {}, may-alias: {0,1}]
  %s2 = inlined_call_operand.vmem [shape: bf16[3,384,32], index: 2, kind: input, shape index: {}]
  %s3 = inlined_call_operand.vmem [shape: bf16[2,96,32], index: 3, kind: output, shape index: {}]
  %s4 = sld [smem:[#allocation0]]
  $region45: #{densenet_forward.22} parent=0
    _
  %s6 = ssub.s32 1, %s4
  %s7 = scalar_select 0, %s6, %s4
  loop: start=0, step=1, limit=4
  $region2: #{densenet_forward.22} parent=0 // loop_pre_header
    _
  $region3: #{densenet_forward.22} parent=0 // loop_header
    %s9 = sphi 0, %s13
    %p10 = scmp.ge.s32.totalorder %s9, 4
    %s16 = sphi 0, %s28
    %s17 = sphi 0, %s24
    %s18 = sphi 0, %s16
    %s19 = sphi 0, %s17
    %s20 = sphi 0, %s18
    %s21 = sphi 0, %s19
    %s33 = sphi 0, %s35
    %s36 = sphi 0, %s33
    %s37 = sphi 0, %s36
    %s53 = sphi 0, %s37
    %s65 = sphi 0, %s67
    %s68 = sphi 0, %s65
    %s69 = sphi 0, %s68
    %s85 = sphi 0, %s69
    %s89 = sphi 0, %s89
    %s91 = sphi 0, %s89
    %s92 = sphi 0, %s91
    %s106 = sphi 0, %s92
    %s114 = sphi 0, %s116
    %s117 = sphi 0, %s114
    %s118 = sphi 0, %s117
    %s134 = sphi 0, %s118
  $region4: #{densenet_forward.22} parent=0 // loop_header_branch
    %12 = sbr.rel (%p10) target = $region8
  $region5: #{densenet_forward.22} parent=0 // loop_body
    %s14 = ssub.s32 %s9, 1
    %s15 = ssub.s32 %s9, 2
    %s22 = sadd.s32 1, %s17
    %p23 = scmp.ge.s32.totalorder %s22, 1
    %s24 = scalar_select %p23, 0, %s22
    %s25 = sadd.s32 1, %s16
    %s26 = scalar_select %p23, %s25, %s16
    %p27 = scmp.ge.s32.totalorder %s26, 2
    %s28 = scalar_select %p27, 0, %s26
    %s29 = ssub.s32 %s16, %s28
    %s30 = ssub.s32 %s17, %s24
    %s31 = sor.u32 %s29, %s30
    %p32 = scmp.eq.s32.totalorder %s31, 0
    %s34 = sadd.s32 %s33, 1
    %s35 = scalar_select %p32, %s33, %s34
    %p38 = pneg %p32
    %p39 = scmp.eq.s32.totalorder %s9, 1
    %p40 = por %p38, %p39
    %p41 = scmp.ne.s32.totalorder %s33, %s36
    %p42 = scmp.eq.s32.totalorder %s9, 0
    %p43 = por %p41, %p42
    %p44 = scmp.ne.s32.totalorder %s33, %s36
    %p45 = scmp.eq.s32.totalorder %s14, 1
    %p46 = por %p44, %p45
    %p47 = scmp.ne.s32.totalorder %s36, %s37
    %p48 = scmp.eq.s32.totalorder %s14, 0
    %p49 = por %p47, %p48
    %p50 = scmp.ne.s32.totalorder %s36, %s37
    %p51 = scmp.eq.s32.totalorder %s15, 1
    %p52 = por %p50, %p51
    %p54 = scmp.ne.s32.totalorder %s37, %s53
    %p55 = scmp.eq.s32.totalorder %s15, 0
    %p56 = por %p54, %p55
    %s57 = sadd.s32 %s17, 1
    %s58 = smul.u32 %s57, 2
    %s59 = sadd.s32 %s24, 1
    %s60 = smul.u32 %s59, 2
    %s61 = ssub.s32 %s16, %s28
    %s62 = ssub.s32 %s58, %s60
    %s63 = sor.u32 %s61, %s62
    %p64 = scmp.eq.s32.totalorder %s63, 0
    %s66 = sadd.s32 %s65, 1
    %s67 = scalar_select %p64, %s65, %s66
    %p70 = pneg %p64
    %p71 = scmp.eq.s32.totalorder %s9, 1
    %p72 = por %p70, %p71
    %p73 = scmp.ne.s32.totalorder %s65, %s68
    %p74 = scmp.eq.s32.totalorder %s9, 0
    %p75 = por %p73, %p74
    %p76 = scmp.ne.s32.totalorder %s65, %s68
    %p77 = scmp.eq.s32.totalorder %s14, 1
    %p78 = por %p76, %p77
    %p79 = scmp.ne.s32.totalorder %s68, %s69
    %p80 = scmp.eq.s32.totalorder %s14, 0
    %p81 = por %p79, %p80
    %p82 = scmp.ne.s32.totalorder %s68, %s69
    %p83 = scmp.eq.s32.totalorder %s15, 1
    %p84 = por %p82, %p83
    %p86 = scmp.ne.s32.totalorder %s69, %s85
    %p87 = scmp.eq.s32.totalorder %s15, 0
    %p88 = por %p86, %p87
    %s90 = sadd.s32 %s89, 1
    %p93 = scmp.eq.s32.totalorder %s9, 1
    %p94 = scmp.ne.s32.totalorder %s89, %s91
    %p95 = scmp.eq.s32.totalorder %s9, 0
    %p96 = por %p94, %p95
    %p97 = scmp.ne.s32.totalorder %s89, %s91
    %p98 = scmp.eq.s32.totalorder %s14, 1
    %p99 = por %p97, %p98
    %p100 = scmp.ne.s32.totalorder %s91, %s92
    %p101 = scmp.eq.s32.totalorder %s14, 0
    %p102 = por %p100, %p101
    %p103 = scmp.ne.s32.totalorder %s91, %s92
    %p104 = scmp.eq.s32.totalorder %s15, 1
    %p105 = por %p103, %p104
    %p107 = scmp.ne.s32.totalorder %s92, %s106
    %p108 = scmp.eq.s32.totalorder %s15, 0
    %p109 = por %p107, %p108
    %s110 = ssub.s32 %s16, %s28
    %s111 = ssub.s32 %s17, %s24
    %s112 = sor.u32 %s110, %s111
    %p113 = scmp.eq.s32.totalorder %s112, 0
    %s115 = sadd.s32 %s114, 1
    %s116 = scalar_select %p113, %s114, %s115
    %p119 = pneg %p113
    %p120 = scmp.eq.s32.totalorder %s9, 1
    %p121 = por %p119, %p120
    %p122 = scmp.ne.s32.totalorder %s114, %s117
    %p123 = scmp.eq.s32.totalorder %s9, 0
    %p124 = por %p122, %p123
    %p125 = scmp.ne.s32.totalorder %s114, %s117
    %p126 = scmp.eq.s32.totalorder %s14, 1
    %p127 = por %p125, %p126
    %p128 = scmp.ne.s32.totalorder %s117, %s118
    %p129 = scmp.eq.s32.totalorder %s14, 0
    %p130 = por %p128, %p129
    %p131 = scmp.ne.s32.totalorder %s117, %s118
    %p132 = scmp.eq.s32.totalorder %s15, 1
    %p133 = por %p131, %p132
    %p135 = scmp.ne.s32.totalorder %s118, %s134
    %p136 = scmp.eq.s32.totalorder %s15, 0
    %p137 = por %p135, %p136
    %p138 = scmp.le.s32.totalorder 1, %s9
    %p139 = scmp.lt.s32.totalorder %s9, 3
    %p140 = pnand %p138, %p139
    %p141 = pneg %p140
    // Predicated region
    $region9: #{densenet_forward.22} parent=5 // pred_check
      _
    $region10: #{densenet_forward.22} parent=5 // pred_check_branch
      %143 = sbr.rel (%p140) target = $region12
    $region11: #{densenet_forward.22} parent=5 // pred_region
      %s144 = ssub.s32 %s9, 1
      // Predicated region
      $region13: #{densenet_forward.22} parent=11 // pred_check
        %p145 = pneg %p102
      $region14: #{densenet_forward.22} parent=11 // pred_check_branch
        %147 = sbr.rel (%p145) target = $region16
      $region15: #{densenet_forward.22} parent=11 // pred_region
        _
      $region16: #{densenet_forward.22} parent=11 // pred_fallthru
        _
    $region12: #{densenet_forward.22} parent=5 // pred_fallthru
      _
    %p148 = scmp.lt.s32.totalorder %s9, 2
    // Predicated region
    $region17: #{densenet_forward.22} parent=5 // pred_check
      %p149 = pneg %p148
    $region18: #{densenet_forward.22} parent=5 // pred_check_branch
      %151 = sbr.rel (%p149) target = $region20
    $region19: #{densenet_forward.22} parent=5 // pred_region
      // Predicated region
      $region21: #{densenet_forward.22} parent=19 // pred_check
        %p152 = pneg %p43
      $region22: #{densenet_forward.22} parent=19 // pred_check_branch
        %154 = sbr.rel (%p152) target = $region24
      $region23: #{densenet_forward.22} parent=19 // pred_region
        %s155 = smul.u32 12, %s17
        %s156 = ssub.s32 18, %s155
        %p157 = scmp.lt.s32.totalorder %s156, 12
        %s158 = scalar_select %p157, %s156, 12
        %s159 = smul.u32 4, %s158
        %p160 = scmp.lt.s32.totalorder %s16, 1
        %s161 = scalar_select %p160, %s16, 1
        %p162 = scmp.lt.s32.totalorder %s155, 17
        %s163 = scalar_select %p162, %s155, 17
        %s164 = smul.addr %s161, 18
        %s165 = sadd.s32 %s163, %s164
        %s166 = smul.addr %s165, 4
        %s167 = scalar_lea.vmem %s0, %s166
        %s168 = smul.u32 12, %s17
        %s169 = ssub.s32 18, %s168
        %p170 = scmp.lt.s32.totalorder %s169, 12
        %s171 = scalar_select %p170, %s169, 12
        %s172 = smul.u32 4, %s171
      $region24: #{densenet_forward.22} parent=19 // pred_fallthru
        _
      // Predicated region
      $region25: #{densenet_forward.22} parent=19 // pred_check
        %p173 = pneg %p75
      $region26: #{densenet_forward.22} parent=19 // pred_check_branch
        %175 = sbr.rel (%p173) target = $region28
      $region27: #{densenet_forward.22} parent=19 // pred_region
        %s176 = sadd.s32 %s17, 1
        %s177 = smul.u32 %s176, 2
        %s178 = smul.u32 6, %s177
        %p179 = scmp.lt.s32.totalorder %s16, 1
        %s180 = scalar_select %p179, %s16, 1
        %p181 = scmp.lt.s32.totalorder %s178, 17
        %s182 = scalar_select %p181, %s178, 17
        %s183 = smul.addr %s180, 18
        %s184 = sadd.s32 %s182, %s183
        %s185 = smul.addr %s184, 4
        %s186 = scalar_lea.vmem %s1, %s185
        %s187 = sadd.s32 %s17, 1
        %s188 = smul.u32 %s187, 2
        %s189 = smul.u32 6, %s188
      $region28: #{densenet_forward.22} parent=19 // pred_fallthru
        _
    $region20: #{densenet_forward.22} parent=5 // pred_fallthru
      _
    %p190 = scmp.le.s32.totalorder 1, %s9
    %p191 = scmp.lt.s32.totalorder %s9, 3
    %p192 = pnand %p190, %p191
    %p193 = pneg %p192
    // Predicated region
    $region29: #{densenet_forward.22} parent=5 // pred_check
      _
    $region30: #{densenet_forward.22} parent=5 // pred_check_branch
      %195 = sbr.rel (%p192) target = $region32
    $region31: #{densenet_forward.22} parent=5 // pred_region
      %s196 = ssub.s32 %s9, 1
      %s197 = smul.u32 12, %s19
      %s198 = ssub.s32 18, %s197
      %p199 = scmp.lt.s32.totalorder %s198, 12
      %s200 = scalar_select %p199, %s198, 12
      %s201 = smul.u32 4, %s200
      %p202 = scmp.lt.s32.totalorder %s18, 1
      %s203 = scalar_select %p202, %s18, 1
      %p204 = scmp.lt.s32.totalorder %s197, 17
      %s205 = scalar_select %p204, %s197, 17
      %s206 = smul.addr %s203, 18
      %s207 = sadd.s32 %s205, %s206
      %s208 = smul.addr %s207, 4
      %s209 = scalar_lea.vmem %s0, %s208
      %p210 = pneg %p49
      %p211 = pneg %p46
      %s212 = sadd.s32 %s19, 1
      %s213 = smul.u32 %s212, 2
      %s214 = smul.u32 6, %s213
      %p215 = scmp.lt.s32.totalorder %s18, 1
      %s216 = scalar_select %p215, %s18, 1
      %p217 = scmp.lt.s32.totalorder %s214, 17
      %s218 = scalar_select %p217, %s214, 17
      %s219 = smul.addr %s216, 18
      %s220 = sadd.s32 %s218, %s219
      %s221 = smul.addr %s220, 4
      %s222 = scalar_lea.vmem %s1, %s221
      %p223 = pneg %p81
      %p224 = pneg %p78
      %p225 = pneg %p102
      %p226 = pneg %p99
      %p227 = pneg %p130
      %p228 = pneg %p127
      %s229 = smul.u32 12, %s19
      %p230 = scmp.lt.s32.totalorder %s18, 1
      %s231 = scalar_select %p230, %s18, 1
      %p232 = scmp.lt.s32.totalorder %s229, 11
      %s233 = scalar_select %p232, %s229, 11
      %s234 = smul.addr %s231, 12
      %s235 = sadd.s32 %s233, %s234
      %s236 = smul.addr %s235, 4
      %s237 = scalar_lea.vmem %s3, %s236
      %s238 = smul.u32 12, %s19
      %s239 = ssub.s32 18, %s238
      %p240 = scmp.lt.s32.totalorder %s239, 12
      %s241 = scalar_select %p240, %s239, 12
      %s242 = smul.u32 4, %s241
      %p243 = scmp.lt.s32.totalorder %s18, 1
      %s244 = scalar_select %p243, %s18, 1
      %p245 = scmp.lt.s32.totalorder %s238, 17
      %s246 = scalar_select %p245, %s238, 17
      %s247 = smul.addr %s244, 18
      %s248 = sadd.s32 %s246, %s247
      %s249 = smul.addr %s248, 4
      %s250 = scalar_lea.vmem %s0, %s249
      %s251 = smul.u32 12, %s19
      %s252 = ssub.s32 18, %s251
      %p253 = scmp.lt.s32.totalorder %s252, 12
      %s254 = scalar_select %p253, %s252, 12
      %s255 = smul.u32 4, %s254
      %s256 = sadd.s32 %s19, 1
      %s257 = smul.u32 %s256, 2
      %s258 = smul.u32 6, %s257
      %p259 = scmp.lt.s32.totalorder %s18, 1
      %s260 = scalar_select %p259, %s18, 1
      %p261 = scmp.lt.s32.totalorder %s258, 17
      %s262 = scalar_select %p261, %s258, 17
      %s263 = smul.addr %s260, 18
      %s264 = sadd.s32 %s262, %s263
      %s265 = smul.addr %s264, 4
      %s266 = scalar_lea.vmem %s1, %s265
      %s267 = sadd.s32 %s19, 1
      %s268 = smul.u32 %s267, 2
      %s269 = smul.u32 6, %s268
      %s270 = smul.u32 12, %s19
      %p271 = scmp.lt.s32.totalorder %s18, 1
      %s272 = scalar_select %p271, %s18, 1
      %p273 = scmp.lt.s32.totalorder %s270, 11
      %s274 = scalar_select %p273, %s270, 11
      %s275 = smul.addr %s272, 12
      %s276 = sadd.s32 %s274, %s275
      %s277 = smul.addr %s276, 4
      %s278 = scalar_lea.vmem %s3, %s277
      %s279 = smul.u32 12, %s19
      %v280 = vld [vmem:[%s250] sm:$0xf]
      %v281 = vld [vmem:[%s250 + $0x4] sm:$0xf]
      %v282 = vld [vmem:[%s250 + $0x8] sm:$0xf]
      %v283 = vld [vmem:[%s250 + $0xc] sm:$0xf]
      %v284 = vld [vmem:[%s250 + $0x10] sm:$0xf]
      %v285 = vld [vmem:[%s250 + $0x14] sm:$0xf]
      %v286 = vld [vmem:[%s250 + $0x18] sm:$0xf]
      %v287 = vld [vmem:[%s250 + $0x1c] sm:$0xf]
      %v288 = vld [vmem:[%s250 + $0x20] sm:$0xf]
      %v289 = vld [vmem:[%s250 + $0x24] sm:$0xf]
      %v290 = vld [vmem:[%s250 + $0x28] sm:$0xf]
      %v291 = vld [vmem:[%s250 + $0x2c] sm:$0xf]
      %292 = vst [vmem:[#allocation2] sm:$0xf] %v280
      %293 = vst [vmem:[#allocation2 + $0x4] sm:$0xf] %v281
      %294 = vst [vmem:[#allocation2 + $0x8] sm:$0xf] %v282
      %295 = vst [vmem:[#allocation2 + $0xc] sm:$0xf] %v283
      %296 = vst [vmem:[#allocation2 + $0x10] sm:$0xf] %v284
      %297 = vst [vmem:[#allocation2 + $0x14] sm:$0xf] %v285
      %298 = vst [vmem:[#allocation2 + $0x18] sm:$0xf] %v286
      %299 = vst [vmem:[#allocation2 + $0x1c] sm:$0xf] %v287
      %300 = vst [vmem:[#allocation2 + $0x20] sm:$0xf] %v288
      %301 = vst [vmem:[#allocation2 + $0x24] sm:$0xf] %v289
      %302 = vst [vmem:[#allocation2 + $0x28] sm:$0xf] %v290
      %303 = vst [vmem:[#allocation2 + $0x2c] sm:$0xf] %v291
      %v304 = vld [vmem:[%s266] sm:$0xf]
      %v305 = vld [vmem:[%s266 + $0x4] sm:$0xf]
      %v306 = vld [vmem:[%s266 + $0x8] sm:$0xf]
      %v307 = vld [vmem:[%s266 + $0xc] sm:$0xf]
      %v308 = vld [vmem:[%s266 + $0x10] sm:$0xf]
      %v309 = vld [vmem:[%s266 + $0x14] sm:$0xf]
      %310 = vst [vmem:[#allocation2 + $0x30] sm:$0xf] %v304
      %311 = vst [vmem:[#allocation2 + $0x34] sm:$0xf] %v305
      %312 = vst [vmem:[#allocation2 + $0x38] sm:$0xf] %v306
      %313 = vst [vmem:[#allocation2 + $0x3c] sm:$0xf] %v307
      %314 = vst [vmem:[#allocation2 + $0x40] sm:$0xf] %v308
      %315 = vst [vmem:[#allocation2 + $0x44] sm:$0xf] %v309
      %v316 = vld [vmem:[#allocation2] sm:$0xf]
      %v317 = vld [vmem:[#allocation2 + $0x4] sm:$0xf]
      %v318 = vld [vmem:[#allocation2 + $0x8] sm:$0xf]
      %v319 = vld [vmem:[#allocation2 + $0xc] sm:$0xf]
      %v320 = vld [vmem:[#allocation2 + $0x10] sm:$0xf]
      %v321 = vld [vmem:[#allocation2 + $0x14] sm:$0xf]
      %v322 = vld [vmem:[#allocation2 + $0x18] sm:$0xf]
      %v323 = vld [vmem:[#allocation2 + $0x1c] sm:$0xf]
      %v324 = vld [vmem:[#allocation2 + $0x20] sm:$0xf]
      %v325 = vld [vmem:[#allocation2 + $0x24] sm:$0xf]
      %v326 = vld [vmem:[#allocation2 + $0x28] sm:$0xf]
      %v327 = vld [vmem:[#allocation2 + $0x2c] sm:$0xf]
      %v328 = vld [vmem:[#allocation2 + $0x30] sm:$0xf]
      %v329 = vld [vmem:[#allocation2 + $0x34] sm:$0xf]
      %v330 = vld [vmem:[#allocation2 + $0x38] sm:$0xf]
      %v331 = vld [vmem:[#allocation2 + $0x3c] sm:$0xf]
      %332 = vst [vmem:[#allocation3] sm:$0xf] %v316
      %333 = vst [vmem:[#allocation3 + $0xc] sm:$0xf] %v317
      %334 = vst [vmem:[#allocation3 + $0x18] sm:$0xf] %v318
      %335 = vst [vmem:[#allocation3 + $0x24] sm:$0xf] %v319
      %336 = vst [vmem:[#allocation3 + $0x30] sm:$0xf] %v320
      %337 = vst [vmem:[#allocation3 + $0x3c] sm:$0xf] %v321
      %338 = vst [vmem:[#allocation3 + $0x48] sm:$0xf] %v322
      %339 = vst [vmem:[#allocation3 + $0x54] sm:$0xf] %v323
      %340 = vst [vmem:[#allocation3 + $0x60] sm:$0xf] %v324
      %341 = vst [vmem:[#allocation3 + $0x6c] sm:$0xf] %v325
      %342 = vst [vmem:[#allocation3 + $0x78] sm:$0xf] %v326
      %343 = vst [vmem:[#allocation3 + $0x84] sm:$0xf] %v327
      %344 = vst [vmem:[#allocation3 + $0x90] sm:$0xf] %v328
      %345 = vst [vmem:[#allocation3 + $0x9c] sm:$0xf] %v329
      %346 = vst [vmem:[#allocation3 + $0xa8] sm:$0xf] %v330
      %347 = vst [vmem:[#allocation3 + $0xb4] sm:$0xf] %v331
      %v348 = vld [vmem:[#allocation2] sm:$0xf]
      %v349 = vld [vmem:[#allocation2 + $0x4] sm:$0xf]
      %v350 = vld [vmem:[#allocation2 + $0x8] sm:$0xf]
      %v351 = vld [vmem:[#allocation2 + $0xc] sm:$0xf]
      %v352 = vld [vmem:[#allocation2 + $0x10] sm:$0xf]
      %v353 = vld [vmem:[#allocation2 + $0x14] sm:$0xf]
      %v354 = vld [vmem:[#allocation2 + $0x18] sm:$0xf]
      %v355 = vld [vmem:[#allocation2 + $0x1c] sm:$0xf]
      %v356 = vld [vmem:[#allocation2 + $0x20] sm:$0xf]
      %v357 = vld [vmem:[#allocation2 + $0x24] sm:$0xf]
      %v358 = vld [vmem:[#allocation2 + $0x28] sm:$0xf]
      %v359 = vld [vmem:[#allocation2 + $0x2c] sm:$0xf]
      %v360 = vld [vmem:[#allocation2 + $0x30] sm:$0xf]
      %v361 = vld [vmem:[#allocation2 + $0x34] sm:$0xf]
      %v362 = vld [vmem:[#allocation2 + $0x38] sm:$0xf]
      %v363 = vld [vmem:[#allocation2 + $0x3c] sm:$0xf]
      %v364 = vld [vmem:[#allocation2 + $0x40] sm:$0x1]
      %vm365 = vsmask.f32 3328
      %vm366 = vsmask.f32 7440
      %vm367 = vmor %vm365, %vm366
      %v369 = vshrl.u32 %v348, 16
      %v371 = vrot.slane %v369, 4
      %v372 = vshll.u32 %v348, 16
      %v374 = vrot.slane %v372, 5
      %v375 = vor.u32 %v371, %v374
      %v376 = vrot.slane %v375, 4
      %v378 = vshll.u32 %v349, 16
      %v380 = vrot.slane %v378, 5
      %v381 = vsel %vm367, %v376, %v380
      %v382 = vshrl.u32 %v349, 16
      %v384 = vrot.slane %v382, 4
      %v385 = vor.u32 %v384, %v380
      %v386 = vrot.slane %v385, 4
      %v388 = vshll.u32 %v350, 16
      %v390 = vrot.slane %v388, 5
      %v391 = vsel %vm367, %v386, %v390
      %v392 = vshrl.u32 %v350, 16
      %v394 = vrot.slane %v392, 4
      %v395 = vor.u32 %v394, %v390
      %v396 = vrot.slane %v395, 4
      %v398 = vshll.u32 %v351, 16
      %v400 = vrot.slane %v398, 5
      %v401 = vsel %vm367, %v396, %v400
      %v402 = vshrl.u32 %v351, 16
      %v404 = vrot.slane %v402, 4
      %v405 = vor.u32 %v404, %v400
      %v406 = vrot.slane %v405, 4
      %v408 = vshll.u32 %v352, 16
      %v410 = vrot.slane %v408, 5
      %v411 = vsel %vm367, %v406, %v410
      %v412 = vshrl.u32 %v352, 16
      %v414 = vrot.slane %v412, 4
      %v415 = vor.u32 %v414, %v410
      %v416 = vrot.slane %v415, 4
      %v418 = vshll.u32 %v353, 16
      %v420 = vrot.slane %v418, 5
      %v421 = vsel %vm367, %v416, %v420
      %v422 = vshrl.u32 %v353, 16
      %v424 = vrot.slane %v422, 4
      %v425 = vor.u32 %v424, %v420
      %v426 = vrot.slane %v425, 4
      %v428 = vshll.u32 %v354, 16
      %v430 = vrot.slane %v428, 5
      %v431 = vsel %vm367, %v426, %v430
      %v432 = vshrl.u32 %v354, 16
      %v434 = vrot.slane %v432, 4
      %v435 = vor.u32 %v434, %v430
      %v436 = vrot.slane %v435, 4
      %v438 = vshll.u32 %v355, 16
      %v440 = vrot.slane %v438, 5
      %v441 = vsel %vm367, %v436, %v440
      %v442 = vshrl.u32 %v355, 16
      %v444 = vrot.slane %v442, 4
      %v445 = vor.u32 %v444, %v440
      %v446 = vrot.slane %v445, 4
      %v448 = vshll.u32 %v356, 16
      %v450 = vrot.slane %v448, 5
      %v451 = vsel %vm367, %v446, %v450
      %v452 = vshrl.u32 %v356, 16
      %v454 = vrot.slane %v452, 4
      %v455 = vor.u32 %v454, %v450
      %v456 = vrot.slane %v455, 4
      %v458 = vshll.u32 %v357, 16
      %v460 = vrot.slane %v458, 5
      %v461 = vsel %vm367, %v456, %v460
      %v462 = vshrl.u32 %v357, 16
      %v464 = vrot.slane %v462, 4
      %v465 = vor.u32 %v464, %v460
      %v466 = vrot.slane %v465, 4
      %v468 = vshll.u32 %v358, 16
      %v470 = vrot.slane %v468, 5
      %v471 = vsel %vm367, %v466, %v470
      %v472 = vshrl.u32 %v358, 16
      %v474 = vrot.slane %v472, 4
      %v475 = vor.u32 %v474, %v470
      %v476 = vrot.slane %v475, 4
      %v478 = vshll.u32 %v359, 16
      %v480 = vrot.slane %v478, 5
      %v481 = vsel %vm367, %v476, %v480
      %v482 = vshrl.u32 %v359, 16
      %v484 = vrot.slane %v482, 4
      %v485 = vor.u32 %v484, %v480
      %v486 = vrot.slane %v485, 4
      %v488 = vshll.u32 %v360, 16
      %v490 = vrot.slane %v488, 5
      %v491 = vsel %vm367, %v486, %v490
      %v492 = vshrl.u32 %v360, 16
      %v494 = vrot.slane %v492, 4
      %v495 = vor.u32 %v494, %v490
      %v496 = vrot.slane %v495, 4
      %v498 = vshll.u32 %v361, 16
      %v500 = vrot.slane %v498, 5
      %v501 = vsel %vm367, %v496, %v500
      %v502 = vshrl.u32 %v361, 16
      %v504 = vrot.slane %v502, 4
      %v505 = vor.u32 %v504, %v500
      %v506 = vrot.slane %v505, 4
      %v508 = vshll.u32 %v362, 16
      %v510 = vrot.slane %v508, 5
      %v511 = vsel %vm367, %v506, %v510
      %v512 = vshrl.u32 %v362, 16
      %v514 = vrot.slane %v512, 4
      %v515 = vor.u32 %v514, %v510
      %v516 = vrot.slane %v515, 4
      %v518 = vshll.u32 %v363, 16
      %v520 = vrot.slane %v518, 5
      %v521 = vsel %vm367, %v516, %v520
      %v522 = vshrl.u32 %v363, 16
      %v524 = vrot.slane %v522, 4
      %v525 = vor.u32 %v524, %v520
      %v526 = vrot.slane %v525, 4
      %v528 = vshll.u32 %v364, 16
      %v530 = vrot.slane %v528, 5
      %v531 = vsel %vm367, %v526, %v530
      %548 = vst [vmem:[#allocation3 + $0x4] sm:$0xf] %v381
      %549 = vst [vmem:[#allocation3 + $0x10] sm:$0xf] %v391
      %550 = vst [vmem:[#allocation3 + $0x1c] sm:$0xf] %v401
      %551 = vst [vmem:[#allocation3 + $0x28] sm:$0xf] %v411
      %552 = vst [vmem:[#allocation3 + $0x34] sm:$0xf] %v421
      %553 = vst [vmem:[#allocation3 + $0x40] sm:$0xf] %v431
      %554 = vst [vmem:[#allocation3 + $0x4c] sm:$0xf] %v441
      %555 = vst [vmem:[#allocation3 + $0x58] sm:$0xf] %v451
      %556 = vst [vmem:[#allocation3 + $0x64] sm:$0xf] %v461
      %557 = vst [vmem:[#allocation3 + $0x70] sm:$0xf] %v471
      %558 = vst [vmem:[#allocation3 + $0x7c] sm:$0xf] %v481
      %559 = vst [vmem:[#allocation3 + $0x88] sm:$0xf] %v491
      %560 = vst [vmem:[#allocation3 + $0x94] sm:$0xf] %v501
      %561 = vst [vmem:[#allocation3 + $0xa0] sm:$0xf] %v511
      %562 = vst [vmem:[#allocation3 + $0xac] sm:$0xf] %v521
      %563 = vst [vmem:[#allocation3 + $0xb8] sm:$0xf] %v531
      %v564 = vld [vmem:[#allocation2] sm:$0xe]
      %v565 = vld [vmem:[#allocation2 + $0x4] sm:$0xf]
      %v566 = vld [vmem:[#allocation2 + $0x8] sm:$0xf]
      %v567 = vld [vmem:[#allocation2 + $0xc] sm:$0xf]
      %v568 = vld [vmem:[#allocation2 + $0x10] sm:$0xf]
      %v569 = vld [vmem:[#allocation2 + $0x14] sm:$0xf]
      %v570 = vld [vmem:[#allocation2 + $0x18] sm:$0xf]
      %v571 = vld [vmem:[#allocation2 + $0x1c] sm:$0xf]
      %v572 = vld [vmem:[#allocation2 + $0x20] sm:$0xf]
      %v573 = vld [vmem:[#allocation2 + $0x24] sm:$0xf]
      %v574 = vld [vmem:[#allocation2 + $0x28] sm:$0xf]
      %v575 = vld [vmem:[#allocation2 + $0x2c] sm:$0xf]
      %v576 = vld [vmem:[#allocation2 + $0x30] sm:$0xf]
      %v577 = vld [vmem:[#allocation2 + $0x34] sm:$0xf]
      %v578 = vld [vmem:[#allocation2 + $0x38] sm:$0xf]
      %v579 = vld [vmem:[#allocation2 + $0x3c] sm:$0xf]
      %v580 = vld [vmem:[#allocation2 + $0x40] sm:$0x1]
      %vm598 = vcmask 1042432
      %vm599 = vcmask 1046532
      %vm600 = vmor %vm598, %vm599
      %v601 = vrot.slane %v564, 5
      %v602 = vrot.slane %v601, 4
      %v603 = vrot.slane %v565, 5
      %v604 = vsel %vm600, %v602, %v603
      %v605 = vrot.slane %v603, 4
      %v606 = vrot.slane %v566, 5
      %v607 = vsel %vm600, %v605, %v606
      %v608 = vrot.slane %v606, 4
      %v609 = vrot.slane %v567, 5
      %v610 = vsel %vm600, %v608, %v609
      %v611 = vrot.slane %v609, 4
      %v612 = vrot.slane %v568, 5
      %v613 = vsel %vm600, %v611, %v612
      %v614 = vrot.slane %v612, 4
      %v615 = vrot.slane %v569, 5
      %v616 = vsel %vm600, %v614, %v615
      %v617 = vrot.slane %v615, 4
      %v618 = vrot.slane %v570, 5
      %v619 = vsel %vm600, %v617, %v618
      %v620 = vrot.slane %v618, 4
      %v621 = vrot.slane %v571, 5
      %v622 = vsel %vm600, %v620, %v621
      %v623 = vrot.slane %v621, 4
      %v624 = vrot.slane %v572, 5
      %v625 = vsel %vm600, %v623, %v624
      %v626 = vrot.slane %v624, 4
      %v627 = vrot.slane %v573, 5
      %v628 = vsel %vm600, %v626, %v627
      %v629 = vrot.slane %v627, 4
      %v630 = vrot.slane %v574, 5
      %v631 = vsel %vm600, %v629, %v630
      %v632 = vrot.slane %v630, 4
      %v633 = vrot.slane %v575, 5
      %v634 = vsel %vm600, %v632, %v633
      %v635 = vrot.slane %v633, 4
      %v636 = vrot.slane %v576, 5
      %v637 = vsel %vm600, %v635, %v636
      %v638 = vrot.slane %v636, 4
      %v639 = vrot.slane %v577, 5
      %v640 = vsel %vm600, %v638, %v639
      %v641 = vrot.slane %v639, 4
      %v642 = vrot.slane %v578, 5
      %v643 = vsel %vm600, %v641, %v642
      %v644 = vrot.slane %v642, 4
      %v645 = vrot.slane %v579, 5
      %v646 = vsel %vm600, %v644, %v645
      %v647 = vrot.slane %v645, 4
      %v648 = vrot.slane %v580, 5
      %v649 = vsel %vm600, %v647, %v648
      %666 = vst [vmem:[#allocation3 + $0x8] sm:$0xf] %v604
      %667 = vst [vmem:[#allocation3 + $0x14] sm:$0xf] %v607
      %668 = vst [vmem:[#allocation3 + $0x20] sm:$0xf] %v610
      %669 = vst [vmem:[#allocation3 + $0x2c] sm:$0xf] %v613
      %670 = vst [vmem:[#allocation3 + $0x38] sm:$0xf] %v616
      %671 = vst [vmem:[#allocation3 + $0x44] sm:$0xf] %v619
      %672 = vst [vmem:[#allocation3 + $0x50] sm:$0xf] %v622
      %673 = vst [vmem:[#allocation3 + $0x5c] sm:$0xf] %v625
      %674 = vst [vmem:[#allocation3 + $0x68] sm:$0xf] %v628
      %675 = vst [vmem:[#allocation3 + $0x74] sm:$0xf] %v631
      %676 = vst [vmem:[#allocation3 + $0x80] sm:$0xf] %v634
      %677 = vst [vmem:[#allocation3 + $0x8c] sm:$0xf] %v637
      %678 = vst [vmem:[#allocation3 + $0x98] sm:$0xf] %v640
      %679 = vst [vmem:[#allocation3 + $0xa4] sm:$0xf] %v643
      %680 = vst [vmem:[#allocation3 + $0xb0] sm:$0xf] %v646
      %681 = vst [vmem:[#allocation3 + $0xbc] sm:$0xf] %v649
      %v682 = vld [vmem:[#allocation3] sm:$0xff]
      %v683 = vld [vmem:[#allocation3 + $0x8] sm:$0xf]
      %v684 = vld [vmem:[#allocation3 + $0xc] sm:$0xff]
      %v685 = vld [vmem:[#allocation3 + $0x14] sm:$0xf]
      %v686 = vld [vmem:[#allocation3 + $0x18] sm:$0xff]
      %v687 = vld [vmem:[#allocation3 + $0x20] sm:$0xf]
      %v688 = vld [vmem:[#allocation3 + $0x24] sm:$0xff]
      %v689 = vld [vmem:[#allocation3 + $0x2c] sm:$0xf]
      %v690 = vld [vmem:[#allocation3 + $0x30] sm:$0xff]
      %v691 = vld [vmem:[#allocation3 + $0x38] sm:$0xf]
      %v692 = vld [vmem:[#allocation3 + $0x3c] sm:$0xff]
      %v693 = vld [vmem:[#allocation3 + $0x44] sm:$0xf]
      %v694 = vld [vmem:[#allocation3 + $0x48] sm:$0xff]
      %v695 = vld [vmem:[#allocation3 + $0x50] sm:$0xf]
      %v696 = vld [vmem:[#allocation3 + $0x54] sm:$0xff]
      %v697 = vld [vmem:[#allocation3 + $0x5c] sm:$0xf]
      %v698 = vld [vmem:[#allocation3 + $0x60] sm:$0xff]
      %v699 = vld [vmem:[#allocation3 + $0x68] sm:$0xf]
      %v700 = vld [vmem:[#allocation3 + $0x6c] sm:$0xff]
      %v701 = vld [vmem:[#allocation3 + $0x74] sm:$0xf]
      %v702 = vld [vmem:[#allocation3 + $0x78] sm:$0xff]
      %v703 = vld [vmem:[#allocation3 + $0x80] sm:$0xf]
      %v704 = vld [vmem:[#allocation3 + $0x84] sm:$0xff]
      %v705 = vld [vmem:[#allocation3 + $0x8c] sm:$0xf]
      %v706 = vld [vmem:[%s2] sm:$0xf]
      %v707 = vld [vmem:[%s2 + $0x4] sm:$0xf]
      %v708 = vld [vmem:[%s2 + $0x8] sm:$0xf]
      %v709 = vld [vmem:[%s2 + $0xc] sm:$0xf]
      %v710 = vld [vmem:[%s2 + $0x10] sm:$0xf]
      %v711 = vld [vmem:[%s2 + $0x14] sm:$0xf]
      %v712 = vld [vmem:[%s2 + $0x18] sm:$0xf]
      %v713 = vld [vmem:[%s2 + $0x1c] sm:$0xf]
      %v714 = vld [vmem:[%s2 + $0x20] sm:$0xf]
      %v715 = vld [vmem:[%s2 + $0x24] sm:$0xf]
      %v716 = vld [vmem:[%s2 + $0x28] sm:$0xf]
      %v717 = vld [vmem:[%s2 + $0x2c] sm:$0xf]
      %v718 = vld [vmem:[%s2 + $0x30] sm:$0xf]
      %v719 = vld [vmem:[%s2 + $0x34] sm:$0xf]
      %v720 = vld [vmem:[%s2 + $0x38] sm:$0xf]
      %v721 = vld [vmem:[%s2 + $0x3c] sm:$0xf]
      %v722 = vld [vmem:[%s2 + $0x40] sm:$0xf]
      %v723 = vld [vmem:[%s2 + $0x44] sm:$0xf]
      %v724 = vld [vmem:[%s2 + $0x48] sm:$0xf]
      %v725 = vld [vmem:[%s2 + $0x4c] sm:$0xf]
      %v726 = vld [vmem:[%s2 + $0x50] sm:$0xf]
      %v727 = vld [vmem:[%s2 + $0x54] sm:$0xf]
      %v728 = vld [vmem:[%s2 + $0x58] sm:$0xf]
      %v729 = vld [vmem:[%s2 + $0x5c] sm:$0xf]
      %v730 = vld [vmem:[%s2 + $0x60] sm:$0xf]
      %v731 = vld [vmem:[%s2 + $0x64] sm:$0xf]
      %v732 = vld [vmem:[%s2 + $0x68] sm:$0xf]
      %v733 = vld [vmem:[%s2 + $0x6c] sm:$0xf]
      %v734 = vld [vmem:[%s2 + $0x70] sm:$0xf]
      %v735 = vld [vmem:[%s2 + $0x74] sm:$0xf]
      %v736 = vld [vmem:[%s2 + $0x78] sm:$0xf]
      %v737 = vld [vmem:[%s2 + $0x7c] sm:$0xf]
      %v738 = vld [vmem:[%s2 + $0x80] sm:$0xf]
      %v739 = vld [vmem:[%s2 + $0x84] sm:$0xf]
      %v740 = vld [vmem:[%s2 + $0x88] sm:$0xf]
      %v741 = vld [vmem:[%s2 + $0x8c] sm:$0xf]
      %v742 = vld [vmem:[%s2 + $0x90] sm:$0xf]
      %v743 = vld [vmem:[%s2 + $0x94] sm:$0xf]
      %v744 = vld [vmem:[%s2 + $0x98] sm:$0xf]
      %v745 = vld [vmem:[%s2 + $0x9c] sm:$0xf]
      %v746 = vld [vmem:[%s2 + $0xa0] sm:$0xf]
      %v747 = vld [vmem:[%s2 + $0xa4] sm:$0xf]
      %v748 = vld [vmem:[%s2 + $0xa8] sm:$0xf]
      %v749 = vld [vmem:[%s2 + $0xac] sm:$0xf]
      %v750 = vld [vmem:[%s2 + $0xb0] sm:$0xf]
      %v751 = vld [vmem:[%s2 + $0xb4] sm:$0xf]
      %v752 = vld [vmem:[%s2 + $0xb8] sm:$0xf]
      %v753 = vld [vmem:[%s2 + $0xbc] sm:$0xf]
      %v754 = vld [vmem:[#allocation3 + $0x90] sm:$0xff]
      %v755 = vld [vmem:[#allocation3 + $0x98] sm:$0xf]
      %v756 = vld [vmem:[#allocation3 + $0x9c] sm:$0xff]
      %v757 = vld [vmem:[#allocation3 + $0xa4] sm:$0xf]
      %s758 = scalar_lea.vmem %s2, 192
      %v759 = vld [vmem:[%s758] sm:$0xf]
      %v760 = vld [vmem:[%s758 + $0x4] sm:$0xf]
      %v761 = vld [vmem:[%s758 + $0x8] sm:$0xf]
      %v762 = vld [vmem:[%s758 + $0xc] sm:$0xf]
      %v763 = vld [vmem:[%s758 + $0x10] sm:$0xf]
      %v764 = vld [vmem:[%s758 + $0x14] sm:$0xf]
      %v765 = vld [vmem:[%s758 + $0x18] sm:$0xf]
      %v766 = vld [vmem:[%s758 + $0x1c] sm:$0xf]
      %v767 = vld [vmem:[%s758 + $0x20] sm:$0xf]
      %v768 = vld [vmem:[%s758 + $0x24] sm:$0xf]
      %v769 = vld [vmem:[%s758 + $0x28] sm:$0xf]
      %v770 = vld [vmem:[%s758 + $0x2c] sm:$0xf]
      %v771 = vld [vmem:[%s758 + $0x30] sm:$0xf]
      %v772 = vld [vmem:[%s758 + $0x34] sm:$0xf]
      %v773 = vld [vmem:[%s758 + $0x38] sm:$0xf]
      %v774 = vld [vmem:[%s758 + $0x3c] sm:$0xf]
      %v775 = vld [vmem:[%s758 + $0x40] sm:$0xf]
      %v776 = vld [vmem:[%s758 + $0x44] sm:$0xf]
      %v777 = vld [vmem:[%s758 + $0x48] sm:$0xf]
      %v778 = vld [vmem:[%s758 + $0x4c] sm:$0xf]
      %v779 = vld [vmem:[%s758 + $0x50] sm:$0xf]
      %v780 = vld [vmem:[%s758 + $0x54] sm:$0xf]
      %v781 = vld [vmem:[%s758 + $0x58] sm:$0xf]
      %v782 = vld [vmem:[%s758 + $0x5c] sm:$0xf]
      %v783 = vld [vmem:[%s758 + $0x60] sm:$0xf]
      %v784 = vld [vmem:[%s758 + $0x64] sm:$0xf]
      %v785 = vld [vmem:[%s758 + $0x68] sm:$0xf]
      %v786 = vld [vmem:[%s758 + $0x6c] sm:$0xf]
      %v787 = vld [vmem:[%s758 + $0x70] sm:$0xf]
      %v788 = vld [vmem:[%s758 + $0x74] sm:$0xf]
      %v789 = vld [vmem:[%s758 + $0x78] sm:$0xf]
      %v790 = vld [vmem:[%s758 + $0x7c] sm:$0xf]
      %v791 = vld [vmem:[%s758 + $0x80] sm:$0xf]
      %v792 = vld [vmem:[%s758 + $0x84] sm:$0xf]
      %v793 = vld [vmem:[%s758 + $0x88] sm:$0xf]
      %v794 = vld [vmem:[%s758 + $0x8c] sm:$0xf]
      %v795 = vld [vmem:[%s758 + $0x90] sm:$0xf]
      %v796 = vld [vmem:[%s758 + $0x94] sm:$0xf]
      %v797 = vld [vmem:[%s758 + $0x98] sm:$0xf]
      %v798 = vld [vmem:[%s758 + $0x9c] sm:$0xf]
      %v799 = vld [vmem:[%s758 + $0xa0] sm:$0xf]
      %v800 = vld [vmem:[%s758 + $0xa4] sm:$0xf]
      %v801 = vld [vmem:[%s758 + $0xa8] sm:$0xf]
      %v802 = vld [vmem:[%s758 + $0xac] sm:$0xf]
      %v803 = vld [vmem:[%s758 + $0xb0] sm:$0xf]
      %v804 = vld [vmem:[%s758 + $0xb4] sm:$0xf]
      %v805 = vld [vmem:[%s758 + $0xb8] sm:$0xf]
      %v806 = vld [vmem:[%s758 + $0xbc] sm:$0xf]
      %v831 = vunpack.c.l.b16 %v686
      %v832 = vunpack.c.h.b16 %v686
      %v833 = vunpack.c.l.b16 %v687
      %v834 = vunpack.c.l.b16 %v688
      %v835 = vunpack.c.h.b16 %v688
      %v836 = vunpack.c.l.b16 %v689
      %v837 = vunpack.c.l.b16 %v690
      %v838 = vunpack.c.h.b16 %v690
      %v839 = vunpack.c.l.b16 %v691
      %v840 = vunpack.c.l.b16 %v692
      %v841 = vunpack.c.h.b16 %v692
      %v842 = vunpack.c.l.b16 %v693
      %v843 = vunpack.c.l.b16 %v694
      %v844 = vunpack.c.h.b16 %v694
      %v845 = vunpack.c.l.b16 %v695
      %v846 = vunpack.c.l.b16 %v696
      %v847 = vunpack.c.h.b16 %v696
      %v848 = vunpack.c.l.b16 %v697
      %v849 = vunpack.c.l.b16 %v698
      %v850 = vunpack.c.h.b16 %v698
      %v851 = vunpack.c.l.b16 %v699
      %v852 = vunpack.c.l.b16 %v700
      %v853 = vunpack.c.h.b16 %v700
      %v854 = vunpack.c.l.b16 %v701
      %v855 = vunpack.c.l.b16 %v702
      %v856 = vunpack.c.h.b16 %v702
      %v857 = vunpack.c.l.b16 %v703
      %v858 = vunpack.c.l.b16 %v704
      %v859 = vunpack.c.h.b16 %v704
      %v860 = vunpack.c.l.b16 %v705
      %v861 = vunpack.c.l.b16 %v754
      %v862 = vunpack.c.h.b16 %v754
      %v863 = vunpack.c.l.b16 %v755
      %v864 = vunpack.c.l.b16 %v756
      %v865 = vunpack.c.h.b16 %v756
      %v866 = vunpack.c.l.b16 %v757
      %v867 = vpack.c.b16 %v834, %v831
      %v868 = vpack.c.b16 %v835, %v832
      %v869 = vpack.c.b16 %v836, %v833
      %v870 = vpack.c.b16 %v840, %v837
      %v871 = vpack.c.b16 %v841, %v838
      %v872 = vpack.c.b16 %v842, %v839
      %v873 = vpack.c.b16 %v846, %v843
      %v874 = vpack.c.b16 %v847, %v844
      %v875 = vpack.c.b16 %v848, %v845
      %v876 = vpack.c.b16 %v852, %v849
      %v877 = vpack.c.b16 %v853, %v850
      %v878 = vpack.c.b16 %v854, %v851
      %v879 = vpack.c.b16 %v858, %v855
      %v880 = vpack.c.b16 %v859, %v856
      %v881 = vpack.c.b16 %v860, %v857
      %v882 = vpack.c.b16 %v864, %v861
      %v883 = vpack.c.b16 %v865, %v862
      %v884 = vpack.c.b16 %v866, %v863
      %v951 = vunpack.c.l.b16 %v759
      %v952 = vunpack.c.l.b16 %v760
      %v953 = vunpack.c.l.b16 %v761
      %v954 = vunpack.c.l.b16 %v762
      %v955 = vunpack.c.l.b16 %v763
      %v956 = vunpack.c.l.b16 %v764
      %v957 = vunpack.c.l.b16 %v765
      %v958 = vunpack.c.l.b16 %v766
      %v959 = vunpack.c.l.b16 %v767
      %v960 = vunpack.c.l.b16 %v768
      %v961 = vunpack.c.l.b16 %v769
      %v962 = vunpack.c.l.b16 %v770
      %v963 = vunpack.c.l.b16 %v771
      %v964 = vunpack.c.l.b16 %v772
      %v965 = vunpack.c.l.b16 %v773
      %v966 = vunpack.c.l.b16 %v774
      %v967 = vunpack.c.l.b16 %v775
      %v968 = vunpack.c.l.b16 %v776
      %v969 = vunpack.c.l.b16 %v777
      %v970 = vunpack.c.l.b16 %v778
      %v971 = vunpack.c.l.b16 %v779
      %v972 = vunpack.c.l.b16 %v780
      %v973 = vunpack.c.l.b16 %v781
      %v974 = vunpack.c.l.b16 %v782
      %v975 = vunpack.c.l.b16 %v783
      %v976 = vunpack.c.l.b16 %v784
      %v977 = vunpack.c.l.b16 %v785
      %v978 = vunpack.c.l.b16 %v786
      %v979 = vunpack.c.l.b16 %v787
      %v980 = vunpack.c.l.b16 %v788
      %v981 = vunpack.c.l.b16 %v789
      %v982 = vunpack.c.l.b16 %v790
      %v983 = vunpack.c.l.b16 %v791
      %v984 = vunpack.c.l.b16 %v792
      %v985 = vunpack.c.l.b16 %v793
      %v986 = vunpack.c.l.b16 %v794
      %v987 = vunpack.c.l.b16 %v795
      %v988 = vunpack.c.l.b16 %v796
      %v989 = vunpack.c.l.b16 %v797
      %v990 = vunpack.c.l.b16 %v798
      %v991 = vunpack.c.l.b16 %v799
      %v992 = vunpack.c.l.b16 %v800
      %v993 = vunpack.c.l.b16 %v801
      %v994 = vunpack.c.l.b16 %v802
      %v995 = vunpack.c.l.b16 %v803
      %v996 = vunpack.c.l.b16 %v804
      %v997 = vunpack.c.l.b16 %v805
      %v998 = vunpack.c.l.b16 %v806
      %v999 = vpack.c.b16 %v952, %v951
      %v1000 = vpack.c.b16 %v954, %v953
      %v1001 = vpack.c.b16 %v956, %v955
      %v1002 = vpack.c.b16 %v958, %v957
      %v1003 = vpack.c.b16 %v960, %v959
      %v1004 = vpack.c.b16 %v962, %v961
      %v1005 = vpack.c.b16 %v964, %v963
      %v1006 = vpack.c.b16 %v966, %v965
      %v1007 = vpack.c.b16 %v968, %v967
      %v1008 = vpack.c.b16 %v970, %v969
      %v1009 = vpack.c.b16 %v972, %v971
      %v1010 = vpack.c.b16 %v974, %v973
      %v1011 = vpack.c.b16 %v976, %v975
      %v1012 = vpack.c.b16 %v978, %v977
      %v1013 = vpack.c.b16 %v980, %v979
      %v1014 = vpack.c.b16 %v982, %v981
      %v1015 = vpack.c.b16 %v984, %v983
      %v1016 = vpack.c.b16 %v986, %v985
      %v1017 = vpack.c.b16 %v988, %v987
      %v1018 = vpack.c.b16 %v990, %v989
      %v1019 = vpack.c.b16 %v992, %v991
      %v1020 = vpack.c.b16 %v994, %v993
      %v1021 = vpack.c.b16 %v996, %v995
      %v1022 = vpack.c.b16 %v998, %v997
      %1047 = vmatpush.bf16.msra.mxu0 %v1006
      %1048 = vmatpush.bf16.msra.mxu0 %v1005
      %1049 = vmatpush.bf16.msra.mxu0 %v1004
      %1050 = vmatpush.bf16.msra.mxu0 %v1003
      %1051 = vmatpush.bf16.msra.mxu0 %v1002
      %1052 = vmatpush.bf16.msra.mxu0 %v1001
      %1053 = vmatpush.bf16.msra.mxu0 %v1000
      %1054 = vmatpush.bf16.msra.mxu0 %v999
      %1055 = vmatmul.bf16.gmra.mxu0 %v867
      %v1056 = vpop.f32.mrf.mxu0
      %v1057 = vadd.f32 0.0, %v1056
      %v1058 = vpop.f32.mrf.mxu0
      %v1059 = vadd.f32 0.0, %v1058
      %1060 = vmatmul.bf16.gmra.mxu0 %v870
      %v1061 = vpop.f32.mrf.mxu0
      %v1062 = vadd.f32 0.0, %v1061
      %v1063 = vpop.f32.mrf.mxu0
      %v1064 = vadd.f32 0.0, %v1063
      %1065 = vmatmul.bf16.gmra.mxu0 %v873
      %v1066 = vpop.f32.mrf.mxu0
      %v1067 = vadd.f32 0.0, %v1066
      %v1068 = vpop.f32.mrf.mxu0
      %v1069 = vadd.f32 0.0, %v1068
      %1070 = vmatmul.bf16.gmra.mxu0 %v876
      %v1071 = vpop.f32.mrf.mxu0
      %v1072 = vadd.f32 0.0, %v1071
      %v1073 = vpop.f32.mrf.mxu0
      %v1074 = vadd.f32 0.0, %v1073
      %1075 = vmatmul.bf16.gmra.mxu0 %v879
      %v1076 = vpop.f32.mrf.mxu0
      %v1077 = vadd.f32 0.0, %v1076
      %v1078 = vpop.f32.mrf.mxu0
      %v1079 = vadd.f32 0.0, %v1078
      %1080 = vmatmul.bf16.gmra.mxu0 %v882
      %v1081 = vpop.f32.mrf.mxu0
      %v1082 = vadd.f32 0.0, %v1081
      %v1083 = vpop.f32.mrf.mxu0
      %v1084 = vadd.f32 0.0, %v1083
      %1085 = vdwg.mxu0
      %1086 = vmatpush.bf16.msra.mxu0 %v1014
      %1087 = vmatpush.bf16.msra.mxu0 %v1013
      %1088 = vmatpush.bf16.msra.mxu0 %v1012
      %1089 = vmatpush.bf16.msra.mxu0 %v1011
      %1090 = vmatpush.bf16.msra.mxu0 %v1010
      %1091 = vmatpush.bf16.msra.mxu0 %v1009
      %1092 = vmatpush.bf16.msra.mxu0 %v1008
      %1093 = vmatpush.bf16.msra.mxu0 %v1007
      %1094 = vmatmul.bf16.gmra.mxu0 %v868
      %v1095 = vpop.f32.mrf.mxu0
      %v1096 = vadd.f32 %v1057, %v1095
      %v1097 = vpop.f32.mrf.mxu0
      %v1098 = vadd.f32 %v1059, %v1097
      %1099 = vmatmul.bf16.gmra.mxu0 %v871
      %v1100 = vpop.f32.mrf.mxu0
      %v1101 = vadd.f32 %v1062, %v1100
      %v1102 = vpop.f32.mrf.mxu0
      %v1103 = vadd.f32 %v1064, %v1102
      %1104 = vmatmul.bf16.gmra.mxu0 %v874
      %v1105 = vpop.f32.mrf.mxu0
      %v1106 = vadd.f32 %v1067, %v1105
      %v1107 = vpop.f32.mrf.mxu0
      %v1108 = vadd.f32 %v1069, %v1107
      %1109 = vmatmul.bf16.gmra.mxu0 %v877
      %v1110 = vpop.f32.mrf.mxu0
      %v1111 = vadd.f32 %v1072, %v1110
      %v1112 = vpop.f32.mrf.mxu0
      %v1113 = vadd.f32 %v1074, %v1112
      %1114 = vmatmul.bf16.gmra.mxu0 %v880
      %v1115 = vpop.f32.mrf.mxu0
      %v1116 = vadd.f32 %v1077, %v1115
      %v1117 = vpop.f32.mrf.mxu0
      %v1118 = vadd.f32 %v1079, %v1117
      %1119 = vmatmul.bf16.gmra.mxu0 %v883
      %v1120 = vpop.f32.mrf.mxu0
      %v1121 = vadd.f32 %v1082, %v1120
      %v1122 = vpop.f32.mrf.mxu0
      %v1123 = vadd.f32 %v1084, %v1122
      %1124 = vdwg.mxu0
      %1125 = vmatpush.bf16.msra.mxu0 %v1022
      %1126 = vmatpush.bf16.msra.mxu0 %v1021
      %1127 = vmatpush.bf16.msra.mxu0 %v1020
      %1128 = vmatpush.bf16.msra.mxu0 %v1019
      %1129 = vmatpush.bf16.msra.mxu0 %v1018
      %1130 = vmatpush.bf16.msra.mxu0 %v1017
      %1131 = vmatpush.bf16.msra.mxu0 %v1016
      %1132 = vmatpush.bf16.msra.mxu0 %v1015
      %1133 = vmatmul.bf16.gmra.mxu0 %v869
      %v1134 = vpop.f32.mrf.mxu0
      %v1135 = vadd.f32 %v1096, %v1134
      %v1136 = vpop.f32.mrf.mxu0
      %v1137 = vadd.f32 %v1098, %v1136
      %1138 = vmatmul.bf16.gmra.mxu0 %v872
      %v1139 = vpop.f32.mrf.mxu0
      %v1140 = vadd.f32 %v1101, %v1139
      %v1141 = vpop.f32.mrf.mxu0
      %v1142 = vadd.f32 %v1103, %v1141
      %1143 = vmatmul.bf16.gmra.mxu0 %v875
      %v1144 = vpop.f32.mrf.mxu0
      %v1145 = vadd.f32 %v1106, %v1144
      %v1146 = vpop.f32.mrf.mxu0
      %v1147 = vadd.f32 %v1108, %v1146
      %1148 = vmatmul.bf16.gmra.mxu0 %v878
      %v1149 = vpop.f32.mrf.mxu0
      %v1150 = vadd.f32 %v1111, %v1149
      %v1151 = vpop.f32.mrf.mxu0
      %v1152 = vadd.f32 %v1113, %v1151
      %1153 = vmatmul.bf16.gmra.mxu0 %v881
      %v1154 = vpop.f32.mrf.mxu0
      %v1155 = vadd.f32 %v1116, %v1154
      %v1156 = vpop.f32.mrf.mxu0
      %v1157 = vadd.f32 %v1118, %v1156
      %1158 = vmatmul.bf16.gmra.mxu0 %v884
      %v1159 = vpop.f32.mrf.mxu0
      %v1160 = vadd.f32 %v1121, %v1159
      %v1161 = vpop.f32.mrf.mxu0
      %v1162 = vadd.f32 %v1123, %v1161
      %1163 = vdwg.mxu0
      %v1168 = vunpack.c.l.b16 %v682
      %v1169 = vunpack.c.h.b16 %v682
      %v1170 = vunpack.c.l.b16 %v683
      %v1171 = vunpack.c.l.b16 %v684
      %v1172 = vunpack.c.h.b16 %v684
      %v1173 = vunpack.c.l.b16 %v685
      %v1174 = vpack.c.b16 %v1171, %v1168
      %v1175 = vpack.c.b16 %v1172, %v1169
      %v1176 = vpack.c.b16 %v1173, %v1170
      %v1228 = vunpack.c.l.b16 %v706
      %v1229 = vunpack.c.l.b16 %v707
      %v1230 = vunpack.c.l.b16 %v708
      %v1231 = vunpack.c.l.b16 %v709
      %v1232 = vunpack.c.l.b16 %v710
      %v1233 = vunpack.c.l.b16 %v711
      %v1234 = vunpack.c.l.b16 %v712
      %v1235 = vunpack.c.l.b16 %v713
      %v1236 = vunpack.c.l.b16 %v714
      %v1237 = vunpack.c.l.b16 %v715
      %v1238 = vunpack.c.l.b16 %v716
      %v1239 = vunpack.c.l.b16 %v717
      %v1240 = vunpack.c.l.b16 %v718
      %v1241 = vunpack.c.l.b16 %v719
      %v1242 = vunpack.c.l.b16 %v720
      %v1243 = vunpack.c.l.b16 %v721
      %v1244 = vunpack.c.l.b16 %v722
      %v1245 = vunpack.c.l.b16 %v723
      %v1246 = vunpack.c.l.b16 %v724
      %v1247 = vunpack.c.l.b16 %v725
      %v1248 = vunpack.c.l.b16 %v726
      %v1249 = vunpack.c.l.b16 %v727
      %v1250 = vunpack.c.l.b16 %v728
      %v1251 = vunpack.c.l.b16 %v729
      %v1252 = vunpack.c.l.b16 %v730
      %v1253 = vunpack.c.l.b16 %v731
      %v1254 = vunpack.c.l.b16 %v732
      %v1255 = vunpack.c.l.b16 %v733
      %v1256 = vunpack.c.l.b16 %v734
      %v1257 = vunpack.c.l.b16 %v735
      %v1258 = vunpack.c.l.b16 %v736
      %v1259 = vunpack.c.l.b16 %v737
      %v1260 = vunpack.c.l.b16 %v738
      %v1261 = vunpack.c.l.b16 %v739
      %v1262 = vunpack.c.l.b16 %v740
      %v1263 = vunpack.c.l.b16 %v741
      %v1264 = vunpack.c.l.b16 %v742
      %v1265 = vunpack.c.l.b16 %v743
      %v1266 = vunpack.c.l.b16 %v744
      %v1267 = vunpack.c.l.b16 %v745
      %v1268 = vunpack.c.l.b16 %v746
      %v1269 = vunpack.c.l.b16 %v747
      %v1270 = vunpack.c.l.b16 %v748
      %v1271 = vunpack.c.l.b16 %v749
      %v1272 = vunpack.c.l.b16 %v750
      %v1273 = vunpack.c.l.b16 %v751
      %v1274 = vunpack.c.l.b16 %v752
      %v1275 = vunpack.c.l.b16 %v753
      %v1276 = vpack.c.b16 %v1229, %v1228
      %v1277 = vpack.c.b16 %v1231, %v1230
      %v1278 = vpack.c.b16 %v1233, %v1232
      %v1279 = vpack.c.b16 %v1235, %v1234
      %v1280 = vpack.c.b16 %v1237, %v1236
      %v1281 = vpack.c.b16 %v1239, %v1238
      %v1282 = vpack.c.b16 %v1241, %v1240
      %v1283 = vpack.c.b16 %v1243, %v1242
      %v1284 = vpack.c.b16 %v1245, %v1244
      %v1285 = vpack.c.b16 %v1247, %v1246
      %v1286 = vpack.c.b16 %v1249, %v1248
      %v1287 = vpack.c.b16 %v1251, %v1250
      %v1288 = vpack.c.b16 %v1253, %v1252
      %v1289 = vpack.c.b16 %v1255, %v1254
      %v1290 = vpack.c.b16 %v1257, %v1256
      %v1291 = vpack.c.b16 %v1259, %v1258
      %v1292 = vpack.c.b16 %v1261, %v1260
      %v1293 = vpack.c.b16 %v1263, %v1262
      %v1294 = vpack.c.b16 %v1265, %v1264
      %v1295 = vpack.c.b16 %v1267, %v1266
      %v1296 = vpack.c.b16 %v1269, %v1268
      %v1297 = vpack.c.b16 %v1271, %v1270
      %v1298 = vpack.c.b16 %v1273, %v1272
      %v1299 = vpack.c.b16 %v1275, %v1274
      %1324 = vmatpush.bf16.msra.mxu0 %v1283
      %1325 = vmatpush.bf16.msra.mxu0 %v1282
      %1326 = vmatpush.bf16.msra.mxu0 %v1281
      %1327 = vmatpush.bf16.msra.mxu0 %v1280
      %1328 = vmatpush.bf16.msra.mxu0 %v1279
      %1329 = vmatpush.bf16.msra.mxu0 %v1278
      %1330 = vmatpush.bf16.msra.mxu0 %v1277
      %1331 = vmatpush.bf16.msra.mxu0 %v1276
      %1332 = vmatmul.bf16.gmra.mxu0 %v1174
      %v1333 = vpop.f32.mrf.mxu0
      %v1334 = vadd.f32 %v1135, %v1333
      %v1335 = vpop.f32.mrf.mxu0
      %v1336 = vadd.f32 %v1137, %v1335
      %1337 = vmatmul.bf16.gmra.mxu0 %v867
      %v1338 = vpop.f32.mrf.mxu0
      %v1339 = vadd.f32 %v1140, %v1338
      %v1340 = vpop.f32.mrf.mxu0
      %v1341 = vadd.f32 %v1142, %v1340
      %1342 = vmatmul.bf16.gmra.mxu0 %v870
      %v1343 = vpop.f32.mrf.mxu0
      %v1344 = vadd.f32 %v1145, %v1343
      %v1345 = vpop.f32.mrf.mxu0
      %v1346 = vadd.f32 %v1147, %v1345
      %1347 = vmatmul.bf16.gmra.mxu0 %v873
      %v1348 = vpop.f32.mrf.mxu0
      %v1349 = vadd.f32 %v1150, %v1348
      %v1350 = vpop.f32.mrf.mxu0
      %v1351 = vadd.f32 %v1152, %v1350
      %1352 = vmatmul.bf16.gmra.mxu0 %v876
      %v1353 = vpop.f32.mrf.mxu0
      %v1354 = vadd.f32 %v1155, %v1353
      %v1355 = vpop.f32.mrf.mxu0
      %v1356 = vadd.f32 %v1157, %v1355
      %1357 = vmatmul.bf16.gmra.mxu0 %v879
      %v1358 = vpop.f32.mrf.mxu0
      %v1359 = vadd.f32 %v1160, %v1358
      %v1360 = vpop.f32.mrf.mxu0
      %v1361 = vadd.f32 %v1162, %v1360
      %1362 = vdwg.mxu0
      %1363 = vmatpush.bf16.msra.mxu0 %v1291
      %1364 = vmatpush.bf16.msra.mxu0 %v1290
      %1365 = vmatpush.bf16.msra.mxu0 %v1289
      %1366 = vmatpush.bf16.msra.mxu0 %v1288
      %1367 = vmatpush.bf16.msra.mxu0 %v1287
      %1368 = vmatpush.bf16.msra.mxu0 %v1286
      %1369 = vmatpush.bf16.msra.mxu0 %v1285
      %1370 = vmatpush.bf16.msra.mxu0 %v1284
      %1371 = vmatmul.bf16.gmra.mxu0 %v1175
      %v1372 = vpop.f32.mrf.mxu0
      %v1373 = vadd.f32 %v1334, %v1372
      %v1374 = vpop.f32.mrf.mxu0
      %v1375 = vadd.f32 %v1336, %v1374
      %1376 = vmatmul.bf16.gmra.mxu0 %v868
      %v1377 = vpop.f32.mrf.mxu0
      %v1378 = vadd.f32 %v1339, %v1377
      %v1379 = vpop.f32.mrf.mxu0
      %v1380 = vadd.f32 %v1341, %v1379
      %1381 = vmatmul.bf16.gmra.mxu0 %v871
      %v1382 = vpop.f32.mrf.mxu0
      %v1383 = vadd.f32 %v1344, %v1382
      %v1384 = vpop.f32.mrf.mxu0
      %v1385 = vadd.f32 %v1346, %v1384
      %1386 = vmatmul.bf16.gmra.mxu0 %v874
      %v1387 = vpop.f32.mrf.mxu0
      %v1388 = vadd.f32 %v1349, %v1387
      %v1389 = vpop.f32.mrf.mxu0
      %v1390 = vadd.f32 %v1351, %v1389
      %1391 = vmatmul.bf16.gmra.mxu0 %v877
      %v1392 = vpop.f32.mrf.mxu0
      %v1393 = vadd.f32 %v1354, %v1392
      %v1394 = vpop.f32.mrf.mxu0
      %v1395 = vadd.f32 %v1356, %v1394
      %1396 = vmatmul.bf16.gmra.mxu0 %v880
      %v1397 = vpop.f32.mrf.mxu0
      %v1398 = vadd.f32 %v1359, %v1397
      %v1399 = vpop.f32.mrf.mxu0
      %v1400 = vadd.f32 %v1361, %v1399
      %1401 = vdwg.mxu0
      %1402 = vmatpush.bf16.msra.mxu0 %v1299
      %1403 = vmatpush.bf16.msra.mxu0 %v1298
      %1404 = vmatpush.bf16.msra.mxu0 %v1297
      %1405 = vmatpush.bf16.msra.mxu0 %v1296
      %1406 = vmatpush.bf16.msra.mxu0 %v1295
      %1407 = vmatpush.bf16.msra.mxu0 %v1294
      %1408 = vmatpush.bf16.msra.mxu0 %v1293
      %1409 = vmatpush.bf16.msra.mxu0 %v1292
      %1410 = vmatmul.bf16.gmra.mxu0 %v1176
      %v1411 = vpop.f32.mrf.mxu0
      %v1412 = vadd.f32 %v1373, %v1411
      %v1413 = vpop.f32.mrf.mxu0
      %v1414 = vadd.f32 %v1375, %v1413
      %1415 = vmatmul.bf16.gmra.mxu0 %v869
      %v1416 = vpop.f32.mrf.mxu0
      %v1417 = vadd.f32 %v1378, %v1416
      %v1418 = vpop.f32.mrf.mxu0
      %v1419 = vadd.f32 %v1380, %v1418
      %1420 = vmatmul.bf16.gmra.mxu0 %v872
      %v1421 = vpop.f32.mrf.mxu0
      %v1422 = vadd.f32 %v1383, %v1421
      %v1423 = vpop.f32.mrf.mxu0
      %v1424 = vadd.f32 %v1385, %v1423
      %1425 = vmatmul.bf16.gmra.mxu0 %v875
      %v1426 = vpop.f32.mrf.mxu0
      %v1427 = vadd.f32 %v1388, %v1426
      %v1428 = vpop.f32.mrf.mxu0
      %v1429 = vadd.f32 %v1390, %v1428
      %1430 = vmatmul.bf16.gmra.mxu0 %v878
      %v1431 = vpop.f32.mrf.mxu0
      %v1432 = vadd.f32 %v1393, %v1431
      %v1433 = vpop.f32.mrf.mxu0
      %v1434 = vadd.f32 %v1395, %v1433
      %1435 = vmatmul.bf16.gmra.mxu0 %v881
      %v1436 = vpop.f32.mrf.mxu0
      %v1437 = vadd.f32 %v1398, %v1436
      %v1438 = vpop.f32.mrf.mxu0
      %v1439 = vadd.f32 %v1400, %v1438
      %1440 = vdwg.mxu0
      %v1441 = vld [vmem:[#allocation3 + $0x30] sm:$0xff]
      %v1442 = vld [vmem:[#allocation3 + $0x38] sm:$0xf]
      %v1443 = vld [vmem:[#allocation3 + $0x3c] sm:$0xff]
      %v1444 = vld [vmem:[#allocation3 + $0x44] sm:$0xf]
      %v1445 = vld [vmem:[#allocation3 + $0x48] sm:$0xff]
      %v1446 = vld [vmem:[#allocation3 + $0x50] sm:$0xf]
      %v1447 = vld [vmem:[#allocation3 + $0x54] sm:$0xff]
      %v1448 = vld [vmem:[#allocation3 + $0x5c] sm:$0xf]
      %v1449 = vld [vmem:[#allocation3 + $0x60] sm:$0xff]
      %v1450 = vld [vmem:[#allocation3 + $0x68] sm:$0xf]
      %v1451 = vld [vmem:[#allocation3 + $0x6c] sm:$0xff]
      %v1452 = vld [vmem:[#allocation3 + $0x74] sm:$0xf]
      %v1453 = vld [vmem:[#allocation3 + $0x78] sm:$0xff]
      %v1454 = vld [vmem:[#allocation3 + $0x80] sm:$0xf]
      %v1455 = vld [vmem:[#allocation3 + $0x84] sm:$0xff]
      %v1456 = vld [vmem:[#allocation3 + $0x8c] sm:$0xf]
      %v1457 = vld [vmem:[#allocation3 + $0x90] sm:$0xff]
      %v1458 = vld [vmem:[#allocation3 + $0x98] sm:$0xf]
      %v1459 = vld [vmem:[#allocation3 + $0x9c] sm:$0xff]
      %v1460 = vld [vmem:[#allocation3 + $0xa4] sm:$0xf]
      %v1461 = vld [vmem:[#allocation3 + $0xa8] sm:$0xff]
      %v1462 = vld [vmem:[#allocation3 + $0xb0] sm:$0xf]
      %v1463 = vld [vmem:[#allocation3 + $0xb4] sm:$0xff]
      %v1464 = vld [vmem:[#allocation3 + $0xbc] sm:$0xf]
      %s1465 = scalar_lea.vmem %s2, 384
      %v1466 = vld [vmem:[%s1465] sm:$0xf]
      %v1467 = vld [vmem:[%s1465 + $0x4] sm:$0xf]
      %v1468 = vld [vmem:[%s1465 + $0x8] sm:$0xf]
      %v1469 = vld [vmem:[%s1465 + $0xc] sm:$0xf]
      %v1470 = vld [vmem:[%s1465 + $0x10] sm:$0xf]
      %v1471 = vld [vmem:[%s1465 + $0x14] sm:$0xf]
      %v1472 = vld [vmem:[%s1465 + $0x18] sm:$0xf]
      %v1473 = vld [vmem:[%s1465 + $0x1c] sm:$0xf]
      %v1474 = vld [vmem:[%s1465 + $0x20] sm:$0xf]
      %v1475 = vld [vmem:[%s1465 + $0x24] sm:$0xf]
      %v1476 = vld [vmem:[%s1465 + $0x28] sm:$0xf]
      %v1477 = vld [vmem:[%s1465 + $0x2c] sm:$0xf]
      %v1478 = vld [vmem:[%s1465 + $0x30] sm:$0xf]
      %v1479 = vld [vmem:[%s1465 + $0x34] sm:$0xf]
      %v1480 = vld [vmem:[%s1465 + $0x38] sm:$0xf]
      %v1481 = vld [vmem:[%s1465 + $0x3c] sm:$0xf]
      %v1482 = vld [vmem:[%s1465 + $0x40] sm:$0xf]
      %v1483 = vld [vmem:[%s1465 + $0x44] sm:$0xf]
      %v1484 = vld [vmem:[%s1465 + $0x48] sm:$0xf]
      %v1485 = vld [vmem:[%s1465 + $0x4c] sm:$0xf]
      %v1486 = vld [vmem:[%s1465 + $0x50] sm:$0xf]
      %v1487 = vld [vmem:[%s1465 + $0x54] sm:$0xf]
      %v1488 = vld [vmem:[%s1465 + $0x58] sm:$0xf]
      %v1489 = vld [vmem:[%s1465 + $0x5c] sm:$0xf]
      %v1490 = vld [vmem:[%s1465 + $0x60] sm:$0xf]
      %v1491 = vld [vmem:[%s1465 + $0x64] sm:$0xf]
      %v1492 = vld [vmem:[%s1465 + $0x68] sm:$0xf]
      %v1493 = vld [vmem:[%s1465 + $0x6c] sm:$0xf]
      %v1494 = vld [vmem:[%s1465 + $0x70] sm:$0xf]
      %v1495 = vld [vmem:[%s1465 + $0x74] sm:$0xf]
      %v1496 = vld [vmem:[%s1465 + $0x78] sm:$0xf]
      %v1497 = vld [vmem:[%s1465 + $0x7c] sm:$0xf]
      %v1498 = vld [vmem:[%s1465 + $0x80] sm:$0xf]
      %v1499 = vld [vmem:[%s1465 + $0x84] sm:$0xf]
      %v1500 = vld [vmem:[%s1465 + $0x88] sm:$0xf]
      %v1501 = vld [vmem:[%s1465 + $0x8c] sm:$0xf]
      %v1502 = vld [vmem:[%s1465 + $0x90] sm:$0xf]
      %v1503 = vld [vmem:[%s1465 + $0x94] sm:$0xf]
      %v1504 = vld [vmem:[%s1465 + $0x98] sm:$0xf]
      %v1505 = vld [vmem:[%s1465 + $0x9c] sm:$0xf]
      %v1506 = vld [vmem:[%s1465 + $0xa0] sm:$0xf]
      %v1507 = vld [vmem:[%s1465 + $0xa4] sm:$0xf]
      %v1508 = vld [vmem:[%s1465 + $0xa8] sm:$0xf]
      %v1509 = vld [vmem:[%s1465 + $0xac] sm:$0xf]
      %v1510 = vld [vmem:[%s1465 + $0xb0] sm:$0xf]
      %v1511 = vld [vmem:[%s1465 + $0xb4] sm:$0xf]
      %v1512 = vld [vmem:[%s1465 + $0xb8] sm:$0xf]
      %v1513 = vld [vmem:[%s1465 + $0xbc] sm:$0xf]
      %v1538 = vunpack.c.l.b16 %v1441
      %v1539 = vunpack.c.h.b16 %v1441
      %v1540 = vunpack.c.l.b16 %v1442
      %v1541 = vunpack.c.l.b16 %v1443
      %v1542 = vunpack.c.h.b16 %v1443
      %v1543 = vunpack.c.l.b16 %v1444
      %v1544 = vunpack.c.l.b16 %v1445
      %v1545 = vunpack.c.h.b16 %v1445
      %v1546 = vunpack.c.l.b16 %v1446
      %v1547 = vunpack.c.l.b16 %v1447
      %v1548 = vunpack.c.h.b16 %v1447
      %v1549 = vunpack.c.l.b16 %v1448
      %v1550 = vunpack.c.l.b16 %v1449
      %v1551 = vunpack.c.h.b16 %v1449
      %v1552 = vunpack.c.l.b16 %v1450
      %v1553 = vunpack.c.l.b16 %v1451
      %v1554 = vunpack.c.h.b16 %v1451
      %v1555 = vunpack.c.l.b16 %v1452
      %v1556 = vunpack.c.l.b16 %v1453
      %v1557 = vunpack.c.h.b16 %v1453
      %v1558 = vunpack.c.l.b16 %v1454
      %v1559 = vunpack.c.l.b16 %v1455
      %v1560 = vunpack.c.h.b16 %v1455
      %v1561 = vunpack.c.l.b16 %v1456
      %v1562 = vunpack.c.l.b16 %v1457
      %v1563 = vunpack.c.h.b16 %v1457
      %v1564 = vunpack.c.l.b16 %v1458
      %v1565 = vunpack.c.l.b16 %v1459
      %v1566 = vunpack.c.h.b16 %v1459
      %v1567 = vunpack.c.l.b16 %v1460
      %v1568 = vunpack.c.l.b16 %v1461
      %v1569 = vunpack.c.h.b16 %v1461
      %v1570 = vunpack.c.l.b16 %v1462
      %v1571 = vunpack.c.l.b16 %v1463
      %v1572 = vunpack.c.h.b16 %v1463
      %v1573 = vunpack.c.l.b16 %v1464
      %v1574 = vpack.c.b16 %v1541, %v1538
      %v1575 = vpack.c.b16 %v1542, %v1539
      %v1576 = vpack.c.b16 %v1543, %v1540
      %v1577 = vpack.c.b16 %v1547, %v1544
      %v1578 = vpack.c.b16 %v1548, %v1545
      %v1579 = vpack.c.b16 %v1549, %v1546
      %v1580 = vpack.c.b16 %v1553, %v1550
      %v1581 = vpack.c.b16 %v1554, %v1551
      %v1582 = vpack.c.b16 %v1555, %v1552
      %v1583 = vpack.c.b16 %v1559, %v1556
      %v1584 = vpack.c.b16 %v1560, %v1557
      %v1585 = vpack.c.b16 %v1561, %v1558
      %v1586 = vpack.c.b16 %v1565, %v1562
      %v1587 = vpack.c.b16 %v1566, %v1563
      %v1588 = vpack.c.b16 %v1567, %v1564
      %v1589 = vpack.c.b16 %v1571, %v1568
      %v1590 = vpack.c.b16 %v1572, %v1569
      %v1591 = vpack.c.b16 %v1573, %v1570
      %v1658 = vunpack.c.l.b16 %v1466
      %v1659 = vunpack.c.l.b16 %v1467
      %v1660 = vunpack.c.l.b16 %v1468
      %v1661 = vunpack.c.l.b16 %v1469
      %v1662 = vunpack.c.l.b16 %v1470
      %v1663 = vunpack.c.l.b16 %v1471
      %v1664 = vunpack.c.l.b16 %v1472
      %v1665 = vunpack.c.l.b16 %v1473
      %v1666 = vunpack.c.l.b16 %v1474
      %v1667 = vunpack.c.l.b16 %v1475
      %v1668 = vunpack.c.l.b16 %v1476
      %v1669 = vunpack.c.l.b16 %v1477
      %v1670 = vunpack.c.l.b16 %v1478
      %v1671 = vunpack.c.l.b16 %v1479
      %v1672 = vunpack.c.l.b16 %v1480
      %v1673 = vunpack.c.l.b16 %v1481
      %v1674 = vunpack.c.l.b16 %v1482
      %v1675 = vunpack.c.l.b16 %v1483
      %v1676 = vunpack.c.l.b16 %v1484
      %v1677 = vunpack.c.l.b16 %v1485
      %v1678 = vunpack.c.l.b16 %v1486
      %v1679 = vunpack.c.l.b16 %v1487
      %v1680 = vunpack.c.l.b16 %v1488
      %v1681 = vunpack.c.l.b16 %v1489
      %v1682 = vunpack.c.l.b16 %v1490
      %v1683 = vunpack.c.l.b16 %v1491
      %v1684 = vunpack.c.l.b16 %v1492
      %v1685 = vunpack.c.l.b16 %v1493
      %v1686 = vunpack.c.l.b16 %v1494
      %v1687 = vunpack.c.l.b16 %v1495
      %v1688 = vunpack.c.l.b16 %v1496
      %v1689 = vunpack.c.l.b16 %v1497
      %v1690 = vunpack.c.l.b16 %v1498
      %v1691 = vunpack.c.l.b16 %v1499
      %v1692 = vunpack.c.l.b16 %v1500
      %v1693 = vunpack.c.l.b16 %v1501
      %v1694 = vunpack.c.l.b16 %v1502
      %v1695 = vunpack.c.l.b16 %v1503
      %v1696 = vunpack.c.l.b16 %v1504
      %v1697 = vunpack.c.l.b16 %v1505
      %v1698 = vunpack.c.l.b16 %v1506
      %v1699 = vunpack.c.l.b16 %v1507
      %v1700 = vunpack.c.l.b16 %v1508
      %v1701 = vunpack.c.l.b16 %v1509
      %v1702 = vunpack.c.l.b16 %v1510
      %v1703 = vunpack.c.l.b16 %v1511
      %v1704 = vunpack.c.l.b16 %v1512
      %v1705 = vunpack.c.l.b16 %v1513
      %v1706 = vpack.c.b16 %v1659, %v1658
      %v1707 = vpack.c.b16 %v1661, %v1660
      %v1708 = vpack.c.b16 %v1663, %v1662
      %v1709 = vpack.c.b16 %v1665, %v1664
      %v1710 = vpack.c.b16 %v1667, %v1666
      %v1711 = vpack.c.b16 %v1669, %v1668
      %v1712 = vpack.c.b16 %v1671, %v1670
      %v1713 = vpack.c.b16 %v1673, %v1672
      %v1714 = vpack.c.b16 %v1675, %v1674
      %v1715 = vpack.c.b16 %v1677, %v1676
      %v1716 = vpack.c.b16 %v1679, %v1678
      %v1717 = vpack.c.b16 %v1681, %v1680
      %v1718 = vpack.c.b16 %v1683, %v1682
      %v1719 = vpack.c.b16 %v1685, %v1684
      %v1720 = vpack.c.b16 %v1687, %v1686
      %v1721 = vpack.c.b16 %v1689, %v1688
      %v1722 = vpack.c.b16 %v1691, %v1690
      %v1723 = vpack.c.b16 %v1693, %v1692
      %v1724 = vpack.c.b16 %v1695, %v1694
      %v1725 = vpack.c.b16 %v1697, %v1696
      %v1726 = vpack.c.b16 %v1699, %v1698
      %v1727 = vpack.c.b16 %v1701, %v1700
      %v1728 = vpack.c.b16 %v1703, %v1702
      %v1729 = vpack.c.b16 %v1705, %v1704
      %1754 = vmatpush.bf16.msra.mxu0 %v1713
      %1755 = vmatpush.bf16.msra.mxu0 %v1712
      %1756 = vmatpush.bf16.msra.mxu0 %v1711
      %1757 = vmatpush.bf16.msra.mxu0 %v1710
      %1758 = vmatpush.bf16.msra.mxu0 %v1709
      %1759 = vmatpush.bf16.msra.mxu0 %v1708
      %1760 = vmatpush.bf16.msra.mxu0 %v1707
      %1761 = vmatpush.bf16.msra.mxu0 %v1706
      %1762 = vmatmul.bf16.gmra.mxu0 %v1574
      %v1763 = vpop.f32.mrf.mxu0
      %v1764 = vadd.f32 0.0, %v1763
      %v1765 = vpop.f32.mrf.mxu0
      %v1766 = vadd.f32 0.0, %v1765
      %1767 = vmatmul.bf16.gmra.mxu0 %v1577
      %v1768 = vpop.f32.mrf.mxu0
      %v1769 = vadd.f32 0.0, %v1768
      %v1770 = vpop.f32.mrf.mxu0
      %v1771 = vadd.f32 0.0, %v1770
      %1772 = vmatmul.bf16.gmra.mxu0 %v1580
      %v1773 = vpop.f32.mrf.mxu0
      %v1774 = vadd.f32 0.0, %v1773
      %v1775 = vpop.f32.mrf.mxu0
      %v1776 = vadd.f32 0.0, %v1775
      %1777 = vmatmul.bf16.gmra.mxu0 %v1583
      %v1778 = vpop.f32.mrf.mxu0
      %v1779 = vadd.f32 0.0, %v1778
      %v1780 = vpop.f32.mrf.mxu0
      %v1781 = vadd.f32 0.0, %v1780
      %1782 = vmatmul.bf16.gmra.mxu0 %v1586
      %v1783 = vpop.f32.mrf.mxu0
      %v1784 = vadd.f32 0.0, %v1783
      %v1785 = vpop.f32.mrf.mxu0
      %v1786 = vadd.f32 0.0, %v1785
      %1787 = vmatmul.bf16.gmra.mxu0 %v1589
      %v1788 = vpop.f32.mrf.mxu0
      %v1789 = vadd.f32 0.0, %v1788
      %v1790 = vpop.f32.mrf.mxu0
      %v1791 = vadd.f32 0.0, %v1790
      %1792 = vdwg.mxu0
      %1793 = vmatpush.bf16.msra.mxu0 %v1721
      %1794 = vmatpush.bf16.msra.mxu0 %v1720
      %1795 = vmatpush.bf16.msra.mxu0 %v1719
      %1796 = vmatpush.bf16.msra.mxu0 %v1718
      %1797 = vmatpush.bf16.msra.mxu0 %v1717
      %1798 = vmatpush.bf16.msra.mxu0 %v1716
      %1799 = vmatpush.bf16.msra.mxu0 %v1715
      %1800 = vmatpush.bf16.msra.mxu0 %v1714
      %1801 = vmatmul.bf16.gmra.mxu0 %v1575
      %v1802 = vpop.f32.mrf.mxu0
      %v1803 = vadd.f32 %v1764, %v1802
      %v1804 = vpop.f32.mrf.mxu0
      %v1805 = vadd.f32 %v1766, %v1804
      %1806 = vmatmul.bf16.gmra.mxu0 %v1578
      %v1807 = vpop.f32.mrf.mxu0
      %v1808 = vadd.f32 %v1769, %v1807
      %v1809 = vpop.f32.mrf.mxu0
      %v1810 = vadd.f32 %v1771, %v1809
      %1811 = vmatmul.bf16.gmra.mxu0 %v1581
      %v1812 = vpop.f32.mrf.mxu0
      %v1813 = vadd.f32 %v1774, %v1812
      %v1814 = vpop.f32.mrf.mxu0
      %v1815 = vadd.f32 %v1776, %v1814
      %1816 = vmatmul.bf16.gmra.mxu0 %v1584
      %v1817 = vpop.f32.mrf.mxu0
      %v1818 = vadd.f32 %v1779, %v1817
      %v1819 = vpop.f32.mrf.mxu0
      %v1820 = vadd.f32 %v1781, %v1819
      %1821 = vmatmul.bf16.gmra.mxu0 %v1587
      %v1822 = vpop.f32.mrf.mxu0
      %v1823 = vadd.f32 %v1784, %v1822
      %v1824 = vpop.f32.mrf.mxu0
      %v1825 = vadd.f32 %v1786, %v1824
      %1826 = vmatmul.bf16.gmra.mxu0 %v1590
      %v1827 = vpop.f32.mrf.mxu0
      %v1828 = vadd.f32 %v1789, %v1827
      %v1829 = vpop.f32.mrf.mxu0
      %v1830 = vadd.f32 %v1791, %v1829
      %1831 = vdwg.mxu0
      %1832 = vmatpush.bf16.msra.mxu0 %v1729
      %1833 = vmatpush.bf16.msra.mxu0 %v1728
      %1834 = vmatpush.bf16.msra.mxu0 %v1727
      %1835 = vmatpush.bf16.msra.mxu0 %v1726
      %1836 = vmatpush.bf16.msra.mxu0 %v1725
      %1837 = vmatpush.bf16.msra.mxu0 %v1724
      %1838 = vmatpush.bf16.msra.mxu0 %v1723
      %1839 = vmatpush.bf16.msra.mxu0 %v1722
      %1840 = vmatmul.bf16.gmra.mxu0 %v1576
      %v1841 = vpop.f32.mrf.mxu0
      %v1842 = vadd.f32 %v1803, %v1841
      %v1843 = vpop.f32.mrf.mxu0
      %v1844 = vadd.f32 %v1805, %v1843
      %1845 = vmatmul.bf16.gmra.mxu0 %v1579
      %v1846 = vpop.f32.mrf.mxu0
      %v1847 = vadd.f32 %v1808, %v1846
      %v1848 = vpop.f32.mrf.mxu0
      %v1849 = vadd.f32 %v1810, %v1848
      %1850 = vmatmul.bf16.gmra.mxu0 %v1582
      %v1851 = vpop.f32.mrf.mxu0
      %v1852 = vadd.f32 %v1813, %v1851
      %v1853 = vpop.f32.mrf.mxu0
      %v1854 = vadd.f32 %v1815, %v1853
      %1855 = vmatmul.bf16.gmra.mxu0 %v1585
      %v1856 = vpop.f32.mrf.mxu0
      %v1857 = vadd.f32 %v1818, %v1856
      %v1858 = vpop.f32.mrf.mxu0
      %v1859 = vadd.f32 %v1820, %v1858
      %1860 = vmatmul.bf16.gmra.mxu0 %v1588
      %v1861 = vpop.f32.mrf.mxu0
      %v1862 = vadd.f32 %v1823, %v1861
      %v1863 = vpop.f32.mrf.mxu0
      %v1864 = vadd.f32 %v1825, %v1863
      %1865 = vmatmul.bf16.gmra.mxu0 %v1591
      %v1866 = vpop.f32.mrf.mxu0
      %v1867 = vadd.f32 %v1828, %v1866
      %v1868 = vpop.f32.mrf.mxu0
      %v1869 = vadd.f32 %v1830, %v1868
      %1870 = vdwg.mxu0
      %v1871 = vadd.f32 %v1412, %v1842
      %v1872 = vadd.f32 %v1414, %v1844
      %v1873 = vadd.f32 %v1417, %v1847
      %v1874 = vadd.f32 %v1419, %v1849
      %v1875 = vadd.f32 %v1422, %v1852
      %v1876 = vadd.f32 %v1424, %v1854
      %v1877 = vadd.f32 %v1427, %v1857
      %v1878 = vadd.f32 %v1429, %v1859
      %v1879 = vadd.f32 %v1432, %v1862
      %v1880 = vadd.f32 %v1434, %v1864
      %v1881 = vadd.f32 %v1437, %v1867
      %v1882 = vadd.f32 %v1439, %v1869
      %v1883 = vpack.c.bf16 %v1871, %v1871
      %v1884 = vpack.c.bf16 %v1872, %v1872
      %v1885 = vpack.c.bf16 %v1873, %v1873
      %v1886 = vpack.c.bf16 %v1874, %v1874
      %v1887 = vpack.c.bf16 %v1875, %v1875
      %v1888 = vpack.c.bf16 %v1876, %v1876
      %v1889 = vpack.c.bf16 %v1877, %v1877
      %v1890 = vpack.c.bf16 %v1878, %v1878
      %v1891 = vpack.c.bf16 %v1879, %v1879
      %v1892 = vpack.c.bf16 %v1880, %v1880
      %v1893 = vpack.c.bf16 %v1881, %v1881
      %v1894 = vpack.c.bf16 %v1882, %v1882
      %vm1895 = vcmask 257024
      %1896 = vst.msk [vmem:[%s278] sm:$0xf] %vm1895, %v1883
      %1897 = vst.msk [vmem:[%s278 + $0x4] sm:$0xf] %vm1895, %v1884
      %1898 = vst.msk [vmem:[%s278 + $0x8] sm:$0xf] %vm1895, %v1885
      %1899 = vst.msk [vmem:[%s278 + $0xc] sm:$0xf] %vm1895, %v1886
      %1900 = vst.msk [vmem:[%s278 + $0x10] sm:$0xf] %vm1895, %v1887
      %1901 = vst.msk [vmem:[%s278 + $0x14] sm:$0xf] %vm1895, %v1888
      %1902 = vst.msk [vmem:[%s278 + $0x18] sm:$0xf] %vm1895, %v1889
      %1903 = vst.msk [vmem:[%s278 + $0x1c] sm:$0xf] %vm1895, %v1890
      %1904 = vst.msk [vmem:[%s278 + $0x20] sm:$0xf] %vm1895, %v1891
      %1905 = vst.msk [vmem:[%s278 + $0x24] sm:$0xf] %vm1895, %v1892
      %1906 = vst.msk [vmem:[%s278 + $0x28] sm:$0xf] %vm1895, %v1893
      %1907 = vst.msk [vmem:[%s278 + $0x2c] sm:$0xf] %vm1895, %v1894
      %s1908 = smul.u32 12, %s19
      %p1909 = scmp.lt.s32.totalorder %s18, 1
      %s1910 = scalar_select %p1909, %s18, 1
      %p1911 = scmp.lt.s32.totalorder %s1908, 11
      %s1912 = scalar_select %p1911, %s1908, 11
      %s1913 = smul.addr %s1910, 12
      %s1914 = sadd.s32 %s1912, %s1913
      %s1915 = smul.addr %s1914, 4
      %s1916 = scalar_lea.vmem %s3, %s1915
      // Predicated region
      $region33: #{densenet_forward.22} parent=31 // pred_check
        %p1917 = pneg %p127
      $region34: #{densenet_forward.22} parent=31 // pred_check_branch
        %1919 = sbr.rel (%p1917) target = $region36
      $region35: #{densenet_forward.22} parent=31 // pred_region
        %s1920 = smul.u32 12, %s19
      $region36: #{densenet_forward.22} parent=31 // pred_fallthru
        _
    $region32: #{densenet_forward.22} parent=5 // pred_fallthru
      _
    %p1921 = scmp.le.s32.totalorder 2, %s9
    // Predicated region
    $region37: #{densenet_forward.22} parent=5 // pred_check
      %p1922 = pneg %p1921
    $region38: #{densenet_forward.22} parent=5 // pred_check_branch
      %1924 = sbr.rel (%p1922) target = $region40
    $region39: #{densenet_forward.22} parent=5 // pred_region
      %s1925 = ssub.s32 %s9, 2
      // Predicated region
      $region41: #{densenet_forward.22} parent=39 // pred_check
        %p1926 = pneg %p133
      $region42: #{densenet_forward.22} parent=39 // pred_check_branch
        %1928 = sbr.rel (%p1926) target = $region44
      $region43: #{densenet_forward.22} parent=39 // pred_region
        %s1929 = smul.u32 12, %s21
        %p1930 = scmp.lt.s32.totalorder %s20, 1
        %s1931 = scalar_select %p1930, %s20, 1
        %p1932 = scmp.lt.s32.totalorder %s1929, 11
        %s1933 = scalar_select %p1932, %s1929, 11
        %s1934 = smul.addr %s1931, 12
        %s1935 = sadd.s32 %s1933, %s1934
        %s1936 = smul.addr %s1935, 4
        %s1937 = scalar_lea.vmem %s3, %s1936
      $region44: #{densenet_forward.22} parent=39 // pred_fallthru
        _
    $region40: #{densenet_forward.22} parent=5 // pred_fallthru
      _
  $region6: #{densenet_forward.22} parent=0 // loop_footer
    %s13 = sadd.s32 1, %s9
  $region7: #{densenet_forward.22} parent=0 // loop_footer_branch
    %8 = sbr.rel target = $region3
  $region8: #{densenet_forward.22} parent=0 // loop_exit
    _

// kernel: densenet_forward.25
$region0: #{densenet_forward.25}
  #allocation0 [shape = 'u32[]', space=smem, size = 0x4, offset = 0x4, fixed_abs, tag = 'smem constant byte address 0x4 - core index']
  #allocation1 [shape = 'u32[72,128]{1,0:T(1,128)}', space=vmem, size = 0x9000, scoped, tag = 'internal scratch']
  %s0 = inlined_call_operand.vmem [shape: bf16[2,16,128], index: 0, kind: input, shape index: {}]
  %s1 = inlined_call_operand.vmem [shape: bf16[128,128], index: 1, kind: input, shape index: {}]
  %s2 = inlined_call_operand.vmem [shape: f32[1,128], index: 2, kind: input, shape index: {}]
  %s3 = inlined_call_operand.hbm [shape: f32[2,128], index: 3, kind: output, shape index: {}]
  %s4 = sld [smem:[#allocation0]]
  $region22: #{densenet_forward.25} parent=0
    _
  %s6 = ssub.s32 1, %s4
  %s7 = scalar_select 0, %s6, %s4
  $region1: #{densenet_forward.25} parent=0
    #allocation2 [shape = 'u8[1024]{0}', space=vmem, size = 0x400, scoped, tag = 'output window, operand 0, single buffered']
    #allocation3 [shape = 's32[1]{0}', space=sflag, size = 0x4, scoped, tag = 'scoped memory for densenet_forward.25']
    %8 = vsyncpa [#allocation3], 0
    // Predicated region
    $region2: #{densenet_forward.25} parent=1 // pred_check
      _
    $region3: #{densenet_forward.25} parent=1 // pred_check_branch
      %10 = sbr.rel (0) target = $region5
    $region4: #{densenet_forward.25} parent=1 // pred_region
      _
    $region5: #{densenet_forward.25} parent=1 // pred_fallthru
      _
    // Predicated region
    $region6: #{densenet_forward.25} parent=1 // pred_check
      _
    $region7: #{densenet_forward.25} parent=1 // pred_check_branch
      %12 = sbr.rel (0) target = $region9
    $region8: #{densenet_forward.25} parent=1 // pred_region
      _
    $region9: #{densenet_forward.25} parent=1 // pred_fallthru
      _
    // Predicated region
    $region10: #{densenet_forward.25} parent=1 // pred_check
      _
    $region11: #{densenet_forward.25} parent=1 // pred_check_branch
      %14 = sbr.rel (0) target = $region13
    $region12: #{densenet_forward.25} parent=1 // pred_region
      _
    $region13: #{densenet_forward.25} parent=1 // pred_fallthru
      _
    %v15 = vld [vmem:[%s0] sm:$0xf]
    %v16 = vld [vmem:[%s0 + $0x4] sm:$0xf]
    %v17 = vld [vmem:[%s0 + $0x8] sm:$0xf]
    %v18 = vld [vmem:[%s0 + $0xc] sm:$0xf]
    %v19 = vunpack.c.l.bf16 %v15
    %v20 = vunpack.c.l.bf16 %v16
    %v21 = vunpack.c.l.bf16 %v17
    %v22 = vunpack.c.l.bf16 %v18
    %v23 = vadd.f32 %v19, %v20
    %v24 = vrot.slane %v23, 4
    %v25 = vadd.f32 %v23, %v24
    %v26 = vrot.slane %v25, 2
    %v27 = vadd.f32 %v25, %v26
    %v28 = vrot.slane %v27, 1
    %v29 = vadd.f32 %v27, %v28
    %v30 = vadd.f32 %v21, %v22
    %v31 = vrot.slane %v30, 4
    %v32 = vadd.f32 %v30, %v31
    %v33 = vrot.slane %v32, 2
    %v34 = vadd.f32 %v32, %v33
    %v35 = vrot.slane %v34, 1
    %v36 = vadd.f32 %v34, %v35
    %v37 = vrcp.pop 16.0
    %v38 = vmul.f32 16.0, %v37
    %v39 = vsub.f32 1.0, %v38
    %v40 = vmul.f32 %v37, %v39
    %v41 = vadd.f32 %v37, %v40
    %vm42 = vweird.f32 %v37
    %v43 = vsel %vm42, %v37, %v41
    %v44 = vmul.f32 %v29, %v43
    %v45 = vmul.f32 %v36, %v43
    %v46 = vpack.c.bf16 %v44, %v44
    %v47 = vpack.c.bf16 %v45, %v45
    %v48 = vld [vmem:[%s1] sm:$0xf]
    %v49 = vld [vmem:[%s1 + $0x4] sm:$0xf]
    %v50 = vld [vmem:[%s1 + $0x8] sm:$0xf]
    %v51 = vld [vmem:[%s1 + $0xc] sm:$0xf]
    %v52 = vld [vmem:[%s1 + $0x10] sm:$0xf]
    %v53 = vld [vmem:[%s1 + $0x14] sm:$0xf]
    %v54 = vld [vmem:[%s1 + $0x18] sm:$0xf]
    %v55 = vld [vmem:[%s1 + $0x1c] sm:$0xf]
    %v56 = vld [vmem:[%s1 + $0x20] sm:$0xf]
    %v57 = vld [vmem:[%s1 + $0x24] sm:$0xf]
    %v58 = vld [vmem:[%s1 + $0x28] sm:$0xf]
    %v59 = vld [vmem:[%s1 + $0x2c] sm:$0xf]
    %v60 = vld [vmem:[%s1 + $0x30] sm:$0xf]
    %v61 = vld [vmem:[%s1 + $0x34] sm:$0xf]
    %v62 = vld [vmem:[%s1 + $0x38] sm:$0xf]
    %v63 = vld [vmem:[%s1 + $0x3c] sm:$0xf]
    %v64 = vld [vmem:[%s2] sm:$0x1]
    %v66 = vperm.slane %v64, 0
    %v70 = vunpack.c.l.b16 %v46
    %v71 = vunpack.c.l.b16 %v47
    %vm72 = vcmask 1041409
    %v73 = vsel %vm72, %v71, %v70
    %v74 = vpack.c.b16 %v73, %v73
    %v92 = vunpack.c.l.b16 %v48
    %v93 = vunpack.c.l.b16 %v49
    %v94 = vunpack.c.l.b16 %v50
    %v95 = vunpack.c.l.b16 %v51
    %v96 = vunpack.c.l.b16 %v52
    %v97 = vunpack.c.l.b16 %v53
    %v98 = vunpack.c.l.b16 %v54
    %v99 = vunpack.c.l.b16 %v55
    %v100 = vunpack.c.l.b16 %v56
    %v101 = vunpack.c.l.b16 %v57
    %v102 = vunpack.c.l.b16 %v58
    %v103 = vunpack.c.l.b16 %v59
    %v104 = vunpack.c.l.b16 %v60
    %v105 = vunpack.c.l.b16 %v61
    %v106 = vunpack.c.l.b16 %v62
    %v107 = vunpack.c.l.b16 %v63
    %v108 = vpack.c.b16 %v93, %v92
    %v109 = vpack.c.b16 %v95, %v94
    %v110 = vpack.c.b16 %v97, %v96
    %v111 = vpack.c.b16 %v99, %v98
    %v112 = vpack.c.b16 %v101, %v100
    %v113 = vpack.c.b16 %v103, %v102
    %v114 = vpack.c.b16 %v105, %v104
    %v115 = vpack.c.b16 %v107, %v106
    %124 = vmatpush.bf16.msra.mxu0 %v115
    %125 = vmatpush.bf16.msra.mxu0 %v114
    %126 = vmatpush.bf16.msra.mxu0 %v113
    %127 = vmatpush.bf16.msra.mxu0 %v112
    %128 = vmatpush.bf16.msra.mxu0 %v111
    %129 = vmatpush.bf16.msra.mxu0 %v110
    %130 = vmatpush.bf16.msra.mxu0 %v109
    %131 = vmatpush.bf16.msra.mxu0 %v108
    %132 = vmatmul.bf16.gmra.mxu0 %v74
    %v133 = vpop.f32.mrf.mxu0
    %v134 = vadd.f32 %v66, %v133
    %v135 = vpop.f32.mrf.mxu0
    %136 = vdwg.mxu0
    %137 = vst [vmem:[#allocation2] sm:$0x3] %v134
    // Predicated region
    $region14: #{densenet_forward.25} parent=1 // pred_check
      _
    $region15: #{densenet_forward.25} parent=1 // pred_check_branch
      %139 = sbr.rel (0) target = $region17
    $region16: #{densenet_forward.25} parent=1 // pred_region
      %141 = vsyncadd [#allocation3], 0
      %s143 = sshll.u32 [#allocation2], 4
      %s144 = int_to_ptr.vmem [resolvable:$true] %s143
      %s145 = sshll.u32 %s3, 4
      %s146 = int_to_ptr.hbm [resolvable:$true] %s145
      %148 = dma.vmem_to_hbm [thread:$0]  %s144, 32, %s146, [#allocation3]
    $region17: #{densenet_forward.25} parent=1 // pred_fallthru
      _
    // Predicated region
    $region18: #{densenet_forward.25} parent=1 // pred_check
      _
    $region19: #{densenet_forward.25} parent=1 // pred_check_branch
      %150 = sbr.rel (0) target = $region21
    $region20: #{densenet_forward.25} parent=1 // pred_region
      %152 = dma.done [#allocation3], 32
    $region21: #{densenet_forward.25} parent=1 // pred_fallthru
      _
    %153 = vsyncpa [#allocation3], 1

</llo_original>
